<compile_context>
chip_gen: v7x
topology: tpu7x:2x2x1
jax: 0.10.0
libtpu: 0.0.40
codegen_flags: <defaults>
</compile_context>

<pallas_src>
import functools

import jax
import jax.numpy as jnp
from jax.experimental import pallas as pl
from jax.experimental.pallas import tpu as pltpu

_BN_EPS = 1e-5
_MXU_DTYPE = jnp.bfloat16          # MXU operand dtype (f32 accumulation)
_VMEM_CAP_BYTES = 64 * 1024 * 1024  # v7x per-TensorCore VMEM (tightest target)
_H_PAD = 16                         # front pad of the halo'd H axis -> aligned stores


# ------------------------------ Pallas kernel -------------------------------

def _block3d_kernel(x_ref, w0_ref, b0_ref, w1_ref, b1_ref, *rest, has_residual):
    """Fully fused Block3d forward for one batch element.

    x_ref  : (1, D, H, W*Cin)           f32  input block (cast to bf16 in-kernel)
    w0_ref : (9, W*Cin, N0)             bf16 banded conv0 weights (BN0 scale folded);
                                             N0 = W*Cout, or 2*W*Cout with the
                                             residual conv concatenated on the right
    b0_ref : (1, W*Cout)                f32  BN0 bias (beta - mean*scale), tiled over W
    w1_ref : (9, W*Cout, W*Cout)        bf16 banded conv1 weights (BN1 scale folded)
    b1_ref : (1, W*Cout)                f32  BN1 bias
    rb_ref : (1, W*Cout)                f32  residual conv bias          [if residual]
    o_ref  : (1, D, H, W*Cout)          f32  output block
    xpad   : (D+2, _H_PAD+H+1, W*Cin)   bf16 scratch, zero-padded input
    hpad   : (D+2, _H_PAD+H+1, W*Cout)  bf16 scratch, zero-padded intermediate
    res    : (D*H, W*Cout)              f32  scratch, residual slab      [if residual]
    """
    if has_residual:
        rb_ref, o_ref, xpad_ref, hpad_ref, res_ref = rest
    else:
        o_ref, xpad_ref, hpad_ref = rest
        rb_ref = res_ref = None

    _, d, h, wc_in = x_ref.shape
    wc_out = o_ref.shape[-1]
    rows = d * h

    # --- zero-padded bf16 copy of the input (D/H halo; W halo lives in the weights).
    # Interior store starts at (outer 1, sublane _H_PAD) -> tile-aligned, unmasked vst.
    xpad_ref[...] = jnp.zeros_like(xpad_ref)
    xpad_ref[1:d + 1, _H_PAD:_H_PAD + h, :] = x_ref[0].astype(xpad_ref.dtype)

    # --- conv0 (+ fused residual conv): 9 banded matmuls, value (register) accumulation
    acc0 = None
    for tap in range(9):
        kd, kh = divmod(tap, 3)
        xs = xpad_ref[kd:kd + d, _H_PAD - 1 + kh:_H_PAD - 1 + kh + h, :]
        contrib = jnp.dot(xs.reshape(rows, wc_in), w0_ref[tap],
                          preferred_element_type=jnp.float32)
        acc0 = contrib if acc0 is None else acc0 + contrib

    h0 = jnp.maximum(acc0[:, :wc_out] + b0_ref[...], 0.0)       # BN0 bias + ReLU
    hpad_ref[...] = jnp.zeros_like(hpad_ref)
    hpad_ref[1:d + 1, _H_PAD:_H_PAD + h, :] = (
        h0.reshape(d, h, wc_out).astype(hpad_ref.dtype))
    if has_residual:
        res_ref[...] = acc0[:, wc_out:] + rb_ref[...]            # res_conv(x) + bias

    # --- conv1 over the VMEM-resident intermediate: 9 banded matmuls ---
    acc1 = None
    for tap in range(9):
        kd, kh = divmod(tap, 3)
        hs = hpad_ref[kd:kd + d, _H_PAD - 1 + kh:_H_PAD - 1 + kh + h, :]
        contrib = jnp.dot(hs.reshape(rows, wc_out), w1_ref[tap],
                          preferred_element_type=jnp.float32)
        acc1 = contrib if acc1 is None else acc1 + contrib

    y = jnp.maximum(acc1 + b1_ref[...], 0.0)                     # BN1 bias + ReLU
    if has_residual:
        y = y + res_ref[...]
    o_ref[...] = y.reshape(1, d, h, wc_out).astype(o_ref.dtype)


# ------------------------------ host-side helpers ---------------------------

def _build_banded_weights(w, width):
    """(3,3,3,Cin,Cout) conv weights -> (9, W*Cin, W*Cout) banded matmul weights.

    Wb[kd*3+kh, iw*Cin+ci, ow*Cout+co] = w[kd,kh,kw,ci,co] where iw = ow + kw - 1,
    zero when iw is out of [0, W) -- i.e. 'same' padding along W is folded into the
    weight matrix, so one matmul per (kd, kh) tap performs the full kw convolution
    for every output column and emits a lane-dense W*Cout slab.
    """
    _, _, _, cin, cout = w.shape
    iw = jnp.arange(width)[:, None]
    ow = jnp.arange(width)[None, :]
    wb = jnp.zeros((3, 3, width, cin, width, cout), w.dtype)
    for kw in range(3):
        band = (iw == ow + (kw - 1)).astype(w.dtype)              # (W, W)
        wb = wb + (band[None, None, :, None, :, None]
                   * w[:, :, kw][:, :, None, :, None, :])
    return wb.reshape(9, width * cin, width * cout)


def _ceil_to(v, m):
    return -(-v // m) * m


def _buf_bytes(shape, dtype):
    """Approximate VMEM bytes of a buffer, last two dims rounded to the (8,128) tile."""
    dims = list(shape)
    dims[-1] = _ceil_to(dims[-1], 128)
    if len(dims) >= 2:
        dims[-2] = _ceil_to(dims[-2], 8)
    n = 1
    for s in dims:
        n *= s
    return n * jnp.dtype(dtype).itemsize


def _vmem_limit_bytes(d, h, wc_in, wc_out, n0, residual):
    """Scoped-VMEM budget computed from the actual block / scratch sizes."""
    rows = d * h
    hs = _H_PAD + h + 1
    bf16, f32 = _MXU_DTYPE, jnp.float32
    blocks = 2 * (_buf_bytes((1, d, h, wc_in), f32)          # x (double-buffered)
                  + _buf_bytes((1, d, h, wc_out), f32)       # output
                  + _buf_bytes((9, wc_in, n0), bf16)         # w0 (+ fused residual)
                  + _buf_bytes((9, wc_out, wc_out), bf16)    # w1
                  + 3 * _buf_bytes((1, wc_out), f32))        # biases
    scratch = (_buf_bytes((d + 2, hs, wc_in), bf16)
               + _buf_bytes((d + 2, hs, wc_out), bf16))
    if residual:
        scratch += _buf_bytes((rows, wc_out), f32)
    # headroom for spilled f32 accumulators + compiler-internal scratch
    spill = _buf_bytes((rows, n0), f32) + _buf_bytes((rows, wc_out), f32)
    need = blocks + scratch + spill + (8 << 20)
    assert need <= _VMEM_CAP_BYTES, (
        f"Block3d volume needs ~{need >> 20} MiB VMEM; "
        "TODO(synk): add a depth-tiled / halo-DMA variant for large volumes.")
    return min(max(24 << 20, need), _VMEM_CAP_BYTES)


# ----------------------------- Block3d wrapper ------------------------------

def init_block3d_params(key, in_channels, out_channels, *, residual=False):
    ks = jax.random.split(key, 12)
    p = {}
    # conv0: in -> out, conv1: out -> out  (kernel 3, pad 1, no bias)
    p["conv0_w"] = 0.1 * jax.random.normal(
        ks[0], (3, 3, 3, in_channels, out_channels), jnp.float32)
    p["conv1_w"] = 0.1 * jax.random.normal(
        ks[1], (3, 3, 3, out_channels, out_channels), jnp.float32)
    # BatchNorm3d params + running stats (eval mode)
    for i, kg, kb, km, kv in [(0, ks[2], ks[3], ks[4], ks[5]),
                              (1, ks[6], ks[7], ks[8], ks[9])]:
        p[f"gamma{i}"] = 1.0 + 0.1 * jax.random.normal(kg, (out_channels,), jnp.float32)
        p[f"beta{i}"] = 0.05 * jax.random.normal(kb, (out_channels,), jnp.float32)
        p[f"mean{i}"] = 0.1 * jax.random.normal(km, (out_channels,), jnp.float32)
        p[f"var{i}"] = jax.random.uniform(kv, (out_channels,), jnp.float32, 0.5, 1.5)
    if residual:
        p["res_w"] = 0.1 * jax.random.normal(
            ks[10], (3, 3, 3, in_channels, out_channels), jnp.float32)
        p["res_b"] = 0.05 * jax.random.normal(ks[11], (out_channels,), jnp.float32)
    return p


def _fold_bn(p, i):
    s = p[f"gamma{i}"] / jnp.sqrt(p[f"var{i}"] + _BN_EPS)
    b = p[f"beta{i}"] - p[f"mean{i}"] * s
    return s, b


def block3d_forward(x, params, *, residual=False):
    """x: (N, D, H, W, Cin) channels-last f32. Eval-mode Block3d forward."""
    n, d, h, wdt, cin = x.shape
    cout = params["conv0_w"].shape[-1]
    wc_in, wc_out = wdt * cin, wdt * cout

    # Fold BN scales into the conv weights and build banded (kw/W-folded) matrices.
    s0, b0 = _fold_bn(params, 0)
    s1, b1 = _fold_bn(params, 1)
    w0b = _build_banded_weights(params["conv0_w"] * s0, wdt)
    if residual:
        # Residual conv fused into conv0's matmuls: output lanes [W*Cout, 2*W*Cout).
        w0b = jnp.concatenate(
            [w0b, _build_banded_weights(params["res_w"], wdt)], axis=-1)
    w0b = w0b.astype(_MXU_DTYPE)
    w1b = _build_banded_weights(params["conv1_w"] * s1, wdt).astype(_MXU_DTYPE)
    b0f = jnp.tile(b0, wdt).reshape(1, wc_out).astype(jnp.float32)
    b1f = jnp.tile(b1, wdt).reshape(1, wc_out).astype(jnp.float32)

    x_flat = x.reshape(n, d, h, wc_in)
    n0 = w0b.shape[-1]

    in_specs = [
        pl.BlockSpec((1, d, h, wc_in), lambda i: (i, 0, 0, 0)),
        pl.BlockSpec((9, wc_in, n0), lambda i: (0, 0, 0)),
        pl.BlockSpec((1, wc_out), lambda i: (0, 0)),
        pl.BlockSpec((9, wc_out, wc_out), lambda i: (0, 0, 0)),
        pl.BlockSpec((1, wc_out), lambda i: (0, 0)),
    ]
    args = [x_flat, w0b, b0f, w1b, b1f]
    scratch_shapes = [
        pltpu.VMEM((d + 2, _H_PAD + h + 1, wc_in), _MXU_DTYPE),
        pltpu.VMEM((d + 2, _H_PAD + h + 1, wc_out), _MXU_DTYPE),
    ]
    if residual:
        rbf = jnp.tile(params["res_b"], wdt).reshape(1, wc_out).astype(jnp.float32)
        in_specs.append(pl.BlockSpec((1, wc_out), lambda i: (0, 0)))
        args.append(rbf)
        scratch_shapes.append(pltpu.VMEM((d * h, wc_out), jnp.float32))

    kernel = functools.partial(_block3d_kernel, has_residual=residual)

    out = pl.pallas_call(
        kernel,
        out_shape=jax.ShapeDtypeStruct((n, d, h, wc_out), jnp.float32),
        grid=(n,),                     # one step per batch; N=2 keeps both v7x TCs busy
        in_specs=in_specs,
        out_specs=pl.BlockSpec((1, d, h, wc_out), lambda i: (i, 0, 0, 0)),
        scratch_shapes=scratch_shapes,
        compiler_params=pltpu.CompilerParams(
            dimension_semantics=("parallel",),
            vmem_limit_bytes=_vmem_limit_bytes(d, h, wc_in, wc_out, n0, residual)),
    )(*args)
    return out.reshape(n, d, h, wdt, cout)


# ------------------------- pure-JAX reference (check) -----------------------

def _conv3d_ref(x, w):
    return jax.lax.conv_general_dilated(
        x, w, window_strides=(1, 1, 1),
        padding=((1, 1), (1, 1), (1, 1)),
        dimension_numbers=("NDHWC", "DHWIO", "NDHWC"))


def block3d_reference(x, params, *, residual=False):
    s0, b0 = _fold_bn(params, 0)
    h = jnp.maximum(_conv3d_ref(x, params["conv0_w"]) * s0 + b0, 0.0)
    s1, b1 = _fold_bn(params, 1)
    h = jnp.maximum(_conv3d_ref(h, params["conv1_w"]) * s1 + b1, 0.0)
    if residual:
        h = (_conv3d_ref(x, params["res_w"]) + params["res_b"]) + h
    return h


if __name__ == "__main__":
    key = jax.random.PRNGKey(0)
    k_x, k_p, k_pr = jax.random.split(key, 3)

    N, CIN, COUT, D, H, W = 2, 4, 8, 16, 16, 16   # W*Cout = 128 -> lane-dense output

    # PyTorch-convention input (NCDHW), then to channels-last for the kernel.
    x_ncdhw = jax.random.normal(k_x, (N, CIN, D, H, W), jnp.float32)
    x = jnp.transpose(x_ncdhw, (0, 2, 3, 4, 1))   # (N, D, H, W, C)

    # Conv operands go through the MXU in bf16 (f32 accumulation), so compare
    # against the f32 reference loosely.
    ATOL = RTOL = 2e-2

    # Default Block3d config: num_convs=2, residual=False, dropout=None.
    params = init_block3d_params(k_p, CIN, COUT, residual=False)
    fwd = jax.jit(functools.partial(block3d_forward, residual=False))
    y = jax.block_until_ready(fwd(x, params))
    y_ref = block3d_reference(x, params, residual=False)
    assert y.shape == (N, D, H, W, COUT)
    max_err = float(jnp.max(jnp.abs(y - y_ref)))
    assert jnp.allclose(y, y_ref, atol=ATOL, rtol=RTOL), f"max_err={max_err}"

    # Also exercise the residual path (res_conv with bias, no norm/activation),
    # fused into conv0's matmul inside the same single kernel.
    params_r = init_block3d_params(k_pr, CIN, COUT, residual=True)
    fwd_r = jax.jit(functools.partial(block3d_forward, residual=True))
    yr = jax.block_until_ready(fwd_r(x, params_r))
    yr_ref = block3d_reference(x, params_r, residual=True)
    max_err_r = float(jnp.max(jnp.abs(yr - yr_ref)))
    assert jnp.allclose(yr, yr_ref, atol=ATOL, rtol=RTOL), f"max_err={max_err_r}"

    print("KERNEL_OK")
</pallas_src>

<mosaic_0001>
module attributes {stable_mosaic.version = 11 : i64} {
  func.func @_block3d_kernel(%arg0: i32, %arg1: memref<1x16x16x64xf32, #tpu.memory_space<vmem>>, %arg2: memref<9x64x128xbf16, #tpu.memory_space<vmem>>, %arg3: memref<1x128xf32, #tpu.memory_space<vmem>>, %arg4: memref<9x128x128xbf16, #tpu.memory_space<vmem>>, %arg5: memref<1x128xf32, #tpu.memory_space<vmem>>, %arg6: memref<1x16x16x128xf32, #tpu.memory_space<vmem>>, %arg7: memref<18x33x64xbf16, #tpu.memory_space<vmem>>, %arg8: memref<18x33x128xbf16, #tpu.memory_space<vmem>>) attributes {dimension_semantics = [#tpu.dimension_semantics<parallel>], iteration_bounds = array<i64: 2>, scalar_prefetch = 0 : i64, scratch_operands = 2 : i64, tpu.core_type = #tpu.core_type<tc>, window_params = [{transform_indices = @transform_0, window_bounds = array<i64: 1, 16, 16, 64>}, {pipeline_mode = #tpu.pipeline_mode<synchronous>, transform_indices = @transform_1, window_bounds = array<i64: 9, 64, 128>}, {pipeline_mode = #tpu.pipeline_mode<synchronous>, transform_indices = @transform_2, window_bounds = array<i64: 1, 128>}, {pipeline_mode = #tpu.pipeline_mode<synchronous>, transform_indices = @transform_3, window_bounds = array<i64: 9, 128, 128>}, {pipeline_mode = #tpu.pipeline_mode<synchronous>, transform_indices = @transform_4, window_bounds = array<i64: 1, 128>}, {transform_indices = @transform_5, window_bounds = array<i64: 1, 16, 16, 128>}]} {
    %cst = arith.constant 0.000000e+00 : bf16
    %0 = vector.broadcast %cst : bf16 to vector<18x33x64xbf16>
    %c0 = arith.constant 0 : index
    %c0_0 = arith.constant 0 : index
    %c0_1 = arith.constant 0 : index
    %1 = vector.load %arg7[%c0, %c0_0, %c0_1] : memref<18x33x64xbf16, #tpu.memory_space<vmem>>, vector<18x33x64xbf16>
    tpu.vector_store %arg7[%c0, %c0_0, %c0_1], %0 {strides = array<i32>} : memref<18x33x64xbf16, #tpu.memory_space<vmem>>, vector<18x33x64xbf16>,
    %c0_2 = arith.constant 0 : index
    %c0_3 = arith.constant 0 : index
    %c0_4 = arith.constant 0 : index
    %c0_5 = arith.constant 0 : index
    %2 = vector.load %arg1[%c0_2, %c0_3, %c0_4, %c0_5] : memref<1x16x16x64xf32, #tpu.memory_space<vmem>>, vector<1x16x16x64xf32>
    %3 = vector.shape_cast %2 : vector<1x16x16x64xf32> to vector<16x16x64xf32>
    %4 = arith.truncf %3 : vector<16x16x64xf32> to vector<16x16x64xbf16>
    %c1 = arith.constant 1 : index
    %c16 = arith.constant 16 : index
    %c0_6 = arith.constant 0 : index
    %5 = vector.load %arg7[%c1, %c16, %c0_6] : memref<18x33x64xbf16, #tpu.memory_space<vmem>>, vector<16x16x64xbf16>
    tpu.vector_store %arg7[%c1, %c16, %c0_6], %4 {strides = array<i32>} : memref<18x33x64xbf16, #tpu.memory_space<vmem>>, vector<16x16x64xbf16>,
    %c0_7 = arith.constant 0 : index
    %c15 = arith.constant 15 : index
    %c0_8 = arith.constant 0 : index
    %6 = vector.load %arg7[%c0_7, %c15, %c0_8] : memref<18x33x64xbf16, #tpu.memory_space<vmem>>, vector<16x16x64xbf16>
    %7 = vector.shape_cast %6 : vector<16x16x64xbf16> to vector<256x64xbf16>
    %c0_9 = arith.constant 0 : index
    %c0_10 = arith.constant 0 : index
    %c0_11 = arith.constant 0 : index
    %8 = vector.load %arg2[%c0_9, %c0_10, %c0_11] : memref<9x64x128xbf16, #tpu.memory_space<vmem>>, vector<1x64x128xbf16>
    %9 = vector.shape_cast %8 : vector<1x64x128xbf16> to vector<64x128xbf16>
    %cst_12 = arith.constant dense<0.000000e+00> : vector<256x128xf32>
    %10 = tpu.matmul %7, %9, %cst_12 {dimension_numbers = #tpu.dot_dimension_numbers<[1], [0], [0], [1], [0, 0, 1, 1], [], []>} : vector<256x64xbf16>, vector<64x128xbf16>, vector<256x128xf32> -> vector<256x128xf32>
    %c0_13 = arith.constant 0 : index
    %c16_14 = arith.constant 16 : index
    %c0_15 = arith.constant 0 : index
    %11 = vector.load %arg7[%c0_13, %c16_14, %c0_15] : memref<18x33x64xbf16, #tpu.memory_space<vmem>>, vector<16x16x64xbf16>
    %12 = vector.shape_cast %11 : vector<16x16x64xbf16> to vector<256x64xbf16>
    %c1_16 = arith.constant 1 : index
    %c0_17 = arith.constant 0 : index
    %c0_18 = arith.constant 0 : index
    %13 = vector.load %arg2[%c1_16, %c0_17, %c0_18] : memref<9x64x128xbf16, #tpu.memory_space<vmem>>, vector<1x64x128xbf16>
    %14 = vector.shape_cast %13 : vector<1x64x128xbf16> to vector<64x128xbf16>
    %cst_19 = arith.constant dense<0.000000e+00> : vector<256x128xf32>
    %15 = tpu.matmul %12, %14, %cst_19 {dimension_numbers = #tpu.dot_dimension_numbers<[1], [0], [0], [1], [0, 0, 1, 1], [], []>} : vector<256x64xbf16>, vector<64x128xbf16>, vector<256x128xf32> -> vector<256x128xf32>
    %16 = arith.addf %10, %15 : vector<256x128xf32>
    %c0_20 = arith.constant 0 : index
    %c17 = arith.constant 17 : index
    %c0_21 = arith.constant 0 : index
    %17 = vector.load %arg7[%c0_20, %c17, %c0_21] : memref<18x33x64xbf16, #tpu.memory_space<vmem>>, vector<16x16x64xbf16>
    %18 = vector.shape_cast %17 : vector<16x16x64xbf16> to vector<256x64xbf16>
    %c2 = arith.constant 2 : index
    %c0_22 = arith.constant 0 : index
    %c0_23 = arith.constant 0 : index
    %19 = vector.load %arg2[%c2, %c0_22, %c0_23] : memref<9x64x128xbf16, #tpu.memory_space<vmem>>, vector<1x64x128xbf16>
    %20 = vector.shape_cast %19 : vector<1x64x128xbf16> to vector<64x128xbf16>
    %cst_24 = arith.constant dense<0.000000e+00> : vector<256x128xf32>
    %21 = tpu.matmul %18, %20, %cst_24 {dimension_numbers = #tpu.dot_dimension_numbers<[1], [0], [0], [1], [0, 0, 1, 1], [], []>} : vector<256x64xbf16>, vector<64x128xbf16>, vector<256x128xf32> -> vector<256x128xf32>
    %22 = arith.addf %16, %21 : vector<256x128xf32>
    %c1_25 = arith.constant 1 : index
    %c15_26 = arith.constant 15 : index
    %c0_27 = arith.constant 0 : index
    %23 = vector.load %arg7[%c1_25, %c15_26, %c0_27] : memref<18x33x64xbf16, #tpu.memory_space<vmem>>, vector<16x16x64xbf16>
    %24 = vector.shape_cast %23 : vector<16x16x64xbf16> to vector<256x64xbf16>
    %c3 = arith.constant 3 : index
    %c0_28 = arith.constant 0 : index
    %c0_29 = arith.constant 0 : index
    %25 = vector.load %arg2[%c3, %c0_28, %c0_29] : memref<9x64x128xbf16, #tpu.memory_space<vmem>>, vector<1x64x128xbf16>
    %26 = vector.shape_cast %25 : vector<1x64x128xbf16> to vector<64x128xbf16>
    %cst_30 = arith.constant dense<0.000000e+00> : vector<256x128xf32>
    %27 = tpu.matmul %24, %26, %cst_30 {dimension_numbers = #tpu.dot_dimension_numbers<[1], [0], [0], [1], [0, 0, 1, 1], [], []>} : vector<256x64xbf16>, vector<64x128xbf16>, vector<256x128xf32> -> vector<256x128xf32>
    %28 = arith.addf %22, %27 : vector<256x128xf32>
    %c1_31 = arith.constant 1 : index
    %c16_32 = arith.constant 16 : index
    %c0_33 = arith.constant 0 : index
    %29 = vector.load %arg7[%c1_31, %c16_32, %c0_33] : memref<18x33x64xbf16, #tpu.memory_space<vmem>>, vector<16x16x64xbf16>
    %30 = vector.shape_cast %29 : vector<16x16x64xbf16> to vector<256x64xbf16>
    %c4 = arith.constant 4 : index
    %c0_34 = arith.constant 0 : index
    %c0_35 = arith.constant 0 : index
    %31 = vector.load %arg2[%c4, %c0_34, %c0_35] : memref<9x64x128xbf16, #tpu.memory_space<vmem>>, vector<1x64x128xbf16>
    %32 = vector.shape_cast %31 : vector<1x64x128xbf16> to vector<64x128xbf16>
    %cst_36 = arith.constant dense<0.000000e+00> : vector<256x128xf32>
    %33 = tpu.matmul %30, %32, %cst_36 {dimension_numbers = #tpu.dot_dimension_numbers<[1], [0], [0], [1], [0, 0, 1, 1], [], []>} : vector<256x64xbf16>, vector<64x128xbf16>, vector<256x128xf32> -> vector<256x128xf32>
    %34 = arith.addf %28, %33 : vector<256x128xf32>
    %c1_37 = arith.constant 1 : index
    %c17_38 = arith.constant 17 : index
    %c0_39 = arith.constant 0 : index
    %35 = vector.load %arg7[%c1_37, %c17_38, %c0_39] : memref<18x33x64xbf16, #tpu.memory_space<vmem>>, vector<16x16x64xbf16>
    %36 = vector.shape_cast %35 : vector<16x16x64xbf16> to vector<256x64xbf16>
    %c5 = arith.constant 5 : index
    %c0_40 = arith.constant 0 : index
    %c0_41 = arith.constant 0 : index
    %37 = vector.load %arg2[%c5, %c0_40, %c0_41] : memref<9x64x128xbf16, #tpu.memory_space<vmem>>, vector<1x64x128xbf16>
    %38 = vector.shape_cast %37 : vector<1x64x128xbf16> to vector<64x128xbf16>
    %cst_42 = arith.constant dense<0.000000e+00> : vector<256x128xf32>
    %39 = tpu.matmul %36, %38, %cst_42 {dimension_numbers = #tpu.dot_dimension_numbers<[1], [0], [0], [1], [0, 0, 1, 1], [], []>} : vector<256x64xbf16>, vector<64x128xbf16>, vector<256x128xf32> -> vector<256x128xf32>
    %40 = arith.addf %34, %39 : vector<256x128xf32>
    %c2_43 = arith.constant 2 : index
    %c15_44 = arith.constant 15 : index
    %c0_45 = arith.constant 0 : index
    %41 = vector.load %arg7[%c2_43, %c15_44, %c0_45] : memref<18x33x64xbf16, #tpu.memory_space<vmem>>, vector<16x16x64xbf16>
    %42 = vector.shape_cast %41 : vector<16x16x64xbf16> to vector<256x64xbf16>
    %c6 = arith.constant 6 : index
    %c0_46 = arith.constant 0 : index
    %c0_47 = arith.constant 0 : index
    %43 = vector.load %arg2[%c6, %c0_46, %c0_47] : memref<9x64x128xbf16, #tpu.memory_space<vmem>>, vector<1x64x128xbf16>
    %44 = vector.shape_cast %43 : vector<1x64x128xbf16> to vector<64x128xbf16>
    %cst_48 = arith.constant dense<0.000000e+00> : vector<256x128xf32>
    %45 = tpu.matmul %42, %44, %cst_48 {dimension_numbers = #tpu.dot_dimension_numbers<[1], [0], [0], [1], [0, 0, 1, 1], [], []>} : vector<256x64xbf16>, vector<64x128xbf16>, vector<256x128xf32> -> vector<256x128xf32>
    %46 = arith.addf %40, %45 : vector<256x128xf32>
    %c2_49 = arith.constant 2 : index
    %c16_50 = arith.constant 16 : index
    %c0_51 = arith.constant 0 : index
    %47 = vector.load %arg7[%c2_49, %c16_50, %c0_51] : memref<18x33x64xbf16, #tpu.memory_space<vmem>>, vector<16x16x64xbf16>
    %48 = vector.shape_cast %47 : vector<16x16x64xbf16> to vector<256x64xbf16>
    %c7 = arith.constant 7 : index
    %c0_52 = arith.constant 0 : index
    %c0_53 = arith.constant 0 : index
    %49 = vector.load %arg2[%c7, %c0_52, %c0_53] : memref<9x64x128xbf16, #tpu.memory_space<vmem>>, vector<1x64x128xbf16>
    %50 = vector.shape_cast %49 : vector<1x64x128xbf16> to vector<64x128xbf16>
    %cst_54 = arith.constant dense<0.000000e+00> : vector<256x128xf32>
    %51 = tpu.matmul %48, %50, %cst_54 {dimension_numbers = #tpu.dot_dimension_numbers<[1], [0], [0], [1], [0, 0, 1, 1], [], []>} : vector<256x64xbf16>, vector<64x128xbf16>, vector<256x128xf32> -> vector<256x128xf32>
    %52 = arith.addf %46, %51 : vector<256x128xf32>
    %c2_55 = arith.constant 2 : index
    %c17_56 = arith.constant 17 : index
    %c0_57 = arith.constant 0 : index
    %53 = vector.load %arg7[%c2_55, %c17_56, %c0_57] : memref<18x33x64xbf16, #tpu.memory_space<vmem>>, vector<16x16x64xbf16>
    %54 = vector.shape_cast %53 : vector<16x16x64xbf16> to vector<256x64xbf16>
    %c8 = arith.constant 8 : index
    %c0_58 = arith.constant 0 : index
    %c0_59 = arith.constant 0 : index
    %55 = vector.load %arg2[%c8, %c0_58, %c0_59] : memref<9x64x128xbf16, #tpu.memory_space<vmem>>, vector<1x64x128xbf16>
    %56 = vector.shape_cast %55 : vector<1x64x128xbf16> to vector<64x128xbf16>
    %cst_60 = arith.constant dense<0.000000e+00> : vector<256x128xf32>
    %57 = tpu.matmul %54, %56, %cst_60 {dimension_numbers = #tpu.dot_dimension_numbers<[1], [0], [0], [1], [0, 0, 1, 1], [], []>} : vector<256x64xbf16>, vector<64x128xbf16>, vector<256x128xf32> -> vector<256x128xf32>
    %58 = arith.addf %52, %57 : vector<256x128xf32>
    %c0_61 = arith.constant 0 : index
    %c0_62 = arith.constant 0 : index
    %59 = vector.load %arg3[%c0_61, %c0_62] : memref<1x128xf32, #tpu.memory_space<vmem>>, vector<1x128xf32>
    %60 = vector.broadcast %59 : vector<1x128xf32> to vector<256x128xf32>
    %61 = arith.addf %58, %60 : vector<256x128xf32>
    %cst_63 = arith.constant 0.000000e+00 : f32
    %62 = vector.broadcast %cst_63 : f32 to vector<256x128xf32>
    %63 = arith.maximumf %61, %62 : vector<256x128xf32>
    %cst_64 = arith.constant 0.000000e+00 : bf16
    %64 = vector.broadcast %cst_64 : bf16 to vector<18x33x128xbf16>
    %c0_65 = arith.constant 0 : index
    %c0_66 = arith.constant 0 : index
    %c0_67 = arith.constant 0 : index
    %65 = vector.load %arg8[%c0_65, %c0_66, %c0_67] : memref<18x33x128xbf16, #tpu.memory_space<vmem>>, vector<18x33x128xbf16>
    tpu.vector_store %arg8[%c0_65, %c0_66, %c0_67], %64 {strides = array<i32>} : memref<18x33x128xbf16, #tpu.memory_space<vmem>>, vector<18x33x128xbf16>,
    %66 = vector.shape_cast %63 : vector<256x128xf32> to vector<16x16x128xf32>
    %67 = arith.truncf %66 : vector<16x16x128xf32> to vector<16x16x128xbf16>
    %c1_68 = arith.constant 1 : index
    %c16_69 = arith.constant 16 : index
    %c0_70 = arith.constant 0 : index
    %68 = vector.load %arg8[%c1_68, %c16_69, %c0_70] : memref<18x33x128xbf16, #tpu.memory_space<vmem>>, vector<16x16x128xbf16>
    tpu.vector_store %arg8[%c1_68, %c16_69, %c0_70], %67 {strides = array<i32>} : memref<18x33x128xbf16, #tpu.memory_space<vmem>>, vector<16x16x128xbf16>,
    %c0_71 = arith.constant 0 : index
    %c15_72 = arith.constant 15 : index
    %c0_73 = arith.constant 0 : index
    %69 = vector.load %arg8[%c0_71, %c15_72, %c0_73] : memref<18x33x128xbf16, #tpu.memory_space<vmem>>, vector<16x16x128xbf16>
    %70 = vector.shape_cast %69 : vector<16x16x128xbf16> to vector<256x128xbf16>
    %c0_74 = arith.constant 0 : index
    %c0_75 = arith.constant 0 : index
    %c0_76 = arith.constant 0 : index
    %71 = vector.load %arg4[%c0_74, %c0_75, %c0_76] : memref<9x128x128xbf16, #tpu.memory_space<vmem>>, vector<1x128x128xbf16>
    %72 = vector.shape_cast %71 : vector<1x128x128xbf16> to vector<128x128xbf16>
    %cst_77 = arith.constant dense<0.000000e+00> : vector<256x128xf32>
    %73 = tpu.matmul %70, %72, %cst_77 {dimension_numbers = #tpu.dot_dimension_numbers<[1], [0], [0], [1], [0, 0, 1, 1], [], []>} : vector<256x128xbf16>, vector<128x128xbf16>, vector<256x128xf32> -> vector<256x128xf32>
    %c0_78 = arith.constant 0 : index
    %c16_79 = arith.constant 16 : index
    %c0_80 = arith.constant 0 : index
    %74 = vector.load %arg8[%c0_78, %c16_79, %c0_80] : memref<18x33x128xbf16, #tpu.memory_space<vmem>>, vector<16x16x128xbf16>
    %75 = vector.shape_cast %74 : vector<16x16x128xbf16> to vector<256x128xbf16>
    %c1_81 = arith.constant 1 : index
    %c0_82 = arith.constant 0 : index
    %c0_83 = arith.constant 0 : index
    %76 = vector.load %arg4[%c1_81, %c0_82, %c0_83] : memref<9x128x128xbf16, #tpu.memory_space<vmem>>, vector<1x128x128xbf16>
    %77 = vector.shape_cast %76 : vector<1x128x128xbf16> to vector<128x128xbf16>
    %cst_84 = arith.constant dense<0.000000e+00> : vector<256x128xf32>
    %78 = tpu.matmul %75, %77, %cst_84 {dimension_numbers = #tpu.dot_dimension_numbers<[1], [0], [0], [1], [0, 0, 1, 1], [], []>} : vector<256x128xbf16>, vector<128x128xbf16>, vector<256x128xf32> -> vector<256x128xf32>
    %79 = arith.addf %73, %78 : vector<256x128xf32>
    %c0_85 = arith.constant 0 : index
    %c17_86 = arith.constant 17 : index
    %c0_87 = arith.constant 0 : index
    %80 = vector.load %arg8[%c0_85, %c17_86, %c0_87] : memref<18x33x128xbf16, #tpu.memory_space<vmem>>, vector<16x16x128xbf16>
    %81 = vector.shape_cast %80 : vector<16x16x128xbf16> to vector<256x128xbf16>
    %c2_88 = arith.constant 2 : index
    %c0_89 = arith.constant 0 : index
    %c0_90 = arith.constant 0 : index
    %82 = vector.load %arg4[%c2_88, %c0_89, %c0_90] : memref<9x128x128xbf16, #tpu.memory_space<vmem>>, vector<1x128x128xbf16>
    %83 = vector.shape_cast %82 : vector<1x128x128xbf16> to vector<128x128xbf16>
    %cst_91 = arith.constant dense<0.000000e+00> : vector<256x128xf32>
    %84 = tpu.matmul %81, %83, %cst_91 {dimension_numbers = #tpu.dot_dimension_numbers<[1], [0], [0], [1], [0, 0, 1, 1], [], []>} : vector<256x128xbf16>, vector<128x128xbf16>, vector<256x128xf32> -> vector<256x128xf32>
    %85 = arith.addf %79, %84 : vector<256x128xf32>
    %c1_92 = arith.constant 1 : index
    %c15_93 = arith.constant 15 : index
    %c0_94 = arith.constant 0 : index
    %86 = vector.load %arg8[%c1_92, %c15_93, %c0_94] : memref<18x33x128xbf16, #tpu.memory_space<vmem>>, vector<16x16x128xbf16>
    %87 = vector.shape_cast %86 : vector<16x16x128xbf16> to vector<256x128xbf16>
    %c3_95 = arith.constant 3 : index
    %c0_96 = arith.constant 0 : index
    %c0_97 = arith.constant 0 : index
    %88 = vector.load %arg4[%c3_95, %c0_96, %c0_97] : memref<9x128x128xbf16, #tpu.memory_space<vmem>>, vector<1x128x128xbf16>
    %89 = vector.shape_cast %88 : vector<1x128x128xbf16> to vector<128x128xbf16>
    %cst_98 = arith.constant dense<0.000000e+00> : vector<256x128xf32>
    %90 = tpu.matmul %87, %89, %cst_98 {dimension_numbers = #tpu.dot_dimension_numbers<[1], [0], [0], [1], [0, 0, 1, 1], [], []>} : vector<256x128xbf16>, vector<128x128xbf16>, vector<256x128xf32> -> vector<256x128xf32>
    %91 = arith.addf %85, %90 : vector<256x128xf32>
    %c1_99 = arith.constant 1 : index
    %c16_100 = arith.constant 16 : index
    %c0_101 = arith.constant 0 : index
    %92 = vector.load %arg8[%c1_99, %c16_100, %c0_101] : memref<18x33x128xbf16, #tpu.memory_space<vmem>>, vector<16x16x128xbf16>
    %93 = vector.shape_cast %92 : vector<16x16x128xbf16> to vector<256x128xbf16>
    %c4_102 = arith.constant 4 : index
    %c0_103 = arith.constant 0 : index
    %c0_104 = arith.constant 0 : index
    %94 = vector.load %arg4[%c4_102, %c0_103, %c0_104] : memref<9x128x128xbf16, #tpu.memory_space<vmem>>, vector<1x128x128xbf16>
    %95 = vector.shape_cast %94 : vector<1x128x128xbf16> to vector<128x128xbf16>
    %cst_105 = arith.constant dense<0.000000e+00> : vector<256x128xf32>
    %96 = tpu.matmul %93, %95, %cst_105 {dimension_numbers = #tpu.dot_dimension_numbers<[1], [0], [0], [1], [0, 0, 1, 1], [], []>} : vector<256x128xbf16>, vector<128x128xbf16>, vector<256x128xf32> -> vector<256x128xf32>
    %97 = arith.addf %91, %96 : vector<256x128xf32>
    %c1_106 = arith.constant 1 : index
    %c17_107 = arith.constant 17 : index
    %c0_108 = arith.constant 0 : index
    %98 = vector.load %arg8[%c1_106, %c17_107, %c0_108] : memref<18x33x128xbf16, #tpu.memory_space<vmem>>, vector<16x16x128xbf16>
    %99 = vector.shape_cast %98 : vector<16x16x128xbf16> to vector<256x128xbf16>
    %c5_109 = arith.constant 5 : index
    %c0_110 = arith.constant 0 : index
    %c0_111 = arith.constant 0 : index
    %100 = vector.load %arg4[%c5_109, %c0_110, %c0_111] : memref<9x128x128xbf16, #tpu.memory_space<vmem>>, vector<1x128x128xbf16>
    %101 = vector.shape_cast %100 : vector<1x128x128xbf16> to vector<128x128xbf16>
    %cst_112 = arith.constant dense<0.000000e+00> : vector<256x128xf32>
    %102 = tpu.matmul %99, %101, %cst_112 {dimension_numbers = #tpu.dot_dimension_numbers<[1], [0], [0], [1], [0, 0, 1, 1], [], []>} : vector<256x128xbf16>, vector<128x128xbf16>, vector<256x128xf32> -> vector<256x128xf32>
    %103 = arith.addf %97, %102 : vector<256x128xf32>
    %c2_113 = arith.constant 2 : index
    %c15_114 = arith.constant 15 : index
    %c0_115 = arith.constant 0 : index
    %104 = vector.load %arg8[%c2_113, %c15_114, %c0_115] : memref<18x33x128xbf16, #tpu.memory_space<vmem>>, vector<16x16x128xbf16>
    %105 = vector.shape_cast %104 : vector<16x16x128xbf16> to vector<256x128xbf16>
    %c6_116 = arith.constant 6 : index
    %c0_117 = arith.constant 0 : index
    %c0_118 = arith.constant 0 : index
    %106 = vector.load %arg4[%c6_116, %c0_117, %c0_118] : memref<9x128x128xbf16, #tpu.memory_space<vmem>>, vector<1x128x128xbf16>
    %107 = vector.shape_cast %106 : vector<1x128x128xbf16> to vector<128x128xbf16>
    %cst_119 = arith.constant dense<0.000000e+00> : vector<256x128xf32>
    %108 = tpu.matmul %105, %107, %cst_119 {dimension_numbers = #tpu.dot_dimension_numbers<[1], [0], [0], [1], [0, 0, 1, 1], [], []>} : vector<256x128xbf16>, vector<128x128xbf16>, vector<256x128xf32> -> vector<256x128xf32>
    %109 = arith.addf %103, %108 : vector<256x128xf32>
    %c2_120 = arith.constant 2 : index
    %c16_121 = arith.constant 16 : index
    %c0_122 = arith.constant 0 : index
    %110 = vector.load %arg8[%c2_120, %c16_121, %c0_122] : memref<18x33x128xbf16, #tpu.memory_space<vmem>>, vector<16x16x128xbf16>
    %111 = vector.shape_cast %110 : vector<16x16x128xbf16> to vector<256x128xbf16>
    %c7_123 = arith.constant 7 : index
    %c0_124 = arith.constant 0 : index
    %c0_125 = arith.constant 0 : index
    %112 = vector.load %arg4[%c7_123, %c0_124, %c0_125] : memref<9x128x128xbf16, #tpu.memory_space<vmem>>, vector<1x128x128xbf16>
    %113 = vector.shape_cast %112 : vector<1x128x128xbf16> to vector<128x128xbf16>
    %cst_126 = arith.constant dense<0.000000e+00> : vector<256x128xf32>
    %114 = tpu.matmul %111, %113, %cst_126 {dimension_numbers = #tpu.dot_dimension_numbers<[1], [0], [0], [1], [0, 0, 1, 1], [], []>} : vector<256x128xbf16>, vector<128x128xbf16>, vector<256x128xf32> -> vector<256x128xf32>
    %115 = arith.addf %109, %114 : vector<256x128xf32>
    %c2_127 = arith.constant 2 : index
    %c17_128 = arith.constant 17 : index
    %c0_129 = arith.constant 0 : index
    %116 = vector.load %arg8[%c2_127, %c17_128, %c0_129] : memref<18x33x128xbf16, #tpu.memory_space<vmem>>, vector<16x16x128xbf16>
    %117 = vector.shape_cast %116 : vector<16x16x128xbf16> to vector<256x128xbf16>
    %c8_130 = arith.constant 8 : index
    %c0_131 = arith.constant 0 : index
    %c0_132 = arith.constant 0 : index
    %118 = vector.load %arg4[%c8_130, %c0_131, %c0_132] : memref<9x128x128xbf16, #tpu.memory_space<vmem>>, vector<1x128x128xbf16>
    %119 = vector.shape_cast %118 : vector<1x128x128xbf16> to vector<128x128xbf16>
    %cst_133 = arith.constant dense<0.000000e+00> : vector<256x128xf32>
    %120 = tpu.matmul %117, %119, %cst_133 {dimension_numbers = #tpu.dot_dimension_numbers<[1], [0], [0], [1], [0, 0, 1, 1], [], []>} : vector<256x128xbf16>, vector<128x128xbf16>, vector<256x128xf32> -> vector<256x128xf32>
    %121 = arith.addf %115, %120 : vector<256x128xf32>
    %c0_134 = arith.constant 0 : index
    %c0_135 = arith.constant 0 : index
    %122 = vector.load %arg5[%c0_134, %c0_135] : memref<1x128xf32, #tpu.memory_space<vmem>>, vector<1x128xf32>
    %123 = vector.broadcast %122 : vector<1x128xf32> to vector<256x128xf32>
    %124 = arith.addf %121, %123 : vector<256x128xf32>
    %cst_136 = arith.constant 0.000000e+00 : f32
    %125 = vector.broadcast %cst_136 : f32 to vector<256x128xf32>
    %126 = arith.maximumf %124, %125 : vector<256x128xf32>
    %127 = vector.shape_cast %126 : vector<256x128xf32> to vector<1x16x16x128xf32>
    %c0_137 = arith.constant 0 : index
    %c0_138 = arith.constant 0 : index
    %c0_139 = arith.constant 0 : index
    %c0_140 = arith.constant 0 : index
    %128 = vector.load %arg6[%c0_137, %c0_138, %c0_139, %c0_140] : memref<1x16x16x128xf32, #tpu.memory_space<vmem>>, vector<1x16x16x128xf32>
    tpu.vector_store %arg6[%c0_137, %c0_138, %c0_139, %c0_140], %127 {strides = array<i32>} : memref<1x16x16x128xf32, #tpu.memory_space<vmem>>, vector<1x16x16x128xf32>,
    return
  }
  func.func @transform_0(%arg0: i32) -> (i32, i32, i32, i32) {
    %c0_i32 = arith.constant 0 : i32
    %c0_i32_0 = arith.constant 0 : i32
    %c0_i32_1 = arith.constant 0 : i32
    %c0_i32_2 = arith.constant 0 : i32
    return %arg0, %c0_i32, %c0_i32_0, %c0_i32_1 : i32, i32, i32, i32
  }
  func.func @transform_1(%arg0: i32) -> (i32, i32, i32) {
    %c0_i32 = arith.constant 0 : i32
    %c0_i32_0 = arith.constant 0 : i32
    %c0_i32_1 = arith.constant 0 : i32
    %c0_i32_2 = arith.constant 0 : i32
    return %c0_i32, %c0_i32_0, %c0_i32_1 : i32, i32, i32
  }
  func.func @transform_2(%arg0: i32) -> (i32, i32) {
    %c0_i32 = arith.constant 0 : i32
    %c0_i32_0 = arith.constant 0 : i32
    %c0_i32_1 = arith.constant 0 : i32
    return %c0_i32, %c0_i32_0 : i32, i32
  }
  func.func @transform_3(%arg0: i32) -> (i32, i32, i32) {
    %c0_i32 = arith.constant 0 : i32
    %c0_i32_0 = arith.constant 0 : i32
    %c0_i32_1 = arith.constant 0 : i32
    %c0_i32_2 = arith.constant 0 : i32
    return %c0_i32, %c0_i32_0, %c0_i32_1 : i32, i32, i32
  }
  func.func @transform_4(%arg0: i32) -> (i32, i32) {
    %c0_i32 = arith.constant 0 : i32
    %c0_i32_0 = arith.constant 0 : i32
    %c0_i32_1 = arith.constant 0 : i32
    return %c0_i32, %c0_i32_0 : i32, i32
  }
  func.func @transform_5(%arg0: i32) -> (i32, i32, i32, i32) {
    %c0_i32 = arith.constant 0 : i32
    %c0_i32_0 = arith.constant 0 : i32
    %c0_i32_1 = arith.constant 0 : i32
    %c0_i32_2 = arith.constant 0 : i32
    return %arg0, %c0_i32, %c0_i32_0, %c0_i32_1 : i32, i32, i32, i32
  }
}

</mosaic_0001>

<llo_original>
// kernel: tile.13
$region0: #{tile.13}
  #allocation0 [shape = 's32[1]{0}', space=sflag, size = 0x4, scoped, tag = 'scoped memory for tile.13']
  %s0 = inlined_call_operand.vmem [shape: f32[8], index: 0, kind: input, shape index: {}]
  %s1 = inlined_call_operand.vmem [shape: f32[16,8], index: 1, kind: output, shape index: {}]
  // Predicated region
  $region2: #{tile.13} parent=0 // pred_check
    _
  $region3: #{tile.13} parent=0 // pred_check_branch
    %3 = sbr.rel (0) target = $region5
  $region4: #{tile.13} parent=0 // pred_region
    _
  $region5: #{tile.13} parent=0 // pred_fallthru
    _
  %v4 = vld [vmem:[%s0] ss:$0 sm:$0xff]
  %5 = vst [vmem:[%s1] sm:$0xff] %v4
  %s6 = scalar_lea.vmem %s1, 8
  %7 = vst [vmem:[%s6] sm:$0xff] %v4

// kernel: tile.14
$region0: #{tile.14}
  %s0 = inlined_call_operand.vmem [shape: f32[16,8], index: 0, kind: input, shape index: {}]
  %s1 = inlined_call_operand.vmem [shape: f32[1,128], index: 1, kind: output, shape index: {}]
  $region1: #{tile.14} parent=0
    #allocation0 [shape = 'u8[4096]{0}', space=vmem, size = 0x1000, scoped, tag = 'scoped mem for output reshape']
    %v2 = vld [vmem:[%s0] sm:$0x1]
    %vm3 = vcmask 64512
    %4 = vst.msk [vmem:[#allocation0] sm:$0x1] %vm3, %v2
    %s5 = scalar_lea.vmem %s0, 15
    %v6 = vld [vmem:[%s5] sm:$0x1]
    %7 = vrot.lane.b32.xlu0 %v6, 120
    %v8 = vpop.permute.xlu0 %7
    %vm9 = vcmask 1048512
    %10 = vst.msk [vmem:[#allocation0] sm:$0x1] %vm9, %v8
    %s11 = scalar_lea.vmem %s0, 14
    %v12 = vld [vmem:[%s11] sm:$0x1]
    %13 = vrot.lane.b32.xlu0 %v12, 112
    %v14 = vpop.permute.xlu0 %13
    %vm15 = vcmask 982912
    %16 = vst.msk [vmem:[#allocation0] sm:$0x1] %vm15, %v14
    %s17 = scalar_lea.vmem %s0, 13
    %v18 = vld [vmem:[%s17] sm:$0x1]
    %19 = vrot.lane.b32.xlu0 %v18, 104
    %v20 = vpop.permute.xlu0 %19
    %vm21 = vcmask 917312
    %22 = vst.msk [vmem:[#allocation0] sm:$0x1] %vm21, %v20
    %s23 = scalar_lea.vmem %s0, 12
    %v24 = vld [vmem:[%s23] sm:$0x1]
    %25 = vrot.lane.b32.xlu0 %v24, 96
    %v26 = vpop.permute.xlu0 %25
    %vm27 = vcmask 851712
    %28 = vst.msk [vmem:[#allocation0] sm:$0x1] %vm27, %v26
    %s29 = scalar_lea.vmem %s0, 11
    %v30 = vld [vmem:[%s29] sm:$0x1]
    %31 = vrot.lane.b32.xlu0 %v30, 88
    %v32 = vpop.permute.xlu0 %31
    %vm33 = vcmask 786112
    %34 = vst.msk [vmem:[#allocation0] sm:$0x1] %vm33, %v32
    %s35 = scalar_lea.vmem %s0, 10
    %v36 = vld [vmem:[%s35] sm:$0x1]
    %37 = vrot.lane.b32.xlu0 %v36, 80
    %v38 = vpop.permute.xlu0 %37
    %vm39 = vcmask 720512
    %40 = vst.msk [vmem:[#allocation0] sm:$0x1] %vm39, %v38
    %s41 = scalar_lea.vmem %s0, 9
    %v42 = vld [vmem:[%s41] sm:$0x1]
    %43 = vrot.lane.b32.xlu0 %v42, 72
    %v44 = vpop.permute.xlu0 %43
    %vm45 = vcmask 654912
    %46 = vst.msk [vmem:[#allocation0] sm:$0x1] %vm45, %v44
    %s47 = scalar_lea.vmem %s0, 8
    %v48 = vld [vmem:[%s47] sm:$0x1]
    %49 = vrot.lane.b32.xlu0 %v48, 64
    %v50 = vpop.permute.xlu0 %49
    %vm51 = vcmask 589312
    %52 = vst.msk [vmem:[#allocation0] sm:$0x1] %vm51, %v50
    %s53 = scalar_lea.vmem %s0, 7
    %v54 = vld [vmem:[%s53] sm:$0x1]
    %55 = vrot.lane.b32.xlu0 %v54, 56
    %v56 = vpop.permute.xlu0 %55
    %vm57 = vcmask 523712
    %58 = vst.msk [vmem:[#allocation0] sm:$0x1] %vm57, %v56
    %s59 = scalar_lea.vmem %s0, 6
    %v60 = vld [vmem:[%s59] sm:$0x1]
    %61 = vrot.lane.b32.xlu0 %v60, 48
    %v62 = vpop.permute.xlu0 %61
    %vm63 = vcmask 458112
    %64 = vst.msk [vmem:[#allocation0] sm:$0x1] %vm63, %v62
    %s65 = scalar_lea.vmem %s0, 5
    %v66 = vld [vmem:[%s65] sm:$0x1]
    %67 = vrot.lane.b32.xlu0 %v66, 40
    %v68 = vpop.permute.xlu0 %67
    %vm69 = vcmask 392512
    %70 = vst.msk [vmem:[#allocation0] sm:$0x1] %vm69, %v68
    %s71 = scalar_lea.vmem %s0, 4
    %v72 = vld [vmem:[%s71] sm:$0x1]
    %73 = vrot.lane.b32.xlu0 %v72, 32
    %v74 = vpop.permute.xlu0 %73
    %vm75 = vcmask 326912
    %76 = vst.msk [vmem:[#allocation0] sm:$0x1] %vm75, %v74
    %s77 = scalar_lea.vmem %s0, 3
    %v78 = vld [vmem:[%s77] sm:$0x1]
    %79 = vrot.lane.b32.xlu0 %v78, 24
    %v80 = vpop.permute.xlu0 %79
    %vm81 = vcmask 261312
    %82 = vst.msk [vmem:[#allocation0] sm:$0x1] %vm81, %v80
    %s83 = scalar_lea.vmem %s0, 2
    %v84 = vld [vmem:[%s83] sm:$0x1]
    %85 = vrot.lane.b32.xlu0 %v84, 16
    %v86 = vpop.permute.xlu0 %85
    %vm87 = vcmask 195712
    %88 = vst.msk [vmem:[#allocation0] sm:$0x1] %vm87, %v86
    %s89 = scalar_lea.vmem %s0, 1
    %v90 = vld [vmem:[%s89] sm:$0x1]
    %91 = vrot.lane.b32.xlu0 %v90, 8
    %v92 = vpop.permute.xlu0 %91
    %vm93 = vcmask 130112
    %94 = vst.msk [vmem:[#allocation0] sm:$0x1] %vm93, %v92
    %s96 = sshllo.u32 0, 1
    %v98 = vld [vmem:[#allocation0] sm:%s96]
    %s99 = sshllo.u32 0, 1
    %100 = vst [vmem:[%s1] sm:%s99] %v98

// kernel: block3d_forward.1
$region0: #{block3d_forward.1}
  #allocation0 [shape = 'u32[]', space=smem, size = 0x4, offset = 0x4, fixed_abs, tag = 'smem constant byte address 0x4 - core index']
  #allocation1 [shape = 'u32[144,128]{1,0:T(1,128)}', space=vmem, size = 0x12000, scoped, tag = 'internal scratch']
  #allocation2 [shape = 'bf16[18,33,64]{2,1,0:T(8,128)(2,1)}', space=vmem, size = 0x2d000, scoped, tag = 'scratch operand']
  #allocation3 [shape = 'bf16[18,33,128]{2,1,0:T(8,128)(2,1)}', space=vmem, size = 0x2d000, scoped, tag = 'scratch operand']
  %s0 = inlined_call_operand.vmem [shape: f32[2,16,16,64], index: 0, kind: input, shape index: {}]
  %s1 = inlined_call_operand.vmem [shape: bf16[9,64,128], index: 1, kind: input, shape index: {}]
  %s2 = inlined_call_operand.vmem [shape: f32[1,128], index: 2, kind: input, shape index: {}]
  %s3 = inlined_call_operand.vmem [shape: bf16[9,128,128], index: 3, kind: input, shape index: {}]
  %s4 = inlined_call_operand.vmem [shape: f32[1,128], index: 4, kind: input, shape index: {}]
  %s5 = inlined_call_operand.vmem [shape: f32[2,16,16,128], index: 5, kind: output, shape index: {}]
  %s6 = sld [smem:[#allocation0]]
  $region53: #{block3d_forward.1} parent=0
    _
  %s8 = ssub.s32 1, %s6
  %s9 = scalar_select 0, %s8, %s6
  loop: start=0, step=1, limit=4
  $region2: #{block3d_forward.1} parent=0 // loop_pre_header
    _
  $region3: #{block3d_forward.1} parent=0 // loop_header
    %s11 = sphi 0, %s15
    %p12 = scmp.ge.s32.totalorder %s11, 4
    %s21 = sphi 0, %s23
    %s24 = sphi 0, %s21
    %s25 = sphi 0, %s24
    %s41 = sphi 0, %s25
    %s45 = sphi 0, %s45
    %s47 = sphi 0, %s45
    %s48 = sphi 0, %s47
    %s62 = sphi 0, %s48
    %s66 = sphi 0, %s66
    %s68 = sphi 0, %s66
    %s69 = sphi 0, %s68
    %s83 = sphi 0, %s69
    %s87 = sphi 0, %s87
    %s89 = sphi 0, %s87
    %s90 = sphi 0, %s89
    %s104 = sphi 0, %s90
    %s108 = sphi 0, %s108
    %s110 = sphi 0, %s108
    %s111 = sphi 0, %s110
    %s125 = sphi 0, %s111
    %s131 = sphi 0, %s133
    %s134 = sphi 0, %s131
    %s135 = sphi 0, %s134
    %s151 = sphi 0, %s135
  $region4: #{block3d_forward.1} parent=0 // loop_header_branch
    %14 = sbr.rel (%p12) target = $region8
  $region5: #{block3d_forward.1} parent=0 // loop_body
    %s16 = ssub.s32 %s11, 1
    %s17 = ssub.s32 %s11, 2
    %s18 = sadd.s32 %s11, 1
    %s19 = ssub.s32 %s11, %s18
    %p20 = scmp.eq.s32.totalorder %s19, 0
    %s22 = sadd.s32 %s21, 1
    %s23 = scalar_select %p20, %s21, %s22
    %p26 = pneg %p20
    %p27 = scmp.eq.s32.totalorder %s11, 1
    %p28 = por %p26, %p27
    %p29 = scmp.ne.s32.totalorder %s21, %s24
    %p30 = scmp.eq.s32.totalorder %s11, 0
    %p31 = por %p29, %p30
    %p32 = scmp.ne.s32.totalorder %s21, %s24
    %p33 = scmp.eq.s32.totalorder %s16, 1
    %p34 = por %p32, %p33
    %p35 = scmp.ne.s32.totalorder %s24, %s25
    %p36 = scmp.eq.s32.totalorder %s16, 0
    %p37 = por %p35, %p36
    %p38 = scmp.ne.s32.totalorder %s24, %s25
    %p39 = scmp.eq.s32.totalorder %s17, 1
    %p40 = por %p38, %p39
    %p42 = scmp.ne.s32.totalorder %s25, %s41
    %p43 = scmp.eq.s32.totalorder %s17, 0
    %p44 = por %p42, %p43
    %s46 = sadd.s32 %s45, 1
    %p49 = scmp.eq.s32.totalorder %s11, 1
    %p50 = scmp.ne.s32.totalorder %s45, %s47
    %p51 = scmp.eq.s32.totalorder %s11, 0
    %p52 = por %p50, %p51
    %p53 = scmp.ne.s32.totalorder %s45, %s47
    %p54 = scmp.eq.s32.totalorder %s16, 1
    %p55 = por %p53, %p54
    %p56 = scmp.ne.s32.totalorder %s47, %s48
    %p57 = scmp.eq.s32.totalorder %s16, 0
    %p58 = por %p56, %p57
    %p59 = scmp.ne.s32.totalorder %s47, %s48
    %p60 = scmp.eq.s32.totalorder %s17, 1
    %p61 = por %p59, %p60
    %p63 = scmp.ne.s32.totalorder %s48, %s62
    %p64 = scmp.eq.s32.totalorder %s17, 0
    %p65 = por %p63, %p64
    %s67 = sadd.s32 %s66, 1
    %p70 = scmp.eq.s32.totalorder %s11, 1
    %p71 = scmp.ne.s32.totalorder %s66, %s68
    %p72 = scmp.eq.s32.totalorder %s11, 0
    %p73 = por %p71, %p72
    %p74 = scmp.ne.s32.totalorder %s66, %s68
    %p75 = scmp.eq.s32.totalorder %s16, 1
    %p76 = por %p74, %p75
    %p77 = scmp.ne.s32.totalorder %s68, %s69
    %p78 = scmp.eq.s32.totalorder %s16, 0
    %p79 = por %p77, %p78
    %p80 = scmp.ne.s32.totalorder %s68, %s69
    %p81 = scmp.eq.s32.totalorder %s17, 1
    %p82 = por %p80, %p81
    %p84 = scmp.ne.s32.totalorder %s69, %s83
    %p85 = scmp.eq.s32.totalorder %s17, 0
    %p86 = por %p84, %p85
    %s88 = sadd.s32 %s87, 1
    %p91 = scmp.eq.s32.totalorder %s11, 1
    %p92 = scmp.ne.s32.totalorder %s87, %s89
    %p93 = scmp.eq.s32.totalorder %s11, 0
    %p94 = por %p92, %p93
    %p95 = scmp.ne.s32.totalorder %s87, %s89
    %p96 = scmp.eq.s32.totalorder %s16, 1
    %p97 = por %p95, %p96
    %p98 = scmp.ne.s32.totalorder %s89, %s90
    %p99 = scmp.eq.s32.totalorder %s16, 0
    %p100 = por %p98, %p99
    %p101 = scmp.ne.s32.totalorder %s89, %s90
    %p102 = scmp.eq.s32.totalorder %s17, 1
    %p103 = por %p101, %p102
    %p105 = scmp.ne.s32.totalorder %s90, %s104
    %p106 = scmp.eq.s32.totalorder %s17, 0
    %p107 = por %p105, %p106
    %s109 = sadd.s32 %s108, 1
    %p112 = scmp.eq.s32.totalorder %s11, 1
    %p113 = scmp.ne.s32.totalorder %s108, %s110
    %p114 = scmp.eq.s32.totalorder %s11, 0
    %p115 = por %p113, %p114
    %p116 = scmp.ne.s32.totalorder %s108, %s110
    %p117 = scmp.eq.s32.totalorder %s16, 1
    %p118 = por %p116, %p117
    %p119 = scmp.ne.s32.totalorder %s110, %s111
    %p120 = scmp.eq.s32.totalorder %s16, 0
    %p121 = por %p119, %p120
    %p122 = scmp.ne.s32.totalorder %s110, %s111
    %p123 = scmp.eq.s32.totalorder %s17, 1
    %p124 = por %p122, %p123
    %p126 = scmp.ne.s32.totalorder %s111, %s125
    %p127 = scmp.eq.s32.totalorder %s17, 0
    %p128 = por %p126, %p127
    %s129 = ssub.s32 %s11, %s18
    %p130 = scmp.eq.s32.totalorder %s129, 0
    %s132 = sadd.s32 %s131, 1
    %s133 = scalar_select %p130, %s131, %s132
    %p136 = pneg %p130
    %p137 = scmp.eq.s32.totalorder %s11, 1
    %p138 = por %p136, %p137
    %p139 = scmp.ne.s32.totalorder %s131, %s134
    %p140 = scmp.eq.s32.totalorder %s11, 0
    %p141 = por %p139, %p140
    %p142 = scmp.ne.s32.totalorder %s131, %s134
    %p143 = scmp.eq.s32.totalorder %s16, 1
    %p144 = por %p142, %p143
    %p145 = scmp.ne.s32.totalorder %s134, %s135
    %p146 = scmp.eq.s32.totalorder %s16, 0
    %p147 = por %p145, %p146
    %p148 = scmp.ne.s32.totalorder %s134, %s135
    %p149 = scmp.eq.s32.totalorder %s17, 1
    %p150 = por %p148, %p149
    %p152 = scmp.ne.s32.totalorder %s135, %s151
    %p153 = scmp.eq.s32.totalorder %s17, 0
    %p154 = por %p152, %p153
    %p155 = scmp.le.s32.totalorder 1, %s11
    %p156 = scmp.lt.s32.totalorder %s11, 3
    %p157 = pnand %p155, %p156
    %p158 = pneg %p157
    // Predicated region
    $region9: #{block3d_forward.1} parent=5 // pred_check
      _
    $region10: #{block3d_forward.1} parent=5 // pred_check_branch
      %160 = sbr.rel (%p157) target = $region12
    $region11: #{block3d_forward.1} parent=5 // pred_region
      %s161 = ssub.s32 %s11, 1
      // Predicated region
      $region13: #{block3d_forward.1} parent=11 // pred_check
        %p162 = pneg %p58
      $region14: #{block3d_forward.1} parent=11 // pred_check_branch
        %164 = sbr.rel (%p162) target = $region16
      $region15: #{block3d_forward.1} parent=11 // pred_region
        _
      $region16: #{block3d_forward.1} parent=11 // pred_fallthru
        _
      // Predicated region
      $region17: #{block3d_forward.1} parent=11 // pred_check
        %p165 = pneg %p79
      $region18: #{block3d_forward.1} parent=11 // pred_check_branch
        %167 = sbr.rel (%p165) target = $region20
      $region19: #{block3d_forward.1} parent=11 // pred_region
        _
      $region20: #{block3d_forward.1} parent=11 // pred_fallthru
        _
      // Predicated region
      $region21: #{block3d_forward.1} parent=11 // pred_check
        %p168 = pneg %p100
      $region22: #{block3d_forward.1} parent=11 // pred_check_branch
        %170 = sbr.rel (%p168) target = $region24
      $region23: #{block3d_forward.1} parent=11 // pred_region
        _
      $region24: #{block3d_forward.1} parent=11 // pred_fallthru
        _
      // Predicated region
      $region25: #{block3d_forward.1} parent=11 // pred_check
        %p171 = pneg %p121
      $region26: #{block3d_forward.1} parent=11 // pred_check_branch
        %173 = sbr.rel (%p171) target = $region28
      $region27: #{block3d_forward.1} parent=11 // pred_region
        _
      $region28: #{block3d_forward.1} parent=11 // pred_fallthru
        _
    $region12: #{block3d_forward.1} parent=5 // pred_fallthru
      _
    %p174 = scmp.lt.s32.totalorder %s11, 2
    // Predicated region
    $region29: #{block3d_forward.1} parent=5 // pred_check
      %p175 = pneg %p174
    $region30: #{block3d_forward.1} parent=5 // pred_check_branch
      %177 = sbr.rel (%p175) target = $region32
    $region31: #{block3d_forward.1} parent=5 // pred_region
      // Predicated region
      $region33: #{block3d_forward.1} parent=31 // pred_check
        %p178 = pneg %p31
      $region34: #{block3d_forward.1} parent=31 // pred_check_branch
        %180 = sbr.rel (%p178) target = $region36
      $region35: #{block3d_forward.1} parent=31 // pred_region
        %p181 = scmp.lt.s32.totalorder %s11, 1
        %s182 = scalar_select %p181, %s11, 1
        %s183 = smul.addr %s182, 32
        %s184 = smul.addr %s183, 8
        %s185 = scalar_lea.vmem %s0, %s184
      $region36: #{block3d_forward.1} parent=31 // pred_fallthru
        _
    $region32: #{block3d_forward.1} parent=5 // pred_fallthru
      _
    %p186 = scmp.le.s32.totalorder 1, %s11
    %p187 = scmp.lt.s32.totalorder %s11, 3
    %p188 = pnand %p186, %p187
    %p189 = pneg %p188
    // Predicated region
    $region37: #{block3d_forward.1} parent=5 // pred_check
      _
    $region38: #{block3d_forward.1} parent=5 // pred_check_branch
      %191 = sbr.rel (%p188) target = $region40
    $region39: #{block3d_forward.1} parent=5 // pred_region
      %s192 = ssub.s32 %s11, 1
      %p193 = scmp.lt.s32.totalorder %s16, 1
      %s194 = scalar_select %p193, %s16, 1
      %s195 = smul.addr %s194, 32
      %s196 = smul.addr %s195, 8
      %s197 = scalar_lea.vmem %s0, %s196
      %p198 = pneg %p37
      %p199 = pneg %p34
      %p200 = pneg %p58
      %p201 = pneg %p55
      %p202 = pneg %p79
      %p203 = pneg %p76
      %p204 = pneg %p100
      %p205 = pneg %p97
      %p206 = pneg %p121
      %p207 = pneg %p118
      %p208 = pneg %p147
      %p209 = pneg %p144
      %p210 = scmp.lt.s32.totalorder %s16, 1
      %s211 = scalar_select %p210, %s16, 1
      %s212 = smul.addr %s211, 32
      %s213 = smul.addr %s212, 8
      %s214 = scalar_lea.vmem %s5, %s213
      %p215 = scmp.lt.s32.totalorder %s16, 1
      %s216 = scalar_select %p215, %s16, 1
      %s217 = smul.addr %s216, 32
      %s218 = smul.addr %s217, 8
      %s219 = scalar_lea.vmem %s0, %s218
      %p220 = scmp.lt.s32.totalorder %s16, 1
      %s221 = scalar_select %p220, %s16, 1
      %s222 = smul.addr %s221, 32
      %s223 = smul.addr %s222, 8
      %s224 = scalar_lea.vmem %s5, %s223
      %vm226 = vcmask 519168
      %227 = vst.msk [vmem:[#allocation2] sm:$0xf] %vm226, 0
      %228 = vst.msk [vmem:[#allocation2 + $0x4] sm:$0xf] %vm226, 0
      %229 = vst.msk [vmem:[#allocation2 + $0x8] sm:$0xf] %vm226, 0
      %230 = vst.msk [vmem:[#allocation2 + $0xc] sm:$0xf] %vm226, 0
      %vm231 = vcmask 516096
      %vm232 = vsmask.f32 256
      %vm233 = vmand %vm231, %vm232
      %v234 = vld [vmem:[#allocation2 + $0x10] sm:$0x1]
      %v235 = vsel %vm233, 0, %v234
      %236 = vst [vmem:[#allocation2 + $0x10] sm:$0x1] %v235
      %237 = vst.msk [vmem:[#allocation2 + $0x14] sm:$0xf] %vm226, 0
      %238 = vst.msk [vmem:[#allocation2 + $0x18] sm:$0xf] %vm226, 0
      %239 = vst.msk [vmem:[#allocation2 + $0x1c] sm:$0xf] %vm226, 0
      %240 = vst.msk [vmem:[#allocation2 + $0x20] sm:$0xf] %vm226, 0
      %v241 = vld [vmem:[#allocation2 + $0x24] sm:$0x1]
      %v242 = vsel %vm233, 0, %v241
      %243 = vst [vmem:[#allocation2 + $0x24] sm:$0x1] %v242
      %244 = vst.msk [vmem:[#allocation2 + $0x28] sm:$0xf] %vm226, 0
      %245 = vst.msk [vmem:[#allocation2 + $0x2c] sm:$0xf] %vm226, 0
      %246 = vst.msk [vmem:[#allocation2 + $0x30] sm:$0xf] %vm226, 0
      %247 = vst.msk [vmem:[#allocation2 + $0x34] sm:$0xf] %vm226, 0
      %v248 = vld [vmem:[#allocation2 + $0x38] sm:$0x1]
      %v249 = vsel %vm233, 0, %v248
      %250 = vst [vmem:[#allocation2 + $0x38] sm:$0x1] %v249
      %251 = vst.msk [vmem:[#allocation2 + $0x3c] sm:$0xf] %vm226, 0
      %252 = vst.msk [vmem:[#allocation2 + $0x40] sm:$0xf] %vm226, 0
      %253 = vst.msk [vmem:[#allocation2 + $0x44] sm:$0xf] %vm226, 0
      %254 = vst.msk [vmem:[#allocation2 + $0x48] sm:$0xf] %vm226, 0
      %v255 = vld [vmem:[#allocation2 + $0x4c] sm:$0x1]
      %v256 = vsel %vm233, 0, %v255
      %257 = vst [vmem:[#allocation2 + $0x4c] sm:$0x1] %v256
      %258 = vst.msk [vmem:[#allocation2 + $0x50] sm:$0xf] %vm226, 0
      %259 = vst.msk [vmem:[#allocation2 + $0x54] sm:$0xf] %vm226, 0
      %260 = vst.msk [vmem:[#allocation2 + $0x58] sm:$0xf] %vm226, 0
      %261 = vst.msk [vmem:[#allocation2 + $0x5c] sm:$0xf] %vm226, 0
      %v262 = vld [vmem:[#allocation2 + $0x60] sm:$0x1]
      %v263 = vsel %vm233, 0, %v262
      %264 = vst [vmem:[#allocation2 + $0x60] sm:$0x1] %v263
      %265 = vst.msk [vmem:[#allocation2 + $0x64] sm:$0xf] %vm226, 0
      %266 = vst.msk [vmem:[#allocation2 + $0x68] sm:$0xf] %vm226, 0
      %267 = vst.msk [vmem:[#allocation2 + $0x6c] sm:$0xf] %vm226, 0
      %268 = vst.msk [vmem:[#allocation2 + $0x70] sm:$0xf] %vm226, 0
      %v269 = vld [vmem:[#allocation2 + $0x74] sm:$0x1]
      %v270 = vsel %vm233, 0, %v269
      %271 = vst [vmem:[#allocation2 + $0x74] sm:$0x1] %v270
      %272 = vst.msk [vmem:[#allocation2 + $0x78] sm:$0xf] %vm226, 0
      %273 = vst.msk [vmem:[#allocation2 + $0x7c] sm:$0xf] %vm226, 0
      %274 = vst.msk [vmem:[#allocation2 + $0x80] sm:$0xf] %vm226, 0
      %275 = vst.msk [vmem:[#allocation2 + $0x84] sm:$0xf] %vm226, 0
      %v276 = vld [vmem:[#allocation2 + $0x88] sm:$0x1]
      %v277 = vsel %vm233, 0, %v276
      %278 = vst [vmem:[#allocation2 + $0x88] sm:$0x1] %v277
      %279 = vst.msk [vmem:[#allocation2 + $0x8c] sm:$0xf] %vm226, 0
      %280 = vst.msk [vmem:[#allocation2 + $0x90] sm:$0xf] %vm226, 0
      %281 = vst.msk [vmem:[#allocation2 + $0x94] sm:$0xf] %vm226, 0
      %282 = vst.msk [vmem:[#allocation2 + $0x98] sm:$0xf] %vm226, 0
      %v283 = vld [vmem:[#allocation2 + $0x9c] sm:$0x1]
      %v284 = vsel %vm233, 0, %v283
      %285 = vst [vmem:[#allocation2 + $0x9c] sm:$0x1] %v284
      %286 = vst.msk [vmem:[#allocation2 + $0xa0] sm:$0xf] %vm226, 0
      %287 = vst.msk [vmem:[#allocation2 + $0xa4] sm:$0xf] %vm226, 0
      %288 = vst.msk [vmem:[#allocation2 + $0xa8] sm:$0xf] %vm226, 0
      %289 = vst.msk [vmem:[#allocation2 + $0xac] sm:$0xf] %vm226, 0
      %v290 = vld [vmem:[#allocation2 + $0xb0] sm:$0x1]
      %v291 = vsel %vm233, 0, %v290
      %292 = vst [vmem:[#allocation2 + $0xb0] sm:$0x1] %v291
      %293 = vst.msk [vmem:[#allocation2 + $0xb4] sm:$0xf] %vm226, 0
      %294 = vst.msk [vmem:[#allocation2 + $0xb8] sm:$0xf] %vm226, 0
      %295 = vst.msk [vmem:[#allocation2 + $0xbc] sm:$0xf] %vm226, 0
      %296 = vst.msk [vmem:[#allocation2 + $0xc0] sm:$0xf] %vm226, 0
      %v297 = vld [vmem:[#allocation2 + $0xc4] sm:$0x1]
      %v298 = vsel %vm233, 0, %v297
      %299 = vst [vmem:[#allocation2 + $0xc4] sm:$0x1] %v298
      %300 = vst.msk [vmem:[#allocation2 + $0xc8] sm:$0xf] %vm226, 0
      %301 = vst.msk [vmem:[#allocation2 + $0xcc] sm:$0xf] %vm226, 0
      %302 = vst.msk [vmem:[#allocation2 + $0xd0] sm:$0xf] %vm226, 0
      %303 = vst.msk [vmem:[#allocation2 + $0xd4] sm:$0xf] %vm226, 0
      %v304 = vld [vmem:[#allocation2 + $0xd8] sm:$0x1]
      %v305 = vsel %vm233, 0, %v304
      %306 = vst [vmem:[#allocation2 + $0xd8] sm:$0x1] %v305
      %307 = vst.msk [vmem:[#allocation2 + $0xdc] sm:$0xf] %vm226, 0
      %308 = vst.msk [vmem:[#allocation2 + $0xe0] sm:$0xf] %vm226, 0
      %309 = vst.msk [vmem:[#allocation2 + $0xe4] sm:$0xf] %vm226, 0
      %310 = vst.msk [vmem:[#allocation2 + $0xe8] sm:$0xf] %vm226, 0
      %v311 = vld [vmem:[#allocation2 + $0xec] sm:$0x1]
      %v312 = vsel %vm233, 0, %v311
      %313 = vst [vmem:[#allocation2 + $0xec] sm:$0x1] %v312
      %314 = vst.msk [vmem:[#allocation2 + $0xf0] sm:$0xf] %vm226, 0
      %315 = vst.msk [vmem:[#allocation2 + $0xf4] sm:$0xf] %vm226, 0
      %316 = vst.msk [vmem:[#allocation2 + $0xf8] sm:$0xf] %vm226, 0
      %317 = vst.msk [vmem:[#allocation2 + $0xfc] sm:$0xf] %vm226, 0
      %v318 = vld [vmem:[#allocation2 + $0x100] sm:$0x1]
      %v319 = vsel %vm233, 0, %v318
      %320 = vst [vmem:[#allocation2 + $0x100] sm:$0x1] %v319
      %321 = vst.msk [vmem:[#allocation2 + $0x104] sm:$0xf] %vm226, 0
      %322 = vst.msk [vmem:[#allocation2 + $0x108] sm:$0xf] %vm226, 0
      %323 = vst.msk [vmem:[#allocation2 + $0x10c] sm:$0xf] %vm226, 0
      %324 = vst.msk [vmem:[#allocation2 + $0x110] sm:$0xf] %vm226, 0
      %v325 = vld [vmem:[#allocation2 + $0x114] sm:$0x1]
      %v326 = vsel %vm233, 0, %v325
      %327 = vst [vmem:[#allocation2 + $0x114] sm:$0x1] %v326
      %328 = vst.msk [vmem:[#allocation2 + $0x118] sm:$0xf] %vm226, 0
      %329 = vst.msk [vmem:[#allocation2 + $0x11c] sm:$0xf] %vm226, 0
      %330 = vst.msk [vmem:[#allocation2 + $0x120] sm:$0xf] %vm226, 0
      %331 = vst.msk [vmem:[#allocation2 + $0x124] sm:$0xf] %vm226, 0
      %v332 = vld [vmem:[#allocation2 + $0x128] sm:$0x1]
      %v333 = vsel %vm233, 0, %v332
      %334 = vst [vmem:[#allocation2 + $0x128] sm:$0x1] %v333
      %335 = vst.msk [vmem:[#allocation2 + $0x12c] sm:$0xf] %vm226, 0
      %336 = vst.msk [vmem:[#allocation2 + $0x130] sm:$0xf] %vm226, 0
      %337 = vst.msk [vmem:[#allocation2 + $0x134] sm:$0xf] %vm226, 0
      %338 = vst.msk [vmem:[#allocation2 + $0x138] sm:$0xf] %vm226, 0
      %v339 = vld [vmem:[#allocation2 + $0x13c] sm:$0x1]
      %v340 = vsel %vm233, 0, %v339
      %341 = vst [vmem:[#allocation2 + $0x13c] sm:$0x1] %v340
      %342 = vst.msk [vmem:[#allocation2 + $0x140] sm:$0xf] %vm226, 0
      %343 = vst.msk [vmem:[#allocation2 + $0x144] sm:$0xf] %vm226, 0
      %344 = vst.msk [vmem:[#allocation2 + $0x148] sm:$0xf] %vm226, 0
      %345 = vst.msk [vmem:[#allocation2 + $0x14c] sm:$0xf] %vm226, 0
      %v346 = vld [vmem:[#allocation2 + $0x150] sm:$0x1]
      %v347 = vsel %vm233, 0, %v346
      %348 = vst [vmem:[#allocation2 + $0x150] sm:$0x1] %v347
      %349 = vst.msk [vmem:[#allocation2 + $0x154] sm:$0xf] %vm226, 0
      %350 = vst.msk [vmem:[#allocation2 + $0x158] sm:$0xf] %vm226, 0
      %351 = vst.msk [vmem:[#allocation2 + $0x15c] sm:$0xf] %vm226, 0
      %352 = vst.msk [vmem:[#allocation2 + $0x160] sm:$0xf] %vm226, 0
      %v353 = vld [vmem:[#allocation2 + $0x164] sm:$0x1]
      %v354 = vsel %vm233, 0, %v353
      %355 = vst [vmem:[#allocation2 + $0x164] sm:$0x1] %v354
      %v356 = vld [vmem:[%s219] sm:$0xff]
      %v357 = vld [vmem:[%s219 + $0x8] sm:$0xff]
      %v358 = vld [vmem:[%s219 + $0x10] sm:$0xff]
      %v359 = vld [vmem:[%s219 + $0x18] sm:$0xff]
      %v360 = vld [vmem:[%s219 + $0x20] sm:$0xff]
      %v361 = vld [vmem:[%s219 + $0x28] sm:$0xff]
      %v362 = vld [vmem:[%s219 + $0x30] sm:$0xff]
      %v363 = vld [vmem:[%s219 + $0x38] sm:$0xff]
      %v364 = vld [vmem:[%s219 + $0x40] sm:$0xff]
      %v365 = vld [vmem:[%s219 + $0x48] sm:$0xff]
      %v366 = vld [vmem:[%s219 + $0x50] sm:$0xff]
      %v367 = vld [vmem:[%s219 + $0x58] sm:$0xff]
      %v368 = vld [vmem:[%s219 + $0x60] sm:$0xff]
      %v369 = vld [vmem:[%s219 + $0x68] sm:$0xff]
      %v370 = vld [vmem:[%s219 + $0x70] sm:$0xff]
      %v371 = vld [vmem:[%s219 + $0x78] sm:$0xff]
      %v372 = vld [vmem:[%s219 + $0x80] sm:$0xff]
      %v373 = vld [vmem:[%s219 + $0x88] sm:$0xff]
      %v374 = vld [vmem:[%s219 + $0x90] sm:$0xff]
      %v375 = vld [vmem:[%s219 + $0x98] sm:$0xff]
      %v376 = vld [vmem:[%s219 + $0xa0] sm:$0xff]
      %v377 = vld [vmem:[%s219 + $0xa8] sm:$0xff]
      %v378 = vld [vmem:[%s219 + $0xb0] sm:$0xff]
      %v379 = vld [vmem:[%s219 + $0xb8] sm:$0xff]
      %v380 = vld [vmem:[%s219 + $0xc0] sm:$0xff]
      %v381 = vld [vmem:[%s219 + $0xc8] sm:$0xff]
      %v382 = vld [vmem:[%s219 + $0xd0] sm:$0xff]
      %v383 = vld [vmem:[%s219 + $0xd8] sm:$0xff]
      %v384 = vld [vmem:[%s219 + $0xe0] sm:$0xff]
      %v385 = vld [vmem:[%s219 + $0xe8] sm:$0xff]
      %v386 = vld [vmem:[%s219 + $0xf0] sm:$0xff]
      %v387 = vld [vmem:[%s219 + $0xf8] sm:$0xff]
      %v388 = vpack.c.bf16 %v357, %v356
      %v389 = vpack.c.bf16 %v359, %v358
      %v390 = vpack.c.bf16 %v361, %v360
      %v391 = vpack.c.bf16 %v363, %v362
      %v392 = vpack.c.bf16 %v365, %v364
      %v393 = vpack.c.bf16 %v367, %v366
      %v394 = vpack.c.bf16 %v369, %v368
      %v395 = vpack.c.bf16 %v371, %v370
      %v396 = vpack.c.bf16 %v373, %v372
      %v397 = vpack.c.bf16 %v375, %v374
      %v398 = vpack.c.bf16 %v377, %v376
      %v399 = vpack.c.bf16 %v379, %v378
      %v400 = vpack.c.bf16 %v381, %v380
      %v401 = vpack.c.bf16 %v383, %v382
      %v402 = vpack.c.bf16 %v385, %v384
      %v403 = vpack.c.bf16 %v387, %v386
      %v420 = vunpack.c.l.b16 %v388
      %v421 = vunpack.c.h.b16 %v388
      %v422 = vunpack.c.l.b16 %v389
      %v423 = vunpack.c.h.b16 %v389
      %v424 = vunpack.c.l.b16 %v390
      %v425 = vunpack.c.h.b16 %v390
      %v426 = vunpack.c.l.b16 %v391
      %v427 = vunpack.c.h.b16 %v391
      %v428 = vunpack.c.l.b16 %v392
      %v429 = vunpack.c.h.b16 %v392
      %v430 = vunpack.c.l.b16 %v393
      %v431 = vunpack.c.h.b16 %v393
      %v432 = vunpack.c.l.b16 %v394
      %v433 = vunpack.c.h.b16 %v394
      %v434 = vunpack.c.l.b16 %v395
      %v435 = vunpack.c.h.b16 %v395
      %v436 = vunpack.c.l.b16 %v396
      %v437 = vunpack.c.h.b16 %v396
      %v438 = vunpack.c.l.b16 %v397
      %v439 = vunpack.c.h.b16 %v397
      %v440 = vunpack.c.l.b16 %v398
      %v441 = vunpack.c.h.b16 %v398
      %v442 = vunpack.c.l.b16 %v399
      %v443 = vunpack.c.h.b16 %v399
      %v444 = vunpack.c.l.b16 %v400
      %v445 = vunpack.c.h.b16 %v400
      %v446 = vunpack.c.l.b16 %v401
      %v447 = vunpack.c.h.b16 %v401
      %v448 = vunpack.c.l.b16 %v402
      %v449 = vunpack.c.h.b16 %v402
      %v450 = vunpack.c.l.b16 %v403
      %v451 = vunpack.c.h.b16 %v403
      %v452 = vpack.c.b16 %v420, %v420
      %v453 = vpack.c.b16 %v421, %v421
      %v454 = vpack.c.b16 %v422, %v422
      %v455 = vpack.c.b16 %v423, %v423
      %v456 = vpack.c.b16 %v424, %v424
      %v457 = vpack.c.b16 %v425, %v425
      %v458 = vpack.c.b16 %v426, %v426
      %v459 = vpack.c.b16 %v427, %v427
      %v460 = vpack.c.b16 %v428, %v428
      %v461 = vpack.c.b16 %v429, %v429
      %v462 = vpack.c.b16 %v430, %v430
      %v463 = vpack.c.b16 %v431, %v431
      %v464 = vpack.c.b16 %v432, %v432
      %v465 = vpack.c.b16 %v433, %v433
      %v466 = vpack.c.b16 %v434, %v434
      %v467 = vpack.c.b16 %v435, %v435
      %v468 = vpack.c.b16 %v436, %v436
      %v469 = vpack.c.b16 %v437, %v437
      %v470 = vpack.c.b16 %v438, %v438
      %v471 = vpack.c.b16 %v439, %v439
      %v472 = vpack.c.b16 %v440, %v440
      %v473 = vpack.c.b16 %v441, %v441
      %v474 = vpack.c.b16 %v442, %v442
      %v475 = vpack.c.b16 %v443, %v443
      %v476 = vpack.c.b16 %v444, %v444
      %v477 = vpack.c.b16 %v445, %v445
      %v478 = vpack.c.b16 %v446, %v446
      %v479 = vpack.c.b16 %v447, %v447
      %v480 = vpack.c.b16 %v448, %v448
      %v481 = vpack.c.b16 %v449, %v449
      %v482 = vpack.c.b16 %v450, %v450
      %v483 = vpack.c.b16 %v451, %v451
      %s516 = scalar_lea.vmem [#allocation2], 20
      %517 = vst.msk [vmem:[%s516 + $0x8] sm:$0xf] %vm226, %v452
      %518 = vst.msk [vmem:[%s516 + $0xc] sm:$0xf] %vm226, %v453
      %519 = vst.msk [vmem:[%s516 + $0x1c] sm:$0xf] %vm226, %v454
      %520 = vst.msk [vmem:[%s516 + $0x20] sm:$0xf] %vm226, %v455
      %521 = vst.msk [vmem:[%s516 + $0x30] sm:$0xf] %vm226, %v456
      %522 = vst.msk [vmem:[%s516 + $0x34] sm:$0xf] %vm226, %v457
      %523 = vst.msk [vmem:[%s516 + $0x44] sm:$0xf] %vm226, %v458
      %524 = vst.msk [vmem:[%s516 + $0x48] sm:$0xf] %vm226, %v459
      %525 = vst.msk [vmem:[%s516 + $0x58] sm:$0xf] %vm226, %v460
      %526 = vst.msk [vmem:[%s516 + $0x5c] sm:$0xf] %vm226, %v461
      %527 = vst.msk [vmem:[%s516 + $0x6c] sm:$0xf] %vm226, %v462
      %528 = vst.msk [vmem:[%s516 + $0x70] sm:$0xf] %vm226, %v463
      %529 = vst.msk [vmem:[%s516 + $0x80] sm:$0xf] %vm226, %v464
      %530 = vst.msk [vmem:[%s516 + $0x84] sm:$0xf] %vm226, %v465
      %531 = vst.msk [vmem:[%s516 + $0x94] sm:$0xf] %vm226, %v466
      %532 = vst.msk [vmem:[%s516 + $0x98] sm:$0xf] %vm226, %v467
      %533 = vst.msk [vmem:[%s516 + $0xa8] sm:$0xf] %vm226, %v468
      %534 = vst.msk [vmem:[%s516 + $0xac] sm:$0xf] %vm226, %v469
      %535 = vst.msk [vmem:[%s516 + $0xbc] sm:$0xf] %vm226, %v470
      %536 = vst.msk [vmem:[%s516 + $0xc0] sm:$0xf] %vm226, %v471
      %537 = vst.msk [vmem:[%s516 + $0xd0] sm:$0xf] %vm226, %v472
      %538 = vst.msk [vmem:[%s516 + $0xd4] sm:$0xf] %vm226, %v473
      %539 = vst.msk [vmem:[%s516 + $0xe4] sm:$0xf] %vm226, %v474
      %540 = vst.msk [vmem:[%s516 + $0xe8] sm:$0xf] %vm226, %v475
      %541 = vst.msk [vmem:[%s516 + $0xf8] sm:$0xf] %vm226, %v476
      %542 = vst.msk [vmem:[%s516 + $0xfc] sm:$0xf] %vm226, %v477
      %543 = vst.msk [vmem:[%s516 + $0x10c] sm:$0xf] %vm226, %v478
      %544 = vst.msk [vmem:[%s516 + $0x110] sm:$0xf] %vm226, %v479
      %545 = vst.msk [vmem:[%s516 + $0x120] sm:$0xf] %vm226, %v480
      %546 = vst.msk [vmem:[%s516 + $0x124] sm:$0xf] %vm226, %v481
      %547 = vst.msk [vmem:[%s516 + $0x134] sm:$0xf] %vm226, %v482
      %548 = vst.msk [vmem:[%s516 + $0x138] sm:$0xf] %vm226, %v483
      %v549 = vld [vmem:[#allocation2 + $0x4] sm:$0x8]
      %v550 = vld [vmem:[#allocation2 + $0x8] sm:$0xf]
      %v551 = vld [vmem:[#allocation2 + $0xc] sm:$0xf]
      %v552 = vld [vmem:[#allocation2 + $0x18] sm:$0x8]
      %v553 = vld [vmem:[#allocation2 + $0x1c] sm:$0xf]
      %v554 = vld [vmem:[#allocation2 + $0x20] sm:$0xf]
      %v555 = vld [vmem:[#allocation2 + $0x2c] sm:$0x8]
      %v556 = vld [vmem:[#allocation2 + $0x30] sm:$0xf]
      %v557 = vld [vmem:[#allocation2 + $0x34] sm:$0xf]
      %v558 = vld [vmem:[#allocation2 + $0x40] sm:$0x8]
      %v559 = vld [vmem:[#allocation2 + $0x44] sm:$0xf]
      %v560 = vld [vmem:[#allocation2 + $0x48] sm:$0xf]
      %v561 = vld [vmem:[#allocation2 + $0x54] sm:$0x8]
      %v562 = vld [vmem:[#allocation2 + $0x58] sm:$0xf]
      %v563 = vld [vmem:[#allocation2 + $0x5c] sm:$0xf]
      %v564 = vld [vmem:[#allocation2 + $0x68] sm:$0x8]
      %v565 = vld [vmem:[#allocation2 + $0x6c] sm:$0xf]
      %v566 = vld [vmem:[#allocation2 + $0x70] sm:$0xf]
      %v567 = vld [vmem:[#allocation2 + $0x7c] sm:$0x8]
      %v568 = vld [vmem:[#allocation2 + $0x80] sm:$0xf]
      %v569 = vld [vmem:[#allocation2 + $0x84] sm:$0xf]
      %v570 = vld [vmem:[#allocation2 + $0x90] sm:$0x8]
      %v571 = vld [vmem:[#allocation2 + $0x94] sm:$0xf]
      %v572 = vld [vmem:[#allocation2 + $0x98] sm:$0xf]
      %v573 = vld [vmem:[#allocation2 + $0xa4] sm:$0x8]
      %v574 = vld [vmem:[#allocation2 + $0xa8] sm:$0xf]
      %v575 = vld [vmem:[#allocation2 + $0xac] sm:$0xf]
      %v576 = vld [vmem:[#allocation2 + $0xb8] sm:$0x8]
      %v577 = vld [vmem:[#allocation2 + $0xbc] sm:$0xf]
      %v578 = vld [vmem:[#allocation2 + $0xc0] sm:$0xf]
      %v579 = vld [vmem:[#allocation2 + $0xcc] sm:$0x8]
      %v580 = vld [vmem:[#allocation2 + $0xd0] sm:$0xf]
      %v581 = vld [vmem:[#allocation2 + $0xd4] sm:$0xf]
      %v582 = vld [vmem:[#allocation2 + $0xe0] sm:$0x8]
      %v583 = vld [vmem:[#allocation2 + $0xe4] sm:$0xf]
      %v584 = vld [vmem:[#allocation2 + $0xe8] sm:$0xf]
      %v585 = vld [vmem:[#allocation2 + $0xf4] sm:$0x8]
      %v586 = vld [vmem:[#allocation2 + $0xf8] sm:$0xf]
      %v587 = vld [vmem:[#allocation2 + $0xfc] sm:$0xf]
      %v588 = vld [vmem:[#allocation2 + $0x108] sm:$0x8]
      %v589 = vld [vmem:[#allocation2 + $0x10c] sm:$0xf]
      %v590 = vld [vmem:[#allocation2 + $0x110] sm:$0xf]
      %v591 = vld [vmem:[#allocation2 + $0x11c] sm:$0x8]
      %v592 = vld [vmem:[#allocation2 + $0x120] sm:$0xf]
      %v593 = vld [vmem:[#allocation2 + $0x124] sm:$0xf]
      %v594 = vld [vmem:[#allocation2 + $0x130] sm:$0x8]
      %v595 = vld [vmem:[#allocation2 + $0x134] sm:$0xf]
      %v596 = vld [vmem:[#allocation2 + $0x138] sm:$0xf]
      %vm597 = vsmask.f32 4368
      %vm598 = vmor %vm232, %vm597
      %v600 = vshrl.u32 %v549, 16
      %v602 = vrot.slane %v600, 7
      %v603 = vrot.slane %v602, 4
      %v605 = vshrl.u32 %v550, 16
      %v607 = vrot.slane %v605, 7
      %v608 = vshll.u32 %v550, 16
      %v610 = vor.u32 %v607, %v608
      %v611 = vsel %vm598, %v603, %v610
      %v612 = vrot.slane %v607, 4
      %v614 = vshrl.u32 %v551, 16
      %v616 = vrot.slane %v614, 7
      %v617 = vshll.u32 %v551, 16
      %v619 = vor.u32 %v616, %v617
      %v620 = vsel %vm598, %v612, %v619
      %v622 = vshrl.u32 %v552, 16
      %v624 = vrot.slane %v622, 7
      %v625 = vrot.slane %v624, 4
      %v627 = vshrl.u32 %v553, 16
      %v629 = vrot.slane %v627, 7
      %v630 = vshll.u32 %v553, 16
      %v632 = vor.u32 %v629, %v630
      %v633 = vsel %vm598, %v625, %v632
      %v634 = vrot.slane %v629, 4
      %v636 = vshrl.u32 %v554, 16
      %v638 = vrot.slane %v636, 7
      %v639 = vshll.u32 %v554, 16
      %v641 = vor.u32 %v638, %v639
      %v642 = vsel %vm598, %v634, %v641
      %v644 = vshrl.u32 %v555, 16
      %v646 = vrot.slane %v644, 7
      %v647 = vrot.slane %v646, 4
      %v649 = vshrl.u32 %v556, 16
      %v651 = vrot.slane %v649, 7
      %v652 = vshll.u32 %v556, 16
      %v654 = vor.u32 %v651, %v652
      %v655 = vsel %vm598, %v647, %v654
      %v656 = vrot.slane %v651, 4
      %v658 = vshrl.u32 %v557, 16
      %v660 = vrot.slane %v658, 7
      %v661 = vshll.u32 %v557, 16
      %v663 = vor.u32 %v660, %v661
      %v664 = vsel %vm598, %v656, %v663
      %v666 = vshrl.u32 %v558, 16
      %v668 = vrot.slane %v666, 7
      %v669 = vrot.slane %v668, 4
      %v671 = vshrl.u32 %v559, 16
      %v673 = vrot.slane %v671, 7
      %v674 = vshll.u32 %v559, 16
      %v676 = vor.u32 %v673, %v674
      %v677 = vsel %vm598, %v669, %v676
      %v678 = vrot.slane %v673, 4
      %v680 = vshrl.u32 %v560, 16
      %v682 = vrot.slane %v680, 7
      %v683 = vshll.u32 %v560, 16
      %v685 = vor.u32 %v682, %v683
      %v686 = vsel %vm598, %v678, %v685
      %v688 = vshrl.u32 %v561, 16
      %v690 = vrot.slane %v688, 7
      %v691 = vrot.slane %v690, 4
      %v693 = vshrl.u32 %v562, 16
      %v695 = vrot.slane %v693, 7
      %v696 = vshll.u32 %v562, 16
      %v698 = vor.u32 %v695, %v696
      %v699 = vsel %vm598, %v691, %v698
      %v700 = vrot.slane %v695, 4
      %v702 = vshrl.u32 %v563, 16
      %v704 = vrot.slane %v702, 7
      %v705 = vshll.u32 %v563, 16
      %v707 = vor.u32 %v704, %v705
      %v708 = vsel %vm598, %v700, %v707
      %v710 = vshrl.u32 %v564, 16
      %v712 = vrot.slane %v710, 7
      %v713 = vrot.slane %v712, 4
      %v715 = vshrl.u32 %v565, 16
      %v717 = vrot.slane %v715, 7
      %v718 = vshll.u32 %v565, 16
      %v720 = vor.u32 %v717, %v718
      %v721 = vsel %vm598, %v713, %v720
      %v722 = vrot.slane %v717, 4
      %v724 = vshrl.u32 %v566, 16
      %v726 = vrot.slane %v724, 7
      %v727 = vshll.u32 %v566, 16
      %v729 = vor.u32 %v726, %v727
      %v730 = vsel %vm598, %v722, %v729
      %v732 = vshrl.u32 %v567, 16
      %v734 = vrot.slane %v732, 7
      %v735 = vrot.slane %v734, 4
      %v737 = vshrl.u32 %v568, 16
      %v739 = vrot.slane %v737, 7
      %v740 = vshll.u32 %v568, 16
      %v742 = vor.u32 %v739, %v740
      %v743 = vsel %vm598, %v735, %v742
      %v744 = vrot.slane %v739, 4
      %v746 = vshrl.u32 %v569, 16
      %v748 = vrot.slane %v746, 7
      %v749 = vshll.u32 %v569, 16
      %v751 = vor.u32 %v748, %v749
      %v752 = vsel %vm598, %v744, %v751
      %v754 = vshrl.u32 %v570, 16
      %v756 = vrot.slane %v754, 7
      %v757 = vrot.slane %v756, 4
      %v759 = vshrl.u32 %v571, 16
      %v761 = vrot.slane %v759, 7
      %v762 = vshll.u32 %v571, 16
      %v764 = vor.u32 %v761, %v762
      %v765 = vsel %vm598, %v757, %v764
      %v766 = vrot.slane %v761, 4
      %v768 = vshrl.u32 %v572, 16
      %v770 = vrot.slane %v768, 7
      %v771 = vshll.u32 %v572, 16
      %v773 = vor.u32 %v770, %v771
      %v774 = vsel %vm598, %v766, %v773
      %v776 = vshrl.u32 %v573, 16
      %v778 = vrot.slane %v776, 7
      %v779 = vrot.slane %v778, 4
      %v781 = vshrl.u32 %v574, 16
      %v783 = vrot.slane %v781, 7
      %v784 = vshll.u32 %v574, 16
      %v786 = vor.u32 %v783, %v784
      %v787 = vsel %vm598, %v779, %v786
      %v788 = vrot.slane %v783, 4
      %v790 = vshrl.u32 %v575, 16
      %v792 = vrot.slane %v790, 7
      %v793 = vshll.u32 %v575, 16
      %v795 = vor.u32 %v792, %v793
      %v796 = vsel %vm598, %v788, %v795
      %v798 = vshrl.u32 %v576, 16
      %v800 = vrot.slane %v798, 7
      %v801 = vrot.slane %v800, 4
      %v803 = vshrl.u32 %v577, 16
      %v805 = vrot.slane %v803, 7
      %v806 = vshll.u32 %v577, 16
      %v808 = vor.u32 %v805, %v806
      %v809 = vsel %vm598, %v801, %v808
      %v810 = vrot.slane %v805, 4
      %v812 = vshrl.u32 %v578, 16
      %v814 = vrot.slane %v812, 7
      %v815 = vshll.u32 %v578, 16
      %v817 = vor.u32 %v814, %v815
      %v818 = vsel %vm598, %v810, %v817
      %v820 = vshrl.u32 %v579, 16
      %v822 = vrot.slane %v820, 7
      %v823 = vrot.slane %v822, 4
      %v825 = vshrl.u32 %v580, 16
      %v827 = vrot.slane %v825, 7
      %v828 = vshll.u32 %v580, 16
      %v830 = vor.u32 %v827, %v828
      %v831 = vsel %vm598, %v823, %v830
      %v832 = vrot.slane %v827, 4
      %v834 = vshrl.u32 %v581, 16
      %v836 = vrot.slane %v834, 7
      %v837 = vshll.u32 %v581, 16
      %v839 = vor.u32 %v836, %v837
      %v840 = vsel %vm598, %v832, %v839
      %v842 = vshrl.u32 %v582, 16
      %v844 = vrot.slane %v842, 7
      %v845 = vrot.slane %v844, 4
      %v847 = vshrl.u32 %v583, 16
      %v849 = vrot.slane %v847, 7
      %v850 = vshll.u32 %v583, 16
      %v852 = vor.u32 %v849, %v850
      %v853 = vsel %vm598, %v845, %v852
      %v854 = vrot.slane %v849, 4
      %v856 = vshrl.u32 %v584, 16
      %v858 = vrot.slane %v856, 7
      %v859 = vshll.u32 %v584, 16
      %v861 = vor.u32 %v858, %v859
      %v862 = vsel %vm598, %v854, %v861
      %v864 = vshrl.u32 %v585, 16
      %v866 = vrot.slane %v864, 7
      %v867 = vrot.slane %v866, 4
      %v869 = vshrl.u32 %v586, 16
      %v871 = vrot.slane %v869, 7
      %v872 = vshll.u32 %v586, 16
      %v874 = vor.u32 %v871, %v872
      %v875 = vsel %vm598, %v867, %v874
      %v876 = vrot.slane %v871, 4
      %v878 = vshrl.u32 %v587, 16
      %v880 = vrot.slane %v878, 7
      %v881 = vshll.u32 %v587, 16
      %v883 = vor.u32 %v880, %v881
      %v884 = vsel %vm598, %v876, %v883
      %v886 = vshrl.u32 %v588, 16
      %v888 = vrot.slane %v886, 7
      %v889 = vrot.slane %v888, 4
      %v891 = vshrl.u32 %v589, 16
      %v893 = vrot.slane %v891, 7
      %v894 = vshll.u32 %v589, 16
      %v896 = vor.u32 %v893, %v894
      %v897 = vsel %vm598, %v889, %v896
      %v898 = vrot.slane %v893, 4
      %v900 = vshrl.u32 %v590, 16
      %v902 = vrot.slane %v900, 7
      %v903 = vshll.u32 %v590, 16
      %v905 = vor.u32 %v902, %v903
      %v906 = vsel %vm598, %v898, %v905
      %v908 = vshrl.u32 %v591, 16
      %v910 = vrot.slane %v908, 7
      %v911 = vrot.slane %v910, 4
      %v913 = vshrl.u32 %v592, 16
      %v915 = vrot.slane %v913, 7
      %v916 = vshll.u32 %v592, 16
      %v918 = vor.u32 %v915, %v916
      %v919 = vsel %vm598, %v911, %v918
      %v920 = vrot.slane %v915, 4
      %v922 = vshrl.u32 %v593, 16
      %v924 = vrot.slane %v922, 7
      %v925 = vshll.u32 %v593, 16
      %v927 = vor.u32 %v924, %v925
      %v928 = vsel %vm598, %v920, %v927
      %v930 = vshrl.u32 %v594, 16
      %v932 = vrot.slane %v930, 7
      %v933 = vrot.slane %v932, 4
      %v935 = vshrl.u32 %v595, 16
      %v937 = vrot.slane %v935, 7
      %v938 = vshll.u32 %v595, 16
      %v940 = vor.u32 %v937, %v938
      %v941 = vsel %vm598, %v933, %v940
      %v942 = vrot.slane %v937, 4
      %v944 = vshrl.u32 %v596, 16
      %v946 = vrot.slane %v944, 7
      %v947 = vshll.u32 %v596, 16
      %v949 = vor.u32 %v946, %v947
      %v950 = vsel %vm598, %v942, %v949
      %v951 = vld [vmem:[%s1] sm:$0xf]
      %v952 = vld [vmem:[%s1 + $0x4] sm:$0xf]
      %v953 = vld [vmem:[%s1 + $0x8] sm:$0xf]
      %v954 = vld [vmem:[%s1 + $0xc] sm:$0xf]
      %v955 = vld [vmem:[%s1 + $0x10] sm:$0xf]
      %v956 = vld [vmem:[%s1 + $0x14] sm:$0xf]
      %v957 = vld [vmem:[%s1 + $0x18] sm:$0xf]
      %v958 = vld [vmem:[%s1 + $0x1c] sm:$0xf]
      %s959 = scalar_lea.vmem %s1, 32
      %v960 = vld [vmem:[%s959] sm:$0xf]
      %v961 = vld [vmem:[%s959 + $0x4] sm:$0xf]
      %v962 = vld [vmem:[%s959 + $0x8] sm:$0xf]
      %v963 = vld [vmem:[%s959 + $0xc] sm:$0xf]
      %v964 = vld [vmem:[%s959 + $0x10] sm:$0xf]
      %v965 = vld [vmem:[%s959 + $0x14] sm:$0xf]
      %v966 = vld [vmem:[%s959 + $0x18] sm:$0xf]
      %v967 = vld [vmem:[%s959 + $0x1c] sm:$0xf]
      %v1000 = vunpack.c.l.b16 %v550
      %v1001 = vunpack.c.l.b16 %v551
      %v1002 = vunpack.c.l.b16 %v553
      %v1003 = vunpack.c.l.b16 %v554
      %v1004 = vunpack.c.l.b16 %v556
      %v1005 = vunpack.c.l.b16 %v557
      %v1006 = vunpack.c.l.b16 %v559
      %v1007 = vunpack.c.l.b16 %v560
      %v1008 = vunpack.c.l.b16 %v562
      %v1009 = vunpack.c.l.b16 %v563
      %v1010 = vunpack.c.l.b16 %v565
      %v1011 = vunpack.c.l.b16 %v566
      %v1012 = vunpack.c.l.b16 %v568
      %v1013 = vunpack.c.l.b16 %v569
      %v1014 = vunpack.c.l.b16 %v571
      %v1015 = vunpack.c.l.b16 %v572
      %v1016 = vunpack.c.l.b16 %v574
      %v1017 = vunpack.c.l.b16 %v575
      %v1018 = vunpack.c.l.b16 %v577
      %v1019 = vunpack.c.l.b16 %v578
      %v1020 = vunpack.c.l.b16 %v580
      %v1021 = vunpack.c.l.b16 %v581
      %v1022 = vunpack.c.l.b16 %v583
      %v1023 = vunpack.c.l.b16 %v584
      %v1024 = vunpack.c.l.b16 %v586
      %v1025 = vunpack.c.l.b16 %v587
      %v1026 = vunpack.c.l.b16 %v589
      %v1027 = vunpack.c.l.b16 %v590
      %v1028 = vunpack.c.l.b16 %v592
      %v1029 = vunpack.c.l.b16 %v593
      %v1030 = vunpack.c.l.b16 %v595
      %v1031 = vunpack.c.l.b16 %v596
      %v1032 = vpack.c.b16 %v1001, %v1000
      %v1033 = vpack.c.b16 %v1003, %v1002
      %v1034 = vpack.c.b16 %v1005, %v1004
      %v1035 = vpack.c.b16 %v1007, %v1006
      %v1036 = vpack.c.b16 %v1009, %v1008
      %v1037 = vpack.c.b16 %v1011, %v1010
      %v1038 = vpack.c.b16 %v1013, %v1012
      %v1039 = vpack.c.b16 %v1015, %v1014
      %v1040 = vpack.c.b16 %v1017, %v1016
      %v1041 = vpack.c.b16 %v1019, %v1018
      %v1042 = vpack.c.b16 %v1021, %v1020
      %v1043 = vpack.c.b16 %v1023, %v1022
      %v1044 = vpack.c.b16 %v1025, %v1024
      %v1045 = vpack.c.b16 %v1027, %v1026
      %v1046 = vpack.c.b16 %v1029, %v1028
      %v1047 = vpack.c.b16 %v1031, %v1030
      %v1056 = vunpack.c.l.b16 %v960
      %v1057 = vunpack.c.l.b16 %v961
      %v1058 = vunpack.c.l.b16 %v962
      %v1059 = vunpack.c.l.b16 %v963
      %v1060 = vunpack.c.l.b16 %v964
      %v1061 = vunpack.c.l.b16 %v965
      %v1062 = vunpack.c.l.b16 %v966
      %v1063 = vunpack.c.l.b16 %v967
      %v1064 = vpack.c.b16 %v1057, %v1056
      %v1065 = vpack.c.b16 %v1059, %v1058
      %v1066 = vpack.c.b16 %v1061, %v1060
      %v1067 = vpack.c.b16 %v1063, %v1062
      %vm1072 = vcmask 523264
      %v1074 = vsel %vm1072, %v1032, 0
      %v1077 = vsel %vm1072, %v1033, 0
      %v1080 = vsel %vm1072, %v1034, 0
      %v1083 = vsel %vm1072, %v1035, 0
      %v1086 = vsel %vm1072, %v1036, 0
      %v1089 = vsel %vm1072, %v1037, 0
      %v1092 = vsel %vm1072, %v1038, 0
      %v1095 = vsel %vm1072, %v1039, 0
      %v1098 = vsel %vm1072, %v1040, 0
      %v1101 = vsel %vm1072, %v1041, 0
      %v1104 = vsel %vm1072, %v1042, 0
      %v1107 = vsel %vm1072, %v1043, 0
      %v1110 = vsel %vm1072, %v1044, 0
      %v1113 = vsel %vm1072, %v1045, 0
      %v1116 = vsel %vm1072, %v1046, 0
      %v1119 = vsel %vm1072, %v1047, 0
      %1121 = vmatprep.subr.bf16.mxu0 0
      %1122 = vmatpush1.bf16.msra.mxu0 %v1064
      %1123 = vmatprep.subr.bf16.mxu0 0
      %1124 = vmatpush1.bf16.msra.mxu0 %v1065
      %1125 = vmatprep.subr.bf16.mxu0 0
      %1126 = vmatpush1.bf16.msra.mxu0 %v1066
      %1127 = vmatprep.subr.bf16.mxu0 0
      %1128 = vmatpush1.bf16.msra.mxu0 %v1067
      %1129 = vmatprep.subr.bf16.mxu0 0
      %1130 = vmatpush1.bf16.msra.mxu0 0
      %1131 = vmatprep.subr.bf16.mxu0 0
      %1132 = vmatpush1.bf16.msra.mxu0 0
      %1133 = vmatprep.subr.bf16.mxu0 0
      %1134 = vmatpush1.bf16.msra.mxu0 0
      %1135 = vmatprep.subr.bf16.mxu0 0
      %1136 = vmatpush1.bf16.msra.mxu0 0
      %1137 = vmatprep.subr.bf16.mxu0 0
      %1138 = vmatpush1.bf16.msra.mxu0 0
      %1139 = vmatprep.subr.bf16.mxu0 0
      %1140 = vmatpush1.bf16.msra.mxu0 0
      %1141 = vmatprep.subr.bf16.mxu0 0
      %1142 = vmatpush1.bf16.msra.mxu0 0
      %1143 = vmatprep.subr.bf16.mxu0 0
      %1144 = vmatpush1.bf16.msra.mxu0 0
      %1145 = vmatprep.subr.bf16.mxu0 0
      %1146 = vmatpush1.bf16.msra.mxu0 0
      %1147 = vmatprep.subr.bf16.mxu0 0
      %1148 = vmatpush1.bf16.msra.mxu0 0
      %1149 = vmatprep.subr.bf16.mxu0 0
      %1150 = vmatpush1.bf16.msra.mxu0 0
      %1151 = vmatprep.subr.bf16.mxu0 0
      %1152 = vmatpush1.bf16.msra.mxu0 0
      %1153 = vmatprep.mubr.bf16.mxu0 0
      %1154 = vmatmul.mubr.bf16.gmra.mrb[0].mxu0 %v1074
      %v1155 = vpop.f32.mrb[0].mxu0
      %v1156 = vadd.f32 0.0, %v1155
      %v1157 = vpop.f32.mrb[0].mxu0
      %v1158 = vpop.f32.mrb[0].mxu0
      %v1159 = vadd.f32 0.0, %v1158
      %v1160 = vpop.f32.mrb[0].mxu0
      %1161 = vmatprep.mubr.bf16.mxu0 0
      %1162 = vmatmul.mubr.bf16.gmra.mrb[0].mxu0 %v1077
      %v1163 = vpop.f32.mrb[0].mxu0
      %v1164 = vadd.f32 0.0, %v1163
      %v1165 = vpop.f32.mrb[0].mxu0
      %v1166 = vpop.f32.mrb[0].mxu0
      %v1167 = vadd.f32 0.0, %v1166
      %v1168 = vpop.f32.mrb[0].mxu0
      %1169 = vmatprep.mubr.bf16.mxu0 0
      %1170 = vmatmul.mubr.bf16.gmra.mrb[0].mxu0 %v1080
      %v1171 = vpop.f32.mrb[0].mxu0
      %v1172 = vadd.f32 0.0, %v1171
      %v1173 = vpop.f32.mrb[0].mxu0
      %v1174 = vpop.f32.mrb[0].mxu0
      %v1175 = vadd.f32 0.0, %v1174
      %v1176 = vpop.f32.mrb[0].mxu0
      %1177 = vmatprep.mubr.bf16.mxu0 0
      %1178 = vmatmul.mubr.bf16.gmra.mrb[0].mxu0 %v1083
      %v1179 = vpop.f32.mrb[0].mxu0
      %v1180 = vadd.f32 0.0, %v1179
      %v1181 = vpop.f32.mrb[0].mxu0
      %v1182 = vpop.f32.mrb[0].mxu0
      %v1183 = vadd.f32 0.0, %v1182
      %v1184 = vpop.f32.mrb[0].mxu0
      %1185 = vmatprep.mubr.bf16.mxu0 0
      %1186 = vmatmul.mubr.bf16.gmra.mrb[0].mxu0 %v1086
      %v1187 = vpop.f32.mrb[0].mxu0
      %v1188 = vadd.f32 0.0, %v1187
      %v1189 = vpop.f32.mrb[0].mxu0
      %v1190 = vpop.f32.mrb[0].mxu0
      %v1191 = vadd.f32 0.0, %v1190
      %v1192 = vpop.f32.mrb[0].mxu0
      %1193 = vmatprep.mubr.bf16.mxu0 0
      %1194 = vmatmul.mubr.bf16.gmra.mrb[0].mxu0 %v1089
      %v1195 = vpop.f32.mrb[0].mxu0
      %v1196 = vadd.f32 0.0, %v1195
      %v1197 = vpop.f32.mrb[0].mxu0
      %v1198 = vpop.f32.mrb[0].mxu0
      %v1199 = vadd.f32 0.0, %v1198
      %v1200 = vpop.f32.mrb[0].mxu0
      %1201 = vmatprep.mubr.bf16.mxu0 0
      %1202 = vmatmul.mubr.bf16.gmra.mrb[0].mxu0 %v1092
      %v1203 = vpop.f32.mrb[0].mxu0
      %v1204 = vadd.f32 0.0, %v1203
      %v1205 = vpop.f32.mrb[0].mxu0
      %v1206 = vpop.f32.mrb[0].mxu0
      %v1207 = vadd.f32 0.0, %v1206
      %v1208 = vpop.f32.mrb[0].mxu0
      %1209 = vmatprep.mubr.bf16.mxu0 0
      %1210 = vmatmul.mubr.bf16.gmra.mrb[0].mxu0 %v1095
      %v1211 = vpop.f32.mrb[0].mxu0
      %v1212 = vadd.f32 0.0, %v1211
      %v1213 = vpop.f32.mrb[0].mxu0
      %v1214 = vpop.f32.mrb[0].mxu0
      %v1215 = vadd.f32 0.0, %v1214
      %v1216 = vpop.f32.mrb[0].mxu0
      %1217 = vmatprep.mubr.bf16.mxu0 0
      %1218 = vmatmul.mubr.bf16.gmra.mrb[0].mxu0 %v1098
      %v1219 = vpop.f32.mrb[0].mxu0
      %v1220 = vadd.f32 0.0, %v1219
      %v1221 = vpop.f32.mrb[0].mxu0
      %v1222 = vpop.f32.mrb[0].mxu0
      %v1223 = vadd.f32 0.0, %v1222
      %v1224 = vpop.f32.mrb[0].mxu0
      %1225 = vmatprep.mubr.bf16.mxu0 0
      %1226 = vmatmul.mubr.bf16.gmra.mrb[0].mxu0 %v1101
      %v1227 = vpop.f32.mrb[0].mxu0
      %v1228 = vadd.f32 0.0, %v1227
      %v1229 = vpop.f32.mrb[0].mxu0
      %v1230 = vpop.f32.mrb[0].mxu0
      %v1231 = vadd.f32 0.0, %v1230
      %v1232 = vpop.f32.mrb[0].mxu0
      %1233 = vmatprep.mubr.bf16.mxu0 0
      %1234 = vmatmul.mubr.bf16.gmra.mrb[0].mxu0 %v1104
      %v1235 = vpop.f32.mrb[0].mxu0
      %v1236 = vadd.f32 0.0, %v1235
      %v1237 = vpop.f32.mrb[0].mxu0
      %v1238 = vpop.f32.mrb[0].mxu0
      %v1239 = vadd.f32 0.0, %v1238
      %v1240 = vpop.f32.mrb[0].mxu0
      %1241 = vmatprep.mubr.bf16.mxu0 0
      %1242 = vmatmul.mubr.bf16.gmra.mrb[0].mxu0 %v1107
      %v1243 = vpop.f32.mrb[0].mxu0
      %v1244 = vadd.f32 0.0, %v1243
      %v1245 = vpop.f32.mrb[0].mxu0
      %v1246 = vpop.f32.mrb[0].mxu0
      %v1247 = vadd.f32 0.0, %v1246
      %v1248 = vpop.f32.mrb[0].mxu0
      %1249 = vmatprep.mubr.bf16.mxu0 0
      %1250 = vmatmul.mubr.bf16.gmra.mrb[0].mxu0 %v1110
      %v1251 = vpop.f32.mrb[0].mxu0
      %v1252 = vadd.f32 0.0, %v1251
      %v1253 = vpop.f32.mrb[0].mxu0
      %v1254 = vpop.f32.mrb[0].mxu0
      %v1255 = vadd.f32 0.0, %v1254
      %v1256 = vpop.f32.mrb[0].mxu0
      %1257 = vmatprep.mubr.bf16.mxu0 0
      %1258 = vmatmul.mubr.bf16.gmra.mrb[0].mxu0 %v1113
      %v1259 = vpop.f32.mrb[0].mxu0
      %v1260 = vadd.f32 0.0, %v1259
      %v1261 = vpop.f32.mrb[0].mxu0
      %v1262 = vpop.f32.mrb[0].mxu0
      %v1263 = vadd.f32 0.0, %v1262
      %v1264 = vpop.f32.mrb[0].mxu0
      %1265 = vmatprep.mubr.bf16.mxu0 0
      %1266 = vmatmul.mubr.bf16.gmra.mrb[0].mxu0 %v1116
      %v1267 = vpop.f32.mrb[0].mxu0
      %v1268 = vadd.f32 0.0, %v1267
      %v1269 = vpop.f32.mrb[0].mxu0
      %v1270 = vpop.f32.mrb[0].mxu0
      %v1271 = vadd.f32 0.0, %v1270
      %v1272 = vpop.f32.mrb[0].mxu0
      %1273 = vmatprep.mubr.bf16.mxu0 0
      %1274 = vmatmul.mubr.bf16.gmra.mrb[0].mxu0 %v1119
      %v1275 = vpop.f32.mrb[0].mxu0
      %v1276 = vadd.f32 0.0, %v1275
      %v1277 = vpop.f32.mrb[0].mxu0
      %v1278 = vpop.f32.mrb[0].mxu0
      %v1279 = vadd.f32 0.0, %v1278
      %v1280 = vpop.f32.mrb[0].mxu0
      %1281 = vdwg.mxu0
      %v1282 = vunpack.c.l.b16 %v611
      %v1283 = vunpack.c.l.b16 %v620
      %v1284 = vunpack.c.l.b16 %v633
      %v1285 = vunpack.c.l.b16 %v642
      %v1286 = vunpack.c.l.b16 %v655
      %v1287 = vunpack.c.l.b16 %v664
      %v1288 = vunpack.c.l.b16 %v677
      %v1289 = vunpack.c.l.b16 %v686
      %v1290 = vunpack.c.l.b16 %v699
      %v1291 = vunpack.c.l.b16 %v708
      %v1292 = vunpack.c.l.b16 %v721
      %v1293 = vunpack.c.l.b16 %v730
      %v1294 = vunpack.c.l.b16 %v743
      %v1295 = vunpack.c.l.b16 %v752
      %v1296 = vunpack.c.l.b16 %v765
      %v1297 = vunpack.c.l.b16 %v774
      %v1298 = vunpack.c.l.b16 %v787
      %v1299 = vunpack.c.l.b16 %v796
      %v1300 = vunpack.c.l.b16 %v809
      %v1301 = vunpack.c.l.b16 %v818
      %v1302 = vunpack.c.l.b16 %v831
      %v1303 = vunpack.c.l.b16 %v840
      %v1304 = vunpack.c.l.b16 %v853
      %v1305 = vunpack.c.l.b16 %v862
      %v1306 = vunpack.c.l.b16 %v875
      %v1307 = vunpack.c.l.b16 %v884
      %v1308 = vunpack.c.l.b16 %v897
      %v1309 = vunpack.c.l.b16 %v906
      %v1310 = vunpack.c.l.b16 %v919
      %v1311 = vunpack.c.l.b16 %v928
      %v1312 = vunpack.c.l.b16 %v941
      %v1313 = vunpack.c.l.b16 %v950
      %v1314 = vpack.c.b16 %v1283, %v1282
      %v1315 = vpack.c.b16 %v1285, %v1284
      %v1316 = vpack.c.b16 %v1287, %v1286
      %v1317 = vpack.c.b16 %v1289, %v1288
      %v1318 = vpack.c.b16 %v1291, %v1290
      %v1319 = vpack.c.b16 %v1293, %v1292
      %v1320 = vpack.c.b16 %v1295, %v1294
      %v1321 = vpack.c.b16 %v1297, %v1296
      %v1322 = vpack.c.b16 %v1299, %v1298
      %v1323 = vpack.c.b16 %v1301, %v1300
      %v1324 = vpack.c.b16 %v1303, %v1302
      %v1325 = vpack.c.b16 %v1305, %v1304
      %v1326 = vpack.c.b16 %v1307, %v1306
      %v1327 = vpack.c.b16 %v1309, %v1308
      %v1328 = vpack.c.b16 %v1311, %v1310
      %v1329 = vpack.c.b16 %v1313, %v1312
      %v1338 = vunpack.c.l.b16 %v951
      %v1339 = vunpack.c.l.b16 %v952
      %v1340 = vunpack.c.l.b16 %v953
      %v1341 = vunpack.c.l.b16 %v954
      %v1342 = vunpack.c.l.b16 %v955
      %v1343 = vunpack.c.l.b16 %v956
      %v1344 = vunpack.c.l.b16 %v957
      %v1345 = vunpack.c.l.b16 %v958
      %v1346 = vpack.c.b16 %v1339, %v1338
      %v1347 = vpack.c.b16 %v1341, %v1340
      %v1348 = vpack.c.b16 %v1343, %v1342
      %v1349 = vpack.c.b16 %v1345, %v1344
      %v1355 = vsel %vm1072, %v1314, 0
      %v1358 = vsel %vm1072, %v1315, 0
      %v1361 = vsel %vm1072, %v1316, 0
      %v1364 = vsel %vm1072, %v1317, 0
      %v1367 = vsel %vm1072, %v1318, 0
      %v1370 = vsel %vm1072, %v1319, 0
      %v1373 = vsel %vm1072, %v1320, 0
      %v1376 = vsel %vm1072, %v1321, 0
      %v1379 = vsel %vm1072, %v1322, 0
      %v1382 = vsel %vm1072, %v1323, 0
      %v1385 = vsel %vm1072, %v1324, 0
      %v1388 = vsel %vm1072, %v1325, 0
      %v1391 = vsel %vm1072, %v1326, 0
      %v1394 = vsel %vm1072, %v1327, 0
      %v1397 = vsel %vm1072, %v1328, 0
      %v1400 = vsel %vm1072, %v1329, 0
      %1402 = vmatprep.subr.bf16.mxu0 0
      %1403 = vmatpush1.bf16.msra.mxu0 %v1346
      %1404 = vmatprep.subr.bf16.mxu0 0
      %1405 = vmatpush1.bf16.msra.mxu0 %v1347
      %1406 = vmatprep.subr.bf16.mxu0 0
      %1407 = vmatpush1.bf16.msra.mxu0 %v1348
      %1408 = vmatprep.subr.bf16.mxu0 0
      %1409 = vmatpush1.bf16.msra.mxu0 %v1349
      %1410 = vmatprep.subr.bf16.mxu0 0
      %1411 = vmatpush1.bf16.msra.mxu0 0
      %1412 = vmatprep.subr.bf16.mxu0 0
      %1413 = vmatpush1.bf16.msra.mxu0 0
      %1414 = vmatprep.subr.bf16.mxu0 0
      %1415 = vmatpush1.bf16.msra.mxu0 0
      %1416 = vmatprep.subr.bf16.mxu0 0
      %1417 = vmatpush1.bf16.msra.mxu0 0
      %1418 = vmatprep.subr.bf16.mxu0 0
      %1419 = vmatpush1.bf16.msra.mxu0 0
      %1420 = vmatprep.subr.bf16.mxu0 0
      %1421 = vmatpush1.bf16.msra.mxu0 0
      %1422 = vmatprep.subr.bf16.mxu0 0
      %1423 = vmatpush1.bf16.msra.mxu0 0
      %1424 = vmatprep.subr.bf16.mxu0 0
      %1425 = vmatpush1.bf16.msra.mxu0 0
      %1426 = vmatprep.subr.bf16.mxu0 0
      %1427 = vmatpush1.bf16.msra.mxu0 0
      %1428 = vmatprep.subr.bf16.mxu0 0
      %1429 = vmatpush1.bf16.msra.mxu0 0
      %1430 = vmatprep.subr.bf16.mxu0 0
      %1431 = vmatpush1.bf16.msra.mxu0 0
      %1432 = vmatprep.subr.bf16.mxu0 0
      %1433 = vmatpush1.bf16.msra.mxu0 0
      %1434 = vmatprep.mubr.bf16.mxu0 0
      %1435 = vmatmul.mubr.bf16.gmra.mrb[0].mxu0 %v1355
      %v1436 = vpop.f32.mrb[0].mxu0
      %v1437 = vadd.f32 %v1156, %v1436
      %v1438 = vpop.f32.mrb[0].mxu0
      %v1439 = vpop.f32.mrb[0].mxu0
      %v1440 = vadd.f32 %v1159, %v1439
      %v1441 = vpop.f32.mrb[0].mxu0
      %1442 = vmatprep.mubr.bf16.mxu0 0
      %1443 = vmatmul.mubr.bf16.gmra.mrb[0].mxu0 %v1358
      %v1444 = vpop.f32.mrb[0].mxu0
      %v1445 = vadd.f32 %v1164, %v1444
      %v1446 = vpop.f32.mrb[0].mxu0
      %v1447 = vpop.f32.mrb[0].mxu0
      %v1448 = vadd.f32 %v1167, %v1447
      %v1449 = vpop.f32.mrb[0].mxu0
      %1450 = vmatprep.mubr.bf16.mxu0 0
      %1451 = vmatmul.mubr.bf16.gmra.mrb[0].mxu0 %v1361
      %v1452 = vpop.f32.mrb[0].mxu0
      %v1453 = vadd.f32 %v1172, %v1452
      %v1454 = vpop.f32.mrb[0].mxu0
      %v1455 = vpop.f32.mrb[0].mxu0
      %v1456 = vadd.f32 %v1175, %v1455
      %v1457 = vpop.f32.mrb[0].mxu0
      %1458 = vmatprep.mubr.bf16.mxu0 0
      %1459 = vmatmul.mubr.bf16.gmra.mrb[0].mxu0 %v1364
      %v1460 = vpop.f32.mrb[0].mxu0
      %v1461 = vadd.f32 %v1180, %v1460
      %v1462 = vpop.f32.mrb[0].mxu0
      %v1463 = vpop.f32.mrb[0].mxu0
      %v1464 = vadd.f32 %v1183, %v1463
      %v1465 = vpop.f32.mrb[0].mxu0
      %1466 = vmatprep.mubr.bf16.mxu0 0
      %1467 = vmatmul.mubr.bf16.gmra.mrb[0].mxu0 %v1367
      %v1468 = vpop.f32.mrb[0].mxu0
      %v1469 = vadd.f32 %v1188, %v1468
      %v1470 = vpop.f32.mrb[0].mxu0
      %v1471 = vpop.f32.mrb[0].mxu0
      %v1472 = vadd.f32 %v1191, %v1471
      %v1473 = vpop.f32.mrb[0].mxu0
      %1474 = vmatprep.mubr.bf16.mxu0 0
      %1475 = vmatmul.mubr.bf16.gmra.mrb[0].mxu0 %v1370
      %v1476 = vpop.f32.mrb[0].mxu0
      %v1477 = vadd.f32 %v1196, %v1476
      %v1478 = vpop.f32.mrb[0].mxu0
      %v1479 = vpop.f32.mrb[0].mxu0
      %v1480 = vadd.f32 %v1199, %v1479
      %v1481 = vpop.f32.mrb[0].mxu0
      %1482 = vmatprep.mubr.bf16.mxu0 0
      %1483 = vmatmul.mubr.bf16.gmra.mrb[0].mxu0 %v1373
      %v1484 = vpop.f32.mrb[0].mxu0
      %v1485 = vadd.f32 %v1204, %v1484
      %v1486 = vpop.f32.mrb[0].mxu0
      %v1487 = vpop.f32.mrb[0].mxu0
      %v1488 = vadd.f32 %v1207, %v1487
      %v1489 = vpop.f32.mrb[0].mxu0
      %1490 = vmatprep.mubr.bf16.mxu0 0
      %1491 = vmatmul.mubr.bf16.gmra.mrb[0].mxu0 %v1376
      %v1492 = vpop.f32.mrb[0].mxu0
      %v1493 = vadd.f32 %v1212, %v1492
      %v1494 = vpop.f32.mrb[0].mxu0
      %v1495 = vpop.f32.mrb[0].mxu0
      %v1496 = vadd.f32 %v1215, %v1495
      %v1497 = vpop.f32.mrb[0].mxu0
      %1498 = vmatprep.mubr.bf16.mxu0 0
      %1499 = vmatmul.mubr.bf16.gmra.mrb[0].mxu0 %v1379
      %v1500 = vpop.f32.mrb[0].mxu0
      %v1501 = vadd.f32 %v1220, %v1500
      %v1502 = vpop.f32.mrb[0].mxu0
      %v1503 = vpop.f32.mrb[0].mxu0
      %v1504 = vadd.f32 %v1223, %v1503
      %v1505 = vpop.f32.mrb[0].mxu0
      %1506 = vmatprep.mubr.bf16.mxu0 0
      %1507 = vmatmul.mubr.bf16.gmra.mrb[0].mxu0 %v1382
      %v1508 = vpop.f32.mrb[0].mxu0
      %v1509 = vadd.f32 %v1228, %v1508
      %v1510 = vpop.f32.mrb[0].mxu0
      %v1511 = vpop.f32.mrb[0].mxu0
      %v1512 = vadd.f32 %v1231, %v1511
      %v1513 = vpop.f32.mrb[0].mxu0
      %1514 = vmatprep.mubr.bf16.mxu0 0
      %1515 = vmatmul.mubr.bf16.gmra.mrb[0].mxu0 %v1385
      %v1516 = vpop.f32.mrb[0].mxu0
      %v1517 = vadd.f32 %v1236, %v1516
      %v1518 = vpop.f32.mrb[0].mxu0
      %v1519 = vpop.f32.mrb[0].mxu0
      %v1520 = vadd.f32 %v1239, %v1519
      %v1521 = vpop.f32.mrb[0].mxu0
      %1522 = vmatprep.mubr.bf16.mxu0 0
      %1523 = vmatmul.mubr.bf16.gmra.mrb[0].mxu0 %v1388
      %v1524 = vpop.f32.mrb[0].mxu0
      %v1525 = vadd.f32 %v1244, %v1524
      %v1526 = vpop.f32.mrb[0].mxu0
      %v1527 = vpop.f32.mrb[0].mxu0
      %v1528 = vadd.f32 %v1247, %v1527
      %v1529 = vpop.f32.mrb[0].mxu0
      %1530 = vmatprep.mubr.bf16.mxu0 0
      %1531 = vmatmul.mubr.bf16.gmra.mrb[0].mxu0 %v1391
      %v1532 = vpop.f32.mrb[0].mxu0
      %v1533 = vadd.f32 %v1252, %v1532
      %v1534 = vpop.f32.mrb[0].mxu0
      %v1535 = vpop.f32.mrb[0].mxu0
      %v1536 = vadd.f32 %v1255, %v1535
      %v1537 = vpop.f32.mrb[0].mxu0
      %1538 = vmatprep.mubr.bf16.mxu0 0
      %1539 = vmatmul.mubr.bf16.gmra.mrb[0].mxu0 %v1394
      %v1540 = vpop.f32.mrb[0].mxu0
      %v1541 = vadd.f32 %v1260, %v1540
      %v1542 = vpop.f32.mrb[0].mxu0
      %v1543 = vpop.f32.mrb[0].mxu0
      %v1544 = vadd.f32 %v1263, %v1543
      %v1545 = vpop.f32.mrb[0].mxu0
      %1546 = vmatprep.mubr.bf16.mxu0 0
      %1547 = vmatmul.mubr.bf16.gmra.mrb[0].mxu0 %v1397
      %v1548 = vpop.f32.mrb[0].mxu0
      %v1549 = vadd.f32 %v1268, %v1548
      %v1550 = vpop.f32.mrb[0].mxu0
      %v1551 = vpop.f32.mrb[0].mxu0
      %v1552 = vadd.f32 %v1271, %v1551
      %v1553 = vpop.f32.mrb[0].mxu0
      %1554 = vmatprep.mubr.bf16.mxu0 0
      %1555 = vmatmul.mubr.bf16.gmra.mrb[0].mxu0 %v1400
      %v1556 = vpop.f32.mrb[0].mxu0
      %v1557 = vadd.f32 %v1276, %v1556
      %v1558 = vpop.f32.mrb[0].mxu0
      %v1559 = vpop.f32.mrb[0].mxu0
      %v1560 = vadd.f32 %v1279, %v1559
      %v1561 = vpop.f32.mrb[0].mxu0
      %1562 = vdwg.mxu0
      %v1563 = vld [vmem:[#allocation2 + $0x8] sm:$0xf]
      %v1564 = vld [vmem:[#allocation2 + $0xc] sm:$0xf]
      %v1565 = vld [vmem:[#allocation2 + $0x10] sm:$0x1]
      %v1566 = vld [vmem:[#allocation2 + $0x1c] sm:$0xf]
      %v1567 = vld [vmem:[#allocation2 + $0x20] sm:$0xf]
      %v1568 = vld [vmem:[#allocation2 + $0x24] sm:$0x1]
      %v1569 = vld [vmem:[#allocation2 + $0x30] sm:$0xf]
      %v1570 = vld [vmem:[#allocation2 + $0x34] sm:$0xf]
      %v1571 = vld [vmem:[#allocation2 + $0x38] sm:$0x1]
      %v1572 = vld [vmem:[#allocation2 + $0x44] sm:$0xf]
      %v1573 = vld [vmem:[#allocation2 + $0x48] sm:$0xf]
      %v1574 = vld [vmem:[#allocation2 + $0x4c] sm:$0x1]
      %v1575 = vld [vmem:[#allocation2 + $0x58] sm:$0xf]
      %v1576 = vld [vmem:[#allocation2 + $0x5c] sm:$0xf]
      %v1577 = vld [vmem:[#allocation2 + $0x60] sm:$0x1]
      %v1578 = vld [vmem:[#allocation2 + $0x6c] sm:$0xf]
      %v1579 = vld [vmem:[#allocation2 + $0x70] sm:$0xf]
      %v1580 = vld [vmem:[#allocation2 + $0x74] sm:$0x1]
      %v1581 = vld [vmem:[#allocation2 + $0x80] sm:$0xf]
      %v1582 = vld [vmem:[#allocation2 + $0x84] sm:$0xf]
      %v1583 = vld [vmem:[#allocation2 + $0x88] sm:$0x1]
      %v1584 = vld [vmem:[#allocation2 + $0x94] sm:$0xf]
      %v1585 = vld [vmem:[#allocation2 + $0x98] sm:$0xf]
      %v1586 = vld [vmem:[#allocation2 + $0x9c] sm:$0x1]
      %v1587 = vld [vmem:[#allocation2 + $0xa8] sm:$0xf]
      %v1588 = vld [vmem:[#allocation2 + $0xac] sm:$0xf]
      %v1589 = vld [vmem:[#allocation2 + $0xb0] sm:$0x1]
      %v1590 = vld [vmem:[#allocation2 + $0xbc] sm:$0xf]
      %v1591 = vld [vmem:[#allocation2 + $0xc0] sm:$0xf]
      %v1592 = vld [vmem:[#allocation2 + $0xc4] sm:$0x1]
      %v1593 = vld [vmem:[#allocation2 + $0xd0] sm:$0xf]
      %v1594 = vld [vmem:[#allocation2 + $0xd4] sm:$0xf]
      %v1595 = vld [vmem:[#allocation2 + $0xd8] sm:$0x1]
      %v1596 = vld [vmem:[#allocation2 + $0xe4] sm:$0xf]
      %v1597 = vld [vmem:[#allocation2 + $0xe8] sm:$0xf]
      %v1598 = vld [vmem:[#allocation2 + $0xec] sm:$0x1]
      %v1599 = vld [vmem:[#allocation2 + $0xf8] sm:$0xf]
      %v1600 = vld [vmem:[#allocation2 + $0xfc] sm:$0xf]
      %v1601 = vld [vmem:[#allocation2 + $0x100] sm:$0x1]
      %v1602 = vld [vmem:[#allocation2 + $0x10c] sm:$0xf]
      %v1603 = vld [vmem:[#allocation2 + $0x110] sm:$0xf]
      %v1604 = vld [vmem:[#allocation2 + $0x114] sm:$0x1]
      %v1605 = vld [vmem:[#allocation2 + $0x120] sm:$0xf]
      %v1606 = vld [vmem:[#allocation2 + $0x124] sm:$0xf]
      %v1607 = vld [vmem:[#allocation2 + $0x128] sm:$0x1]
      %v1608 = vld [vmem:[#allocation2 + $0x134] sm:$0xf]
      %v1609 = vld [vmem:[#allocation2 + $0x138] sm:$0xf]
      %v1610 = vld [vmem:[#allocation2 + $0x13c] sm:$0x1]
      %vm1611 = vsmask.f32 3328
      %vm1612 = vsmask.f32 7440
      %vm1613 = vmor %vm1611, %vm1612
      %v1615 = vshrl.u32 %v1563, 16
      %v1617 = vrot.slane %v1615, 4
      %v1618 = vshll.u32 %v1563, 16
      %v1620 = vrot.slane %v1618, 5
      %v1621 = vor.u32 %v1617, %v1620
      %v1622 = vrot.slane %v1621, 4
      %v1624 = vshll.u32 %v1564, 16
      %v1626 = vrot.slane %v1624, 5
      %v1627 = vsel %vm1613, %v1622, %v1626
      %v1628 = vshrl.u32 %v1564, 16
      %v1630 = vrot.slane %v1628, 4
      %v1631 = vor.u32 %v1630, %v1626
      %v1632 = vrot.slane %v1631, 4
      %v1634 = vshll.u32 %v1565, 16
      %v1636 = vrot.slane %v1634, 5
      %v1637 = vsel %vm1613, %v1632, %v1636
      %v1639 = vshrl.u32 %v1566, 16
      %v1641 = vrot.slane %v1639, 4
      %v1642 = vshll.u32 %v1566, 16
      %v1644 = vrot.slane %v1642, 5
      %v1645 = vor.u32 %v1641, %v1644
      %v1646 = vrot.slane %v1645, 4
      %v1648 = vshll.u32 %v1567, 16
      %v1650 = vrot.slane %v1648, 5
      %v1651 = vsel %vm1613, %v1646, %v1650
      %v1652 = vshrl.u32 %v1567, 16
      %v1654 = vrot.slane %v1652, 4
      %v1655 = vor.u32 %v1654, %v1650
      %v1656 = vrot.slane %v1655, 4
      %v1658 = vshll.u32 %v1568, 16
      %v1660 = vrot.slane %v1658, 5
      %v1661 = vsel %vm1613, %v1656, %v1660
      %v1663 = vshrl.u32 %v1569, 16
      %v1665 = vrot.slane %v1663, 4
      %v1666 = vshll.u32 %v1569, 16
      %v1668 = vrot.slane %v1666, 5
      %v1669 = vor.u32 %v1665, %v1668
      %v1670 = vrot.slane %v1669, 4
      %v1672 = vshll.u32 %v1570, 16
      %v1674 = vrot.slane %v1672, 5
      %v1675 = vsel %vm1613, %v1670, %v1674
      %v1676 = vshrl.u32 %v1570, 16
      %v1678 = vrot.slane %v1676, 4
      %v1679 = vor.u32 %v1678, %v1674
      %v1680 = vrot.slane %v1679, 4
      %v1682 = vshll.u32 %v1571, 16
      %v1684 = vrot.slane %v1682, 5
      %v1685 = vsel %vm1613, %v1680, %v1684
      %v1687 = vshrl.u32 %v1572, 16
      %v1689 = vrot.slane %v1687, 4
      %v1690 = vshll.u32 %v1572, 16
      %v1692 = vrot.slane %v1690, 5
      %v1693 = vor.u32 %v1689, %v1692
      %v1694 = vrot.slane %v1693, 4
      %v1696 = vshll.u32 %v1573, 16
      %v1698 = vrot.slane %v1696, 5
      %v1699 = vsel %vm1613, %v1694, %v1698
      %v1700 = vshrl.u32 %v1573, 16
      %v1702 = vrot.slane %v1700, 4
      %v1703 = vor.u32 %v1702, %v1698
      %v1704 = vrot.slane %v1703, 4
      %v1706 = vshll.u32 %v1574, 16
      %v1708 = vrot.slane %v1706, 5
      %v1709 = vsel %vm1613, %v1704, %v1708
      %v1711 = vshrl.u32 %v1575, 16
      %v1713 = vrot.slane %v1711, 4
      %v1714 = vshll.u32 %v1575, 16
      %v1716 = vrot.slane %v1714, 5
      %v1717 = vor.u32 %v1713, %v1716
      %v1718 = vrot.slane %v1717, 4
      %v1720 = vshll.u32 %v1576, 16
      %v1722 = vrot.slane %v1720, 5
      %v1723 = vsel %vm1613, %v1718, %v1722
      %v1724 = vshrl.u32 %v1576, 16
      %v1726 = vrot.slane %v1724, 4
      %v1727 = vor.u32 %v1726, %v1722
      %v1728 = vrot.slane %v1727, 4
      %v1730 = vshll.u32 %v1577, 16
      %v1732 = vrot.slane %v1730, 5
      %v1733 = vsel %vm1613, %v1728, %v1732
      %v1735 = vshrl.u32 %v1578, 16
      %v1737 = vrot.slane %v1735, 4
      %v1738 = vshll.u32 %v1578, 16
      %v1740 = vrot.slane %v1738, 5
      %v1741 = vor.u32 %v1737, %v1740
      %v1742 = vrot.slane %v1741, 4
      %v1744 = vshll.u32 %v1579, 16
      %v1746 = vrot.slane %v1744, 5
      %v1747 = vsel %vm1613, %v1742, %v1746
      %v1748 = vshrl.u32 %v1579, 16
      %v1750 = vrot.slane %v1748, 4
      %v1751 = vor.u32 %v1750, %v1746
      %v1752 = vrot.slane %v1751, 4
      %v1754 = vshll.u32 %v1580, 16
      %v1756 = vrot.slane %v1754, 5
      %v1757 = vsel %vm1613, %v1752, %v1756
      %v1759 = vshrl.u32 %v1581, 16
      %v1761 = vrot.slane %v1759, 4
      %v1762 = vshll.u32 %v1581, 16
      %v1764 = vrot.slane %v1762, 5
      %v1765 = vor.u32 %v1761, %v1764
      %v1766 = vrot.slane %v1765, 4
      %v1768 = vshll.u32 %v1582, 16
      %v1770 = vrot.slane %v1768, 5
      %v1771 = vsel %vm1613, %v1766, %v1770
      %v1772 = vshrl.u32 %v1582, 16
      %v1774 = vrot.slane %v1772, 4
      %v1775 = vor.u32 %v1774, %v1770
      %v1776 = vrot.slane %v1775, 4
      %v1778 = vshll.u32 %v1583, 16
      %v1780 = vrot.slane %v1778, 5
      %v1781 = vsel %vm1613, %v1776, %v1780
      %v1783 = vshrl.u32 %v1584, 16
      %v1785 = vrot.slane %v1783, 4
      %v1786 = vshll.u32 %v1584, 16
      %v1788 = vrot.slane %v1786, 5
      %v1789 = vor.u32 %v1785, %v1788
      %v1790 = vrot.slane %v1789, 4
      %v1792 = vshll.u32 %v1585, 16
      %v1794 = vrot.slane %v1792, 5
      %v1795 = vsel %vm1613, %v1790, %v1794
      %v1796 = vshrl.u32 %v1585, 16
      %v1798 = vrot.slane %v1796, 4
      %v1799 = vor.u32 %v1798, %v1794
      %v1800 = vrot.slane %v1799, 4
      %v1802 = vshll.u32 %v1586, 16
      %v1804 = vrot.slane %v1802, 5
      %v1805 = vsel %vm1613, %v1800, %v1804
      %v1807 = vshrl.u32 %v1587, 16
      %v1809 = vrot.slane %v1807, 4
      %v1810 = vshll.u32 %v1587, 16
      %v1812 = vrot.slane %v1810, 5
      %v1813 = vor.u32 %v1809, %v1812
      %v1814 = vrot.slane %v1813, 4
      %v1816 = vshll.u32 %v1588, 16
      %v1818 = vrot.slane %v1816, 5
      %v1819 = vsel %vm1613, %v1814, %v1818
      %v1820 = vshrl.u32 %v1588, 16
      %v1822 = vrot.slane %v1820, 4
      %v1823 = vor.u32 %v1822, %v1818
      %v1824 = vrot.slane %v1823, 4
      %v1826 = vshll.u32 %v1589, 16
      %v1828 = vrot.slane %v1826, 5
      %v1829 = vsel %vm1613, %v1824, %v1828
      %v1831 = vshrl.u32 %v1590, 16
      %v1833 = vrot.slane %v1831, 4
      %v1834 = vshll.u32 %v1590, 16
      %v1836 = vrot.slane %v1834, 5
      %v1837 = vor.u32 %v1833, %v1836
      %v1838 = vrot.slane %v1837, 4
      %v1840 = vshll.u32 %v1591, 16
      %v1842 = vrot.slane %v1840, 5
      %v1843 = vsel %vm1613, %v1838, %v1842
      %v1844 = vshrl.u32 %v1591, 16
      %v1846 = vrot.slane %v1844, 4
      %v1847 = vor.u32 %v1846, %v1842
      %v1848 = vrot.slane %v1847, 4
      %v1850 = vshll.u32 %v1592, 16
      %v1852 = vrot.slane %v1850, 5
      %v1853 = vsel %vm1613, %v1848, %v1852
      %v1855 = vshrl.u32 %v1593, 16
      %v1857 = vrot.slane %v1855, 4
      %v1858 = vshll.u32 %v1593, 16
      %v1860 = vrot.slane %v1858, 5
      %v1861 = vor.u32 %v1857, %v1860
      %v1862 = vrot.slane %v1861, 4
      %v1864 = vshll.u32 %v1594, 16
      %v1866 = vrot.slane %v1864, 5
      %v1867 = vsel %vm1613, %v1862, %v1866
      %v1868 = vshrl.u32 %v1594, 16
      %v1870 = vrot.slane %v1868, 4
      %v1871 = vor.u32 %v1870, %v1866
      %v1872 = vrot.slane %v1871, 4
      %v1874 = vshll.u32 %v1595, 16
      %v1876 = vrot.slane %v1874, 5
      %v1877 = vsel %vm1613, %v1872, %v1876
      %v1879 = vshrl.u32 %v1596, 16
      %v1881 = vrot.slane %v1879, 4
      %v1882 = vshll.u32 %v1596, 16
      %v1884 = vrot.slane %v1882, 5
      %v1885 = vor.u32 %v1881, %v1884
      %v1886 = vrot.slane %v1885, 4
      %v1888 = vshll.u32 %v1597, 16
      %v1890 = vrot.slane %v1888, 5
      %v1891 = vsel %vm1613, %v1886, %v1890
      %v1892 = vshrl.u32 %v1597, 16
      %v1894 = vrot.slane %v1892, 4
      %v1895 = vor.u32 %v1894, %v1890
      %v1896 = vrot.slane %v1895, 4
      %v1898 = vshll.u32 %v1598, 16
      %v1900 = vrot.slane %v1898, 5
      %v1901 = vsel %vm1613, %v1896, %v1900
      %v1903 = vshrl.u32 %v1599, 16
      %v1905 = vrot.slane %v1903, 4
      %v1906 = vshll.u32 %v1599, 16
      %v1908 = vrot.slane %v1906, 5
      %v1909 = vor.u32 %v1905, %v1908
      %v1910 = vrot.slane %v1909, 4
      %v1912 = vshll.u32 %v1600, 16
      %v1914 = vrot.slane %v1912, 5
      %v1915 = vsel %vm1613, %v1910, %v1914
      %v1916 = vshrl.u32 %v1600, 16
      %v1918 = vrot.slane %v1916, 4
      %v1919 = vor.u32 %v1918, %v1914
      %v1920 = vrot.slane %v1919, 4
      %v1922 = vshll.u32 %v1601, 16
      %v1924 = vrot.slane %v1922, 5
      %v1925 = vsel %vm1613, %v1920, %v1924
      %v1927 = vshrl.u32 %v1602, 16
      %v1929 = vrot.slane %v1927, 4
      %v1930 = vshll.u32 %v1602, 16
      %v1932 = vrot.slane %v1930, 5
      %v1933 = vor.u32 %v1929, %v1932
      %v1934 = vrot.slane %v1933, 4
      %v1936 = vshll.u32 %v1603, 16
      %v1938 = vrot.slane %v1936, 5
      %v1939 = vsel %vm1613, %v1934, %v1938
      %v1940 = vshrl.u32 %v1603, 16
      %v1942 = vrot.slane %v1940, 4
      %v1943 = vor.u32 %v1942, %v1938
      %v1944 = vrot.slane %v1943, 4
      %v1946 = vshll.u32 %v1604, 16
      %v1948 = vrot.slane %v1946, 5
      %v1949 = vsel %vm1613, %v1944, %v1948
      %v1951 = vshrl.u32 %v1605, 16
      %v1953 = vrot.slane %v1951, 4
      %v1954 = vshll.u32 %v1605, 16
      %v1956 = vrot.slane %v1954, 5
      %v1957 = vor.u32 %v1953, %v1956
      %v1958 = vrot.slane %v1957, 4
      %v1960 = vshll.u32 %v1606, 16
      %v1962 = vrot.slane %v1960, 5
      %v1963 = vsel %vm1613, %v1958, %v1962
      %v1964 = vshrl.u32 %v1606, 16
      %v1966 = vrot.slane %v1964, 4
      %v1967 = vor.u32 %v1966, %v1962
      %v1968 = vrot.slane %v1967, 4
      %v1970 = vshll.u32 %v1607, 16
      %v1972 = vrot.slane %v1970, 5
      %v1973 = vsel %vm1613, %v1968, %v1972
      %v1975 = vshrl.u32 %v1608, 16
      %v1977 = vrot.slane %v1975, 4
      %v1978 = vshll.u32 %v1608, 16
      %v1980 = vrot.slane %v1978, 5
      %v1981 = vor.u32 %v1977, %v1980
      %v1982 = vrot.slane %v1981, 4
      %v1984 = vshll.u32 %v1609, 16
      %v1986 = vrot.slane %v1984, 5
      %v1987 = vsel %vm1613, %v1982, %v1986
      %v1988 = vshrl.u32 %v1609, 16
      %v1990 = vrot.slane %v1988, 4
      %v1991 = vor.u32 %v1990, %v1986
      %v1992 = vrot.slane %v1991, 4
      %v1994 = vshll.u32 %v1610, 16
      %v1996 = vrot.slane %v1994, 5
      %v1997 = vsel %vm1613, %v1992, %v1996
      %s1998 = scalar_lea.vmem %s1, 64
      %v1999 = vld [vmem:[%s1998] sm:$0xf]
      %v2000 = vld [vmem:[%s1998 + $0x4] sm:$0xf]
      %v2001 = vld [vmem:[%s1998 + $0x8] sm:$0xf]
      %v2002 = vld [vmem:[%s1998 + $0xc] sm:$0xf]
      %v2003 = vld [vmem:[%s1998 + $0x10] sm:$0xf]
      %v2004 = vld [vmem:[%s1998 + $0x14] sm:$0xf]
      %v2005 = vld [vmem:[%s1998 + $0x18] sm:$0xf]
      %v2006 = vld [vmem:[%s1998 + $0x1c] sm:$0xf]
      %v2007 = vunpack.c.l.b16 %v1627
      %v2008 = vunpack.c.l.b16 %v1637
      %v2009 = vunpack.c.l.b16 %v1651
      %v2010 = vunpack.c.l.b16 %v1661
      %v2011 = vunpack.c.l.b16 %v1675
      %v2012 = vunpack.c.l.b16 %v1685
      %v2013 = vunpack.c.l.b16 %v1699
      %v2014 = vunpack.c.l.b16 %v1709
      %v2015 = vunpack.c.l.b16 %v1723
      %v2016 = vunpack.c.l.b16 %v1733
      %v2017 = vunpack.c.l.b16 %v1747
      %v2018 = vunpack.c.l.b16 %v1757
      %v2019 = vunpack.c.l.b16 %v1771
      %v2020 = vunpack.c.l.b16 %v1781
      %v2021 = vunpack.c.l.b16 %v1795
      %v2022 = vunpack.c.l.b16 %v1805
      %v2023 = vunpack.c.l.b16 %v1819
      %v2024 = vunpack.c.l.b16 %v1829
      %v2025 = vunpack.c.l.b16 %v1843
      %v2026 = vunpack.c.l.b16 %v1853
      %v2027 = vunpack.c.l.b16 %v1867
      %v2028 = vunpack.c.l.b16 %v1877
      %v2029 = vunpack.c.l.b16 %v1891
      %v2030 = vunpack.c.l.b16 %v1901
      %v2031 = vunpack.c.l.b16 %v1915
      %v2032 = vunpack.c.l.b16 %v1925
      %v2033 = vunpack.c.l.b16 %v1939
      %v2034 = vunpack.c.l.b16 %v1949
      %v2035 = vunpack.c.l.b16 %v1963
      %v2036 = vunpack.c.l.b16 %v1973
      %v2037 = vunpack.c.l.b16 %v1987
      %v2038 = vunpack.c.l.b16 %v1997
      %v2039 = vpack.c.b16 %v2008, %v2007
      %v2040 = vpack.c.b16 %v2010, %v2009
      %v2041 = vpack.c.b16 %v2012, %v2011
      %v2042 = vpack.c.b16 %v2014, %v2013
      %v2043 = vpack.c.b16 %v2016, %v2015
      %v2044 = vpack.c.b16 %v2018, %v2017
      %v2045 = vpack.c.b16 %v2020, %v2019
      %v2046 = vpack.c.b16 %v2022, %v2021
      %v2047 = vpack.c.b16 %v2024, %v2023
      %v2048 = vpack.c.b16 %v2026, %v2025
      %v2049 = vpack.c.b16 %v2028, %v2027
      %v2050 = vpack.c.b16 %v2030, %v2029
      %v2051 = vpack.c.b16 %v2032, %v2031
      %v2052 = vpack.c.b16 %v2034, %v2033
      %v2053 = vpack.c.b16 %v2036, %v2035
      %v2054 = vpack.c.b16 %v2038, %v2037
      %v2063 = vunpack.c.l.b16 %v1999
      %v2064 = vunpack.c.l.b16 %v2000
      %v2065 = vunpack.c.l.b16 %v2001
      %v2066 = vunpack.c.l.b16 %v2002
      %v2067 = vunpack.c.l.b16 %v2003
      %v2068 = vunpack.c.l.b16 %v2004
      %v2069 = vunpack.c.l.b16 %v2005
      %v2070 = vunpack.c.l.b16 %v2006
      %v2071 = vpack.c.b16 %v2064, %v2063
      %v2072 = vpack.c.b16 %v2066, %v2065
      %v2073 = vpack.c.b16 %v2068, %v2067
      %v2074 = vpack.c.b16 %v2070, %v2069
      %v2080 = vsel %vm1072, %v2039, 0
      %v2083 = vsel %vm1072, %v2040, 0
      %v2086 = vsel %vm1072, %v2041, 0
      %v2089 = vsel %vm1072, %v2042, 0
      %v2092 = vsel %vm1072, %v2043, 0
      %v2095 = vsel %vm1072, %v2044, 0
      %v2098 = vsel %vm1072, %v2045, 0
      %v2101 = vsel %vm1072, %v2046, 0
      %v2104 = vsel %vm1072, %v2047, 0
      %v2107 = vsel %vm1072, %v2048, 0
      %v2110 = vsel %vm1072, %v2049, 0
      %v2113 = vsel %vm1072, %v2050, 0
      %v2116 = vsel %vm1072, %v2051, 0
      %v2119 = vsel %vm1072, %v2052, 0
      %v2122 = vsel %vm1072, %v2053, 0
      %v2125 = vsel %vm1072, %v2054, 0
      %2127 = vmatprep.subr.bf16.mxu0 0
      %2128 = vmatpush1.bf16.msra.mxu0 %v2071
      %2129 = vmatprep.subr.bf16.mxu0 0
      %2130 = vmatpush1.bf16.msra.mxu0 %v2072
      %2131 = vmatprep.subr.bf16.mxu0 0
      %2132 = vmatpush1.bf16.msra.mxu0 %v2073
      %2133 = vmatprep.subr.bf16.mxu0 0
      %2134 = vmatpush1.bf16.msra.mxu0 %v2074
      %2135 = vmatprep.subr.bf16.mxu0 0
      %2136 = vmatpush1.bf16.msra.mxu0 0
      %2137 = vmatprep.subr.bf16.mxu0 0
      %2138 = vmatpush1.bf16.msra.mxu0 0
      %2139 = vmatprep.subr.bf16.mxu0 0
      %2140 = vmatpush1.bf16.msra.mxu0 0
      %2141 = vmatprep.subr.bf16.mxu0 0
      %2142 = vmatpush1.bf16.msra.mxu0 0
      %2143 = vmatprep.subr.bf16.mxu0 0
      %2144 = vmatpush1.bf16.msra.mxu0 0
      %2145 = vmatprep.subr.bf16.mxu0 0
      %2146 = vmatpush1.bf16.msra.mxu0 0
      %2147 = vmatprep.subr.bf16.mxu0 0
      %2148 = vmatpush1.bf16.msra.mxu0 0
      %2149 = vmatprep.subr.bf16.mxu0 0
      %2150 = vmatpush1.bf16.msra.mxu0 0
      %2151 = vmatprep.subr.bf16.mxu0 0
      %2152 = vmatpush1.bf16.msra.mxu0 0
      %2153 = vmatprep.subr.bf16.mxu0 0
      %2154 = vmatpush1.bf16.msra.mxu0 0
      %2155 = vmatprep.subr.bf16.mxu0 0
      %2156 = vmatpush1.bf16.msra.mxu0 0
      %2157 = vmatprep.subr.bf16.mxu0 0
      %2158 = vmatpush1.bf16.msra.mxu0 0
      %2159 = vmatprep.mubr.bf16.mxu0 0
      %2160 = vmatmul.mubr.bf16.gmra.mrb[0].mxu0 %v2080
      %v2161 = vpop.f32.mrb[0].mxu0
      %v2162 = vadd.f32 0.0, %v2161
      %v2163 = vpop.f32.mrb[0].mxu0
      %v2164 = vpop.f32.mrb[0].mxu0
      %v2165 = vadd.f32 0.0, %v2164
      %v2166 = vpop.f32.mrb[0].mxu0
      %2167 = vmatprep.mubr.bf16.mxu0 0
      %2168 = vmatmul.mubr.bf16.gmra.mrb[0].mxu0 %v2083
      %v2169 = vpop.f32.mrb[0].mxu0
      %v2170 = vadd.f32 0.0, %v2169
      %v2171 = vpop.f32.mrb[0].mxu0
      %v2172 = vpop.f32.mrb[0].mxu0
      %v2173 = vadd.f32 0.0, %v2172
      %v2174 = vpop.f32.mrb[0].mxu0
      %2175 = vmatprep.mubr.bf16.mxu0 0
      %2176 = vmatmul.mubr.bf16.gmra.mrb[0].mxu0 %v2086
      %v2177 = vpop.f32.mrb[0].mxu0
      %v2178 = vadd.f32 0.0, %v2177
      %v2179 = vpop.f32.mrb[0].mxu0
      %v2180 = vpop.f32.mrb[0].mxu0
      %v2181 = vadd.f32 0.0, %v2180
      %v2182 = vpop.f32.mrb[0].mxu0
      %2183 = vmatprep.mubr.bf16.mxu0 0
      %2184 = vmatmul.mubr.bf16.gmra.mrb[0].mxu0 %v2089
      %v2185 = vpop.f32.mrb[0].mxu0
      %v2186 = vadd.f32 0.0, %v2185
      %v2187 = vpop.f32.mrb[0].mxu0
      %v2188 = vpop.f32.mrb[0].mxu0
      %v2189 = vadd.f32 0.0, %v2188
      %v2190 = vpop.f32.mrb[0].mxu0
      %2191 = vmatprep.mubr.bf16.mxu0 0
      %2192 = vmatmul.mubr.bf16.gmra.mrb[0].mxu0 %v2092
      %v2193 = vpop.f32.mrb[0].mxu0
      %v2194 = vadd.f32 0.0, %v2193
      %v2195 = vpop.f32.mrb[0].mxu0
      %v2196 = vpop.f32.mrb[0].mxu0
      %v2197 = vadd.f32 0.0, %v2196
      %v2198 = vpop.f32.mrb[0].mxu0
      %2199 = vmatprep.mubr.bf16.mxu0 0
      %2200 = vmatmul.mubr.bf16.gmra.mrb[0].mxu0 %v2095
      %v2201 = vpop.f32.mrb[0].mxu0
      %v2202 = vadd.f32 0.0, %v2201
      %v2203 = vpop.f32.mrb[0].mxu0
      %v2204 = vpop.f32.mrb[0].mxu0
      %v2205 = vadd.f32 0.0, %v2204
      %v2206 = vpop.f32.mrb[0].mxu0
      %2207 = vmatprep.mubr.bf16.mxu0 0
      %2208 = vmatmul.mubr.bf16.gmra.mrb[0].mxu0 %v2098
      %v2209 = vpop.f32.mrb[0].mxu0
      %v2210 = vadd.f32 0.0, %v2209
      %v2211 = vpop.f32.mrb[0].mxu0
      %v2212 = vpop.f32.mrb[0].mxu0
      %v2213 = vadd.f32 0.0, %v2212
      %v2214 = vpop.f32.mrb[0].mxu0
      %2215 = vmatprep.mubr.bf16.mxu0 0
      %2216 = vmatmul.mubr.bf16.gmra.mrb[0].mxu0 %v2101
      %v2217 = vpop.f32.mrb[0].mxu0
      %v2218 = vadd.f32 0.0, %v2217
      %v2219 = vpop.f32.mrb[0].mxu0
      %v2220 = vpop.f32.mrb[0].mxu0
      %v2221 = vadd.f32 0.0, %v2220
      %v2222 = vpop.f32.mrb[0].mxu0
      %2223 = vmatprep.mubr.bf16.mxu0 0
      %2224 = vmatmul.mubr.bf16.gmra.mrb[0].mxu0 %v2104
      %v2225 = vpop.f32.mrb[0].mxu0
      %v2226 = vadd.f32 0.0, %v2225
      %v2227 = vpop.f32.mrb[0].mxu0
      %v2228 = vpop.f32.mrb[0].mxu0
      %v2229 = vadd.f32 0.0, %v2228
      %v2230 = vpop.f32.mrb[0].mxu0
      %2231 = vmatprep.mubr.bf16.mxu0 0
      %2232 = vmatmul.mubr.bf16.gmra.mrb[0].mxu0 %v2107
      %v2233 = vpop.f32.mrb[0].mxu0
      %v2234 = vadd.f32 0.0, %v2233
      %v2235 = vpop.f32.mrb[0].mxu0
      %v2236 = vpop.f32.mrb[0].mxu0
      %v2237 = vadd.f32 0.0, %v2236
      %v2238 = vpop.f32.mrb[0].mxu0
      %2239 = vmatprep.mubr.bf16.mxu0 0
      %2240 = vmatmul.mubr.bf16.gmra.mrb[0].mxu0 %v2110
      %v2241 = vpop.f32.mrb[0].mxu0
      %v2242 = vadd.f32 0.0, %v2241
      %v2243 = vpop.f32.mrb[0].mxu0
      %v2244 = vpop.f32.mrb[0].mxu0
      %v2245 = vadd.f32 0.0, %v2244
      %v2246 = vpop.f32.mrb[0].mxu0
      %2247 = vmatprep.mubr.bf16.mxu0 0
      %2248 = vmatmul.mubr.bf16.gmra.mrb[0].mxu0 %v2113
      %v2249 = vpop.f32.mrb[0].mxu0
      %v2250 = vadd.f32 0.0, %v2249
      %v2251 = vpop.f32.mrb[0].mxu0
      %v2252 = vpop.f32.mrb[0].mxu0
      %v2253 = vadd.f32 0.0, %v2252
      %v2254 = vpop.f32.mrb[0].mxu0
      %2255 = vmatprep.mubr.bf16.mxu0 0
      %2256 = vmatmul.mubr.bf16.gmra.mrb[0].mxu0 %v2116
      %v2257 = vpop.f32.mrb[0].mxu0
      %v2258 = vadd.f32 0.0, %v2257
      %v2259 = vpop.f32.mrb[0].mxu0
      %v2260 = vpop.f32.mrb[0].mxu0
      %v2261 = vadd.f32 0.0, %v2260
      %v2262 = vpop.f32.mrb[0].mxu0
      %2263 = vmatprep.mubr.bf16.mxu0 0
      %2264 = vmatmul.mubr.bf16.gmra.mrb[0].mxu0 %v2119
      %v2265 = vpop.f32.mrb[0].mxu0
      %v2266 = vadd.f32 0.0, %v2265
      %v2267 = vpop.f32.mrb[0].mxu0
      %v2268 = vpop.f32.mrb[0].mxu0
      %v2269 = vadd.f32 0.0, %v2268
      %v2270 = vpop.f32.mrb[0].mxu0
      %2271 = vmatprep.mubr.bf16.mxu0 0
      %2272 = vmatmul.mubr.bf16.gmra.mrb[0].mxu0 %v2122
      %v2273 = vpop.f32.mrb[0].mxu0
      %v2274 = vadd.f32 0.0, %v2273
      %v2275 = vpop.f32.mrb[0].mxu0
      %v2276 = vpop.f32.mrb[0].mxu0
      %v2277 = vadd.f32 0.0, %v2276
      %v2278 = vpop.f32.mrb[0].mxu0
      %2279 = vmatprep.mubr.bf16.mxu0 0
      %2280 = vmatmul.mubr.bf16.gmra.mrb[0].mxu0 %v2125
      %v2281 = vpop.f32.mrb[0].mxu0
      %v2282 = vadd.f32 0.0, %v2281
      %v2283 = vpop.f32.mrb[0].mxu0
      %v2284 = vpop.f32.mrb[0].mxu0
      %v2285 = vadd.f32 0.0, %v2284
      %v2286 = vpop.f32.mrb[0].mxu0
      %2287 = vdwg.mxu0
      %v2288 = vadd.f32 %v1437, %v2162
      %v2289 = vadd.f32 %v1440, %v2165
      %v2290 = vadd.f32 %v1445, %v2170
      %v2291 = vadd.f32 %v1448, %v2173
      %v2292 = vadd.f32 %v1453, %v2178
      %v2293 = vadd.f32 %v1456, %v2181
      %v2294 = vadd.f32 %v1461, %v2186
      %v2295 = vadd.f32 %v1464, %v2189
      %v2296 = vadd.f32 %v1469, %v2194
      %v2297 = vadd.f32 %v1472, %v2197
      %v2298 = vadd.f32 %v1477, %v2202
      %v2299 = vadd.f32 %v1480, %v2205
      %v2300 = vadd.f32 %v1485, %v2210
      %v2301 = vadd.f32 %v1488, %v2213
      %v2302 = vadd.f32 %v1493, %v2218
      %v2303 = vadd.f32 %v1496, %v2221
      %v2304 = vadd.f32 %v1501, %v2226
      %v2305 = vadd.f32 %v1504, %v2229
      %v2306 = vadd.f32 %v1509, %v2234
      %v2307 = vadd.f32 %v1512, %v2237
      %v2308 = vadd.f32 %v1517, %v2242
      %v2309 = vadd.f32 %v1520, %v2245
      %v2310 = vadd.f32 %v1525, %v2250
      %v2311 = vadd.f32 %v1528, %v2253
      %v2312 = vadd.f32 %v1533, %v2258
      %v2313 = vadd.f32 %v1536, %v2261
      %v2314 = vadd.f32 %v1541, %v2266
      %v2315 = vadd.f32 %v1544, %v2269
      %v2316 = vadd.f32 %v1549, %v2274
      %v2317 = vadd.f32 %v1552, %v2277
      %v2318 = vadd.f32 %v1557, %v2282
      %v2319 = vadd.f32 %v1560, %v2285
      %v2320 = vld [vmem:[%s516 + $0x4] sm:$0x8]
      %v2321 = vld [vmem:[%s516 + $0x8] sm:$0xf]
      %v2322 = vld [vmem:[%s516 + $0xc] sm:$0xf]
      %v2323 = vld [vmem:[%s516 + $0x18] sm:$0x8]
      %v2324 = vld [vmem:[%s516 + $0x1c] sm:$0xf]
      %v2325 = vld [vmem:[%s516 + $0x20] sm:$0xf]
      %v2326 = vld [vmem:[%s516 + $0x2c] sm:$0x8]
      %v2327 = vld [vmem:[%s516 + $0x30] sm:$0xf]
      %v2328 = vld [vmem:[%s516 + $0x34] sm:$0xf]
      %v2329 = vld [vmem:[%s516 + $0x40] sm:$0x8]
      %v2330 = vld [vmem:[%s516 + $0x44] sm:$0xf]
      %v2331 = vld [vmem:[%s516 + $0x48] sm:$0xf]
      %v2332 = vld [vmem:[%s516 + $0x54] sm:$0x8]
      %v2333 = vld [vmem:[%s516 + $0x58] sm:$0xf]
      %v2334 = vld [vmem:[%s516 + $0x5c] sm:$0xf]
      %v2335 = vld [vmem:[%s516 + $0x68] sm:$0x8]
      %v2336 = vld [vmem:[%s516 + $0x6c] sm:$0xf]
      %v2337 = vld [vmem:[%s516 + $0x70] sm:$0xf]
      %v2338 = vld [vmem:[%s516 + $0x7c] sm:$0x8]
      %v2339 = vld [vmem:[%s516 + $0x80] sm:$0xf]
      %v2340 = vld [vmem:[%s516 + $0x84] sm:$0xf]
      %v2341 = vld [vmem:[%s516 + $0x90] sm:$0x8]
      %v2342 = vld [vmem:[%s516 + $0x94] sm:$0xf]
      %v2343 = vld [vmem:[%s516 + $0x98] sm:$0xf]
      %v2344 = vld [vmem:[%s516 + $0xa4] sm:$0x8]
      %v2345 = vld [vmem:[%s516 + $0xa8] sm:$0xf]
      %v2346 = vld [vmem:[%s516 + $0xac] sm:$0xf]
      %v2347 = vld [vmem:[%s516 + $0xb8] sm:$0x8]
      %v2348 = vld [vmem:[%s516 + $0xbc] sm:$0xf]
      %v2349 = vld [vmem:[%s516 + $0xc0] sm:$0xf]
      %v2350 = vld [vmem:[%s516 + $0xcc] sm:$0x8]
      %v2351 = vld [vmem:[%s516 + $0xd0] sm:$0xf]
      %v2352 = vld [vmem:[%s516 + $0xd4] sm:$0xf]
      %v2353 = vld [vmem:[%s516 + $0xe0] sm:$0x8]
      %v2354 = vld [vmem:[%s516 + $0xe4] sm:$0xf]
      %v2355 = vld [vmem:[%s516 + $0xe8] sm:$0xf]
      %v2356 = vld [vmem:[%s516 + $0xf4] sm:$0x8]
      %v2357 = vld [vmem:[%s516 + $0xf8] sm:$0xf]
      %v2358 = vld [vmem:[%s516 + $0xfc] sm:$0xf]
      %v2359 = vld [vmem:[%s516 + $0x108] sm:$0x8]
      %v2360 = vld [vmem:[%s516 + $0x10c] sm:$0xf]
      %v2361 = vld [vmem:[%s516 + $0x110] sm:$0xf]
      %v2362 = vld [vmem:[%s516 + $0x11c] sm:$0x8]
      %v2363 = vld [vmem:[%s516 + $0x120] sm:$0xf]
      %v2364 = vld [vmem:[%s516 + $0x124] sm:$0xf]
      %v2365 = vld [vmem:[%s516 + $0x130] sm:$0x8]
      %v2366 = vld [vmem:[%s516 + $0x134] sm:$0xf]
      %v2367 = vld [vmem:[%s516 + $0x138] sm:$0xf]
      %v2369 = vshrl.u32 %v2320, 16
      %v2371 = vrot.slane %v2369, 7
      %v2372 = vrot.slane %v2371, 4
      %v2374 = vshrl.u32 %v2321, 16
      %v2376 = vrot.slane %v2374, 7
      %v2377 = vshll.u32 %v2321, 16
      %v2379 = vor.u32 %v2376, %v2377
      %v2380 = vsel %vm598, %v2372, %v2379
      %v2381 = vrot.slane %v2376, 4
      %v2383 = vshrl.u32 %v2322, 16
      %v2385 = vrot.slane %v2383, 7
      %v2386 = vshll.u32 %v2322, 16
      %v2388 = vor.u32 %v2385, %v2386
      %v2389 = vsel %vm598, %v2381, %v2388
      %v2391 = vshrl.u32 %v2323, 16
      %v2393 = vrot.slane %v2391, 7
      %v2394 = vrot.slane %v2393, 4
      %v2396 = vshrl.u32 %v2324, 16
      %v2398 = vrot.slane %v2396, 7
      %v2399 = vshll.u32 %v2324, 16
      %v2401 = vor.u32 %v2398, %v2399
      %v2402 = vsel %vm598, %v2394, %v2401
      %v2403 = vrot.slane %v2398, 4
      %v2405 = vshrl.u32 %v2325, 16
      %v2407 = vrot.slane %v2405, 7
      %v2408 = vshll.u32 %v2325, 16
      %v2410 = vor.u32 %v2407, %v2408
      %v2411 = vsel %vm598, %v2403, %v2410
      %v2413 = vshrl.u32 %v2326, 16
      %v2415 = vrot.slane %v2413, 7
      %v2416 = vrot.slane %v2415, 4
      %v2418 = vshrl.u32 %v2327, 16
      %v2420 = vrot.slane %v2418, 7
      %v2421 = vshll.u32 %v2327, 16
      %v2423 = vor.u32 %v2420, %v2421
      %v2424 = vsel %vm598, %v2416, %v2423
      %v2425 = vrot.slane %v2420, 4
      %v2427 = vshrl.u32 %v2328, 16
      %v2429 = vrot.slane %v2427, 7
      %v2430 = vshll.u32 %v2328, 16
      %v2432 = vor.u32 %v2429, %v2430
      %v2433 = vsel %vm598, %v2425, %v2432
      %v2435 = vshrl.u32 %v2329, 16
      %v2437 = vrot.slane %v2435, 7
      %v2438 = vrot.slane %v2437, 4
      %v2440 = vshrl.u32 %v2330, 16
      %v2442 = vrot.slane %v2440, 7
      %v2443 = vshll.u32 %v2330, 16
      %v2445 = vor.u32 %v2442, %v2443
      %v2446 = vsel %vm598, %v2438, %v2445
      %v2447 = vrot.slane %v2442, 4
      %v2449 = vshrl.u32 %v2331, 16
      %v2451 = vrot.slane %v2449, 7
      %v2452 = vshll.u32 %v2331, 16
      %v2454 = vor.u32 %v2451, %v2452
      %v2455 = vsel %vm598, %v2447, %v2454
      %v2457 = vshrl.u32 %v2332, 16
      %v2459 = vrot.slane %v2457, 7
      %v2460 = vrot.slane %v2459, 4
      %v2462 = vshrl.u32 %v2333, 16
      %v2464 = vrot.slane %v2462, 7
      %v2465 = vshll.u32 %v2333, 16
      %v2467 = vor.u32 %v2464, %v2465
      %v2468 = vsel %vm598, %v2460, %v2467
      %v2469 = vrot.slane %v2464, 4
      %v2471 = vshrl.u32 %v2334, 16
      %v2473 = vrot.slane %v2471, 7
      %v2474 = vshll.u32 %v2334, 16
      %v2476 = vor.u32 %v2473, %v2474
      %v2477 = vsel %vm598, %v2469, %v2476
      %v2479 = vshrl.u32 %v2335, 16
      %v2481 = vrot.slane %v2479, 7
      %v2482 = vrot.slane %v2481, 4
      %v2484 = vshrl.u32 %v2336, 16
      %v2486 = vrot.slane %v2484, 7
      %v2487 = vshll.u32 %v2336, 16
      %v2489 = vor.u32 %v2486, %v2487
      %v2490 = vsel %vm598, %v2482, %v2489
      %v2491 = vrot.slane %v2486, 4
      %v2493 = vshrl.u32 %v2337, 16
      %v2495 = vrot.slane %v2493, 7
      %v2496 = vshll.u32 %v2337, 16
      %v2498 = vor.u32 %v2495, %v2496
      %v2499 = vsel %vm598, %v2491, %v2498
      %v2501 = vshrl.u32 %v2338, 16
      %v2503 = vrot.slane %v2501, 7
      %v2504 = vrot.slane %v2503, 4
      %v2506 = vshrl.u32 %v2339, 16
      %v2508 = vrot.slane %v2506, 7
      %v2509 = vshll.u32 %v2339, 16
      %v2511 = vor.u32 %v2508, %v2509
      %v2512 = vsel %vm598, %v2504, %v2511
      %v2513 = vrot.slane %v2508, 4
      %v2515 = vshrl.u32 %v2340, 16
      %v2517 = vrot.slane %v2515, 7
      %v2518 = vshll.u32 %v2340, 16
      %v2520 = vor.u32 %v2517, %v2518
      %v2521 = vsel %vm598, %v2513, %v2520
      %v2523 = vshrl.u32 %v2341, 16
      %v2525 = vrot.slane %v2523, 7
      %v2526 = vrot.slane %v2525, 4
      %v2528 = vshrl.u32 %v2342, 16
      %v2530 = vrot.slane %v2528, 7
      %v2531 = vshll.u32 %v2342, 16
      %v2533 = vor.u32 %v2530, %v2531
      %v2534 = vsel %vm598, %v2526, %v2533
      %v2535 = vrot.slane %v2530, 4
      %v2537 = vshrl.u32 %v2343, 16
      %v2539 = vrot.slane %v2537, 7
      %v2540 = vshll.u32 %v2343, 16
      %v2542 = vor.u32 %v2539, %v2540
      %v2543 = vsel %vm598, %v2535, %v2542
      %v2545 = vshrl.u32 %v2344, 16
      %v2547 = vrot.slane %v2545, 7
      %v2548 = vrot.slane %v2547, 4
      %v2550 = vshrl.u32 %v2345, 16
      %v2552 = vrot.slane %v2550, 7
      %v2553 = vshll.u32 %v2345, 16
      %v2555 = vor.u32 %v2552, %v2553
      %v2556 = vsel %vm598, %v2548, %v2555
      %v2557 = vrot.slane %v2552, 4
      %v2559 = vshrl.u32 %v2346, 16
      %v2561 = vrot.slane %v2559, 7
      %v2562 = vshll.u32 %v2346, 16
      %v2564 = vor.u32 %v2561, %v2562
      %v2565 = vsel %vm598, %v2557, %v2564
      %v2567 = vshrl.u32 %v2347, 16
      %v2569 = vrot.slane %v2567, 7
      %v2570 = vrot.slane %v2569, 4
      %v2572 = vshrl.u32 %v2348, 16
      %v2574 = vrot.slane %v2572, 7
      %v2575 = vshll.u32 %v2348, 16
      %v2577 = vor.u32 %v2574, %v2575
      %v2578 = vsel %vm598, %v2570, %v2577
      %v2579 = vrot.slane %v2574, 4
      %v2581 = vshrl.u32 %v2349, 16
      %v2583 = vrot.slane %v2581, 7
      %v2584 = vshll.u32 %v2349, 16
      %v2586 = vor.u32 %v2583, %v2584
      %v2587 = vsel %vm598, %v2579, %v2586
      %v2589 = vshrl.u32 %v2350, 16
      %v2591 = vrot.slane %v2589, 7
      %v2592 = vrot.slane %v2591, 4
      %v2594 = vshrl.u32 %v2351, 16
      %v2596 = vrot.slane %v2594, 7
      %v2597 = vshll.u32 %v2351, 16
      %v2599 = vor.u32 %v2596, %v2597
      %v2600 = vsel %vm598, %v2592, %v2599
      %v2601 = vrot.slane %v2596, 4
      %v2603 = vshrl.u32 %v2352, 16
      %v2605 = vrot.slane %v2603, 7
      %v2606 = vshll.u32 %v2352, 16
      %v2608 = vor.u32 %v2605, %v2606
      %v2609 = vsel %vm598, %v2601, %v2608
      %v2611 = vshrl.u32 %v2353, 16
      %v2613 = vrot.slane %v2611, 7
      %v2614 = vrot.slane %v2613, 4
      %v2616 = vshrl.u32 %v2354, 16
      %v2618 = vrot.slane %v2616, 7
      %v2619 = vshll.u32 %v2354, 16
      %v2621 = vor.u32 %v2618, %v2619
      %v2622 = vsel %vm598, %v2614, %v2621
      %v2623 = vrot.slane %v2618, 4
      %v2625 = vshrl.u32 %v2355, 16
      %v2627 = vrot.slane %v2625, 7
      %v2628 = vshll.u32 %v2355, 16
      %v2630 = vor.u32 %v2627, %v2628
      %v2631 = vsel %vm598, %v2623, %v2630
      %v2633 = vshrl.u32 %v2356, 16
      %v2635 = vrot.slane %v2633, 7
      %v2636 = vrot.slane %v2635, 4
      %v2638 = vshrl.u32 %v2357, 16
      %v2640 = vrot.slane %v2638, 7
      %v2641 = vshll.u32 %v2357, 16
      %v2643 = vor.u32 %v2640, %v2641
      %v2644 = vsel %vm598, %v2636, %v2643
      %v2645 = vrot.slane %v2640, 4
      %v2647 = vshrl.u32 %v2358, 16
      %v2649 = vrot.slane %v2647, 7
      %v2650 = vshll.u32 %v2358, 16
      %v2652 = vor.u32 %v2649, %v2650
      %v2653 = vsel %vm598, %v2645, %v2652
      %v2655 = vshrl.u32 %v2359, 16
      %v2657 = vrot.slane %v2655, 7
      %v2658 = vrot.slane %v2657, 4
      %v2660 = vshrl.u32 %v2360, 16
      %v2662 = vrot.slane %v2660, 7
      %v2663 = vshll.u32 %v2360, 16
      %v2665 = vor.u32 %v2662, %v2663
      %v2666 = vsel %vm598, %v2658, %v2665
      %v2667 = vrot.slane %v2662, 4
      %v2669 = vshrl.u32 %v2361, 16
      %v2671 = vrot.slane %v2669, 7
      %v2672 = vshll.u32 %v2361, 16
      %v2674 = vor.u32 %v2671, %v2672
      %v2675 = vsel %vm598, %v2667, %v2674
      %v2677 = vshrl.u32 %v2362, 16
      %v2679 = vrot.slane %v2677, 7
      %v2680 = vrot.slane %v2679, 4
      %v2682 = vshrl.u32 %v2363, 16
      %v2684 = vrot.slane %v2682, 7
      %v2685 = vshll.u32 %v2363, 16
      %v2687 = vor.u32 %v2684, %v2685
      %v2688 = vsel %vm598, %v2680, %v2687
      %v2689 = vrot.slane %v2684, 4
      %v2691 = vshrl.u32 %v2364, 16
      %v2693 = vrot.slane %v2691, 7
      %v2694 = vshll.u32 %v2364, 16
      %v2696 = vor.u32 %v2693, %v2694
      %v2697 = vsel %vm598, %v2689, %v2696
      %v2699 = vshrl.u32 %v2365, 16
      %v2701 = vrot.slane %v2699, 7
      %v2702 = vrot.slane %v2701, 4
      %v2704 = vshrl.u32 %v2366, 16
      %v2706 = vrot.slane %v2704, 7
      %v2707 = vshll.u32 %v2366, 16
      %v2709 = vor.u32 %v2706, %v2707
      %v2710 = vsel %vm598, %v2702, %v2709
      %v2711 = vrot.slane %v2706, 4
      %v2713 = vshrl.u32 %v2367, 16
      %v2715 = vrot.slane %v2713, 7
      %v2716 = vshll.u32 %v2367, 16
      %v2718 = vor.u32 %v2715, %v2716
      %v2719 = vsel %vm598, %v2711, %v2718
      %s2720 = scalar_lea.vmem %s1, 96
      %v2721 = vld [vmem:[%s2720] sm:$0xf]
      %v2722 = vld [vmem:[%s2720 + $0x4] sm:$0xf]
      %v2723 = vld [vmem:[%s2720 + $0x8] sm:$0xf]
      %v2724 = vld [vmem:[%s2720 + $0xc] sm:$0xf]
      %v2725 = vld [vmem:[%s2720 + $0x10] sm:$0xf]
      %v2726 = vld [vmem:[%s2720 + $0x14] sm:$0xf]
      %v2727 = vld [vmem:[%s2720 + $0x18] sm:$0xf]
      %v2728 = vld [vmem:[%s2720 + $0x1c] sm:$0xf]
      %v2729 = vunpack.c.l.b16 %v2380
      %v2730 = vunpack.c.l.b16 %v2389
      %v2731 = vunpack.c.l.b16 %v2402
      %v2732 = vunpack.c.l.b16 %v2411
      %v2733 = vunpack.c.l.b16 %v2424
      %v2734 = vunpack.c.l.b16 %v2433
      %v2735 = vunpack.c.l.b16 %v2446
      %v2736 = vunpack.c.l.b16 %v2455
      %v2737 = vunpack.c.l.b16 %v2468
      %v2738 = vunpack.c.l.b16 %v2477
      %v2739 = vunpack.c.l.b16 %v2490
      %v2740 = vunpack.c.l.b16 %v2499
      %v2741 = vunpack.c.l.b16 %v2512
      %v2742 = vunpack.c.l.b16 %v2521
      %v2743 = vunpack.c.l.b16 %v2534
      %v2744 = vunpack.c.l.b16 %v2543
      %v2745 = vunpack.c.l.b16 %v2556
      %v2746 = vunpack.c.l.b16 %v2565
      %v2747 = vunpack.c.l.b16 %v2578
      %v2748 = vunpack.c.l.b16 %v2587
      %v2749 = vunpack.c.l.b16 %v2600
      %v2750 = vunpack.c.l.b16 %v2609
      %v2751 = vunpack.c.l.b16 %v2622
      %v2752 = vunpack.c.l.b16 %v2631
      %v2753 = vunpack.c.l.b16 %v2644
      %v2754 = vunpack.c.l.b16 %v2653
      %v2755 = vunpack.c.l.b16 %v2666
      %v2756 = vunpack.c.l.b16 %v2675
      %v2757 = vunpack.c.l.b16 %v2688
      %v2758 = vunpack.c.l.b16 %v2697
      %v2759 = vunpack.c.l.b16 %v2710
      %v2760 = vunpack.c.l.b16 %v2719
      %v2761 = vpack.c.b16 %v2730, %v2729
      %v2762 = vpack.c.b16 %v2732, %v2731
      %v2763 = vpack.c.b16 %v2734, %v2733
      %v2764 = vpack.c.b16 %v2736, %v2735
      %v2765 = vpack.c.b16 %v2738, %v2737
      %v2766 = vpack.c.b16 %v2740, %v2739
      %v2767 = vpack.c.b16 %v2742, %v2741
      %v2768 = vpack.c.b16 %v2744, %v2743
      %v2769 = vpack.c.b16 %v2746, %v2745
      %v2770 = vpack.c.b16 %v2748, %v2747
      %v2771 = vpack.c.b16 %v2750, %v2749
      %v2772 = vpack.c.b16 %v2752, %v2751
      %v2773 = vpack.c.b16 %v2754, %v2753
      %v2774 = vpack.c.b16 %v2756, %v2755
      %v2775 = vpack.c.b16 %v2758, %v2757
      %v2776 = vpack.c.b16 %v2760, %v2759
      %v2785 = vunpack.c.l.b16 %v2721
      %v2786 = vunpack.c.l.b16 %v2722
      %v2787 = vunpack.c.l.b16 %v2723
      %v2788 = vunpack.c.l.b16 %v2724
      %v2789 = vunpack.c.l.b16 %v2725
      %v2790 = vunpack.c.l.b16 %v2726
      %v2791 = vunpack.c.l.b16 %v2727
      %v2792 = vunpack.c.l.b16 %v2728
      %v2793 = vpack.c.b16 %v2786, %v2785
      %v2794 = vpack.c.b16 %v2788, %v2787
      %v2795 = vpack.c.b16 %v2790, %v2789
      %v2796 = vpack.c.b16 %v2792, %v2791
      %v2802 = vsel %vm1072, %v2761, 0
      %v2805 = vsel %vm1072, %v2762, 0
      %v2808 = vsel %vm1072, %v2763, 0
      %v2811 = vsel %vm1072, %v2764, 0
      %v2814 = vsel %vm1072, %v2765, 0
      %v2817 = vsel %vm1072, %v2766, 0
      %v2820 = vsel %vm1072, %v2767, 0
      %v2823 = vsel %vm1072, %v2768, 0
      %v2826 = vsel %vm1072, %v2769, 0
      %v2829 = vsel %vm1072, %v2770, 0
      %v2832 = vsel %vm1072, %v2771, 0
      %v2835 = vsel %vm1072, %v2772, 0
      %v2838 = vsel %vm1072, %v2773, 0
      %v2841 = vsel %vm1072, %v2774, 0
      %v2844 = vsel %vm1072, %v2775, 0
      %v2847 = vsel %vm1072, %v2776, 0
      %2849 = vmatprep.subr.bf16.mxu0 0
      %2850 = vmatpush1.bf16.msra.mxu0 %v2793
      %2851 = vmatprep.subr.bf16.mxu0 0
      %2852 = vmatpush1.bf16.msra.mxu0 %v2794
      %2853 = vmatprep.subr.bf16.mxu0 0
      %2854 = vmatpush1.bf16.msra.mxu0 %v2795
      %2855 = vmatprep.subr.bf16.mxu0 0
      %2856 = vmatpush1.bf16.msra.mxu0 %v2796
      %2857 = vmatprep.subr.bf16.mxu0 0
      %2858 = vmatpush1.bf16.msra.mxu0 0
      %2859 = vmatprep.subr.bf16.mxu0 0
      %2860 = vmatpush1.bf16.msra.mxu0 0
      %2861 = vmatprep.subr.bf16.mxu0 0
      %2862 = vmatpush1.bf16.msra.mxu0 0
      %2863 = vmatprep.subr.bf16.mxu0 0
      %2864 = vmatpush1.bf16.msra.mxu0 0
      %2865 = vmatprep.subr.bf16.mxu0 0
      %2866 = vmatpush1.bf16.msra.mxu0 0
      %2867 = vmatprep.subr.bf16.mxu0 0
      %2868 = vmatpush1.bf16.msra.mxu0 0
      %2869 = vmatprep.subr.bf16.mxu0 0
      %2870 = vmatpush1.bf16.msra.mxu0 0
      %2871 = vmatprep.subr.bf16.mxu0 0
      %2872 = vmatpush1.bf16.msra.mxu0 0
      %2873 = vmatprep.subr.bf16.mxu0 0
      %2874 = vmatpush1.bf16.msra.mxu0 0
      %2875 = vmatprep.subr.bf16.mxu0 0
      %2876 = vmatpush1.bf16.msra.mxu0 0
      %2877 = vmatprep.subr.bf16.mxu0 0
      %2878 = vmatpush1.bf16.msra.mxu0 0
      %2879 = vmatprep.subr.bf16.mxu0 0
      %2880 = vmatpush1.bf16.msra.mxu0 0
      %2881 = vmatprep.mubr.bf16.mxu0 0
      %2882 = vmatmul.mubr.bf16.gmra.mrb[0].mxu0 %v2802
      %v2883 = vpop.f32.mrb[0].mxu0
      %v2884 = vadd.f32 0.0, %v2883
      %v2885 = vpop.f32.mrb[0].mxu0
      %v2886 = vpop.f32.mrb[0].mxu0
      %v2887 = vadd.f32 0.0, %v2886
      %v2888 = vpop.f32.mrb[0].mxu0
      %2889 = vmatprep.mubr.bf16.mxu0 0
      %2890 = vmatmul.mubr.bf16.gmra.mrb[0].mxu0 %v2805
      %v2891 = vpop.f32.mrb[0].mxu0
      %v2892 = vadd.f32 0.0, %v2891
      %v2893 = vpop.f32.mrb[0].mxu0
      %v2894 = vpop.f32.mrb[0].mxu0
      %v2895 = vadd.f32 0.0, %v2894
      %v2896 = vpop.f32.mrb[0].mxu0
      %2897 = vmatprep.mubr.bf16.mxu0 0
      %2898 = vmatmul.mubr.bf16.gmra.mrb[0].mxu0 %v2808
      %v2899 = vpop.f32.mrb[0].mxu0
      %v2900 = vadd.f32 0.0, %v2899
      %v2901 = vpop.f32.mrb[0].mxu0
      %v2902 = vpop.f32.mrb[0].mxu0
      %v2903 = vadd.f32 0.0, %v2902
      %v2904 = vpop.f32.mrb[0].mxu0
      %2905 = vmatprep.mubr.bf16.mxu0 0
      %2906 = vmatmul.mubr.bf16.gmra.mrb[0].mxu0 %v2811
      %v2907 = vpop.f32.mrb[0].mxu0
      %v2908 = vadd.f32 0.0, %v2907
      %v2909 = vpop.f32.mrb[0].mxu0
      %v2910 = vpop.f32.mrb[0].mxu0
      %v2911 = vadd.f32 0.0, %v2910
      %v2912 = vpop.f32.mrb[0].mxu0
      %2913 = vmatprep.mubr.bf16.mxu0 0
      %2914 = vmatmul.mubr.bf16.gmra.mrb[0].mxu0 %v2814
      %v2915 = vpop.f32.mrb[0].mxu0
      %v2916 = vadd.f32 0.0, %v2915
      %v2917 = vpop.f32.mrb[0].mxu0
      %v2918 = vpop.f32.mrb[0].mxu0
      %v2919 = vadd.f32 0.0, %v2918
      %v2920 = vpop.f32.mrb[0].mxu0
      %2921 = vmatprep.mubr.bf16.mxu0 0
      %2922 = vmatmul.mubr.bf16.gmra.mrb[0].mxu0 %v2817
      %v2923 = vpop.f32.mrb[0].mxu0
      %v2924 = vadd.f32 0.0, %v2923
      %v2925 = vpop.f32.mrb[0].mxu0
      %v2926 = vpop.f32.mrb[0].mxu0
      %v2927 = vadd.f32 0.0, %v2926
      %v2928 = vpop.f32.mrb[0].mxu0
      %2929 = vmatprep.mubr.bf16.mxu0 0
      %2930 = vmatmul.mubr.bf16.gmra.mrb[0].mxu0 %v2820
      %v2931 = vpop.f32.mrb[0].mxu0
      %v2932 = vadd.f32 0.0, %v2931
      %v2933 = vpop.f32.mrb[0].mxu0
      %v2934 = vpop.f32.mrb[0].mxu0
      %v2935 = vadd.f32 0.0, %v2934
      %v2936 = vpop.f32.mrb[0].mxu0
      %2937 = vmatprep.mubr.bf16.mxu0 0
      %2938 = vmatmul.mubr.bf16.gmra.mrb[0].mxu0 %v2823
      %v2939 = vpop.f32.mrb[0].mxu0
      %v2940 = vadd.f32 0.0, %v2939
      %v2941 = vpop.f32.mrb[0].mxu0
      %v2942 = vpop.f32.mrb[0].mxu0
      %v2943 = vadd.f32 0.0, %v2942
      %v2944 = vpop.f32.mrb[0].mxu0
      %2945 = vmatprep.mubr.bf16.mxu0 0
      %2946 = vmatmul.mubr.bf16.gmra.mrb[0].mxu0 %v2826
      %v2947 = vpop.f32.mrb[0].mxu0
      %v2948 = vadd.f32 0.0, %v2947
      %v2949 = vpop.f32.mrb[0].mxu0
      %v2950 = vpop.f32.mrb[0].mxu0
      %v2951 = vadd.f32 0.0, %v2950
      %v2952 = vpop.f32.mrb[0].mxu0
      %2953 = vmatprep.mubr.bf16.mxu0 0
      %2954 = vmatmul.mubr.bf16.gmra.mrb[0].mxu0 %v2829
      %v2955 = vpop.f32.mrb[0].mxu0
      %v2956 = vadd.f32 0.0, %v2955
      %v2957 = vpop.f32.mrb[0].mxu0
      %v2958 = vpop.f32.mrb[0].mxu0
      %v2959 = vadd.f32 0.0, %v2958
      %v2960 = vpop.f32.mrb[0].mxu0
      %2961 = vmatprep.mubr.bf16.mxu0 0
      %2962 = vmatmul.mubr.bf16.gmra.mrb[0].mxu0 %v2832
      %v2963 = vpop.f32.mrb[0].mxu0
      %v2964 = vadd.f32 0.0, %v2963
      %v2965 = vpop.f32.mrb[0].mxu0
      %v2966 = vpop.f32.mrb[0].mxu0
      %v2967 = vadd.f32 0.0, %v2966
      %v2968 = vpop.f32.mrb[0].mxu0
      %2969 = vmatprep.mubr.bf16.mxu0 0
      %2970 = vmatmul.mubr.bf16.gmra.mrb[0].mxu0 %v2835
      %v2971 = vpop.f32.mrb[0].mxu0
      %v2972 = vadd.f32 0.0, %v2971
      %v2973 = vpop.f32.mrb[0].mxu0
      %v2974 = vpop.f32.mrb[0].mxu0
      %v2975 = vadd.f32 0.0, %v2974
      %v2976 = vpop.f32.mrb[0].mxu0
      %2977 = vmatprep.mubr.bf16.mxu0 0
      %2978 = vmatmul.mubr.bf16.gmra.mrb[0].mxu0 %v2838
      %v2979 = vpop.f32.mrb[0].mxu0
      %v2980 = vadd.f32 0.0, %v2979
      %v2981 = vpop.f32.mrb[0].mxu0
      %v2982 = vpop.f32.mrb[0].mxu0
      %v2983 = vadd.f32 0.0, %v2982
      %v2984 = vpop.f32.mrb[0].mxu0
      %2985 = vmatprep.mubr.bf16.mxu0 0
      %2986 = vmatmul.mubr.bf16.gmra.mrb[0].mxu0 %v2841
      %v2987 = vpop.f32.mrb[0].mxu0
      %v2988 = vadd.f32 0.0, %v2987
      %v2989 = vpop.f32.mrb[0].mxu0
      %v2990 = vpop.f32.mrb[0].mxu0
      %v2991 = vadd.f32 0.0, %v2990
      %v2992 = vpop.f32.mrb[0].mxu0
      %2993 = vmatprep.mubr.bf16.mxu0 0
      %2994 = vmatmul.mubr.bf16.gmra.mrb[0].mxu0 %v2844
      %v2995 = vpop.f32.mrb[0].mxu0
      %v2996 = vadd.f32 0.0, %v2995
      %v2997 = vpop.f32.mrb[0].mxu0
      %v2998 = vpop.f32.mrb[0].mxu0
      %v2999 = vadd.f32 0.0, %v2998
      %v3000 = vpop.f32.mrb[0].mxu0
      %3001 = vmatprep.mubr.bf16.mxu0 0
      %3002 = vmatmul.mubr.bf16.gmra.mrb[0].mxu0 %v2847
      %v3003 = vpop.f32.mrb[0].mxu0
      %v3004 = vadd.f32 0.0, %v3003
      %v3005 = vpop.f32.mrb[0].mxu0
      %v3006 = vpop.f32.mrb[0].mxu0
      %v3007 = vadd.f32 0.0, %v3006
      %v3008 = vpop.f32.mrb[0].mxu0
      %3009 = vdwg.mxu0
      %v3010 = vadd.f32 %v2288, %v2884
      %v3011 = vadd.f32 %v2289, %v2887
      %v3012 = vadd.f32 %v2290, %v2892
      %v3013 = vadd.f32 %v2291, %v2895
      %v3014 = vadd.f32 %v2292, %v2900
      %v3015 = vadd.f32 %v2293, %v2903
      %v3016 = vadd.f32 %v2294, %v2908
      %v3017 = vadd.f32 %v2295, %v2911
      %v3018 = vadd.f32 %v2296, %v2916
      %v3019 = vadd.f32 %v2297, %v2919
      %v3020 = vadd.f32 %v2298, %v2924
      %v3021 = vadd.f32 %v2299, %v2927
      %v3022 = vadd.f32 %v2300, %v2932
      %v3023 = vadd.f32 %v2301, %v2935
      %v3024 = vadd.f32 %v2302, %v2940
      %v3025 = vadd.f32 %v2303, %v2943
      %v3026 = vadd.f32 %v2304, %v2948
      %v3027 = vadd.f32 %v2305, %v2951
      %v3028 = vadd.f32 %v2306, %v2956
      %v3029 = vadd.f32 %v2307, %v2959
      %v3030 = vadd.f32 %v2308, %v2964
      %v3031 = vadd.f32 %v2309, %v2967
      %v3032 = vadd.f32 %v2310, %v2972
      %v3033 = vadd.f32 %v2311, %v2975
      %v3034 = vadd.f32 %v2312, %v2980
      %v3035 = vadd.f32 %v2313, %v2983
      %v3036 = vadd.f32 %v2314, %v2988
      %v3037 = vadd.f32 %v2315, %v2991
      %v3038 = vadd.f32 %v2316, %v2996
      %v3039 = vadd.f32 %v2317, %v2999
      %v3040 = vadd.f32 %v2318, %v3004
      %v3041 = vadd.f32 %v2319, %v3007
      %s3042 = scalar_lea.vmem %s1, 128
      %v3043 = vld [vmem:[%s3042] sm:$0xf]
      %v3044 = vld [vmem:[%s3042 + $0x4] sm:$0xf]
      %v3045 = vld [vmem:[%s3042 + $0x8] sm:$0xf]
      %v3046 = vld [vmem:[%s3042 + $0xc] sm:$0xf]
      %v3047 = vld [vmem:[%s3042 + $0x10] sm:$0xf]
      %v3048 = vld [vmem:[%s3042 + $0x14] sm:$0xf]
      %v3049 = vld [vmem:[%s3042 + $0x18] sm:$0xf]
      %v3050 = vld [vmem:[%s3042 + $0x1c] sm:$0xf]
      %v3083 = vunpack.c.l.b16 %v2321
      %v3084 = vunpack.c.l.b16 %v2322
      %v3085 = vunpack.c.l.b16 %v2324
      %v3086 = vunpack.c.l.b16 %v2325
      %v3087 = vunpack.c.l.b16 %v2327
      %v3088 = vunpack.c.l.b16 %v2328
      %v3089 = vunpack.c.l.b16 %v2330
      %v3090 = vunpack.c.l.b16 %v2331
      %v3091 = vunpack.c.l.b16 %v2333
      %v3092 = vunpack.c.l.b16 %v2334
      %v3093 = vunpack.c.l.b16 %v2336
      %v3094 = vunpack.c.l.b16 %v2337
      %v3095 = vunpack.c.l.b16 %v2339
      %v3096 = vunpack.c.l.b16 %v2340
      %v3097 = vunpack.c.l.b16 %v2342
      %v3098 = vunpack.c.l.b16 %v2343
      %v3099 = vunpack.c.l.b16 %v2345
      %v3100 = vunpack.c.l.b16 %v2346
      %v3101 = vunpack.c.l.b16 %v2348
      %v3102 = vunpack.c.l.b16 %v2349
      %v3103 = vunpack.c.l.b16 %v2351
      %v3104 = vunpack.c.l.b16 %v2352
      %v3105 = vunpack.c.l.b16 %v2354
      %v3106 = vunpack.c.l.b16 %v2355
      %v3107 = vunpack.c.l.b16 %v2357
      %v3108 = vunpack.c.l.b16 %v2358
      %v3109 = vunpack.c.l.b16 %v2360
      %v3110 = vunpack.c.l.b16 %v2361
      %v3111 = vunpack.c.l.b16 %v2363
      %v3112 = vunpack.c.l.b16 %v2364
      %v3113 = vunpack.c.l.b16 %v2366
      %v3114 = vunpack.c.l.b16 %v2367
      %v3115 = vpack.c.b16 %v3084, %v3083
      %v3116 = vpack.c.b16 %v3086, %v3085
      %v3117 = vpack.c.b16 %v3088, %v3087
      %v3118 = vpack.c.b16 %v3090, %v3089
      %v3119 = vpack.c.b16 %v3092, %v3091
      %v3120 = vpack.c.b16 %v3094, %v3093
      %v3121 = vpack.c.b16 %v3096, %v3095
      %v3122 = vpack.c.b16 %v3098, %v3097
      %v3123 = vpack.c.b16 %v3100, %v3099
      %v3124 = vpack.c.b16 %v3102, %v3101
      %v3125 = vpack.c.b16 %v3104, %v3103
      %v3126 = vpack.c.b16 %v3106, %v3105
      %v3127 = vpack.c.b16 %v3108, %v3107
      %v3128 = vpack.c.b16 %v3110, %v3109
      %v3129 = vpack.c.b16 %v3112, %v3111
      %v3130 = vpack.c.b16 %v3114, %v3113
      %v3139 = vunpack.c.l.b16 %v3043
      %v3140 = vunpack.c.l.b16 %v3044
      %v3141 = vunpack.c.l.b16 %v3045
      %v3142 = vunpack.c.l.b16 %v3046
      %v3143 = vunpack.c.l.b16 %v3047
      %v3144 = vunpack.c.l.b16 %v3048
      %v3145 = vunpack.c.l.b16 %v3049
      %v3146 = vunpack.c.l.b16 %v3050
      %v3147 = vpack.c.b16 %v3140, %v3139
      %v3148 = vpack.c.b16 %v3142, %v3141
      %v3149 = vpack.c.b16 %v3144, %v3143
      %v3150 = vpack.c.b16 %v3146, %v3145
      %v3156 = vsel %vm1072, %v3115, 0
      %v3159 = vsel %vm1072, %v3116, 0
      %v3162 = vsel %vm1072, %v3117, 0
      %v3165 = vsel %vm1072, %v3118, 0
      %v3168 = vsel %vm1072, %v3119, 0
      %v3171 = vsel %vm1072, %v3120, 0
      %v3174 = vsel %vm1072, %v3121, 0
      %v3177 = vsel %vm1072, %v3122, 0
      %v3180 = vsel %vm1072, %v3123, 0
      %v3183 = vsel %vm1072, %v3124, 0
      %v3186 = vsel %vm1072, %v3125, 0
      %v3189 = vsel %vm1072, %v3126, 0
      %v3192 = vsel %vm1072, %v3127, 0
      %v3195 = vsel %vm1072, %v3128, 0
      %v3198 = vsel %vm1072, %v3129, 0
      %v3201 = vsel %vm1072, %v3130, 0
      %3203 = vmatprep.subr.bf16.mxu0 0
      %3204 = vmatpush1.bf16.msra.mxu0 %v3147
      %3205 = vmatprep.subr.bf16.mxu0 0
      %3206 = vmatpush1.bf16.msra.mxu0 %v3148
      %3207 = vmatprep.subr.bf16.mxu0 0
      %3208 = vmatpush1.bf16.msra.mxu0 %v3149
      %3209 = vmatprep.subr.bf16.mxu0 0
      %3210 = vmatpush1.bf16.msra.mxu0 %v3150
      %3211 = vmatprep.subr.bf16.mxu0 0
      %3212 = vmatpush1.bf16.msra.mxu0 0
      %3213 = vmatprep.subr.bf16.mxu0 0
      %3214 = vmatpush1.bf16.msra.mxu0 0
      %3215 = vmatprep.subr.bf16.mxu0 0
      %3216 = vmatpush1.bf16.msra.mxu0 0
      %3217 = vmatprep.subr.bf16.mxu0 0
      %3218 = vmatpush1.bf16.msra.mxu0 0
      %3219 = vmatprep.subr.bf16.mxu0 0
      %3220 = vmatpush1.bf16.msra.mxu0 0
      %3221 = vmatprep.subr.bf16.mxu0 0
      %3222 = vmatpush1.bf16.msra.mxu0 0
      %3223 = vmatprep.subr.bf16.mxu0 0
      %3224 = vmatpush1.bf16.msra.mxu0 0
      %3225 = vmatprep.subr.bf16.mxu0 0
      %3226 = vmatpush1.bf16.msra.mxu0 0
      %3227 = vmatprep.subr.bf16.mxu0 0
      %3228 = vmatpush1.bf16.msra.mxu0 0
      %3229 = vmatprep.subr.bf16.mxu0 0
      %3230 = vmatpush1.bf16.msra.mxu0 0
      %3231 = vmatprep.subr.bf16.mxu0 0
      %3232 = vmatpush1.bf16.msra.mxu0 0
      %3233 = vmatprep.subr.bf16.mxu0 0
      %3234 = vmatpush1.bf16.msra.mxu0 0
      %3235 = vmatprep.mubr.bf16.mxu0 0
      %3236 = vmatmul.mubr.bf16.gmra.mrb[0].mxu0 %v3156
      %v3237 = vpop.f32.mrb[0].mxu0
      %v3238 = vadd.f32 0.0, %v3237
      %v3239 = vpop.f32.mrb[0].mxu0
      %v3240 = vpop.f32.mrb[0].mxu0
      %v3241 = vadd.f32 0.0, %v3240
      %v3242 = vpop.f32.mrb[0].mxu0
      %3243 = vmatprep.mubr.bf16.mxu0 0
      %3244 = vmatmul.mubr.bf16.gmra.mrb[0].mxu0 %v3159
      %v3245 = vpop.f32.mrb[0].mxu0
      %v3246 = vadd.f32 0.0, %v3245
      %v3247 = vpop.f32.mrb[0].mxu0
      %v3248 = vpop.f32.mrb[0].mxu0
      %v3249 = vadd.f32 0.0, %v3248
      %v3250 = vpop.f32.mrb[0].mxu0
      %3251 = vmatprep.mubr.bf16.mxu0 0
      %3252 = vmatmul.mubr.bf16.gmra.mrb[0].mxu0 %v3162
      %v3253 = vpop.f32.mrb[0].mxu0
      %v3254 = vadd.f32 0.0, %v3253
      %v3255 = vpop.f32.mrb[0].mxu0
      %v3256 = vpop.f32.mrb[0].mxu0
      %v3257 = vadd.f32 0.0, %v3256
      %v3258 = vpop.f32.mrb[0].mxu0
      %3259 = vmatprep.mubr.bf16.mxu0 0
      %3260 = vmatmul.mubr.bf16.gmra.mrb[0].mxu0 %v3165
      %v3261 = vpop.f32.mrb[0].mxu0
      %v3262 = vadd.f32 0.0, %v3261
      %v3263 = vpop.f32.mrb[0].mxu0
      %v3264 = vpop.f32.mrb[0].mxu0
      %v3265 = vadd.f32 0.0, %v3264
      %v3266 = vpop.f32.mrb[0].mxu0
      %3267 = vmatprep.mubr.bf16.mxu0 0
      %3268 = vmatmul.mubr.bf16.gmra.mrb[0].mxu0 %v3168
      %v3269 = vpop.f32.mrb[0].mxu0
      %v3270 = vadd.f32 0.0, %v3269
      %v3271 = vpop.f32.mrb[0].mxu0
      %v3272 = vpop.f32.mrb[0].mxu0
      %v3273 = vadd.f32 0.0, %v3272
      %v3274 = vpop.f32.mrb[0].mxu0
      %3275 = vmatprep.mubr.bf16.mxu0 0
      %3276 = vmatmul.mubr.bf16.gmra.mrb[0].mxu0 %v3171
      %v3277 = vpop.f32.mrb[0].mxu0
      %v3278 = vadd.f32 0.0, %v3277
      %v3279 = vpop.f32.mrb[0].mxu0
      %v3280 = vpop.f32.mrb[0].mxu0
      %v3281 = vadd.f32 0.0, %v3280
      %v3282 = vpop.f32.mrb[0].mxu0
      %3283 = vmatprep.mubr.bf16.mxu0 0
      %3284 = vmatmul.mubr.bf16.gmra.mrb[0].mxu0 %v3174
      %v3285 = vpop.f32.mrb[0].mxu0
      %v3286 = vadd.f32 0.0, %v3285
      %v3287 = vpop.f32.mrb[0].mxu0
      %v3288 = vpop.f32.mrb[0].mxu0
      %v3289 = vadd.f32 0.0, %v3288
      %v3290 = vpop.f32.mrb[0].mxu0
      %3291 = vmatprep.mubr.bf16.mxu0 0
      %3292 = vmatmul.mubr.bf16.gmra.mrb[0].mxu0 %v3177
      %v3293 = vpop.f32.mrb[0].mxu0
      %v3294 = vadd.f32 0.0, %v3293
      %v3295 = vpop.f32.mrb[0].mxu0
      %v3296 = vpop.f32.mrb[0].mxu0
      %v3297 = vadd.f32 0.0, %v3296
      %v3298 = vpop.f32.mrb[0].mxu0
      %3299 = vmatprep.mubr.bf16.mxu0 0
      %3300 = vmatmul.mubr.bf16.gmra.mrb[0].mxu0 %v3180
      %v3301 = vpop.f32.mrb[0].mxu0
      %v3302 = vadd.f32 0.0, %v3301
      %v3303 = vpop.f32.mrb[0].mxu0
      %v3304 = vpop.f32.mrb[0].mxu0
      %v3305 = vadd.f32 0.0, %v3304
      %v3306 = vpop.f32.mrb[0].mxu0
      %3307 = vmatprep.mubr.bf16.mxu0 0
      %3308 = vmatmul.mubr.bf16.gmra.mrb[0].mxu0 %v3183
      %v3309 = vpop.f32.mrb[0].mxu0
      %v3310 = vadd.f32 0.0, %v3309
      %v3311 = vpop.f32.mrb[0].mxu0
      %v3312 = vpop.f32.mrb[0].mxu0
      %v3313 = vadd.f32 0.0, %v3312
      %v3314 = vpop.f32.mrb[0].mxu0
      %3315 = vmatprep.mubr.bf16.mxu0 0
      %3316 = vmatmul.mubr.bf16.gmra.mrb[0].mxu0 %v3186
      %v3317 = vpop.f32.mrb[0].mxu0
      %v3318 = vadd.f32 0.0, %v3317
      %v3319 = vpop.f32.mrb[0].mxu0
      %v3320 = vpop.f32.mrb[0].mxu0
      %v3321 = vadd.f32 0.0, %v3320
      %v3322 = vpop.f32.mrb[0].mxu0
      %3323 = vmatprep.mubr.bf16.mxu0 0
      %3324 = vmatmul.mubr.bf16.gmra.mrb[0].mxu0 %v3189
      %v3325 = vpop.f32.mrb[0].mxu0
      %v3326 = vadd.f32 0.0, %v3325
      %v3327 = vpop.f32.mrb[0].mxu0
      %v3328 = vpop.f32.mrb[0].mxu0
      %v3329 = vadd.f32 0.0, %v3328
      %v3330 = vpop.f32.mrb[0].mxu0
      %3331 = vmatprep.mubr.bf16.mxu0 0
      %3332 = vmatmul.mubr.bf16.gmra.mrb[0].mxu0 %v3192
      %v3333 = vpop.f32.mrb[0].mxu0
      %v3334 = vadd.f32 0.0, %v3333
      %v3335 = vpop.f32.mrb[0].mxu0
      %v3336 = vpop.f32.mrb[0].mxu0
      %v3337 = vadd.f32 0.0, %v3336
      %v3338 = vpop.f32.mrb[0].mxu0
      %3339 = vmatprep.mubr.bf16.mxu0 0
      %3340 = vmatmul.mubr.bf16.gmra.mrb[0].mxu0 %v3195
      %v3341 = vpop.f32.mrb[0].mxu0
      %v3342 = vadd.f32 0.0, %v3341
      %v3343 = vpop.f32.mrb[0].mxu0
      %v3344 = vpop.f32.mrb[0].mxu0
      %v3345 = vadd.f32 0.0, %v3344
      %v3346 = vpop.f32.mrb[0].mxu0
      %3347 = vmatprep.mubr.bf16.mxu0 0
      %3348 = vmatmul.mubr.bf16.gmra.mrb[0].mxu0 %v3198
      %v3349 = vpop.f32.mrb[0].mxu0
      %v3350 = vadd.f32 0.0, %v3349
      %v3351 = vpop.f32.mrb[0].mxu0
      %v3352 = vpop.f32.mrb[0].mxu0
      %v3353 = vadd.f32 0.0, %v3352
      %v3354 = vpop.f32.mrb[0].mxu0
      %3355 = vmatprep.mubr.bf16.mxu0 0
      %3356 = vmatmul.mubr.bf16.gmra.mrb[0].mxu0 %v3201
      %v3357 = vpop.f32.mrb[0].mxu0
      %v3358 = vadd.f32 0.0, %v3357
      %v3359 = vpop.f32.mrb[0].mxu0
      %v3360 = vpop.f32.mrb[0].mxu0
      %v3361 = vadd.f32 0.0, %v3360
      %v3362 = vpop.f32.mrb[0].mxu0
      %3363 = vdwg.mxu0
      %v3364 = vadd.f32 %v3010, %v3238
      %v3365 = vadd.f32 %v3011, %v3241
      %v3366 = vadd.f32 %v3012, %v3246
      %v3367 = vadd.f32 %v3013, %v3249
      %v3368 = vadd.f32 %v3014, %v3254
      %v3369 = vadd.f32 %v3015, %v3257
      %v3370 = vadd.f32 %v3016, %v3262
      %v3371 = vadd.f32 %v3017, %v3265
      %v3372 = vadd.f32 %v3018, %v3270
      %v3373 = vadd.f32 %v3019, %v3273
      %v3374 = vadd.f32 %v3020, %v3278
      %v3375 = vadd.f32 %v3021, %v3281
      %v3376 = vadd.f32 %v3022, %v3286
      %v3377 = vadd.f32 %v3023, %v3289
      %v3378 = vadd.f32 %v3024, %v3294
      %v3379 = vadd.f32 %v3025, %v3297
      %v3380 = vadd.f32 %v3026, %v3302
      %v3381 = vadd.f32 %v3027, %v3305
      %v3382 = vadd.f32 %v3028, %v3310
      %v3383 = vadd.f32 %v3029, %v3313
      %v3384 = vadd.f32 %v3030, %v3318
      %v3385 = vadd.f32 %v3031, %v3321
      %v3386 = vadd.f32 %v3032, %v3326
      %v3387 = vadd.f32 %v3033, %v3329
      %v3388 = vadd.f32 %v3034, %v3334
      %v3389 = vadd.f32 %v3035, %v3337
      %v3390 = vadd.f32 %v3036, %v3342
      %v3391 = vadd.f32 %v3037, %v3345
      %v3392 = vadd.f32 %v3038, %v3350
      %v3393 = vadd.f32 %v3039, %v3353
      %v3394 = vadd.f32 %v3040, %v3358
      %v3395 = vadd.f32 %v3041, %v3361
      %v3396 = vld [vmem:[%s516 + $0x8] sm:$0xf]
      %v3397 = vld [vmem:[%s516 + $0xc] sm:$0xf]
      %v3398 = vld [vmem:[%s516 + $0x10] sm:$0x1]
      %v3399 = vld [vmem:[%s516 + $0x1c] sm:$0xf]
      %v3400 = vld [vmem:[%s516 + $0x20] sm:$0xf]
      %v3401 = vld [vmem:[%s516 + $0x24] sm:$0x1]
      %v3402 = vld [vmem:[%s516 + $0x30] sm:$0xf]
      %v3403 = vld [vmem:[%s516 + $0x34] sm:$0xf]
      %v3404 = vld [vmem:[%s516 + $0x38] sm:$0x1]
      %v3405 = vld [vmem:[%s516 + $0x44] sm:$0xf]
      %v3406 = vld [vmem:[%s516 + $0x48] sm:$0xf]
      %v3407 = vld [vmem:[%s516 + $0x4c] sm:$0x1]
      %v3408 = vld [vmem:[%s516 + $0x58] sm:$0xf]
      %v3409 = vld [vmem:[%s516 + $0x5c] sm:$0xf]
      %v3410 = vld [vmem:[%s516 + $0x60] sm:$0x1]
      %v3411 = vld [vmem:[%s516 + $0x6c] sm:$0xf]
      %v3412 = vld [vmem:[%s516 + $0x70] sm:$0xf]
      %v3413 = vld [vmem:[%s516 + $0x74] sm:$0x1]
      %v3414 = vld [vmem:[%s516 + $0x80] sm:$0xf]
      %v3415 = vld [vmem:[%s516 + $0x84] sm:$0xf]
      %v3416 = vld [vmem:[%s516 + $0x88] sm:$0x1]
      %v3417 = vld [vmem:[%s516 + $0x94] sm:$0xf]
      %v3418 = vld [vmem:[%s516 + $0x98] sm:$0xf]
      %v3419 = vld [vmem:[%s516 + $0x9c] sm:$0x1]
      %v3420 = vld [vmem:[%s516 + $0xa8] sm:$0xf]
      %v3421 = vld [vmem:[%s516 + $0xac] sm:$0xf]
      %v3422 = vld [vmem:[%s516 + $0xb0] sm:$0x1]
      %v3423 = vld [vmem:[%s516 + $0xbc] sm:$0xf]
      %v3424 = vld [vmem:[%s516 + $0xc0] sm:$0xf]
      %v3425 = vld [vmem:[%s516 + $0xc4] sm:$0x1]
      %v3426 = vld [vmem:[%s516 + $0xd0] sm:$0xf]
      %v3427 = vld [vmem:[%s516 + $0xd4] sm:$0xf]
      %v3428 = vld [vmem:[%s516 + $0xd8] sm:$0x1]
      %v3429 = vld [vmem:[%s516 + $0xe4] sm:$0xf]
      %v3430 = vld [vmem:[%s516 + $0xe8] sm:$0xf]
      %v3431 = vld [vmem:[%s516 + $0xec] sm:$0x1]
      %v3432 = vld [vmem:[%s516 + $0xf8] sm:$0xf]
      %v3433 = vld [vmem:[%s516 + $0xfc] sm:$0xf]
      %v3434 = vld [vmem:[%s516 + $0x100] sm:$0x1]
      %v3435 = vld [vmem:[%s516 + $0x10c] sm:$0xf]
      %v3436 = vld [vmem:[%s516 + $0x110] sm:$0xf]
      %v3437 = vld [vmem:[%s516 + $0x114] sm:$0x1]
      %v3438 = vld [vmem:[%s516 + $0x120] sm:$0xf]
      %v3439 = vld [vmem:[%s516 + $0x124] sm:$0xf]
      %v3440 = vld [vmem:[%s516 + $0x128] sm:$0x1]
      %v3441 = vld [vmem:[%s516 + $0x134] sm:$0xf]
      %v3442 = vld [vmem:[%s516 + $0x138] sm:$0xf]
      %v3443 = vld [vmem:[%s516 + $0x13c] sm:$0x1]
      %v3445 = vshrl.u32 %v3396, 16
      %v3447 = vrot.slane %v3445, 4
      %v3448 = vshll.u32 %v3396, 16
      %v3450 = vrot.slane %v3448, 5
      %v3451 = vor.u32 %v3447, %v3450
      %v3452 = vrot.slane %v3451, 4
      %v3454 = vshll.u32 %v3397, 16
      %v3456 = vrot.slane %v3454, 5
      %v3457 = vsel %vm1613, %v3452, %v3456
      %v3458 = vshrl.u32 %v3397, 16
      %v3460 = vrot.slane %v3458, 4
      %v3461 = vor.u32 %v3460, %v3456
      %v3462 = vrot.slane %v3461, 4
      %v3464 = vshll.u32 %v3398, 16
      %v3466 = vrot.slane %v3464, 5
      %v3467 = vsel %vm1613, %v3462, %v3466
      %v3469 = vshrl.u32 %v3399, 16
      %v3471 = vrot.slane %v3469, 4
      %v3472 = vshll.u32 %v3399, 16
      %v3474 = vrot.slane %v3472, 5
      %v3475 = vor.u32 %v3471, %v3474
      %v3476 = vrot.slane %v3475, 4
      %v3478 = vshll.u32 %v3400, 16
      %v3480 = vrot.slane %v3478, 5
      %v3481 = vsel %vm1613, %v3476, %v3480
      %v3482 = vshrl.u32 %v3400, 16
      %v3484 = vrot.slane %v3482, 4
      %v3485 = vor.u32 %v3484, %v3480
      %v3486 = vrot.slane %v3485, 4
      %v3488 = vshll.u32 %v3401, 16
      %v3490 = vrot.slane %v3488, 5
      %v3491 = vsel %vm1613, %v3486, %v3490
      %v3493 = vshrl.u32 %v3402, 16
      %v3495 = vrot.slane %v3493, 4
      %v3496 = vshll.u32 %v3402, 16
      %v3498 = vrot.slane %v3496, 5
      %v3499 = vor.u32 %v3495, %v3498
      %v3500 = vrot.slane %v3499, 4
      %v3502 = vshll.u32 %v3403, 16
      %v3504 = vrot.slane %v3502, 5
      %v3505 = vsel %vm1613, %v3500, %v3504
      %v3506 = vshrl.u32 %v3403, 16
      %v3508 = vrot.slane %v3506, 4
      %v3509 = vor.u32 %v3508, %v3504
      %v3510 = vrot.slane %v3509, 4
      %v3512 = vshll.u32 %v3404, 16
      %v3514 = vrot.slane %v3512, 5
      %v3515 = vsel %vm1613, %v3510, %v3514
      %v3517 = vshrl.u32 %v3405, 16
      %v3519 = vrot.slane %v3517, 4
      %v3520 = vshll.u32 %v3405, 16
      %v3522 = vrot.slane %v3520, 5
      %v3523 = vor.u32 %v3519, %v3522
      %v3524 = vrot.slane %v3523, 4
      %v3526 = vshll.u32 %v3406, 16
      %v3528 = vrot.slane %v3526, 5
      %v3529 = vsel %vm1613, %v3524, %v3528
      %v3530 = vshrl.u32 %v3406, 16
      %v3532 = vrot.slane %v3530, 4
      %v3533 = vor.u32 %v3532, %v3528
      %v3534 = vrot.slane %v3533, 4
      %v3536 = vshll.u32 %v3407, 16
      %v3538 = vrot.slane %v3536, 5
      %v3539 = vsel %vm1613, %v3534, %v3538
      %v3541 = vshrl.u32 %v3408, 16
      %v3543 = vrot.slane %v3541, 4
      %v3544 = vshll.u32 %v3408, 16
      %v3546 = vrot.slane %v3544, 5
      %v3547 = vor.u32 %v3543, %v3546
      %v3548 = vrot.slane %v3547, 4
      %v3550 = vshll.u32 %v3409, 16
      %v3552 = vrot.slane %v3550, 5
      %v3553 = vsel %vm1613, %v3548, %v3552
      %v3554 = vshrl.u32 %v3409, 16
      %v3556 = vrot.slane %v3554, 4
      %v3557 = vor.u32 %v3556, %v3552
      %v3558 = vrot.slane %v3557, 4
      %v3560 = vshll.u32 %v3410, 16
      %v3562 = vrot.slane %v3560, 5
      %v3563 = vsel %vm1613, %v3558, %v3562
      %v3565 = vshrl.u32 %v3411, 16
      %v3567 = vrot.slane %v3565, 4
      %v3568 = vshll.u32 %v3411, 16
      %v3570 = vrot.slane %v3568, 5
      %v3571 = vor.u32 %v3567, %v3570
      %v3572 = vrot.slane %v3571, 4
      %v3574 = vshll.u32 %v3412, 16
      %v3576 = vrot.slane %v3574, 5
      %v3577 = vsel %vm1613, %v3572, %v3576
      %v3578 = vshrl.u32 %v3412, 16
      %v3580 = vrot.slane %v3578, 4
      %v3581 = vor.u32 %v3580, %v3576
      %v3582 = vrot.slane %v3581, 4
      %v3584 = vshll.u32 %v3413, 16
      %v3586 = vrot.slane %v3584, 5
      %v3587 = vsel %vm1613, %v3582, %v3586
      %v3589 = vshrl.u32 %v3414, 16
      %v3591 = vrot.slane %v3589, 4
      %v3592 = vshll.u32 %v3414, 16
      %v3594 = vrot.slane %v3592, 5
      %v3595 = vor.u32 %v3591, %v3594
      %v3596 = vrot.slane %v3595, 4
      %v3598 = vshll.u32 %v3415, 16
      %v3600 = vrot.slane %v3598, 5
      %v3601 = vsel %vm1613, %v3596, %v3600
      %v3602 = vshrl.u32 %v3415, 16
      %v3604 = vrot.slane %v3602, 4
      %v3605 = vor.u32 %v3604, %v3600
      %v3606 = vrot.slane %v3605, 4
      %v3608 = vshll.u32 %v3416, 16
      %v3610 = vrot.slane %v3608, 5
      %v3611 = vsel %vm1613, %v3606, %v3610
      %v3613 = vshrl.u32 %v3417, 16
      %v3615 = vrot.slane %v3613, 4
      %v3616 = vshll.u32 %v3417, 16
      %v3618 = vrot.slane %v3616, 5
      %v3619 = vor.u32 %v3615, %v3618
      %v3620 = vrot.slane %v3619, 4
      %v3622 = vshll.u32 %v3418, 16
      %v3624 = vrot.slane %v3622, 5
      %v3625 = vsel %vm1613, %v3620, %v3624
      %v3626 = vshrl.u32 %v3418, 16
      %v3628 = vrot.slane %v3626, 4
      %v3629 = vor.u32 %v3628, %v3624
      %v3630 = vrot.slane %v3629, 4
      %v3632 = vshll.u32 %v3419, 16
      %v3634 = vrot.slane %v3632, 5
      %v3635 = vsel %vm1613, %v3630, %v3634
      %v3637 = vshrl.u32 %v3420, 16
      %v3639 = vrot.slane %v3637, 4
      %v3640 = vshll.u32 %v3420, 16
      %v3642 = vrot.slane %v3640, 5
      %v3643 = vor.u32 %v3639, %v3642
      %v3644 = vrot.slane %v3643, 4
      %v3646 = vshll.u32 %v3421, 16
      %v3648 = vrot.slane %v3646, 5
      %v3649 = vsel %vm1613, %v3644, %v3648
      %v3650 = vshrl.u32 %v3421, 16
      %v3652 = vrot.slane %v3650, 4
      %v3653 = vor.u32 %v3652, %v3648
      %v3654 = vrot.slane %v3653, 4
      %v3656 = vshll.u32 %v3422, 16
      %v3658 = vrot.slane %v3656, 5
      %v3659 = vsel %vm1613, %v3654, %v3658
      %v3661 = vshrl.u32 %v3423, 16
      %v3663 = vrot.slane %v3661, 4
      %v3664 = vshll.u32 %v3423, 16
      %v3666 = vrot.slane %v3664, 5
      %v3667 = vor.u32 %v3663, %v3666
      %v3668 = vrot.slane %v3667, 4
      %v3670 = vshll.u32 %v3424, 16
      %v3672 = vrot.slane %v3670, 5
      %v3673 = vsel %vm1613, %v3668, %v3672
      %v3674 = vshrl.u32 %v3424, 16
      %v3676 = vrot.slane %v3674, 4
      %v3677 = vor.u32 %v3676, %v3672
      %v3678 = vrot.slane %v3677, 4
      %v3680 = vshll.u32 %v3425, 16
      %v3682 = vrot.slane %v3680, 5
      %v3683 = vsel %vm1613, %v3678, %v3682
      %v3685 = vshrl.u32 %v3426, 16
      %v3687 = vrot.slane %v3685, 4
      %v3688 = vshll.u32 %v3426, 16
      %v3690 = vrot.slane %v3688, 5
      %v3691 = vor.u32 %v3687, %v3690
      %v3692 = vrot.slane %v3691, 4
      %v3694 = vshll.u32 %v3427, 16
      %v3696 = vrot.slane %v3694, 5
      %v3697 = vsel %vm1613, %v3692, %v3696
      %v3698 = vshrl.u32 %v3427, 16
      %v3700 = vrot.slane %v3698, 4
      %v3701 = vor.u32 %v3700, %v3696
      %v3702 = vrot.slane %v3701, 4
      %v3704 = vshll.u32 %v3428, 16
      %v3706 = vrot.slane %v3704, 5
      %v3707 = vsel %vm1613, %v3702, %v3706
      %v3709 = vshrl.u32 %v3429, 16
      %v3711 = vrot.slane %v3709, 4
      %v3712 = vshll.u32 %v3429, 16
      %v3714 = vrot.slane %v3712, 5
      %v3715 = vor.u32 %v3711, %v3714
      %v3716 = vrot.slane %v3715, 4
      %v3718 = vshll.u32 %v3430, 16
      %v3720 = vrot.slane %v3718, 5
      %v3721 = vsel %vm1613, %v3716, %v3720
      %v3722 = vshrl.u32 %v3430, 16
      %v3724 = vrot.slane %v3722, 4
      %v3725 = vor.u32 %v3724, %v3720
      %v3726 = vrot.slane %v3725, 4
      %v3728 = vshll.u32 %v3431, 16
      %v3730 = vrot.slane %v3728, 5
      %v3731 = vsel %vm1613, %v3726, %v3730
      %v3733 = vshrl.u32 %v3432, 16
      %v3735 = vrot.slane %v3733, 4
      %v3736 = vshll.u32 %v3432, 16
      %v3738 = vrot.slane %v3736, 5
      %v3739 = vor.u32 %v3735, %v3738
      %v3740 = vrot.slane %v3739, 4
      %v3742 = vshll.u32 %v3433, 16
      %v3744 = vrot.slane %v3742, 5
      %v3745 = vsel %vm1613, %v3740, %v3744
      %v3746 = vshrl.u32 %v3433, 16
      %v3748 = vrot.slane %v3746, 4
      %v3749 = vor.u32 %v3748, %v3744
      %v3750 = vrot.slane %v3749, 4
      %v3752 = vshll.u32 %v3434, 16
      %v3754 = vrot.slane %v3752, 5
      %v3755 = vsel %vm1613, %v3750, %v3754
      %v3757 = vshrl.u32 %v3435, 16
      %v3759 = vrot.slane %v3757, 4
      %v3760 = vshll.u32 %v3435, 16
      %v3762 = vrot.slane %v3760, 5
      %v3763 = vor.u32 %v3759, %v3762
      %v3764 = vrot.slane %v3763, 4
      %v3766 = vshll.u32 %v3436, 16
      %v3768 = vrot.slane %v3766, 5
      %v3769 = vsel %vm1613, %v3764, %v3768
      %v3770 = vshrl.u32 %v3436, 16
      %v3772 = vrot.slane %v3770, 4
      %v3773 = vor.u32 %v3772, %v3768
      %v3774 = vrot.slane %v3773, 4
      %v3776 = vshll.u32 %v3437, 16
      %v3778 = vrot.slane %v3776, 5
      %v3779 = vsel %vm1613, %v3774, %v3778
      %v3781 = vshrl.u32 %v3438, 16
      %v3783 = vrot.slane %v3781, 4
      %v3784 = vshll.u32 %v3438, 16
      %v3786 = vrot.slane %v3784, 5
      %v3787 = vor.u32 %v3783, %v3786
      %v3788 = vrot.slane %v3787, 4
      %v3790 = vshll.u32 %v3439, 16
      %v3792 = vrot.slane %v3790, 5
      %v3793 = vsel %vm1613, %v3788, %v3792
      %v3794 = vshrl.u32 %v3439, 16
      %v3796 = vrot.slane %v3794, 4
      %v3797 = vor.u32 %v3796, %v3792
      %v3798 = vrot.slane %v3797, 4
      %v3800 = vshll.u32 %v3440, 16
      %v3802 = vrot.slane %v3800, 5
      %v3803 = vsel %vm1613, %v3798, %v3802
      %v3805 = vshrl.u32 %v3441, 16
      %v3807 = vrot.slane %v3805, 4
      %v3808 = vshll.u32 %v3441, 16
      %v3810 = vrot.slane %v3808, 5
      %v3811 = vor.u32 %v3807, %v3810
      %v3812 = vrot.slane %v3811, 4
      %v3814 = vshll.u32 %v3442, 16
      %v3816 = vrot.slane %v3814, 5
      %v3817 = vsel %vm1613, %v3812, %v3816
      %v3818 = vshrl.u32 %v3442, 16
      %v3820 = vrot.slane %v3818, 4
      %v3821 = vor.u32 %v3820, %v3816
      %v3822 = vrot.slane %v3821, 4
      %v3824 = vshll.u32 %v3443, 16
      %v3826 = vrot.slane %v3824, 5
      %v3827 = vsel %vm1613, %v3822, %v3826
      %s3828 = scalar_lea.vmem %s1, 160
      %v3829 = vld [vmem:[%s3828] sm:$0xf]
      %v3830 = vld [vmem:[%s3828 + $0x4] sm:$0xf]
      %v3831 = vld [vmem:[%s3828 + $0x8] sm:$0xf]
      %v3832 = vld [vmem:[%s3828 + $0xc] sm:$0xf]
      %v3833 = vld [vmem:[%s3828 + $0x10] sm:$0xf]
      %v3834 = vld [vmem:[%s3828 + $0x14] sm:$0xf]
      %v3835 = vld [vmem:[%s3828 + $0x18] sm:$0xf]
      %v3836 = vld [vmem:[%s3828 + $0x1c] sm:$0xf]
      %v3837 = vunpack.c.l.b16 %v3457
      %v3838 = vunpack.c.l.b16 %v3467
      %v3839 = vunpack.c.l.b16 %v3481
      %v3840 = vunpack.c.l.b16 %v3491
      %v3841 = vunpack.c.l.b16 %v3505
      %v3842 = vunpack.c.l.b16 %v3515
      %v3843 = vunpack.c.l.b16 %v3529
      %v3844 = vunpack.c.l.b16 %v3539
      %v3845 = vunpack.c.l.b16 %v3553
      %v3846 = vunpack.c.l.b16 %v3563
      %v3847 = vunpack.c.l.b16 %v3577
      %v3848 = vunpack.c.l.b16 %v3587
      %v3849 = vunpack.c.l.b16 %v3601
      %v3850 = vunpack.c.l.b16 %v3611
      %v3851 = vunpack.c.l.b16 %v3625
      %v3852 = vunpack.c.l.b16 %v3635
      %v3853 = vunpack.c.l.b16 %v3649
      %v3854 = vunpack.c.l.b16 %v3659
      %v3855 = vunpack.c.l.b16 %v3673
      %v3856 = vunpack.c.l.b16 %v3683
      %v3857 = vunpack.c.l.b16 %v3697
      %v3858 = vunpack.c.l.b16 %v3707
      %v3859 = vunpack.c.l.b16 %v3721
      %v3860 = vunpack.c.l.b16 %v3731
      %v3861 = vunpack.c.l.b16 %v3745
      %v3862 = vunpack.c.l.b16 %v3755
      %v3863 = vunpack.c.l.b16 %v3769
      %v3864 = vunpack.c.l.b16 %v3779
      %v3865 = vunpack.c.l.b16 %v3793
      %v3866 = vunpack.c.l.b16 %v3803
      %v3867 = vunpack.c.l.b16 %v3817
      %v3868 = vunpack.c.l.b16 %v3827
      %v3869 = vpack.c.b16 %v3838, %v3837
      %v3870 = vpack.c.b16 %v3840, %v3839
      %v3871 = vpack.c.b16 %v3842, %v3841
      %v3872 = vpack.c.b16 %v3844, %v3843
      %v3873 = vpack.c.b16 %v3846, %v3845
      %v3874 = vpack.c.b16 %v3848, %v3847
      %v3875 = vpack.c.b16 %v3850, %v3849
      %v3876 = vpack.c.b16 %v3852, %v3851
      %v3877 = vpack.c.b16 %v3854, %v3853
      %v3878 = vpack.c.b16 %v3856, %v3855
      %v3879 = vpack.c.b16 %v3858, %v3857
      %v3880 = vpack.c.b16 %v3860, %v3859
      %v3881 = vpack.c.b16 %v3862, %v3861
      %v3882 = vpack.c.b16 %v3864, %v3863
      %v3883 = vpack.c.b16 %v3866, %v3865
      %v3884 = vpack.c.b16 %v3868, %v3867
      %v3893 = vunpack.c.l.b16 %v3829
      %v3894 = vunpack.c.l.b16 %v3830
      %v3895 = vunpack.c.l.b16 %v3831
      %v3896 = vunpack.c.l.b16 %v3832
      %v3897 = vunpack.c.l.b16 %v3833
      %v3898 = vunpack.c.l.b16 %v3834
      %v3899 = vunpack.c.l.b16 %v3835
      %v3900 = vunpack.c.l.b16 %v3836
      %v3901 = vpack.c.b16 %v3894, %v3893
      %v3902 = vpack.c.b16 %v3896, %v3895
      %v3903 = vpack.c.b16 %v3898, %v3897
      %v3904 = vpack.c.b16 %v3900, %v3899
      %v3910 = vsel %vm1072, %v3869, 0
      %v3913 = vsel %vm1072, %v3870, 0
      %v3916 = vsel %vm1072, %v3871, 0
      %v3919 = vsel %vm1072, %v3872, 0
      %v3922 = vsel %vm1072, %v3873, 0
      %v3925 = vsel %vm1072, %v3874, 0
      %v3928 = vsel %vm1072, %v3875, 0
      %v3931 = vsel %vm1072, %v3876, 0
      %v3934 = vsel %vm1072, %v3877, 0
      %v3937 = vsel %vm1072, %v3878, 0
      %v3940 = vsel %vm1072, %v3879, 0
      %v3943 = vsel %vm1072, %v3880, 0
      %v3946 = vsel %vm1072, %v3881, 0
      %v3949 = vsel %vm1072, %v3882, 0
      %v3952 = vsel %vm1072, %v3883, 0
      %v3955 = vsel %vm1072, %v3884, 0
      %3957 = vmatprep.subr.bf16.mxu0 0
      %3958 = vmatpush1.bf16.msra.mxu0 %v3901
      %3959 = vmatprep.subr.bf16.mxu0 0
      %3960 = vmatpush1.bf16.msra.mxu0 %v3902
      %3961 = vmatprep.subr.bf16.mxu0 0
      %3962 = vmatpush1.bf16.msra.mxu0 %v3903
      %3963 = vmatprep.subr.bf16.mxu0 0
      %3964 = vmatpush1.bf16.msra.mxu0 %v3904
      %3965 = vmatprep.subr.bf16.mxu0 0
      %3966 = vmatpush1.bf16.msra.mxu0 0
      %3967 = vmatprep.subr.bf16.mxu0 0
      %3968 = vmatpush1.bf16.msra.mxu0 0
      %3969 = vmatprep.subr.bf16.mxu0 0
      %3970 = vmatpush1.bf16.msra.mxu0 0
      %3971 = vmatprep.subr.bf16.mxu0 0
      %3972 = vmatpush1.bf16.msra.mxu0 0
      %3973 = vmatprep.subr.bf16.mxu0 0
      %3974 = vmatpush1.bf16.msra.mxu0 0
      %3975 = vmatprep.subr.bf16.mxu0 0
      %3976 = vmatpush1.bf16.msra.mxu0 0
      %3977 = vmatprep.subr.bf16.mxu0 0
      %3978 = vmatpush1.bf16.msra.mxu0 0
      %3979 = vmatprep.subr.bf16.mxu0 0
      %3980 = vmatpush1.bf16.msra.mxu0 0
      %3981 = vmatprep.subr.bf16.mxu0 0
      %3982 = vmatpush1.bf16.msra.mxu0 0
      %3983 = vmatprep.subr.bf16.mxu0 0
      %3984 = vmatpush1.bf16.msra.mxu0 0
      %3985 = vmatprep.subr.bf16.mxu0 0
      %3986 = vmatpush1.bf16.msra.mxu0 0
      %3987 = vmatprep.subr.bf16.mxu0 0
      %3988 = vmatpush1.bf16.msra.mxu0 0
      %3989 = vmatprep.mubr.bf16.mxu0 0
      %3990 = vmatmul.mubr.bf16.gmra.mrb[0].mxu0 %v3910
      %v3991 = vpop.f32.mrb[0].mxu0
      %v3992 = vadd.f32 0.0, %v3991
      %v3993 = vpop.f32.mrb[0].mxu0
      %v3994 = vpop.f32.mrb[0].mxu0
      %v3995 = vadd.f32 0.0, %v3994
      %v3996 = vpop.f32.mrb[0].mxu0
      %3997 = vmatprep.mubr.bf16.mxu0 0
      %3998 = vmatmul.mubr.bf16.gmra.mrb[0].mxu0 %v3913
      %v3999 = vpop.f32.mrb[0].mxu0
      %v4000 = vadd.f32 0.0, %v3999
      %v4001 = vpop.f32.mrb[0].mxu0
      %v4002 = vpop.f32.mrb[0].mxu0
      %v4003 = vadd.f32 0.0, %v4002
      %v4004 = vpop.f32.mrb[0].mxu0
      %4005 = vmatprep.mubr.bf16.mxu0 0
      %4006 = vmatmul.mubr.bf16.gmra.mrb[0].mxu0 %v3916
      %v4007 = vpop.f32.mrb[0].mxu0
      %v4008 = vadd.f32 0.0, %v4007
      %v4009 = vpop.f32.mrb[0].mxu0
      %v4010 = vpop.f32.mrb[0].mxu0
      %v4011 = vadd.f32 0.0, %v4010
      %v4012 = vpop.f32.mrb[0].mxu0
      %4013 = vmatprep.mubr.bf16.mxu0 0
      %4014 = vmatmul.mubr.bf16.gmra.mrb[0].mxu0 %v3919
      %v4015 = vpop.f32.mrb[0].mxu0
      %v4016 = vadd.f32 0.0, %v4015
      %v4017 = vpop.f32.mrb[0].mxu0
      %v4018 = vpop.f32.mrb[0].mxu0
      %v4019 = vadd.f32 0.0, %v4018
      %v4020 = vpop.f32.mrb[0].mxu0
      %4021 = vmatprep.mubr.bf16.mxu0 0
      %4022 = vmatmul.mubr.bf16.gmra.mrb[0].mxu0 %v3922
      %v4023 = vpop.f32.mrb[0].mxu0
      %v4024 = vadd.f32 0.0, %v4023
      %v4025 = vpop.f32.mrb[0].mxu0
      %v4026 = vpop.f32.mrb[0].mxu0
      %v4027 = vadd.f32 0.0, %v4026
      %v4028 = vpop.f32.mrb[0].mxu0
      %4029 = vmatprep.mubr.bf16.mxu0 0
      %4030 = vmatmul.mubr.bf16.gmra.mrb[0].mxu0 %v3925
      %v4031 = vpop.f32.mrb[0].mxu0
      %v4032 = vadd.f32 0.0, %v4031
      %v4033 = vpop.f32.mrb[0].mxu0
      %v4034 = vpop.f32.mrb[0].mxu0
      %v4035 = vadd.f32 0.0, %v4034
      %v4036 = vpop.f32.mrb[0].mxu0
      %4037 = vmatprep.mubr.bf16.mxu0 0
      %4038 = vmatmul.mubr.bf16.gmra.mrb[0].mxu0 %v3928
      %v4039 = vpop.f32.mrb[0].mxu0
      %v4040 = vadd.f32 0.0, %v4039
      %v4041 = vpop.f32.mrb[0].mxu0
      %v4042 = vpop.f32.mrb[0].mxu0
      %v4043 = vadd.f32 0.0, %v4042
      %v4044 = vpop.f32.mrb[0].mxu0
      %4045 = vmatprep.mubr.bf16.mxu0 0
      %4046 = vmatmul.mubr.bf16.gmra.mrb[0].mxu0 %v3931
      %v4047 = vpop.f32.mrb[0].mxu0
      %v4048 = vadd.f32 0.0, %v4047
      %v4049 = vpop.f32.mrb[0].mxu0
      %v4050 = vpop.f32.mrb[0].mxu0
      %v4051 = vadd.f32 0.0, %v4050
      %v4052 = vpop.f32.mrb[0].mxu0
      %4053 = vmatprep.mubr.bf16.mxu0 0
      %4054 = vmatmul.mubr.bf16.gmra.mrb[0].mxu0 %v3934
      %v4055 = vpop.f32.mrb[0].mxu0
      %v4056 = vadd.f32 0.0, %v4055
      %v4057 = vpop.f32.mrb[0].mxu0
      %v4058 = vpop.f32.mrb[0].mxu0
      %v4059 = vadd.f32 0.0, %v4058
      %v4060 = vpop.f32.mrb[0].mxu0
      %4061 = vmatprep.mubr.bf16.mxu0 0
      %4062 = vmatmul.mubr.bf16.gmra.mrb[0].mxu0 %v3937
      %v4063 = vpop.f32.mrb[0].mxu0
      %v4064 = vadd.f32 0.0, %v4063
      %v4065 = vpop.f32.mrb[0].mxu0
      %v4066 = vpop.f32.mrb[0].mxu0
      %v4067 = vadd.f32 0.0, %v4066
      %v4068 = vpop.f32.mrb[0].mxu0
      %4069 = vmatprep.mubr.bf16.mxu0 0
      %4070 = vmatmul.mubr.bf16.gmra.mrb[0].mxu0 %v3940
      %v4071 = vpop.f32.mrb[0].mxu0
      %v4072 = vadd.f32 0.0, %v4071
      %v4073 = vpop.f32.mrb[0].mxu0
      %v4074 = vpop.f32.mrb[0].mxu0
      %v4075 = vadd.f32 0.0, %v4074
      %v4076 = vpop.f32.mrb[0].mxu0
      %4077 = vmatprep.mubr.bf16.mxu0 0
      %4078 = vmatmul.mubr.bf16.gmra.mrb[0].mxu0 %v3943
      %v4079 = vpop.f32.mrb[0].mxu0
      %v4080 = vadd.f32 0.0, %v4079
      %v4081 = vpop.f32.mrb[0].mxu0
      %v4082 = vpop.f32.mrb[0].mxu0
      %v4083 = vadd.f32 0.0, %v4082
      %v4084 = vpop.f32.mrb[0].mxu0
      %4085 = vmatprep.mubr.bf16.mxu0 0
      %4086 = vmatmul.mubr.bf16.gmra.mrb[0].mxu0 %v3946
      %v4087 = vpop.f32.mrb[0].mxu0
      %v4088 = vadd.f32 0.0, %v4087
      %v4089 = vpop.f32.mrb[0].mxu0
      %v4090 = vpop.f32.mrb[0].mxu0
      %v4091 = vadd.f32 0.0, %v4090
      %v4092 = vpop.f32.mrb[0].mxu0
      %4093 = vmatprep.mubr.bf16.mxu0 0
      %4094 = vmatmul.mubr.bf16.gmra.mrb[0].mxu0 %v3949
      %v4095 = vpop.f32.mrb[0].mxu0
      %v4096 = vadd.f32 0.0, %v4095
      %v4097 = vpop.f32.mrb[0].mxu0
      %v4098 = vpop.f32.mrb[0].mxu0
      %v4099 = vadd.f32 0.0, %v4098
      %v4100 = vpop.f32.mrb[0].mxu0
      %4101 = vmatprep.mubr.bf16.mxu0 0
      %4102 = vmatmul.mubr.bf16.gmra.mrb[0].mxu0 %v3952
      %v4103 = vpop.f32.mrb[0].mxu0
      %v4104 = vadd.f32 0.0, %v4103
      %v4105 = vpop.f32.mrb[0].mxu0
      %v4106 = vpop.f32.mrb[0].mxu0
      %v4107 = vadd.f32 0.0, %v4106
      %v4108 = vpop.f32.mrb[0].mxu0
      %4109 = vmatprep.mubr.bf16.mxu0 0
      %4110 = vmatmul.mubr.bf16.gmra.mrb[0].mxu0 %v3955
      %v4111 = vpop.f32.mrb[0].mxu0
      %v4112 = vadd.f32 0.0, %v4111
      %v4113 = vpop.f32.mrb[0].mxu0
      %v4114 = vpop.f32.mrb[0].mxu0
      %v4115 = vadd.f32 0.0, %v4114
      %v4116 = vpop.f32.mrb[0].mxu0
      %4117 = vdwg.mxu0
      %v4118 = vadd.f32 %v3364, %v3992
      %v4119 = vadd.f32 %v3365, %v3995
      %v4120 = vadd.f32 %v3366, %v4000
      %v4121 = vadd.f32 %v3367, %v4003
      %v4122 = vadd.f32 %v3368, %v4008
      %v4123 = vadd.f32 %v3369, %v4011
      %v4124 = vadd.f32 %v3370, %v4016
      %v4125 = vadd.f32 %v3371, %v4019
      %v4126 = vadd.f32 %v3372, %v4024
      %v4127 = vadd.f32 %v3373, %v4027
      %v4128 = vadd.f32 %v3374, %v4032
      %v4129 = vadd.f32 %v3375, %v4035
      %v4130 = vadd.f32 %v3376, %v4040
      %v4131 = vadd.f32 %v3377, %v4043
      %v4132 = vadd.f32 %v3378, %v4048
      %v4133 = vadd.f32 %v3379, %v4051
      %v4134 = vadd.f32 %v3380, %v4056
      %v4135 = vadd.f32 %v3381, %v4059
      %v4136 = vadd.f32 %v3382, %v4064
      %v4137 = vadd.f32 %v3383, %v4067
      %v4138 = vadd.f32 %v3384, %v4072
      %v4139 = vadd.f32 %v3385, %v4075
      %v4140 = vadd.f32 %v3386, %v4080
      %v4141 = vadd.f32 %v3387, %v4083
      %v4142 = vadd.f32 %v3388, %v4088
      %v4143 = vadd.f32 %v3389, %v4091
      %v4144 = vadd.f32 %v3390, %v4096
      %v4145 = vadd.f32 %v3391, %v4099
      %v4146 = vadd.f32 %v3392, %v4104
      %v4147 = vadd.f32 %v3393, %v4107
      %v4148 = vadd.f32 %v3394, %v4112
      %v4149 = vadd.f32 %v3395, %v4115
      %s4150 = scalar_lea.vmem [#allocation2], 40
      %v4151 = vld [vmem:[%s4150 + $0x4] sm:$0x8]
      %v4152 = vld [vmem:[%s4150 + $0x8] sm:$0xf]
      %v4153 = vld [vmem:[%s4150 + $0xc] sm:$0xf]
      %v4154 = vld [vmem:[%s4150 + $0x18] sm:$0x8]
      %v4155 = vld [vmem:[%s4150 + $0x1c] sm:$0xf]
      %v4156 = vld [vmem:[%s4150 + $0x20] sm:$0xf]
      %v4157 = vld [vmem:[%s4150 + $0x2c] sm:$0x8]
      %v4158 = vld [vmem:[%s4150 + $0x30] sm:$0xf]
      %v4159 = vld [vmem:[%s4150 + $0x34] sm:$0xf]
      %v4160 = vld [vmem:[%s4150 + $0x40] sm:$0x8]
      %v4161 = vld [vmem:[%s4150 + $0x44] sm:$0xf]
      %v4162 = vld [vmem:[%s4150 + $0x48] sm:$0xf]
      %v4163 = vld [vmem:[%s4150 + $0x54] sm:$0x8]
      %v4164 = vld [vmem:[%s4150 + $0x58] sm:$0xf]
      %v4165 = vld [vmem:[%s4150 + $0x5c] sm:$0xf]
      %v4166 = vld [vmem:[%s4150 + $0x68] sm:$0x8]
      %v4167 = vld [vmem:[%s4150 + $0x6c] sm:$0xf]
      %v4168 = vld [vmem:[%s4150 + $0x70] sm:$0xf]
      %v4169 = vld [vmem:[%s4150 + $0x7c] sm:$0x8]
      %v4170 = vld [vmem:[%s4150 + $0x80] sm:$0xf]
      %v4171 = vld [vmem:[%s4150 + $0x84] sm:$0xf]
      %v4172 = vld [vmem:[%s4150 + $0x90] sm:$0x8]
      %v4173 = vld [vmem:[%s4150 + $0x94] sm:$0xf]
      %v4174 = vld [vmem:[%s4150 + $0x98] sm:$0xf]
      %v4175 = vld [vmem:[%s4150 + $0xa4] sm:$0x8]
      %v4176 = vld [vmem:[%s4150 + $0xa8] sm:$0xf]
      %v4177 = vld [vmem:[%s4150 + $0xac] sm:$0xf]
      %v4178 = vld [vmem:[%s4150 + $0xb8] sm:$0x8]
      %v4179 = vld [vmem:[%s4150 + $0xbc] sm:$0xf]
      %v4180 = vld [vmem:[%s4150 + $0xc0] sm:$0xf]
      %v4181 = vld [vmem:[%s4150 + $0xcc] sm:$0x8]
      %v4182 = vld [vmem:[%s4150 + $0xd0] sm:$0xf]
      %v4183 = vld [vmem:[%s4150 + $0xd4] sm:$0xf]
      %v4184 = vld [vmem:[%s4150 + $0xe0] sm:$0x8]
      %v4185 = vld [vmem:[%s4150 + $0xe4] sm:$0xf]
      %v4186 = vld [vmem:[%s4150 + $0xe8] sm:$0xf]
      %v4187 = vld [vmem:[%s4150 + $0xf4] sm:$0x8]
      %v4188 = vld [vmem:[%s4150 + $0xf8] sm:$0xf]
      %v4189 = vld [vmem:[%s4150 + $0xfc] sm:$0xf]
      %v4190 = vld [vmem:[%s4150 + $0x108] sm:$0x8]
      %v4191 = vld [vmem:[%s4150 + $0x10c] sm:$0xf]
      %v4192 = vld [vmem:[%s4150 + $0x110] sm:$0xf]
      %v4193 = vld [vmem:[%s4150 + $0x11c] sm:$0x8]
      %v4194 = vld [vmem:[%s4150 + $0x120] sm:$0xf]
      %v4195 = vld [vmem:[%s4150 + $0x124] sm:$0xf]
      %v4196 = vld [vmem:[%s4150 + $0x130] sm:$0x8]
      %v4197 = vld [vmem:[%s4150 + $0x134] sm:$0xf]
      %v4198 = vld [vmem:[%s4150 + $0x138] sm:$0xf]
      %v4200 = vshrl.u32 %v4151, 16
      %v4202 = vrot.slane %v4200, 7
      %v4203 = vrot.slane %v4202, 4
      %v4205 = vshrl.u32 %v4152, 16
      %v4207 = vrot.slane %v4205, 7
      %v4208 = vshll.u32 %v4152, 16
      %v4210 = vor.u32 %v4207, %v4208
      %v4211 = vsel %vm598, %v4203, %v4210
      %v4212 = vrot.slane %v4207, 4
      %v4214 = vshrl.u32 %v4153, 16
      %v4216 = vrot.slane %v4214, 7
      %v4217 = vshll.u32 %v4153, 16
      %v4219 = vor.u32 %v4216, %v4217
      %v4220 = vsel %vm598, %v4212, %v4219
      %v4222 = vshrl.u32 %v4154, 16
      %v4224 = vrot.slane %v4222, 7
      %v4225 = vrot.slane %v4224, 4
      %v4227 = vshrl.u32 %v4155, 16
      %v4229 = vrot.slane %v4227, 7
      %v4230 = vshll.u32 %v4155, 16
      %v4232 = vor.u32 %v4229, %v4230
      %v4233 = vsel %vm598, %v4225, %v4232
      %v4234 = vrot.slane %v4229, 4
      %v4236 = vshrl.u32 %v4156, 16
      %v4238 = vrot.slane %v4236, 7
      %v4239 = vshll.u32 %v4156, 16
      %v4241 = vor.u32 %v4238, %v4239
      %v4242 = vsel %vm598, %v4234, %v4241
      %v4244 = vshrl.u32 %v4157, 16
      %v4246 = vrot.slane %v4244, 7
      %v4247 = vrot.slane %v4246, 4
      %v4249 = vshrl.u32 %v4158, 16
      %v4251 = vrot.slane %v4249, 7
      %v4252 = vshll.u32 %v4158, 16
      %v4254 = vor.u32 %v4251, %v4252
      %v4255 = vsel %vm598, %v4247, %v4254
      %v4256 = vrot.slane %v4251, 4
      %v4258 = vshrl.u32 %v4159, 16
      %v4260 = vrot.slane %v4258, 7
      %v4261 = vshll.u32 %v4159, 16
      %v4263 = vor.u32 %v4260, %v4261
      %v4264 = vsel %vm598, %v4256, %v4263
      %v4266 = vshrl.u32 %v4160, 16
      %v4268 = vrot.slane %v4266, 7
      %v4269 = vrot.slane %v4268, 4
      %v4271 = vshrl.u32 %v4161, 16
      %v4273 = vrot.slane %v4271, 7
      %v4274 = vshll.u32 %v4161, 16
      %v4276 = vor.u32 %v4273, %v4274
      %v4277 = vsel %vm598, %v4269, %v4276
      %v4278 = vrot.slane %v4273, 4
      %v4280 = vshrl.u32 %v4162, 16
      %v4282 = vrot.slane %v4280, 7
      %v4283 = vshll.u32 %v4162, 16
      %v4285 = vor.u32 %v4282, %v4283
      %v4286 = vsel %vm598, %v4278, %v4285
      %v4288 = vshrl.u32 %v4163, 16
      %v4290 = vrot.slane %v4288, 7
      %v4291 = vrot.slane %v4290, 4
      %v4293 = vshrl.u32 %v4164, 16
      %v4295 = vrot.slane %v4293, 7
      %v4296 = vshll.u32 %v4164, 16
      %v4298 = vor.u32 %v4295, %v4296
      %v4299 = vsel %vm598, %v4291, %v4298
      %v4300 = vrot.slane %v4295, 4
      %v4302 = vshrl.u32 %v4165, 16
      %v4304 = vrot.slane %v4302, 7
      %v4305 = vshll.u32 %v4165, 16
      %v4307 = vor.u32 %v4304, %v4305
      %v4308 = vsel %vm598, %v4300, %v4307
      %v4310 = vshrl.u32 %v4166, 16
      %v4312 = vrot.slane %v4310, 7
      %v4313 = vrot.slane %v4312, 4
      %v4315 = vshrl.u32 %v4167, 16
      %v4317 = vrot.slane %v4315, 7
      %v4318 = vshll.u32 %v4167, 16
      %v4320 = vor.u32 %v4317, %v4318
      %v4321 = vsel %vm598, %v4313, %v4320
      %v4322 = vrot.slane %v4317, 4
      %v4324 = vshrl.u32 %v4168, 16
      %v4326 = vrot.slane %v4324, 7
      %v4327 = vshll.u32 %v4168, 16
      %v4329 = vor.u32 %v4326, %v4327
      %v4330 = vsel %vm598, %v4322, %v4329
      %v4332 = vshrl.u32 %v4169, 16
      %v4334 = vrot.slane %v4332, 7
      %v4335 = vrot.slane %v4334, 4
      %v4337 = vshrl.u32 %v4170, 16
      %v4339 = vrot.slane %v4337, 7
      %v4340 = vshll.u32 %v4170, 16
      %v4342 = vor.u32 %v4339, %v4340
      %v4343 = vsel %vm598, %v4335, %v4342
      %v4344 = vrot.slane %v4339, 4
      %v4346 = vshrl.u32 %v4171, 16
      %v4348 = vrot.slane %v4346, 7
      %v4349 = vshll.u32 %v4171, 16
      %v4351 = vor.u32 %v4348, %v4349
      %v4352 = vsel %vm598, %v4344, %v4351
      %v4354 = vshrl.u32 %v4172, 16
      %v4356 = vrot.slane %v4354, 7
      %v4357 = vrot.slane %v4356, 4
      %v4359 = vshrl.u32 %v4173, 16
      %v4361 = vrot.slane %v4359, 7
      %v4362 = vshll.u32 %v4173, 16
      %v4364 = vor.u32 %v4361, %v4362
      %v4365 = vsel %vm598, %v4357, %v4364
      %v4366 = vrot.slane %v4361, 4
      %v4368 = vshrl.u32 %v4174, 16
      %v4370 = vrot.slane %v4368, 7
      %v4371 = vshll.u32 %v4174, 16
      %v4373 = vor.u32 %v4370, %v4371
      %v4374 = vsel %vm598, %v4366, %v4373
      %v4376 = vshrl.u32 %v4175, 16
      %v4378 = vrot.slane %v4376, 7
      %v4379 = vrot.slane %v4378, 4
      %v4381 = vshrl.u32 %v4176, 16
      %v4383 = vrot.slane %v4381, 7
      %v4384 = vshll.u32 %v4176, 16
      %v4386 = vor.u32 %v4383, %v4384
      %v4387 = vsel %vm598, %v4379, %v4386
      %v4388 = vrot.slane %v4383, 4
      %v4390 = vshrl.u32 %v4177, 16
      %v4392 = vrot.slane %v4390, 7
      %v4393 = vshll.u32 %v4177, 16
      %v4395 = vor.u32 %v4392, %v4393
      %v4396 = vsel %vm598, %v4388, %v4395
      %v4398 = vshrl.u32 %v4178, 16
      %v4400 = vrot.slane %v4398, 7
      %v4401 = vrot.slane %v4400, 4
      %v4403 = vshrl.u32 %v4179, 16
      %v4405 = vrot.slane %v4403, 7
      %v4406 = vshll.u32 %v4179, 16
      %v4408 = vor.u32 %v4405, %v4406
      %v4409 = vsel %vm598, %v4401, %v4408
      %v4410 = vrot.slane %v4405, 4
      %v4412 = vshrl.u32 %v4180, 16
      %v4414 = vrot.slane %v4412, 7
      %v4415 = vshll.u32 %v4180, 16
      %v4417 = vor.u32 %v4414, %v4415
      %v4418 = vsel %vm598, %v4410, %v4417
      %v4420 = vshrl.u32 %v4181, 16
      %v4422 = vrot.slane %v4420, 7
      %v4423 = vrot.slane %v4422, 4
      %v4425 = vshrl.u32 %v4182, 16
      %v4427 = vrot.slane %v4425, 7
      %v4428 = vshll.u32 %v4182, 16
      %v4430 = vor.u32 %v4427, %v4428
      %v4431 = vsel %vm598, %v4423, %v4430
      %v4432 = vrot.slane %v4427, 4
      %v4434 = vshrl.u32 %v4183, 16
      %v4436 = vrot.slane %v4434, 7
      %v4437 = vshll.u32 %v4183, 16
      %v4439 = vor.u32 %v4436, %v4437
      %v4440 = vsel %vm598, %v4432, %v4439
      %v4442 = vshrl.u32 %v4184, 16
      %v4444 = vrot.slane %v4442, 7
      %v4445 = vrot.slane %v4444, 4
      %v4447 = vshrl.u32 %v4185, 16
      %v4449 = vrot.slane %v4447, 7
      %v4450 = vshll.u32 %v4185, 16
      %v4452 = vor.u32 %v4449, %v4450
      %v4453 = vsel %vm598, %v4445, %v4452
      %v4454 = vrot.slane %v4449, 4
      %v4456 = vshrl.u32 %v4186, 16
      %v4458 = vrot.slane %v4456, 7
      %v4459 = vshll.u32 %v4186, 16
      %v4461 = vor.u32 %v4458, %v4459
      %v4462 = vsel %vm598, %v4454, %v4461
      %v4464 = vshrl.u32 %v4187, 16
      %v4466 = vrot.slane %v4464, 7
      %v4467 = vrot.slane %v4466, 4
      %v4469 = vshrl.u32 %v4188, 16
      %v4471 = vrot.slane %v4469, 7
      %v4472 = vshll.u32 %v4188, 16
      %v4474 = vor.u32 %v4471, %v4472
      %v4475 = vsel %vm598, %v4467, %v4474
      %v4476 = vrot.slane %v4471, 4
      %v4478 = vshrl.u32 %v4189, 16
      %v4480 = vrot.slane %v4478, 7
      %v4481 = vshll.u32 %v4189, 16
      %v4483 = vor.u32 %v4480, %v4481
      %v4484 = vsel %vm598, %v4476, %v4483
      %v4486 = vshrl.u32 %v4190, 16
      %v4488 = vrot.slane %v4486, 7
      %v4489 = vrot.slane %v4488, 4
      %v4491 = vshrl.u32 %v4191, 16
      %v4493 = vrot.slane %v4491, 7
      %v4494 = vshll.u32 %v4191, 16
      %v4496 = vor.u32 %v4493, %v4494
      %v4497 = vsel %vm598, %v4489, %v4496
      %v4498 = vrot.slane %v4493, 4
      %v4500 = vshrl.u32 %v4192, 16
      %v4502 = vrot.slane %v4500, 7
      %v4503 = vshll.u32 %v4192, 16
      %v4505 = vor.u32 %v4502, %v4503
      %v4506 = vsel %vm598, %v4498, %v4505
      %v4508 = vshrl.u32 %v4193, 16
      %v4510 = vrot.slane %v4508, 7
      %v4511 = vrot.slane %v4510, 4
      %v4513 = vshrl.u32 %v4194, 16
      %v4515 = vrot.slane %v4513, 7
      %v4516 = vshll.u32 %v4194, 16
      %v4518 = vor.u32 %v4515, %v4516
      %v4519 = vsel %vm598, %v4511, %v4518
      %v4520 = vrot.slane %v4515, 4
      %v4522 = vshrl.u32 %v4195, 16
      %v4524 = vrot.slane %v4522, 7
      %v4525 = vshll.u32 %v4195, 16
      %v4527 = vor.u32 %v4524, %v4525
      %v4528 = vsel %vm598, %v4520, %v4527
      %v4530 = vshrl.u32 %v4196, 16
      %v4532 = vrot.slane %v4530, 7
      %v4533 = vrot.slane %v4532, 4
      %v4535 = vshrl.u32 %v4197, 16
      %v4537 = vrot.slane %v4535, 7
      %v4538 = vshll.u32 %v4197, 16
      %v4540 = vor.u32 %v4537, %v4538
      %v4541 = vsel %vm598, %v4533, %v4540
      %v4542 = vrot.slane %v4537, 4
      %v4544 = vshrl.u32 %v4198, 16
      %v4546 = vrot.slane %v4544, 7
      %v4547 = vshll.u32 %v4198, 16
      %v4549 = vor.u32 %v4546, %v4547
      %v4550 = vsel %vm598, %v4542, %v4549
      %s4551 = scalar_lea.vmem %s1, 192
      %v4552 = vld [vmem:[%s4551] sm:$0xf]
      %v4553 = vld [vmem:[%s4551 + $0x4] sm:$0xf]
      %v4554 = vld [vmem:[%s4551 + $0x8] sm:$0xf]
      %v4555 = vld [vmem:[%s4551 + $0xc] sm:$0xf]
      %v4556 = vld [vmem:[%s4551 + $0x10] sm:$0xf]
      %v4557 = vld [vmem:[%s4551 + $0x14] sm:$0xf]
      %v4558 = vld [vmem:[%s4551 + $0x18] sm:$0xf]
      %v4559 = vld [vmem:[%s4551 + $0x1c] sm:$0xf]
      %v4560 = vunpack.c.l.b16 %v4211
      %v4561 = vunpack.c.l.b16 %v4220
      %v4562 = vunpack.c.l.b16 %v4233
      %v4563 = vunpack.c.l.b16 %v4242
      %v4564 = vunpack.c.l.b16 %v4255
      %v4565 = vunpack.c.l.b16 %v4264
      %v4566 = vunpack.c.l.b16 %v4277
      %v4567 = vunpack.c.l.b16 %v4286
      %v4568 = vunpack.c.l.b16 %v4299
      %v4569 = vunpack.c.l.b16 %v4308
      %v4570 = vunpack.c.l.b16 %v4321
      %v4571 = vunpack.c.l.b16 %v4330
      %v4572 = vunpack.c.l.b16 %v4343
      %v4573 = vunpack.c.l.b16 %v4352
      %v4574 = vunpack.c.l.b16 %v4365
      %v4575 = vunpack.c.l.b16 %v4374
      %v4576 = vunpack.c.l.b16 %v4387
      %v4577 = vunpack.c.l.b16 %v4396
      %v4578 = vunpack.c.l.b16 %v4409
      %v4579 = vunpack.c.l.b16 %v4418
      %v4580 = vunpack.c.l.b16 %v4431
      %v4581 = vunpack.c.l.b16 %v4440
      %v4582 = vunpack.c.l.b16 %v4453
      %v4583 = vunpack.c.l.b16 %v4462
      %v4584 = vunpack.c.l.b16 %v4475
      %v4585 = vunpack.c.l.b16 %v4484
      %v4586 = vunpack.c.l.b16 %v4497
      %v4587 = vunpack.c.l.b16 %v4506
      %v4588 = vunpack.c.l.b16 %v4519
      %v4589 = vunpack.c.l.b16 %v4528
      %v4590 = vunpack.c.l.b16 %v4541
      %v4591 = vunpack.c.l.b16 %v4550
      %v4592 = vpack.c.b16 %v4561, %v4560
      %v4593 = vpack.c.b16 %v4563, %v4562
      %v4594 = vpack.c.b16 %v4565, %v4564
      %v4595 = vpack.c.b16 %v4567, %v4566
      %v4596 = vpack.c.b16 %v4569, %v4568
      %v4597 = vpack.c.b16 %v4571, %v4570
      %v4598 = vpack.c.b16 %v4573, %v4572
      %v4599 = vpack.c.b16 %v4575, %v4574
      %v4600 = vpack.c.b16 %v4577, %v4576
      %v4601 = vpack.c.b16 %v4579, %v4578
      %v4602 = vpack.c.b16 %v4581, %v4580
      %v4603 = vpack.c.b16 %v4583, %v4582
      %v4604 = vpack.c.b16 %v4585, %v4584
      %v4605 = vpack.c.b16 %v4587, %v4586
      %v4606 = vpack.c.b16 %v4589, %v4588
      %v4607 = vpack.c.b16 %v4591, %v4590
      %v4616 = vunpack.c.l.b16 %v4552
      %v4617 = vunpack.c.l.b16 %v4553
      %v4618 = vunpack.c.l.b16 %v4554
      %v4619 = vunpack.c.l.b16 %v4555
      %v4620 = vunpack.c.l.b16 %v4556
      %v4621 = vunpack.c.l.b16 %v4557
      %v4622 = vunpack.c.l.b16 %v4558
      %v4623 = vunpack.c.l.b16 %v4559
      %v4624 = vpack.c.b16 %v4617, %v4616
      %v4625 = vpack.c.b16 %v4619, %v4618
      %v4626 = vpack.c.b16 %v4621, %v4620
      %v4627 = vpack.c.b16 %v4623, %v4622
      %v4633 = vsel %vm1072, %v4592, 0
      %v4636 = vsel %vm1072, %v4593, 0
      %v4639 = vsel %vm1072, %v4594, 0
      %v4642 = vsel %vm1072, %v4595, 0
      %v4645 = vsel %vm1072, %v4596, 0
      %v4648 = vsel %vm1072, %v4597, 0
      %v4651 = vsel %vm1072, %v4598, 0
      %v4654 = vsel %vm1072, %v4599, 0
      %v4657 = vsel %vm1072, %v4600, 0
      %v4660 = vsel %vm1072, %v4601, 0
      %v4663 = vsel %vm1072, %v4602, 0
      %v4666 = vsel %vm1072, %v4603, 0
      %v4669 = vsel %vm1072, %v4604, 0
      %v4672 = vsel %vm1072, %v4605, 0
      %v4675 = vsel %vm1072, %v4606, 0
      %v4678 = vsel %vm1072, %v4607, 0
      %4680 = vmatprep.subr.bf16.mxu0 0
      %4681 = vmatpush1.bf16.msra.mxu0 %v4624
      %4682 = vmatprep.subr.bf16.mxu0 0
      %4683 = vmatpush1.bf16.msra.mxu0 %v4625
      %4684 = vmatprep.subr.bf16.mxu0 0
      %4685 = vmatpush1.bf16.msra.mxu0 %v4626
      %4686 = vmatprep.subr.bf16.mxu0 0
      %4687 = vmatpush1.bf16.msra.mxu0 %v4627
      %4688 = vmatprep.subr.bf16.mxu0 0
      %4689 = vmatpush1.bf16.msra.mxu0 0
      %4690 = vmatprep.subr.bf16.mxu0 0
      %4691 = vmatpush1.bf16.msra.mxu0 0
      %4692 = vmatprep.subr.bf16.mxu0 0
      %4693 = vmatpush1.bf16.msra.mxu0 0
      %4694 = vmatprep.subr.bf16.mxu0 0
      %4695 = vmatpush1.bf16.msra.mxu0 0
      %4696 = vmatprep.subr.bf16.mxu0 0
      %4697 = vmatpush1.bf16.msra.mxu0 0
      %4698 = vmatprep.subr.bf16.mxu0 0
      %4699 = vmatpush1.bf16.msra.mxu0 0
      %4700 = vmatprep.subr.bf16.mxu0 0
      %4701 = vmatpush1.bf16.msra.mxu0 0
      %4702 = vmatprep.subr.bf16.mxu0 0
      %4703 = vmatpush1.bf16.msra.mxu0 0
      %4704 = vmatprep.subr.bf16.mxu0 0
      %4705 = vmatpush1.bf16.msra.mxu0 0
      %4706 = vmatprep.subr.bf16.mxu0 0
      %4707 = vmatpush1.bf16.msra.mxu0 0
      %4708 = vmatprep.subr.bf16.mxu0 0
      %4709 = vmatpush1.bf16.msra.mxu0 0
      %4710 = vmatprep.subr.bf16.mxu0 0
      %4711 = vmatpush1.bf16.msra.mxu0 0
      %4712 = vmatprep.mubr.bf16.mxu0 0
      %4713 = vmatmul.mubr.bf16.gmra.mrb[0].mxu0 %v4633
      %v4714 = vpop.f32.mrb[0].mxu0
      %v4715 = vadd.f32 0.0, %v4714
      %v4716 = vpop.f32.mrb[0].mxu0
      %v4717 = vpop.f32.mrb[0].mxu0
      %v4718 = vadd.f32 0.0, %v4717
      %v4719 = vpop.f32.mrb[0].mxu0
      %4720 = vmatprep.mubr.bf16.mxu0 0
      %4721 = vmatmul.mubr.bf16.gmra.mrb[0].mxu0 %v4636
      %v4722 = vpop.f32.mrb[0].mxu0
      %v4723 = vadd.f32 0.0, %v4722
      %v4724 = vpop.f32.mrb[0].mxu0
      %v4725 = vpop.f32.mrb[0].mxu0
      %v4726 = vadd.f32 0.0, %v4725
      %v4727 = vpop.f32.mrb[0].mxu0
      %4728 = vmatprep.mubr.bf16.mxu0 0
      %4729 = vmatmul.mubr.bf16.gmra.mrb[0].mxu0 %v4639
      %v4730 = vpop.f32.mrb[0].mxu0
      %v4731 = vadd.f32 0.0, %v4730
      %v4732 = vpop.f32.mrb[0].mxu0
      %v4733 = vpop.f32.mrb[0].mxu0
      %v4734 = vadd.f32 0.0, %v4733
      %v4735 = vpop.f32.mrb[0].mxu0
      %4736 = vmatprep.mubr.bf16.mxu0 0
      %4737 = vmatmul.mubr.bf16.gmra.mrb[0].mxu0 %v4642
      %v4738 = vpop.f32.mrb[0].mxu0
      %v4739 = vadd.f32 0.0, %v4738
      %v4740 = vpop.f32.mrb[0].mxu0
      %v4741 = vpop.f32.mrb[0].mxu0
      %v4742 = vadd.f32 0.0, %v4741
      %v4743 = vpop.f32.mrb[0].mxu0
      %4744 = vmatprep.mubr.bf16.mxu0 0
      %4745 = vmatmul.mubr.bf16.gmra.mrb[0].mxu0 %v4645
      %v4746 = vpop.f32.mrb[0].mxu0
      %v4747 = vadd.f32 0.0, %v4746
      %v4748 = vpop.f32.mrb[0].mxu0
      %v4749 = vpop.f32.mrb[0].mxu0
      %v4750 = vadd.f32 0.0, %v4749
      %v4751 = vpop.f32.mrb[0].mxu0
      %4752 = vmatprep.mubr.bf16.mxu0 0
      %4753 = vmatmul.mubr.bf16.gmra.mrb[0].mxu0 %v4648
      %v4754 = vpop.f32.mrb[0].mxu0
      %v4755 = vadd.f32 0.0, %v4754
      %v4756 = vpop.f32.mrb[0].mxu0
      %v4757 = vpop.f32.mrb[0].mxu0
      %v4758 = vadd.f32 0.0, %v4757
      %v4759 = vpop.f32.mrb[0].mxu0
      %4760 = vmatprep.mubr.bf16.mxu0 0
      %4761 = vmatmul.mubr.bf16.gmra.mrb[0].mxu0 %v4651
      %v4762 = vpop.f32.mrb[0].mxu0
      %v4763 = vadd.f32 0.0, %v4762
      %v4764 = vpop.f32.mrb[0].mxu0
      %v4765 = vpop.f32.mrb[0].mxu0
      %v4766 = vadd.f32 0.0, %v4765
      %v4767 = vpop.f32.mrb[0].mxu0
      %4768 = vmatprep.mubr.bf16.mxu0 0
      %4769 = vmatmul.mubr.bf16.gmra.mrb[0].mxu0 %v4654
      %v4770 = vpop.f32.mrb[0].mxu0
      %v4771 = vadd.f32 0.0, %v4770
      %v4772 = vpop.f32.mrb[0].mxu0
      %v4773 = vpop.f32.mrb[0].mxu0
      %v4774 = vadd.f32 0.0, %v4773
      %v4775 = vpop.f32.mrb[0].mxu0
      %4776 = vmatprep.mubr.bf16.mxu0 0
      %4777 = vmatmul.mubr.bf16.gmra.mrb[0].mxu0 %v4657
      %v4778 = vpop.f32.mrb[0].mxu0
      %v4779 = vadd.f32 0.0, %v4778
      %v4780 = vpop.f32.mrb[0].mxu0
      %v4781 = vpop.f32.mrb[0].mxu0
      %v4782 = vadd.f32 0.0, %v4781
      %v4783 = vpop.f32.mrb[0].mxu0
      %4784 = vmatprep.mubr.bf16.mxu0 0
      %4785 = vmatmul.mubr.bf16.gmra.mrb[0].mxu0 %v4660
      %v4786 = vpop.f32.mrb[0].mxu0
      %v4787 = vadd.f32 0.0, %v4786
      %v4788 = vpop.f32.mrb[0].mxu0
      %v4789 = vpop.f32.mrb[0].mxu0
      %v4790 = vadd.f32 0.0, %v4789
      %v4791 = vpop.f32.mrb[0].mxu0
      %4792 = vmatprep.mubr.bf16.mxu0 0
      %4793 = vmatmul.mubr.bf16.gmra.mrb[0].mxu0 %v4663
      %v4794 = vpop.f32.mrb[0].mxu0
      %v4795 = vadd.f32 0.0, %v4794
      %v4796 = vpop.f32.mrb[0].mxu0
      %v4797 = vpop.f32.mrb[0].mxu0
      %v4798 = vadd.f32 0.0, %v4797
      %v4799 = vpop.f32.mrb[0].mxu0
      %4800 = vmatprep.mubr.bf16.mxu0 0
      %4801 = vmatmul.mubr.bf16.gmra.mrb[0].mxu0 %v4666
      %v4802 = vpop.f32.mrb[0].mxu0
      %v4803 = vadd.f32 0.0, %v4802
      %v4804 = vpop.f32.mrb[0].mxu0
      %v4805 = vpop.f32.mrb[0].mxu0
      %v4806 = vadd.f32 0.0, %v4805
      %v4807 = vpop.f32.mrb[0].mxu0
      %4808 = vmatprep.mubr.bf16.mxu0 0
      %4809 = vmatmul.mubr.bf16.gmra.mrb[0].mxu0 %v4669
      %v4810 = vpop.f32.mrb[0].mxu0
      %v4811 = vadd.f32 0.0, %v4810
      %v4812 = vpop.f32.mrb[0].mxu0
      %v4813 = vpop.f32.mrb[0].mxu0
      %v4814 = vadd.f32 0.0, %v4813
      %v4815 = vpop.f32.mrb[0].mxu0
      %4816 = vmatprep.mubr.bf16.mxu0 0
      %4817 = vmatmul.mubr.bf16.gmra.mrb[0].mxu0 %v4672
      %v4818 = vpop.f32.mrb[0].mxu0
      %v4819 = vadd.f32 0.0, %v4818
      %v4820 = vpop.f32.mrb[0].mxu0
      %v4821 = vpop.f32.mrb[0].mxu0
      %v4822 = vadd.f32 0.0, %v4821
      %v4823 = vpop.f32.mrb[0].mxu0
      %4824 = vmatprep.mubr.bf16.mxu0 0
      %4825 = vmatmul.mubr.bf16.gmra.mrb[0].mxu0 %v4675
      %v4826 = vpop.f32.mrb[0].mxu0
      %v4827 = vadd.f32 0.0, %v4826
      %v4828 = vpop.f32.mrb[0].mxu0
      %v4829 = vpop.f32.mrb[0].mxu0
      %v4830 = vadd.f32 0.0, %v4829
      %v4831 = vpop.f32.mrb[0].mxu0
      %4832 = vmatprep.mubr.bf16.mxu0 0
      %4833 = vmatmul.mubr.bf16.gmra.mrb[0].mxu0 %v4678
      %v4834 = vpop.f32.mrb[0].mxu0
      %v4835 = vadd.f32 0.0, %v4834
      %v4836 = vpop.f32.mrb[0].mxu0
      %v4837 = vpop.f32.mrb[0].mxu0
      %v4838 = vadd.f32 0.0, %v4837
      %v4839 = vpop.f32.mrb[0].mxu0
      %4840 = vdwg.mxu0
      %v4841 = vadd.f32 %v4118, %v4715
      %v4842 = vadd.f32 %v4119, %v4718
      %v4843 = vadd.f32 %v4120, %v4723
      %v4844 = vadd.f32 %v4121, %v4726
      %v4845 = vadd.f32 %v4122, %v4731
      %v4846 = vadd.f32 %v4123, %v4734
      %v4847 = vadd.f32 %v4124, %v4739
      %v4848 = vadd.f32 %v4125, %v4742
      %v4849 = vadd.f32 %v4126, %v4747
      %v4850 = vadd.f32 %v4127, %v4750
      %v4851 = vadd.f32 %v4128, %v4755
      %v4852 = vadd.f32 %v4129, %v4758
      %v4853 = vadd.f32 %v4130, %v4763
      %v4854 = vadd.f32 %v4131, %v4766
      %v4855 = vadd.f32 %v4132, %v4771
      %v4856 = vadd.f32 %v4133, %v4774
      %v4857 = vadd.f32 %v4134, %v4779
      %v4858 = vadd.f32 %v4135, %v4782
      %v4859 = vadd.f32 %v4136, %v4787
      %v4860 = vadd.f32 %v4137, %v4790
      %v4861 = vadd.f32 %v4138, %v4795
      %v4862 = vadd.f32 %v4139, %v4798
      %v4863 = vadd.f32 %v4140, %v4803
      %v4864 = vadd.f32 %v4141, %v4806
      %v4865 = vadd.f32 %v4142, %v4811
      %v4866 = vadd.f32 %v4143, %v4814
      %v4867 = vadd.f32 %v4144, %v4819
      %v4868 = vadd.f32 %v4145, %v4822
      %v4869 = vadd.f32 %v4146, %v4827
      %v4870 = vadd.f32 %v4147, %v4830
      %v4871 = vadd.f32 %v4148, %v4835
      %v4872 = vadd.f32 %v4149, %v4838
      %s4873 = scalar_lea.vmem %s1, 224
      %v4874 = vld [vmem:[%s4873] sm:$0xf]
      %v4875 = vld [vmem:[%s4873 + $0x4] sm:$0xf]
      %v4876 = vld [vmem:[%s4873 + $0x8] sm:$0xf]
      %v4877 = vld [vmem:[%s4873 + $0xc] sm:$0xf]
      %v4878 = vld [vmem:[%s4873 + $0x10] sm:$0xf]
      %v4879 = vld [vmem:[%s4873 + $0x14] sm:$0xf]
      %v4880 = vld [vmem:[%s4873 + $0x18] sm:$0xf]
      %v4881 = vld [vmem:[%s4873 + $0x1c] sm:$0xf]
      %v4914 = vunpack.c.l.b16 %v4152
      %v4915 = vunpack.c.l.b16 %v4153
      %v4916 = vunpack.c.l.b16 %v4155
      %v4917 = vunpack.c.l.b16 %v4156
      %v4918 = vunpack.c.l.b16 %v4158
      %v4919 = vunpack.c.l.b16 %v4159
      %v4920 = vunpack.c.l.b16 %v4161
      %v4921 = vunpack.c.l.b16 %v4162
      %v4922 = vunpack.c.l.b16 %v4164
      %v4923 = vunpack.c.l.b16 %v4165
      %v4924 = vunpack.c.l.b16 %v4167
      %v4925 = vunpack.c.l.b16 %v4168
      %v4926 = vunpack.c.l.b16 %v4170
      %v4927 = vunpack.c.l.b16 %v4171
      %v4928 = vunpack.c.l.b16 %v4173
      %v4929 = vunpack.c.l.b16 %v4174
      %v4930 = vunpack.c.l.b16 %v4176
      %v4931 = vunpack.c.l.b16 %v4177
      %v4932 = vunpack.c.l.b16 %v4179
      %v4933 = vunpack.c.l.b16 %v4180
      %v4934 = vunpack.c.l.b16 %v4182
      %v4935 = vunpack.c.l.b16 %v4183
      %v4936 = vunpack.c.l.b16 %v4185
      %v4937 = vunpack.c.l.b16 %v4186
      %v4938 = vunpack.c.l.b16 %v4188
      %v4939 = vunpack.c.l.b16 %v4189
      %v4940 = vunpack.c.l.b16 %v4191
      %v4941 = vunpack.c.l.b16 %v4192
      %v4942 = vunpack.c.l.b16 %v4194
      %v4943 = vunpack.c.l.b16 %v4195
      %v4944 = vunpack.c.l.b16 %v4197
      %v4945 = vunpack.c.l.b16 %v4198
      %v4946 = vpack.c.b16 %v4915, %v4914
      %v4947 = vpack.c.b16 %v4917, %v4916
      %v4948 = vpack.c.b16 %v4919, %v4918
      %v4949 = vpack.c.b16 %v4921, %v4920
      %v4950 = vpack.c.b16 %v4923, %v4922
      %v4951 = vpack.c.b16 %v4925, %v4924
      %v4952 = vpack.c.b16 %v4927, %v4926
      %v4953 = vpack.c.b16 %v4929, %v4928
      %v4954 = vpack.c.b16 %v4931, %v4930
      %v4955 = vpack.c.b16 %v4933, %v4932
      %v4956 = vpack.c.b16 %v4935, %v4934
      %v4957 = vpack.c.b16 %v4937, %v4936
      %v4958 = vpack.c.b16 %v4939, %v4938
      %v4959 = vpack.c.b16 %v4941, %v4940
      %v4960 = vpack.c.b16 %v4943, %v4942
      %v4961 = vpack.c.b16 %v4945, %v4944
      %v4970 = vunpack.c.l.b16 %v4874
      %v4971 = vunpack.c.l.b16 %v4875
      %v4972 = vunpack.c.l.b16 %v4876
      %v4973 = vunpack.c.l.b16 %v4877
      %v4974 = vunpack.c.l.b16 %v4878
      %v4975 = vunpack.c.l.b16 %v4879
      %v4976 = vunpack.c.l.b16 %v4880
      %v4977 = vunpack.c.l.b16 %v4881
      %v4978 = vpack.c.b16 %v4971, %v4970
      %v4979 = vpack.c.b16 %v4973, %v4972
      %v4980 = vpack.c.b16 %v4975, %v4974
      %v4981 = vpack.c.b16 %v4977, %v4976
      %v4987 = vsel %vm1072, %v4946, 0
      %v4990 = vsel %vm1072, %v4947, 0
      %v4993 = vsel %vm1072, %v4948, 0
      %v4996 = vsel %vm1072, %v4949, 0
      %v4999 = vsel %vm1072, %v4950, 0
      %v5002 = vsel %vm1072, %v4951, 0
      %v5005 = vsel %vm1072, %v4952, 0
      %v5008 = vsel %vm1072, %v4953, 0
      %v5011 = vsel %vm1072, %v4954, 0
      %v5014 = vsel %vm1072, %v4955, 0
      %v5017 = vsel %vm1072, %v4956, 0
      %v5020 = vsel %vm1072, %v4957, 0
      %v5023 = vsel %vm1072, %v4958, 0
      %v5026 = vsel %vm1072, %v4959, 0
      %v5029 = vsel %vm1072, %v4960, 0
      %v5032 = vsel %vm1072, %v4961, 0
      %5034 = vmatprep.subr.bf16.mxu0 0
      %5035 = vmatpush1.bf16.msra.mxu0 %v4978
      %5036 = vmatprep.subr.bf16.mxu0 0
      %5037 = vmatpush1.bf16.msra.mxu0 %v4979
      %5038 = vmatprep.subr.bf16.mxu0 0
      %5039 = vmatpush1.bf16.msra.mxu0 %v4980
      %5040 = vmatprep.subr.bf16.mxu0 0
      %5041 = vmatpush1.bf16.msra.mxu0 %v4981
      %5042 = vmatprep.subr.bf16.mxu0 0
      %5043 = vmatpush1.bf16.msra.mxu0 0
      %5044 = vmatprep.subr.bf16.mxu0 0
      %5045 = vmatpush1.bf16.msra.mxu0 0
      %5046 = vmatprep.subr.bf16.mxu0 0
      %5047 = vmatpush1.bf16.msra.mxu0 0
      %5048 = vmatprep.subr.bf16.mxu0 0
      %5049 = vmatpush1.bf16.msra.mxu0 0
      %5050 = vmatprep.subr.bf16.mxu0 0
      %5051 = vmatpush1.bf16.msra.mxu0 0
      %5052 = vmatprep.subr.bf16.mxu0 0
      %5053 = vmatpush1.bf16.msra.mxu0 0
      %5054 = vmatprep.subr.bf16.mxu0 0
      %5055 = vmatpush1.bf16.msra.mxu0 0
      %5056 = vmatprep.subr.bf16.mxu0 0
      %5057 = vmatpush1.bf16.msra.mxu0 0
      %5058 = vmatprep.subr.bf16.mxu0 0
      %5059 = vmatpush1.bf16.msra.mxu0 0
      %5060 = vmatprep.subr.bf16.mxu0 0
      %5061 = vmatpush1.bf16.msra.mxu0 0
      %5062 = vmatprep.subr.bf16.mxu0 0
      %5063 = vmatpush1.bf16.msra.mxu0 0
      %5064 = vmatprep.subr.bf16.mxu0 0
      %5065 = vmatpush1.bf16.msra.mxu0 0
      %5066 = vmatprep.mubr.bf16.mxu0 0
      %5067 = vmatmul.mubr.bf16.gmra.mrb[0].mxu0 %v4987
      %v5068 = vpop.f32.mrb[0].mxu0
      %v5069 = vadd.f32 0.0, %v5068
      %v5070 = vpop.f32.mrb[0].mxu0
      %v5071 = vpop.f32.mrb[0].mxu0
      %v5072 = vadd.f32 0.0, %v5071
      %v5073 = vpop.f32.mrb[0].mxu0
      %5074 = vmatprep.mubr.bf16.mxu0 0
      %5075 = vmatmul.mubr.bf16.gmra.mrb[0].mxu0 %v4990
      %v5076 = vpop.f32.mrb[0].mxu0
      %v5077 = vadd.f32 0.0, %v5076
      %v5078 = vpop.f32.mrb[0].mxu0
      %v5079 = vpop.f32.mrb[0].mxu0
      %v5080 = vadd.f32 0.0, %v5079
      %v5081 = vpop.f32.mrb[0].mxu0
      %5082 = vmatprep.mubr.bf16.mxu0 0
      %5083 = vmatmul.mubr.bf16.gmra.mrb[0].mxu0 %v4993
      %v5084 = vpop.f32.mrb[0].mxu0
      %v5085 = vadd.f32 0.0, %v5084
      %v5086 = vpop.f32.mrb[0].mxu0
      %v5087 = vpop.f32.mrb[0].mxu0
      %v5088 = vadd.f32 0.0, %v5087
      %v5089 = vpop.f32.mrb[0].mxu0
      %5090 = vmatprep.mubr.bf16.mxu0 0
      %5091 = vmatmul.mubr.bf16.gmra.mrb[0].mxu0 %v4996
      %v5092 = vpop.f32.mrb[0].mxu0
      %v5093 = vadd.f32 0.0, %v5092
      %v5094 = vpop.f32.mrb[0].mxu0
      %v5095 = vpop.f32.mrb[0].mxu0
      %v5096 = vadd.f32 0.0, %v5095
      %v5097 = vpop.f32.mrb[0].mxu0
      %5098 = vmatprep.mubr.bf16.mxu0 0
      %5099 = vmatmul.mubr.bf16.gmra.mrb[0].mxu0 %v4999
      %v5100 = vpop.f32.mrb[0].mxu0
      %v5101 = vadd.f32 0.0, %v5100
      %v5102 = vpop.f32.mrb[0].mxu0
      %v5103 = vpop.f32.mrb[0].mxu0
      %v5104 = vadd.f32 0.0, %v5103
      %v5105 = vpop.f32.mrb[0].mxu0
      %5106 = vmatprep.mubr.bf16.mxu0 0
      %5107 = vmatmul.mubr.bf16.gmra.mrb[0].mxu0 %v5002
      %v5108 = vpop.f32.mrb[0].mxu0
      %v5109 = vadd.f32 0.0, %v5108
      %v5110 = vpop.f32.mrb[0].mxu0
      %v5111 = vpop.f32.mrb[0].mxu0
      %v5112 = vadd.f32 0.0, %v5111
      %v5113 = vpop.f32.mrb[0].mxu0
      %5114 = vmatprep.mubr.bf16.mxu0 0
      %5115 = vmatmul.mubr.bf16.gmra.mrb[0].mxu0 %v5005
      %v5116 = vpop.f32.mrb[0].mxu0
      %v5117 = vadd.f32 0.0, %v5116
      %v5118 = vpop.f32.mrb[0].mxu0
      %v5119 = vpop.f32.mrb[0].mxu0
      %v5120 = vadd.f32 0.0, %v5119
      %v5121 = vpop.f32.mrb[0].mxu0
      %5122 = vmatprep.mubr.bf16.mxu0 0
      %5123 = vmatmul.mubr.bf16.gmra.mrb[0].mxu0 %v5008
      %v5124 = vpop.f32.mrb[0].mxu0
      %v5125 = vadd.f32 0.0, %v5124
      %v5126 = vpop.f32.mrb[0].mxu0
      %v5127 = vpop.f32.mrb[0].mxu0
      %v5128 = vadd.f32 0.0, %v5127
      %v5129 = vpop.f32.mrb[0].mxu0
      %5130 = vmatprep.mubr.bf16.mxu0 0
      %5131 = vmatmul.mubr.bf16.gmra.mrb[0].mxu0 %v5011
      %v5132 = vpop.f32.mrb[0].mxu0
      %v5133 = vadd.f32 0.0, %v5132
      %v5134 = vpop.f32.mrb[0].mxu0
      %v5135 = vpop.f32.mrb[0].mxu0
      %v5136 = vadd.f32 0.0, %v5135
      %v5137 = vpop.f32.mrb[0].mxu0
      %5138 = vmatprep.mubr.bf16.mxu0 0
      %5139 = vmatmul.mubr.bf16.gmra.mrb[0].mxu0 %v5014
      %v5140 = vpop.f32.mrb[0].mxu0
      %v5141 = vadd.f32 0.0, %v5140
      %v5142 = vpop.f32.mrb[0].mxu0
      %v5143 = vpop.f32.mrb[0].mxu0
      %v5144 = vadd.f32 0.0, %v5143
      %v5145 = vpop.f32.mrb[0].mxu0
      %5146 = vmatprep.mubr.bf16.mxu0 0
      %5147 = vmatmul.mubr.bf16.gmra.mrb[0].mxu0 %v5017
      %v5148 = vpop.f32.mrb[0].mxu0
      %v5149 = vadd.f32 0.0, %v5148
      %v5150 = vpop.f32.mrb[0].mxu0
      %v5151 = vpop.f32.mrb[0].mxu0
      %v5152 = vadd.f32 0.0, %v5151
      %v5153 = vpop.f32.mrb[0].mxu0
      %5154 = vmatprep.mubr.bf16.mxu0 0
      %5155 = vmatmul.mubr.bf16.gmra.mrb[0].mxu0 %v5020
      %v5156 = vpop.f32.mrb[0].mxu0
      %v5157 = vadd.f32 0.0, %v5156
      %v5158 = vpop.f32.mrb[0].mxu0
      %v5159 = vpop.f32.mrb[0].mxu0
      %v5160 = vadd.f32 0.0, %v5159
      %v5161 = vpop.f32.mrb[0].mxu0
      %5162 = vmatprep.mubr.bf16.mxu0 0
      %5163 = vmatmul.mubr.bf16.gmra.mrb[0].mxu0 %v5023
      %v5164 = vpop.f32.mrb[0].mxu0
      %v5165 = vadd.f32 0.0, %v5164
      %v5166 = vpop.f32.mrb[0].mxu0
      %v5167 = vpop.f32.mrb[0].mxu0
      %v5168 = vadd.f32 0.0, %v5167
      %v5169 = vpop.f32.mrb[0].mxu0
      %5170 = vmatprep.mubr.bf16.mxu0 0
      %5171 = vmatmul.mubr.bf16.gmra.mrb[0].mxu0 %v5026
      %v5172 = vpop.f32.mrb[0].mxu0
      %v5173 = vadd.f32 0.0, %v5172
      %v5174 = vpop.f32.mrb[0].mxu0
      %v5175 = vpop.f32.mrb[0].mxu0
      %v5176 = vadd.f32 0.0, %v5175
      %v5177 = vpop.f32.mrb[0].mxu0
      %5178 = vmatprep.mubr.bf16.mxu0 0
      %5179 = vmatmul.mubr.bf16.gmra.mrb[0].mxu0 %v5029
      %v5180 = vpop.f32.mrb[0].mxu0
      %v5181 = vadd.f32 0.0, %v5180
      %v5182 = vpop.f32.mrb[0].mxu0
      %v5183 = vpop.f32.mrb[0].mxu0
      %v5184 = vadd.f32 0.0, %v5183
      %v5185 = vpop.f32.mrb[0].mxu0
      %5186 = vmatprep.mubr.bf16.mxu0 0
      %5187 = vmatmul.mubr.bf16.gmra.mrb[0].mxu0 %v5032
      %v5188 = vpop.f32.mrb[0].mxu0
      %v5189 = vadd.f32 0.0, %v5188
      %v5190 = vpop.f32.mrb[0].mxu0
      %v5191 = vpop.f32.mrb[0].mxu0
      %v5192 = vadd.f32 0.0, %v5191
      %v5193 = vpop.f32.mrb[0].mxu0
      %5194 = vdwg.mxu0
      %v5195 = vadd.f32 %v4841, %v5069
      %v5196 = vadd.f32 %v4842, %v5072
      %v5197 = vadd.f32 %v4843, %v5077
      %v5198 = vadd.f32 %v4844, %v5080
      %v5199 = vadd.f32 %v4845, %v5085
      %v5200 = vadd.f32 %v4846, %v5088
      %v5201 = vadd.f32 %v4847, %v5093
      %v5202 = vadd.f32 %v4848, %v5096
      %v5203 = vadd.f32 %v4849, %v5101
      %v5204 = vadd.f32 %v4850, %v5104
      %v5205 = vadd.f32 %v4851, %v5109
      %v5206 = vadd.f32 %v4852, %v5112
      %v5207 = vadd.f32 %v4853, %v5117
      %v5208 = vadd.f32 %v4854, %v5120
      %v5209 = vadd.f32 %v4855, %v5125
      %v5210 = vadd.f32 %v4856, %v5128
      %v5211 = vadd.f32 %v4857, %v5133
      %v5212 = vadd.f32 %v4858, %v5136
      %v5213 = vadd.f32 %v4859, %v5141
      %v5214 = vadd.f32 %v4860, %v5144
      %v5215 = vadd.f32 %v4861, %v5149
      %v5216 = vadd.f32 %v4862, %v5152
      %v5217 = vadd.f32 %v4863, %v5157
      %v5218 = vadd.f32 %v4864, %v5160
      %v5219 = vadd.f32 %v4865, %v5165
      %v5220 = vadd.f32 %v4866, %v5168
      %v5221 = vadd.f32 %v4867, %v5173
      %v5222 = vadd.f32 %v4868, %v5176
      %v5223 = vadd.f32 %v4869, %v5181
      %v5224 = vadd.f32 %v4870, %v5184
      %v5225 = vadd.f32 %v4871, %v5189
      %v5226 = vadd.f32 %v4872, %v5192
      %v5227 = vld [vmem:[%s4150 + $0x8] sm:$0xf]
      %v5228 = vld [vmem:[%s4150 + $0xc] sm:$0xf]
      %v5229 = vld [vmem:[%s4150 + $0x10] sm:$0x1]
      %v5230 = vld [vmem:[%s4150 + $0x1c] sm:$0xf]
      %v5231 = vld [vmem:[%s4150 + $0x20] sm:$0xf]
      %v5232 = vld [vmem:[%s4150 + $0x24] sm:$0x1]
      %v5233 = vld [vmem:[%s4150 + $0x30] sm:$0xf]
      %v5234 = vld [vmem:[%s4150 + $0x34] sm:$0xf]
      %v5235 = vld [vmem:[%s4150 + $0x38] sm:$0x1]
      %v5236 = vld [vmem:[%s4150 + $0x44] sm:$0xf]
      %v5237 = vld [vmem:[%s4150 + $0x48] sm:$0xf]
      %v5238 = vld [vmem:[%s4150 + $0x4c] sm:$0x1]
      %v5239 = vld [vmem:[%s4150 + $0x58] sm:$0xf]
      %v5240 = vld [vmem:[%s4150 + $0x5c] sm:$0xf]
      %v5241 = vld [vmem:[%s4150 + $0x60] sm:$0x1]
      %v5242 = vld [vmem:[%s4150 + $0x6c] sm:$0xf]
      %v5243 = vld [vmem:[%s4150 + $0x70] sm:$0xf]
      %v5244 = vld [vmem:[%s4150 + $0x74] sm:$0x1]
      %v5245 = vld [vmem:[%s4150 + $0x80] sm:$0xf]
      %v5246 = vld [vmem:[%s4150 + $0x84] sm:$0xf]
      %v5247 = vld [vmem:[%s4150 + $0x88] sm:$0x1]
      %v5248 = vld [vmem:[%s4150 + $0x94] sm:$0xf]
      %v5249 = vld [vmem:[%s4150 + $0x98] sm:$0xf]
      %v5250 = vld [vmem:[%s4150 + $0x9c] sm:$0x1]
      %v5251 = vld [vmem:[%s4150 + $0xa8] sm:$0xf]
      %v5252 = vld [vmem:[%s4150 + $0xac] sm:$0xf]
      %v5253 = vld [vmem:[%s4150 + $0xb0] sm:$0x1]
      %v5254 = vld [vmem:[%s4150 + $0xbc] sm:$0xf]
      %v5255 = vld [vmem:[%s4150 + $0xc0] sm:$0xf]
      %v5256 = vld [vmem:[%s4150 + $0xc4] sm:$0x1]
      %v5257 = vld [vmem:[%s4150 + $0xd0] sm:$0xf]
      %v5258 = vld [vmem:[%s4150 + $0xd4] sm:$0xf]
      %v5259 = vld [vmem:[%s4150 + $0xd8] sm:$0x1]
      %v5260 = vld [vmem:[%s4150 + $0xe4] sm:$0xf]
      %v5261 = vld [vmem:[%s4150 + $0xe8] sm:$0xf]
      %v5262 = vld [vmem:[%s4150 + $0xec] sm:$0x1]
      %v5263 = vld [vmem:[%s4150 + $0xf8] sm:$0xf]
      %v5264 = vld [vmem:[%s4150 + $0xfc] sm:$0xf]
      %v5265 = vld [vmem:[%s4150 + $0x100] sm:$0x1]
      %v5266 = vld [vmem:[%s4150 + $0x10c] sm:$0xf]
      %v5267 = vld [vmem:[%s4150 + $0x110] sm:$0xf]
      %v5268 = vld [vmem:[%s4150 + $0x114] sm:$0x1]
      %v5269 = vld [vmem:[%s4150 + $0x120] sm:$0xf]
      %v5270 = vld [vmem:[%s4150 + $0x124] sm:$0xf]
      %v5271 = vld [vmem:[%s4150 + $0x128] sm:$0x1]
      %v5272 = vld [vmem:[%s4150 + $0x134] sm:$0xf]
      %v5273 = vld [vmem:[%s4150 + $0x138] sm:$0xf]
      %v5274 = vld [vmem:[%s4150 + $0x13c] sm:$0x1]
      %v5276 = vshrl.u32 %v5227, 16
      %v5278 = vrot.slane %v5276, 4
      %v5279 = vshll.u32 %v5227, 16
      %v5281 = vrot.slane %v5279, 5
      %v5282 = vor.u32 %v5278, %v5281
      %v5283 = vrot.slane %v5282, 4
      %v5285 = vshll.u32 %v5228, 16
      %v5287 = vrot.slane %v5285, 5
      %v5288 = vsel %vm1613, %v5283, %v5287
      %v5289 = vshrl.u32 %v5228, 16
      %v5291 = vrot.slane %v5289, 4
      %v5292 = vor.u32 %v5291, %v5287
      %v5293 = vrot.slane %v5292, 4
      %v5295 = vshll.u32 %v5229, 16
      %v5297 = vrot.slane %v5295, 5
      %v5298 = vsel %vm1613, %v5293, %v5297
      %v5300 = vshrl.u32 %v5230, 16
      %v5302 = vrot.slane %v5300, 4
      %v5303 = vshll.u32 %v5230, 16
      %v5305 = vrot.slane %v5303, 5
      %v5306 = vor.u32 %v5302, %v5305
      %v5307 = vrot.slane %v5306, 4
      %v5309 = vshll.u32 %v5231, 16
      %v5311 = vrot.slane %v5309, 5
      %v5312 = vsel %vm1613, %v5307, %v5311
      %v5313 = vshrl.u32 %v5231, 16
      %v5315 = vrot.slane %v5313, 4
      %v5316 = vor.u32 %v5315, %v5311
      %v5317 = vrot.slane %v5316, 4
      %v5319 = vshll.u32 %v5232, 16
      %v5321 = vrot.slane %v5319, 5
      %v5322 = vsel %vm1613, %v5317, %v5321
      %v5324 = vshrl.u32 %v5233, 16
      %v5326 = vrot.slane %v5324, 4
      %v5327 = vshll.u32 %v5233, 16
      %v5329 = vrot.slane %v5327, 5
      %v5330 = vor.u32 %v5326, %v5329
      %v5331 = vrot.slane %v5330, 4
      %v5333 = vshll.u32 %v5234, 16
      %v5335 = vrot.slane %v5333, 5
      %v5336 = vsel %vm1613, %v5331, %v5335
      %v5337 = vshrl.u32 %v5234, 16
      %v5339 = vrot.slane %v5337, 4
      %v5340 = vor.u32 %v5339, %v5335
      %v5341 = vrot.slane %v5340, 4
      %v5343 = vshll.u32 %v5235, 16
      %v5345 = vrot.slane %v5343, 5
      %v5346 = vsel %vm1613, %v5341, %v5345
      %v5348 = vshrl.u32 %v5236, 16
      %v5350 = vrot.slane %v5348, 4
      %v5351 = vshll.u32 %v5236, 16
      %v5353 = vrot.slane %v5351, 5
      %v5354 = vor.u32 %v5350, %v5353
      %v5355 = vrot.slane %v5354, 4
      %v5357 = vshll.u32 %v5237, 16
      %v5359 = vrot.slane %v5357, 5
      %v5360 = vsel %vm1613, %v5355, %v5359
      %v5361 = vshrl.u32 %v5237, 16
      %v5363 = vrot.slane %v5361, 4
      %v5364 = vor.u32 %v5363, %v5359
      %v5365 = vrot.slane %v5364, 4
      %v5367 = vshll.u32 %v5238, 16
      %v5369 = vrot.slane %v5367, 5
      %v5370 = vsel %vm1613, %v5365, %v5369
      %v5372 = vshrl.u32 %v5239, 16
      %v5374 = vrot.slane %v5372, 4
      %v5375 = vshll.u32 %v5239, 16
      %v5377 = vrot.slane %v5375, 5
      %v5378 = vor.u32 %v5374, %v5377
      %v5379 = vrot.slane %v5378, 4
      %v5381 = vshll.u32 %v5240, 16
      %v5383 = vrot.slane %v5381, 5
      %v5384 = vsel %vm1613, %v5379, %v5383
      %v5385 = vshrl.u32 %v5240, 16
      %v5387 = vrot.slane %v5385, 4
      %v5388 = vor.u32 %v5387, %v5383
      %v5389 = vrot.slane %v5388, 4
      %v5391 = vshll.u32 %v5241, 16
      %v5393 = vrot.slane %v5391, 5
      %v5394 = vsel %vm1613, %v5389, %v5393
      %v5396 = vshrl.u32 %v5242, 16
      %v5398 = vrot.slane %v5396, 4
      %v5399 = vshll.u32 %v5242, 16
      %v5401 = vrot.slane %v5399, 5
      %v5402 = vor.u32 %v5398, %v5401
      %v5403 = vrot.slane %v5402, 4
      %v5405 = vshll.u32 %v5243, 16
      %v5407 = vrot.slane %v5405, 5
      %v5408 = vsel %vm1613, %v5403, %v5407
      %v5409 = vshrl.u32 %v5243, 16
      %v5411 = vrot.slane %v5409, 4
      %v5412 = vor.u32 %v5411, %v5407
      %v5413 = vrot.slane %v5412, 4
      %v5415 = vshll.u32 %v5244, 16
      %v5417 = vrot.slane %v5415, 5
      %v5418 = vsel %vm1613, %v5413, %v5417
      %v5420 = vshrl.u32 %v5245, 16
      %v5422 = vrot.slane %v5420, 4
      %v5423 = vshll.u32 %v5245, 16
      %v5425 = vrot.slane %v5423, 5
      %v5426 = vor.u32 %v5422, %v5425
      %v5427 = vrot.slane %v5426, 4
      %v5429 = vshll.u32 %v5246, 16
      %v5431 = vrot.slane %v5429, 5
      %v5432 = vsel %vm1613, %v5427, %v5431
      %v5433 = vshrl.u32 %v5246, 16
      %v5435 = vrot.slane %v5433, 4
      %v5436 = vor.u32 %v5435, %v5431
      %v5437 = vrot.slane %v5436, 4
      %v5439 = vshll.u32 %v5247, 16
      %v5441 = vrot.slane %v5439, 5
      %v5442 = vsel %vm1613, %v5437, %v5441
      %v5444 = vshrl.u32 %v5248, 16
      %v5446 = vrot.slane %v5444, 4
      %v5447 = vshll.u32 %v5248, 16
      %v5449 = vrot.slane %v5447, 5
      %v5450 = vor.u32 %v5446, %v5449
      %v5451 = vrot.slane %v5450, 4
      %v5453 = vshll.u32 %v5249, 16
      %v5455 = vrot.slane %v5453, 5
      %v5456 = vsel %vm1613, %v5451, %v5455
      %v5457 = vshrl.u32 %v5249, 16
      %v5459 = vrot.slane %v5457, 4
      %v5460 = vor.u32 %v5459, %v5455
      %v5461 = vrot.slane %v5460, 4
      %v5463 = vshll.u32 %v5250, 16
      %v5465 = vrot.slane %v5463, 5
      %v5466 = vsel %vm1613, %v5461, %v5465
      %v5468 = vshrl.u32 %v5251, 16
      %v5470 = vrot.slane %v5468, 4
      %v5471 = vshll.u32 %v5251, 16
      %v5473 = vrot.slane %v5471, 5
      %v5474 = vor.u32 %v5470, %v5473
      %v5475 = vrot.slane %v5474, 4
      %v5477 = vshll.u32 %v5252, 16
      %v5479 = vrot.slane %v5477, 5
      %v5480 = vsel %vm1613, %v5475, %v5479
      %v5481 = vshrl.u32 %v5252, 16
      %v5483 = vrot.slane %v5481, 4
      %v5484 = vor.u32 %v5483, %v5479
      %v5485 = vrot.slane %v5484, 4
      %v5487 = vshll.u32 %v5253, 16
      %v5489 = vrot.slane %v5487, 5
      %v5490 = vsel %vm1613, %v5485, %v5489
      %v5492 = vshrl.u32 %v5254, 16
      %v5494 = vrot.slane %v5492, 4
      %v5495 = vshll.u32 %v5254, 16
      %v5497 = vrot.slane %v5495, 5
      %v5498 = vor.u32 %v5494, %v5497
      %v5499 = vrot.slane %v5498, 4
      %v5501 = vshll.u32 %v5255, 16
      %v5503 = vrot.slane %v5501, 5
      %v5504 = vsel %vm1613, %v5499, %v5503
      %v5505 = vshrl.u32 %v5255, 16
      %v5507 = vrot.slane %v5505, 4
      %v5508 = vor.u32 %v5507, %v5503
      %v5509 = vrot.slane %v5508, 4
      %v5511 = vshll.u32 %v5256, 16
      %v5513 = vrot.slane %v5511, 5
      %v5514 = vsel %vm1613, %v5509, %v5513
      %v5516 = vshrl.u32 %v5257, 16
      %v5518 = vrot.slane %v5516, 4
      %v5519 = vshll.u32 %v5257, 16
      %v5521 = vrot.slane %v5519, 5
      %v5522 = vor.u32 %v5518, %v5521
      %v5523 = vrot.slane %v5522, 4
      %v5525 = vshll.u32 %v5258, 16
      %v5527 = vrot.slane %v5525, 5
      %v5528 = vsel %vm1613, %v5523, %v5527
      %v5529 = vshrl.u32 %v5258, 16
      %v5531 = vrot.slane %v5529, 4
      %v5532 = vor.u32 %v5531, %v5527
      %v5533 = vrot.slane %v5532, 4
      %v5535 = vshll.u32 %v5259, 16
      %v5537 = vrot.slane %v5535, 5
      %v5538 = vsel %vm1613, %v5533, %v5537
      %v5540 = vshrl.u32 %v5260, 16
      %v5542 = vrot.slane %v5540, 4
      %v5543 = vshll.u32 %v5260, 16
      %v5545 = vrot.slane %v5543, 5
      %v5546 = vor.u32 %v5542, %v5545
      %v5547 = vrot.slane %v5546, 4
      %v5549 = vshll.u32 %v5261, 16
      %v5551 = vrot.slane %v5549, 5
      %v5552 = vsel %vm1613, %v5547, %v5551
      %v5553 = vshrl.u32 %v5261, 16
      %v5555 = vrot.slane %v5553, 4
      %v5556 = vor.u32 %v5555, %v5551
      %v5557 = vrot.slane %v5556, 4
      %v5559 = vshll.u32 %v5262, 16
      %v5561 = vrot.slane %v5559, 5
      %v5562 = vsel %vm1613, %v5557, %v5561
      %v5564 = vshrl.u32 %v5263, 16
      %v5566 = vrot.slane %v5564, 4
      %v5567 = vshll.u32 %v5263, 16
      %v5569 = vrot.slane %v5567, 5
      %v5570 = vor.u32 %v5566, %v5569
      %v5571 = vrot.slane %v5570, 4
      %v5573 = vshll.u32 %v5264, 16
      %v5575 = vrot.slane %v5573, 5
      %v5576 = vsel %vm1613, %v5571, %v5575
      %v5577 = vshrl.u32 %v5264, 16
      %v5579 = vrot.slane %v5577, 4
      %v5580 = vor.u32 %v5579, %v5575
      %v5581 = vrot.slane %v5580, 4
      %v5583 = vshll.u32 %v5265, 16
      %v5585 = vrot.slane %v5583, 5
      %v5586 = vsel %vm1613, %v5581, %v5585
      %v5588 = vshrl.u32 %v5266, 16
      %v5590 = vrot.slane %v5588, 4
      %v5591 = vshll.u32 %v5266, 16
      %v5593 = vrot.slane %v5591, 5
      %v5594 = vor.u32 %v5590, %v5593
      %v5595 = vrot.slane %v5594, 4
      %v5597 = vshll.u32 %v5267, 16
      %v5599 = vrot.slane %v5597, 5
      %v5600 = vsel %vm1613, %v5595, %v5599
      %v5601 = vshrl.u32 %v5267, 16
      %v5603 = vrot.slane %v5601, 4
      %v5604 = vor.u32 %v5603, %v5599
      %v5605 = vrot.slane %v5604, 4
      %v5607 = vshll.u32 %v5268, 16
      %v5609 = vrot.slane %v5607, 5
      %v5610 = vsel %vm1613, %v5605, %v5609
      %v5612 = vshrl.u32 %v5269, 16
      %v5614 = vrot.slane %v5612, 4
      %v5615 = vshll.u32 %v5269, 16
      %v5617 = vrot.slane %v5615, 5
      %v5618 = vor.u32 %v5614, %v5617
      %v5619 = vrot.slane %v5618, 4
      %v5621 = vshll.u32 %v5270, 16
      %v5623 = vrot.slane %v5621, 5
      %v5624 = vsel %vm1613, %v5619, %v5623
      %v5625 = vshrl.u32 %v5270, 16
      %v5627 = vrot.slane %v5625, 4
      %v5628 = vor.u32 %v5627, %v5623
      %v5629 = vrot.slane %v5628, 4
      %v5631 = vshll.u32 %v5271, 16
      %v5633 = vrot.slane %v5631, 5
      %v5634 = vsel %vm1613, %v5629, %v5633
      %v5636 = vshrl.u32 %v5272, 16
      %v5638 = vrot.slane %v5636, 4
      %v5639 = vshll.u32 %v5272, 16
      %v5641 = vrot.slane %v5639, 5
      %v5642 = vor.u32 %v5638, %v5641
      %v5643 = vrot.slane %v5642, 4
      %v5645 = vshll.u32 %v5273, 16
      %v5647 = vrot.slane %v5645, 5
      %v5648 = vsel %vm1613, %v5643, %v5647
      %v5649 = vshrl.u32 %v5273, 16
      %v5651 = vrot.slane %v5649, 4
      %v5652 = vor.u32 %v5651, %v5647
      %v5653 = vrot.slane %v5652, 4
      %v5655 = vshll.u32 %v5274, 16
      %v5657 = vrot.slane %v5655, 5
      %v5658 = vsel %vm1613, %v5653, %v5657
      %s5659 = scalar_lea.vmem %s1, 256
      %v5660 = vld [vmem:[%s5659] sm:$0xf]
      %v5661 = vld [vmem:[%s5659 + $0x4] sm:$0xf]
      %v5662 = vld [vmem:[%s5659 + $0x8] sm:$0xf]
      %v5663 = vld [vmem:[%s5659 + $0xc] sm:$0xf]
      %v5664 = vld [vmem:[%s5659 + $0x10] sm:$0xf]
      %v5665 = vld [vmem:[%s5659 + $0x14] sm:$0xf]
      %v5666 = vld [vmem:[%s5659 + $0x18] sm:$0xf]
      %v5667 = vld [vmem:[%s5659 + $0x1c] sm:$0xf]
      %v5668 = vunpack.c.l.b16 %v5288
      %v5669 = vunpack.c.l.b16 %v5298
      %v5670 = vunpack.c.l.b16 %v5312
      %v5671 = vunpack.c.l.b16 %v5322
      %v5672 = vunpack.c.l.b16 %v5336
      %v5673 = vunpack.c.l.b16 %v5346
      %v5674 = vunpack.c.l.b16 %v5360
      %v5675 = vunpack.c.l.b16 %v5370
      %v5676 = vunpack.c.l.b16 %v5384
      %v5677 = vunpack.c.l.b16 %v5394
      %v5678 = vunpack.c.l.b16 %v5408
      %v5679 = vunpack.c.l.b16 %v5418
      %v5680 = vunpack.c.l.b16 %v5432
      %v5681 = vunpack.c.l.b16 %v5442
      %v5682 = vunpack.c.l.b16 %v5456
      %v5683 = vunpack.c.l.b16 %v5466
      %v5684 = vunpack.c.l.b16 %v5480
      %v5685 = vunpack.c.l.b16 %v5490
      %v5686 = vunpack.c.l.b16 %v5504
      %v5687 = vunpack.c.l.b16 %v5514
      %v5688 = vunpack.c.l.b16 %v5528
      %v5689 = vunpack.c.l.b16 %v5538
      %v5690 = vunpack.c.l.b16 %v5552
      %v5691 = vunpack.c.l.b16 %v5562
      %v5692 = vunpack.c.l.b16 %v5576
      %v5693 = vunpack.c.l.b16 %v5586
      %v5694 = vunpack.c.l.b16 %v5600
      %v5695 = vunpack.c.l.b16 %v5610
      %v5696 = vunpack.c.l.b16 %v5624
      %v5697 = vunpack.c.l.b16 %v5634
      %v5698 = vunpack.c.l.b16 %v5648
      %v5699 = vunpack.c.l.b16 %v5658
      %v5700 = vpack.c.b16 %v5669, %v5668
      %v5701 = vpack.c.b16 %v5671, %v5670
      %v5702 = vpack.c.b16 %v5673, %v5672
      %v5703 = vpack.c.b16 %v5675, %v5674
      %v5704 = vpack.c.b16 %v5677, %v5676
      %v5705 = vpack.c.b16 %v5679, %v5678
      %v5706 = vpack.c.b16 %v5681, %v5680
      %v5707 = vpack.c.b16 %v5683, %v5682
      %v5708 = vpack.c.b16 %v5685, %v5684
      %v5709 = vpack.c.b16 %v5687, %v5686
      %v5710 = vpack.c.b16 %v5689, %v5688
      %v5711 = vpack.c.b16 %v5691, %v5690
      %v5712 = vpack.c.b16 %v5693, %v5692
      %v5713 = vpack.c.b16 %v5695, %v5694
      %v5714 = vpack.c.b16 %v5697, %v5696
      %v5715 = vpack.c.b16 %v5699, %v5698
      %v5724 = vunpack.c.l.b16 %v5660
      %v5725 = vunpack.c.l.b16 %v5661
      %v5726 = vunpack.c.l.b16 %v5662
      %v5727 = vunpack.c.l.b16 %v5663
      %v5728 = vunpack.c.l.b16 %v5664
      %v5729 = vunpack.c.l.b16 %v5665
      %v5730 = vunpack.c.l.b16 %v5666
      %v5731 = vunpack.c.l.b16 %v5667
      %v5732 = vpack.c.b16 %v5725, %v5724
      %v5733 = vpack.c.b16 %v5727, %v5726
      %v5734 = vpack.c.b16 %v5729, %v5728
      %v5735 = vpack.c.b16 %v5731, %v5730
      %v5741 = vsel %vm1072, %v5700, 0
      %v5744 = vsel %vm1072, %v5701, 0
      %v5747 = vsel %vm1072, %v5702, 0
      %v5750 = vsel %vm1072, %v5703, 0
      %v5753 = vsel %vm1072, %v5704, 0
      %v5756 = vsel %vm1072, %v5705, 0
      %v5759 = vsel %vm1072, %v5706, 0
      %v5762 = vsel %vm1072, %v5707, 0
      %v5765 = vsel %vm1072, %v5708, 0
      %v5768 = vsel %vm1072, %v5709, 0
      %v5771 = vsel %vm1072, %v5710, 0
      %v5774 = vsel %vm1072, %v5711, 0
      %v5777 = vsel %vm1072, %v5712, 0
      %v5780 = vsel %vm1072, %v5713, 0
      %v5783 = vsel %vm1072, %v5714, 0
      %v5786 = vsel %vm1072, %v5715, 0
      %5788 = vmatprep.subr.bf16.mxu0 0
      %5789 = vmatpush1.bf16.msra.mxu0 %v5732
      %5790 = vmatprep.subr.bf16.mxu0 0
      %5791 = vmatpush1.bf16.msra.mxu0 %v5733
      %5792 = vmatprep.subr.bf16.mxu0 0
      %5793 = vmatpush1.bf16.msra.mxu0 %v5734
      %5794 = vmatprep.subr.bf16.mxu0 0
      %5795 = vmatpush1.bf16.msra.mxu0 %v5735
      %5796 = vmatprep.subr.bf16.mxu0 0
      %5797 = vmatpush1.bf16.msra.mxu0 0
      %5798 = vmatprep.subr.bf16.mxu0 0
      %5799 = vmatpush1.bf16.msra.mxu0 0
      %5800 = vmatprep.subr.bf16.mxu0 0
      %5801 = vmatpush1.bf16.msra.mxu0 0
      %5802 = vmatprep.subr.bf16.mxu0 0
      %5803 = vmatpush1.bf16.msra.mxu0 0
      %5804 = vmatprep.subr.bf16.mxu0 0
      %5805 = vmatpush1.bf16.msra.mxu0 0
      %5806 = vmatprep.subr.bf16.mxu0 0
      %5807 = vmatpush1.bf16.msra.mxu0 0
      %5808 = vmatprep.subr.bf16.mxu0 0
      %5809 = vmatpush1.bf16.msra.mxu0 0
      %5810 = vmatprep.subr.bf16.mxu0 0
      %5811 = vmatpush1.bf16.msra.mxu0 0
      %5812 = vmatprep.subr.bf16.mxu0 0
      %5813 = vmatpush1.bf16.msra.mxu0 0
      %5814 = vmatprep.subr.bf16.mxu0 0
      %5815 = vmatpush1.bf16.msra.mxu0 0
      %5816 = vmatprep.subr.bf16.mxu0 0
      %5817 = vmatpush1.bf16.msra.mxu0 0
      %5818 = vmatprep.subr.bf16.mxu0 0
      %5819 = vmatpush1.bf16.msra.mxu0 0
      %5820 = vmatprep.mubr.bf16.mxu0 0
      %5821 = vmatmul.mubr.bf16.gmra.mrb[0].mxu0 %v5741
      %v5822 = vpop.f32.mrb[0].mxu0
      %v5823 = vadd.f32 0.0, %v5822
      %v5824 = vpop.f32.mrb[0].mxu0
      %v5825 = vpop.f32.mrb[0].mxu0
      %v5826 = vadd.f32 0.0, %v5825
      %v5827 = vpop.f32.mrb[0].mxu0
      %5828 = vmatprep.mubr.bf16.mxu0 0
      %5829 = vmatmul.mubr.bf16.gmra.mrb[0].mxu0 %v5744
      %v5830 = vpop.f32.mrb[0].mxu0
      %v5831 = vadd.f32 0.0, %v5830
      %v5832 = vpop.f32.mrb[0].mxu0
      %v5833 = vpop.f32.mrb[0].mxu0
      %v5834 = vadd.f32 0.0, %v5833
      %v5835 = vpop.f32.mrb[0].mxu0
      %5836 = vmatprep.mubr.bf16.mxu0 0
      %5837 = vmatmul.mubr.bf16.gmra.mrb[0].mxu0 %v5747
      %v5838 = vpop.f32.mrb[0].mxu0
      %v5839 = vadd.f32 0.0, %v5838
      %v5840 = vpop.f32.mrb[0].mxu0
      %v5841 = vpop.f32.mrb[0].mxu0
      %v5842 = vadd.f32 0.0, %v5841
      %v5843 = vpop.f32.mrb[0].mxu0
      %5844 = vmatprep.mubr.bf16.mxu0 0
      %5845 = vmatmul.mubr.bf16.gmra.mrb[0].mxu0 %v5750
      %v5846 = vpop.f32.mrb[0].mxu0
      %v5847 = vadd.f32 0.0, %v5846
      %v5848 = vpop.f32.mrb[0].mxu0
      %v5849 = vpop.f32.mrb[0].mxu0
      %v5850 = vadd.f32 0.0, %v5849
      %v5851 = vpop.f32.mrb[0].mxu0
      %5852 = vmatprep.mubr.bf16.mxu0 0
      %5853 = vmatmul.mubr.bf16.gmra.mrb[0].mxu0 %v5753
      %v5854 = vpop.f32.mrb[0].mxu0
      %v5855 = vadd.f32 0.0, %v5854
      %v5856 = vpop.f32.mrb[0].mxu0
      %v5857 = vpop.f32.mrb[0].mxu0
      %v5858 = vadd.f32 0.0, %v5857
      %v5859 = vpop.f32.mrb[0].mxu0
      %5860 = vmatprep.mubr.bf16.mxu0 0
      %5861 = vmatmul.mubr.bf16.gmra.mrb[0].mxu0 %v5756
      %v5862 = vpop.f32.mrb[0].mxu0
      %v5863 = vadd.f32 0.0, %v5862
      %v5864 = vpop.f32.mrb[0].mxu0
      %v5865 = vpop.f32.mrb[0].mxu0
      %v5866 = vadd.f32 0.0, %v5865
      %v5867 = vpop.f32.mrb[0].mxu0
      %5868 = vmatprep.mubr.bf16.mxu0 0
      %5869 = vmatmul.mubr.bf16.gmra.mrb[0].mxu0 %v5759
      %v5870 = vpop.f32.mrb[0].mxu0
      %v5871 = vadd.f32 0.0, %v5870
      %v5872 = vpop.f32.mrb[0].mxu0
      %v5873 = vpop.f32.mrb[0].mxu0
      %v5874 = vadd.f32 0.0, %v5873
      %v5875 = vpop.f32.mrb[0].mxu0
      %5876 = vmatprep.mubr.bf16.mxu0 0
      %5877 = vmatmul.mubr.bf16.gmra.mrb[0].mxu0 %v5762
      %v5878 = vpop.f32.mrb[0].mxu0
      %v5879 = vadd.f32 0.0, %v5878
      %v5880 = vpop.f32.mrb[0].mxu0
      %v5881 = vpop.f32.mrb[0].mxu0
      %v5882 = vadd.f32 0.0, %v5881
      %v5883 = vpop.f32.mrb[0].mxu0
      %5884 = vmatprep.mubr.bf16.mxu0 0
      %5885 = vmatmul.mubr.bf16.gmra.mrb[0].mxu0 %v5765
      %v5886 = vpop.f32.mrb[0].mxu0
      %v5887 = vadd.f32 0.0, %v5886
      %v5888 = vpop.f32.mrb[0].mxu0
      %v5889 = vpop.f32.mrb[0].mxu0
      %v5890 = vadd.f32 0.0, %v5889
      %v5891 = vpop.f32.mrb[0].mxu0
      %5892 = vmatprep.mubr.bf16.mxu0 0
      %5893 = vmatmul.mubr.bf16.gmra.mrb[0].mxu0 %v5768
      %v5894 = vpop.f32.mrb[0].mxu0
      %v5895 = vadd.f32 0.0, %v5894
      %v5896 = vpop.f32.mrb[0].mxu0
      %v5897 = vpop.f32.mrb[0].mxu0
      %v5898 = vadd.f32 0.0, %v5897
      %v5899 = vpop.f32.mrb[0].mxu0
      %5900 = vmatprep.mubr.bf16.mxu0 0
      %5901 = vmatmul.mubr.bf16.gmra.mrb[0].mxu0 %v5771
      %v5902 = vpop.f32.mrb[0].mxu0
      %v5903 = vadd.f32 0.0, %v5902
      %v5904 = vpop.f32.mrb[0].mxu0
      %v5905 = vpop.f32.mrb[0].mxu0
      %v5906 = vadd.f32 0.0, %v5905
      %v5907 = vpop.f32.mrb[0].mxu0
      %5908 = vmatprep.mubr.bf16.mxu0 0
      %5909 = vmatmul.mubr.bf16.gmra.mrb[0].mxu0 %v5774
      %v5910 = vpop.f32.mrb[0].mxu0
      %v5911 = vadd.f32 0.0, %v5910
      %v5912 = vpop.f32.mrb[0].mxu0
      %v5913 = vpop.f32.mrb[0].mxu0
      %v5914 = vadd.f32 0.0, %v5913
      %v5915 = vpop.f32.mrb[0].mxu0
      %5916 = vmatprep.mubr.bf16.mxu0 0
      %5917 = vmatmul.mubr.bf16.gmra.mrb[0].mxu0 %v5777
      %v5918 = vpop.f32.mrb[0].mxu0
      %v5919 = vadd.f32 0.0, %v5918
      %v5920 = vpop.f32.mrb[0].mxu0
      %v5921 = vpop.f32.mrb[0].mxu0
      %v5922 = vadd.f32 0.0, %v5921
      %v5923 = vpop.f32.mrb[0].mxu0
      %5924 = vmatprep.mubr.bf16.mxu0 0
      %5925 = vmatmul.mubr.bf16.gmra.mrb[0].mxu0 %v5780
      %v5926 = vpop.f32.mrb[0].mxu0
      %v5927 = vadd.f32 0.0, %v5926
      %v5928 = vpop.f32.mrb[0].mxu0
      %v5929 = vpop.f32.mrb[0].mxu0
      %v5930 = vadd.f32 0.0, %v5929
      %v5931 = vpop.f32.mrb[0].mxu0
      %5932 = vmatprep.mubr.bf16.mxu0 0
      %5933 = vmatmul.mubr.bf16.gmra.mrb[0].mxu0 %v5783
      %v5934 = vpop.f32.mrb[0].mxu0
      %v5935 = vadd.f32 0.0, %v5934
      %v5936 = vpop.f32.mrb[0].mxu0
      %v5937 = vpop.f32.mrb[0].mxu0
      %v5938 = vadd.f32 0.0, %v5937
      %v5939 = vpop.f32.mrb[0].mxu0
      %5940 = vmatprep.mubr.bf16.mxu0 0
      %5941 = vmatmul.mubr.bf16.gmra.mrb[0].mxu0 %v5786
      %v5942 = vpop.f32.mrb[0].mxu0
      %v5943 = vadd.f32 0.0, %v5942
      %v5944 = vpop.f32.mrb[0].mxu0
      %v5945 = vpop.f32.mrb[0].mxu0
      %v5946 = vadd.f32 0.0, %v5945
      %v5947 = vpop.f32.mrb[0].mxu0
      %5948 = vdwg.mxu0
      %v5949 = vadd.f32 %v5195, %v5823
      %v5950 = vadd.f32 %v5196, %v5826
      %v5951 = vadd.f32 %v5197, %v5831
      %v5952 = vadd.f32 %v5198, %v5834
      %v5953 = vadd.f32 %v5199, %v5839
      %v5954 = vadd.f32 %v5200, %v5842
      %v5955 = vadd.f32 %v5201, %v5847
      %v5956 = vadd.f32 %v5202, %v5850
      %v5957 = vadd.f32 %v5203, %v5855
      %v5958 = vadd.f32 %v5204, %v5858
      %v5959 = vadd.f32 %v5205, %v5863
      %v5960 = vadd.f32 %v5206, %v5866
      %v5961 = vadd.f32 %v5207, %v5871
      %v5962 = vadd.f32 %v5208, %v5874
      %v5963 = vadd.f32 %v5209, %v5879
      %v5964 = vadd.f32 %v5210, %v5882
      %v5965 = vadd.f32 %v5211, %v5887
      %v5966 = vadd.f32 %v5212, %v5890
      %v5967 = vadd.f32 %v5213, %v5895
      %v5968 = vadd.f32 %v5214, %v5898
      %v5969 = vadd.f32 %v5215, %v5903
      %v5970 = vadd.f32 %v5216, %v5906
      %v5971 = vadd.f32 %v5217, %v5911
      %v5972 = vadd.f32 %v5218, %v5914
      %v5973 = vadd.f32 %v5219, %v5919
      %v5974 = vadd.f32 %v5220, %v5922
      %v5975 = vadd.f32 %v5221, %v5927
      %v5976 = vadd.f32 %v5222, %v5930
      %v5977 = vadd.f32 %v5223, %v5935
      %v5978 = vadd.f32 %v5224, %v5938
      %v5979 = vadd.f32 %v5225, %v5943
      %v5980 = vadd.f32 %v5226, %v5946
      %v5981 = vld [vmem:[%s2] sm:$0x1]
      %v5983 = vlaneseq
      %v5984 = vshrl.u32 %v5983, 7
      %v5985 = vsub.s32 0, %v5984
      %v5986 = vrot.slane %v5981, %v5985
      %v5988 = vadd.f32 %v5949, %v5986
      %v5989 = vadd.f32 %v5950, %v5986
      %v5990 = vadd.f32 %v5951, %v5986
      %v5991 = vadd.f32 %v5952, %v5986
      %v5992 = vadd.f32 %v5953, %v5986
      %v5993 = vadd.f32 %v5954, %v5986
      %v5994 = vadd.f32 %v5955, %v5986
      %v5995 = vadd.f32 %v5956, %v5986
      %v5996 = vadd.f32 %v5957, %v5986
      %v5997 = vadd.f32 %v5958, %v5986
      %v5998 = vadd.f32 %v5959, %v5986
      %v5999 = vadd.f32 %v5960, %v5986
      %v6000 = vadd.f32 %v5961, %v5986
      %v6001 = vadd.f32 %v5962, %v5986
      %v6002 = vadd.f32 %v5963, %v5986
      %v6003 = vadd.f32 %v5964, %v5986
      %v6004 = vadd.f32 %v5965, %v5986
      %v6005 = vadd.f32 %v5966, %v5986
      %v6006 = vadd.f32 %v5967, %v5986
      %v6007 = vadd.f32 %v5968, %v5986
      %v6008 = vadd.f32 %v5969, %v5986
      %v6009 = vadd.f32 %v5970, %v5986
      %v6010 = vadd.f32 %v5971, %v5986
      %v6011 = vadd.f32 %v5972, %v5986
      %v6012 = vadd.f32 %v5973, %v5986
      %v6013 = vadd.f32 %v5974, %v5986
      %v6014 = vadd.f32 %v5975, %v5986
      %v6015 = vadd.f32 %v5976, %v5986
      %v6016 = vadd.f32 %v5977, %v5986
      %v6017 = vadd.f32 %v5978, %v5986
      %v6018 = vadd.f32 %v5979, %v5986
      %v6019 = vadd.f32 %v5980, %v5986
      %v6020 = vmax.f32 %v5988, 0.0
      %v6021 = vmax.f32 %v5989, 0.0
      %v6022 = vmax.f32 %v5990, 0.0
      %v6023 = vmax.f32 %v5991, 0.0
      %v6024 = vmax.f32 %v5992, 0.0
      %v6025 = vmax.f32 %v5993, 0.0
      %v6026 = vmax.f32 %v5994, 0.0
      %v6027 = vmax.f32 %v5995, 0.0
      %v6028 = vmax.f32 %v5996, 0.0
      %v6029 = vmax.f32 %v5997, 0.0
      %v6030 = vmax.f32 %v5998, 0.0
      %v6031 = vmax.f32 %v5999, 0.0
      %v6032 = vmax.f32 %v6000, 0.0
      %v6033 = vmax.f32 %v6001, 0.0
      %v6034 = vmax.f32 %v6002, 0.0
      %v6035 = vmax.f32 %v6003, 0.0
      %v6036 = vmax.f32 %v6004, 0.0
      %v6037 = vmax.f32 %v6005, 0.0
      %v6038 = vmax.f32 %v6006, 0.0
      %v6039 = vmax.f32 %v6007, 0.0
      %v6040 = vmax.f32 %v6008, 0.0
      %v6041 = vmax.f32 %v6009, 0.0
      %v6042 = vmax.f32 %v6010, 0.0
      %v6043 = vmax.f32 %v6011, 0.0
      %v6044 = vmax.f32 %v6012, 0.0
      %v6045 = vmax.f32 %v6013, 0.0
      %v6046 = vmax.f32 %v6014, 0.0
      %v6047 = vmax.f32 %v6015, 0.0
      %v6048 = vmax.f32 %v6016, 0.0
      %v6049 = vmax.f32 %v6017, 0.0
      %v6050 = vmax.f32 %v6018, 0.0
      %v6051 = vmax.f32 %v6019, 0.0
      %6052 = vst [vmem:[#allocation3] sm:$0xf] 0
      %6053 = vst [vmem:[#allocation3 + $0x4] sm:$0xf] 0
      %6054 = vst [vmem:[#allocation3 + $0x8] sm:$0xf] 0
      %6055 = vst [vmem:[#allocation3 + $0xc] sm:$0xf] 0
      %vm6056 = vcmask 1040384
      %vm6057 = vmand %vm6056, %vm232
      %v6058 = vld [vmem:[#allocation3 + $0x10] sm:$0x1]
      %v6059 = vsel %vm6057, 0, %v6058
      %6060 = vst [vmem:[#allocation3 + $0x10] sm:$0x1] %v6059
      %6061 = vst [vmem:[#allocation3 + $0x14] sm:$0xf] 0
      %6062 = vst [vmem:[#allocation3 + $0x18] sm:$0xf] 0
      %6063 = vst [vmem:[#allocation3 + $0x1c] sm:$0xf] 0
      %6064 = vst [vmem:[#allocation3 + $0x20] sm:$0xf] 0
      %v6065 = vld [vmem:[#allocation3 + $0x24] sm:$0x1]
      %v6066 = vsel %vm6057, 0, %v6065
      %6067 = vst [vmem:[#allocation3 + $0x24] sm:$0x1] %v6066
      %6068 = vst [vmem:[#allocation3 + $0x28] sm:$0xf] 0
      %6069 = vst [vmem:[#allocation3 + $0x2c] sm:$0xf] 0
      %6070 = vst [vmem:[#allocation3 + $0x30] sm:$0xf] 0
      %6071 = vst [vmem:[#allocation3 + $0x34] sm:$0xf] 0
      %v6072 = vld [vmem:[#allocation3 + $0x38] sm:$0x1]
      %v6073 = vsel %vm6057, 0, %v6072
      %6074 = vst [vmem:[#allocation3 + $0x38] sm:$0x1] %v6073
      %6075 = vst [vmem:[#allocation3 + $0x3c] sm:$0xf] 0
      %6076 = vst [vmem:[#allocation3 + $0x40] sm:$0xf] 0
      %6077 = vst [vmem:[#allocation3 + $0x44] sm:$0xf] 0
      %6078 = vst [vmem:[#allocation3 + $0x48] sm:$0xf] 0
      %v6079 = vld [vmem:[#allocation3 + $0x4c] sm:$0x1]
      %v6080 = vsel %vm6057, 0, %v6079
      %6081 = vst [vmem:[#allocation3 + $0x4c] sm:$0x1] %v6080
      %6082 = vst [vmem:[#allocation3 + $0x50] sm:$0xf] 0
      %6083 = vst [vmem:[#allocation3 + $0x54] sm:$0xf] 0
      %6084 = vst [vmem:[#allocation3 + $0x58] sm:$0xf] 0
      %6085 = vst [vmem:[#allocation3 + $0x5c] sm:$0xf] 0
      %v6086 = vld [vmem:[#allocation3 + $0x60] sm:$0x1]
      %v6087 = vsel %vm6057, 0, %v6086
      %6088 = vst [vmem:[#allocation3 + $0x60] sm:$0x1] %v6087
      %6089 = vst [vmem:[#allocation3 + $0x64] sm:$0xf] 0
      %6090 = vst [vmem:[#allocation3 + $0x68] sm:$0xf] 0
      %6091 = vst [vmem:[#allocation3 + $0x6c] sm:$0xf] 0
      %6092 = vst [vmem:[#allocation3 + $0x70] sm:$0xf] 0
      %v6093 = vld [vmem:[#allocation3 + $0x74] sm:$0x1]
      %v6094 = vsel %vm6057, 0, %v6093
      %6095 = vst [vmem:[#allocation3 + $0x74] sm:$0x1] %v6094
      %6096 = vst [vmem:[#allocation3 + $0x78] sm:$0xf] 0
      %6097 = vst [vmem:[#allocation3 + $0x7c] sm:$0xf] 0
      %6098 = vst [vmem:[#allocation3 + $0x80] sm:$0xf] 0
      %6099 = vst [vmem:[#allocation3 + $0x84] sm:$0xf] 0
      %v6100 = vld [vmem:[#allocation3 + $0x88] sm:$0x1]
      %v6101 = vsel %vm6057, 0, %v6100
      %6102 = vst [vmem:[#allocation3 + $0x88] sm:$0x1] %v6101
      %6103 = vst [vmem:[#allocation3 + $0x8c] sm:$0xf] 0
      %6104 = vst [vmem:[#allocation3 + $0x90] sm:$0xf] 0
      %6105 = vst [vmem:[#allocation3 + $0x94] sm:$0xf] 0
      %6106 = vst [vmem:[#allocation3 + $0x98] sm:$0xf] 0
      %v6107 = vld [vmem:[#allocation3 + $0x9c] sm:$0x1]
      %v6108 = vsel %vm6057, 0, %v6107
      %6109 = vst [vmem:[#allocation3 + $0x9c] sm:$0x1] %v6108
      %6110 = vst [vmem:[#allocation3 + $0xa0] sm:$0xf] 0
      %6111 = vst [vmem:[#allocation3 + $0xa4] sm:$0xf] 0
      %6112 = vst [vmem:[#allocation3 + $0xa8] sm:$0xf] 0
      %6113 = vst [vmem:[#allocation3 + $0xac] sm:$0xf] 0
      %v6114 = vld [vmem:[#allocation3 + $0xb0] sm:$0x1]
      %v6115 = vsel %vm6057, 0, %v6114
      %6116 = vst [vmem:[#allocation3 + $0xb0] sm:$0x1] %v6115
      %6117 = vst [vmem:[#allocation3 + $0xb4] sm:$0xf] 0
      %6118 = vst [vmem:[#allocation3 + $0xb8] sm:$0xf] 0
      %6119 = vst [vmem:[#allocation3 + $0xbc] sm:$0xf] 0
      %6120 = vst [vmem:[#allocation3 + $0xc0] sm:$0xf] 0
      %v6121 = vld [vmem:[#allocation3 + $0xc4] sm:$0x1]
      %v6122 = vsel %vm6057, 0, %v6121
      %6123 = vst [vmem:[#allocation3 + $0xc4] sm:$0x1] %v6122
      %6124 = vst [vmem:[#allocation3 + $0xc8] sm:$0xf] 0
      %6125 = vst [vmem:[#allocation3 + $0xcc] sm:$0xf] 0
      %6126 = vst [vmem:[#allocation3 + $0xd0] sm:$0xf] 0
      %6127 = vst [vmem:[#allocation3 + $0xd4] sm:$0xf] 0
      %v6128 = vld [vmem:[#allocation3 + $0xd8] sm:$0x1]
      %v6129 = vsel %vm6057, 0, %v6128
      %6130 = vst [vmem:[#allocation3 + $0xd8] sm:$0x1] %v6129
      %6131 = vst [vmem:[#allocation3 + $0xdc] sm:$0xf] 0
      %6132 = vst [vmem:[#allocation3 + $0xe0] sm:$0xf] 0
      %6133 = vst [vmem:[#allocation3 + $0xe4] sm:$0xf] 0
      %6134 = vst [vmem:[#allocation3 + $0xe8] sm:$0xf] 0
      %v6135 = vld [vmem:[#allocation3 + $0xec] sm:$0x1]
      %v6136 = vsel %vm6057, 0, %v6135
      %6137 = vst [vmem:[#allocation3 + $0xec] sm:$0x1] %v6136
      %6138 = vst [vmem:[#allocation3 + $0xf0] sm:$0xf] 0
      %6139 = vst [vmem:[#allocation3 + $0xf4] sm:$0xf] 0
      %6140 = vst [vmem:[#allocation3 + $0xf8] sm:$0xf] 0
      %6141 = vst [vmem:[#allocation3 + $0xfc] sm:$0xf] 0
      %v6142 = vld [vmem:[#allocation3 + $0x100] sm:$0x1]
      %v6143 = vsel %vm6057, 0, %v6142
      %6144 = vst [vmem:[#allocation3 + $0x100] sm:$0x1] %v6143
      %6145 = vst [vmem:[#allocation3 + $0x104] sm:$0xf] 0
      %6146 = vst [vmem:[#allocation3 + $0x108] sm:$0xf] 0
      %6147 = vst [vmem:[#allocation3 + $0x10c] sm:$0xf] 0
      %6148 = vst [vmem:[#allocation3 + $0x110] sm:$0xf] 0
      %v6149 = vld [vmem:[#allocation3 + $0x114] sm:$0x1]
      %v6150 = vsel %vm6057, 0, %v6149
      %6151 = vst [vmem:[#allocation3 + $0x114] sm:$0x1] %v6150
      %6152 = vst [vmem:[#allocation3 + $0x118] sm:$0xf] 0
      %6153 = vst [vmem:[#allocation3 + $0x11c] sm:$0xf] 0
      %6154 = vst [vmem:[#allocation3 + $0x120] sm:$0xf] 0
      %6155 = vst [vmem:[#allocation3 + $0x124] sm:$0xf] 0
      %v6156 = vld [vmem:[#allocation3 + $0x128] sm:$0x1]
      %v6157 = vsel %vm6057, 0, %v6156
      %6158 = vst [vmem:[#allocation3 + $0x128] sm:$0x1] %v6157
      %6159 = vst [vmem:[#allocation3 + $0x12c] sm:$0xf] 0
      %6160 = vst [vmem:[#allocation3 + $0x130] sm:$0xf] 0
      %6161 = vst [vmem:[#allocation3 + $0x134] sm:$0xf] 0
      %6162 = vst [vmem:[#allocation3 + $0x138] sm:$0xf] 0
      %v6163 = vld [vmem:[#allocation3 + $0x13c] sm:$0x1]
      %v6164 = vsel %vm6057, 0, %v6163
      %6165 = vst [vmem:[#allocation3 + $0x13c] sm:$0x1] %v6164
      %6166 = vst [vmem:[#allocation3 + $0x140] sm:$0xf] 0
      %6167 = vst [vmem:[#allocation3 + $0x144] sm:$0xf] 0
      %6168 = vst [vmem:[#allocation3 + $0x148] sm:$0xf] 0
      %6169 = vst [vmem:[#allocation3 + $0x14c] sm:$0xf] 0
      %v6170 = vld [vmem:[#allocation3 + $0x150] sm:$0x1]
      %v6171 = vsel %vm6057, 0, %v6170
      %6172 = vst [vmem:[#allocation3 + $0x150] sm:$0x1] %v6171
      %6173 = vst [vmem:[#allocation3 + $0x154] sm:$0xf] 0
      %6174 = vst [vmem:[#allocation3 + $0x158] sm:$0xf] 0
      %6175 = vst [vmem:[#allocation3 + $0x15c] sm:$0xf] 0
      %6176 = vst [vmem:[#allocation3 + $0x160] sm:$0xf] 0
      %v6177 = vld [vmem:[#allocation3 + $0x164] sm:$0x1]
      %v6178 = vsel %vm6057, 0, %v6177
      %6179 = vst [vmem:[#allocation3 + $0x164] sm:$0x1] %v6178
      %v6180 = vpack.c.bf16 %v6021, %v6020
      %v6181 = vpack.c.bf16 %v6023, %v6022
      %v6182 = vpack.c.bf16 %v6025, %v6024
      %v6183 = vpack.c.bf16 %v6027, %v6026
      %v6184 = vpack.c.bf16 %v6029, %v6028
      %v6185 = vpack.c.bf16 %v6031, %v6030
      %v6186 = vpack.c.bf16 %v6033, %v6032
      %v6187 = vpack.c.bf16 %v6035, %v6034
      %v6188 = vpack.c.bf16 %v6037, %v6036
      %v6189 = vpack.c.bf16 %v6039, %v6038
      %v6190 = vpack.c.bf16 %v6041, %v6040
      %v6191 = vpack.c.bf16 %v6043, %v6042
      %v6192 = vpack.c.bf16 %v6045, %v6044
      %v6193 = vpack.c.bf16 %v6047, %v6046
      %v6194 = vpack.c.bf16 %v6049, %v6048
      %v6195 = vpack.c.bf16 %v6051, %v6050
      %v6212 = vunpack.c.l.b16 %v6180
      %v6213 = vunpack.c.h.b16 %v6180
      %v6214 = vunpack.c.l.b16 %v6181
      %v6215 = vunpack.c.h.b16 %v6181
      %v6216 = vunpack.c.l.b16 %v6182
      %v6217 = vunpack.c.h.b16 %v6182
      %v6218 = vunpack.c.l.b16 %v6183
      %v6219 = vunpack.c.h.b16 %v6183
      %v6220 = vunpack.c.l.b16 %v6184
      %v6221 = vunpack.c.h.b16 %v6184
      %v6222 = vunpack.c.l.b16 %v6185
      %v6223 = vunpack.c.h.b16 %v6185
      %v6224 = vunpack.c.l.b16 %v6186
      %v6225 = vunpack.c.h.b16 %v6186
      %v6226 = vunpack.c.l.b16 %v6187
      %v6227 = vunpack.c.h.b16 %v6187
      %v6228 = vunpack.c.l.b16 %v6188
      %v6229 = vunpack.c.h.b16 %v6188
      %v6230 = vunpack.c.l.b16 %v6189
      %v6231 = vunpack.c.h.b16 %v6189
      %v6232 = vunpack.c.l.b16 %v6190
      %v6233 = vunpack.c.h.b16 %v6190
      %v6234 = vunpack.c.l.b16 %v6191
      %v6235 = vunpack.c.h.b16 %v6191
      %v6236 = vunpack.c.l.b16 %v6192
      %v6237 = vunpack.c.h.b16 %v6192
      %v6238 = vunpack.c.l.b16 %v6193
      %v6239 = vunpack.c.h.b16 %v6193
      %v6240 = vunpack.c.l.b16 %v6194
      %v6241 = vunpack.c.h.b16 %v6194
      %v6242 = vunpack.c.l.b16 %v6195
      %v6243 = vunpack.c.h.b16 %v6195
      %v6244 = vpack.c.b16 %v6212, %v6212
      %v6245 = vpack.c.b16 %v6213, %v6213
      %v6246 = vpack.c.b16 %v6214, %v6214
      %v6247 = vpack.c.b16 %v6215, %v6215
      %v6248 = vpack.c.b16 %v6216, %v6216
      %v6249 = vpack.c.b16 %v6217, %v6217
      %v6250 = vpack.c.b16 %v6218, %v6218
      %v6251 = vpack.c.b16 %v6219, %v6219
      %v6252 = vpack.c.b16 %v6220, %v6220
      %v6253 = vpack.c.b16 %v6221, %v6221
      %v6254 = vpack.c.b16 %v6222, %v6222
      %v6255 = vpack.c.b16 %v6223, %v6223
      %v6256 = vpack.c.b16 %v6224, %v6224
      %v6257 = vpack.c.b16 %v6225, %v6225
      %v6258 = vpack.c.b16 %v6226, %v6226
      %v6259 = vpack.c.b16 %v6227, %v6227
      %v6260 = vpack.c.b16 %v6228, %v6228
      %v6261 = vpack.c.b16 %v6229, %v6229
      %v6262 = vpack.c.b16 %v6230, %v6230
      %v6263 = vpack.c.b16 %v6231, %v6231
      %v6264 = vpack.c.b16 %v6232, %v6232
      %v6265 = vpack.c.b16 %v6233, %v6233
      %v6266 = vpack.c.b16 %v6234, %v6234
      %v6267 = vpack.c.b16 %v6235, %v6235
      %v6268 = vpack.c.b16 %v6236, %v6236
      %v6269 = vpack.c.b16 %v6237, %v6237
      %v6270 = vpack.c.b16 %v6238, %v6238
      %v6271 = vpack.c.b16 %v6239, %v6239
      %v6272 = vpack.c.b16 %v6240, %v6240
      %v6273 = vpack.c.b16 %v6241, %v6241
      %v6274 = vpack.c.b16 %v6242, %v6242
      %v6275 = vpack.c.b16 %v6243, %v6243
      %s6308 = scalar_lea.vmem [#allocation3], 20
      %6309 = vst [vmem:[%s6308 + $0x8] sm:$0xf] %v6244
      %6310 = vst [vmem:[%s6308 + $0xc] sm:$0xf] %v6245
      %6311 = vst [vmem:[%s6308 + $0x1c] sm:$0xf] %v6246
      %6312 = vst [vmem:[%s6308 + $0x20] sm:$0xf] %v6247
      %6313 = vst [vmem:[%s6308 + $0x30] sm:$0xf] %v6248
      %6314 = vst [vmem:[%s6308 + $0x34] sm:$0xf] %v6249
      %6315 = vst [vmem:[%s6308 + $0x44] sm:$0xf] %v6250
      %6316 = vst [vmem:[%s6308 + $0x48] sm:$0xf] %v6251
      %6317 = vst [vmem:[%s6308 + $0x58] sm:$0xf] %v6252
      %6318 = vst [vmem:[%s6308 + $0x5c] sm:$0xf] %v6253
      %6319 = vst [vmem:[%s6308 + $0x6c] sm:$0xf] %v6254
      %6320 = vst [vmem:[%s6308 + $0x70] sm:$0xf] %v6255
      %6321 = vst [vmem:[%s6308 + $0x80] sm:$0xf] %v6256
      %6322 = vst [vmem:[%s6308 + $0x84] sm:$0xf] %v6257
      %6323 = vst [vmem:[%s6308 + $0x94] sm:$0xf] %v6258
      %6324 = vst [vmem:[%s6308 + $0x98] sm:$0xf] %v6259
      %6325 = vst [vmem:[%s6308 + $0xa8] sm:$0xf] %v6260
      %6326 = vst [vmem:[%s6308 + $0xac] sm:$0xf] %v6261
      %6327 = vst [vmem:[%s6308 + $0xbc] sm:$0xf] %v6262
      %6328 = vst [vmem:[%s6308 + $0xc0] sm:$0xf] %v6263
      %6329 = vst [vmem:[%s6308 + $0xd0] sm:$0xf] %v6264
      %6330 = vst [vmem:[%s6308 + $0xd4] sm:$0xf] %v6265
      %6331 = vst [vmem:[%s6308 + $0xe4] sm:$0xf] %v6266
      %6332 = vst [vmem:[%s6308 + $0xe8] sm:$0xf] %v6267
      %6333 = vst [vmem:[%s6308 + $0xf8] sm:$0xf] %v6268
      %6334 = vst [vmem:[%s6308 + $0xfc] sm:$0xf] %v6269
      %6335 = vst [vmem:[%s6308 + $0x10c] sm:$0xf] %v6270
      %6336 = vst [vmem:[%s6308 + $0x110] sm:$0xf] %v6271
      %6337 = vst [vmem:[%s6308 + $0x120] sm:$0xf] %v6272
      %6338 = vst [vmem:[%s6308 + $0x124] sm:$0xf] %v6273
      %6339 = vst [vmem:[%s6308 + $0x134] sm:$0xf] %v6274
      %6340 = vst [vmem:[%s6308 + $0x138] sm:$0xf] %v6275
      %v6341 = vld [vmem:[#allocation3 + $0x4] sm:$0x8]
      %v6342 = vld [vmem:[#allocation3 + $0x8] sm:$0xf]
      %v6343 = vld [vmem:[#allocation3 + $0xc] sm:$0xf]
      %v6344 = vld [vmem:[#allocation3 + $0x18] sm:$0x8]
      %v6345 = vld [vmem:[#allocation3 + $0x1c] sm:$0xf]
      %v6346 = vld [vmem:[#allocation3 + $0x20] sm:$0xf]
      %v6347 = vld [vmem:[#allocation3 + $0x2c] sm:$0x8]
      %v6348 = vld [vmem:[#allocation3 + $0x30] sm:$0xf]
      %v6349 = vld [vmem:[#allocation3 + $0x34] sm:$0xf]
      %v6350 = vld [vmem:[#allocation3 + $0x40] sm:$0x8]
      %v6351 = vld [vmem:[#allocation3 + $0x44] sm:$0xf]
      %v6352 = vld [vmem:[#allocation3 + $0x48] sm:$0xf]
      %v6353 = vld [vmem:[#allocation3 + $0x54] sm:$0x8]
      %v6354 = vld [vmem:[#allocation3 + $0x58] sm:$0xf]
      %v6355 = vld [vmem:[#allocation3 + $0x5c] sm:$0xf]
      %v6356 = vld [vmem:[#allocation3 + $0x68] sm:$0x8]
      %v6357 = vld [vmem:[#allocation3 + $0x6c] sm:$0xf]
      %v6358 = vld [vmem:[#allocation3 + $0x70] sm:$0xf]
      %v6359 = vld [vmem:[#allocation3 + $0x7c] sm:$0x8]
      %v6360 = vld [vmem:[#allocation3 + $0x80] sm:$0xf]
      %v6361 = vld [vmem:[#allocation3 + $0x84] sm:$0xf]
      %v6362 = vld [vmem:[#allocation3 + $0x90] sm:$0x8]
      %v6363 = vld [vmem:[#allocation3 + $0x94] sm:$0xf]
      %v6364 = vld [vmem:[#allocation3 + $0x98] sm:$0xf]
      %v6365 = vld [vmem:[#allocation3 + $0xa4] sm:$0x8]
      %v6366 = vld [vmem:[#allocation3 + $0xa8] sm:$0xf]
      %v6367 = vld [vmem:[#allocation3 + $0xac] sm:$0xf]
      %v6368 = vld [vmem:[#allocation3 + $0xb8] sm:$0x8]
      %v6369 = vld [vmem:[#allocation3 + $0xbc] sm:$0xf]
      %v6370 = vld [vmem:[#allocation3 + $0xc0] sm:$0xf]
      %v6371 = vld [vmem:[#allocation3 + $0xcc] sm:$0x8]
      %v6372 = vld [vmem:[#allocation3 + $0xd0] sm:$0xf]
      %v6373 = vld [vmem:[#allocation3 + $0xd4] sm:$0xf]
      %v6374 = vld [vmem:[#allocation3 + $0xe0] sm:$0x8]
      %v6375 = vld [vmem:[#allocation3 + $0xe4] sm:$0xf]
      %v6376 = vld [vmem:[#allocation3 + $0xe8] sm:$0xf]
      %v6377 = vld [vmem:[#allocation3 + $0xf4] sm:$0x8]
      %v6378 = vld [vmem:[#allocation3 + $0xf8] sm:$0xf]
      %v6379 = vld [vmem:[#allocation3 + $0xfc] sm:$0xf]
      %v6380 = vld [vmem:[#allocation3 + $0x108] sm:$0x8]
      %v6381 = vld [vmem:[#allocation3 + $0x10c] sm:$0xf]
      %v6382 = vld [vmem:[#allocation3 + $0x110] sm:$0xf]
      %v6383 = vld [vmem:[#allocation3 + $0x11c] sm:$0x8]
      %v6384 = vld [vmem:[#allocation3 + $0x120] sm:$0xf]
      %v6385 = vld [vmem:[#allocation3 + $0x124] sm:$0xf]
      %v6386 = vld [vmem:[#allocation3 + $0x130] sm:$0x8]
      %v6387 = vld [vmem:[#allocation3 + $0x134] sm:$0xf]
      %v6388 = vld [vmem:[#allocation3 + $0x138] sm:$0xf]
      %v6390 = vshrl.u32 %v6341, 16
      %v6392 = vrot.slane %v6390, 7
      %v6393 = vrot.slane %v6392, 4
      %v6395 = vshrl.u32 %v6342, 16
      %v6397 = vrot.slane %v6395, 7
      %v6398 = vshll.u32 %v6342, 16
      %v6400 = vor.u32 %v6397, %v6398
      %v6401 = vsel %vm598, %v6393, %v6400
      %v6402 = vrot.slane %v6397, 4
      %v6404 = vshrl.u32 %v6343, 16
      %v6406 = vrot.slane %v6404, 7
      %v6407 = vshll.u32 %v6343, 16
      %v6409 = vor.u32 %v6406, %v6407
      %v6410 = vsel %vm598, %v6402, %v6409
      %v6412 = vshrl.u32 %v6344, 16
      %v6414 = vrot.slane %v6412, 7
      %v6415 = vrot.slane %v6414, 4
      %v6417 = vshrl.u32 %v6345, 16
      %v6419 = vrot.slane %v6417, 7
      %v6420 = vshll.u32 %v6345, 16
      %v6422 = vor.u32 %v6419, %v6420
      %v6423 = vsel %vm598, %v6415, %v6422
      %v6424 = vrot.slane %v6419, 4
      %v6426 = vshrl.u32 %v6346, 16
      %v6428 = vrot.slane %v6426, 7
      %v6429 = vshll.u32 %v6346, 16
      %v6431 = vor.u32 %v6428, %v6429
      %v6432 = vsel %vm598, %v6424, %v6431
      %v6434 = vshrl.u32 %v6347, 16
      %v6436 = vrot.slane %v6434, 7
      %v6437 = vrot.slane %v6436, 4
      %v6439 = vshrl.u32 %v6348, 16
      %v6441 = vrot.slane %v6439, 7
      %v6442 = vshll.u32 %v6348, 16
      %v6444 = vor.u32 %v6441, %v6442
      %v6445 = vsel %vm598, %v6437, %v6444
      %v6446 = vrot.slane %v6441, 4
      %v6448 = vshrl.u32 %v6349, 16
      %v6450 = vrot.slane %v6448, 7
      %v6451 = vshll.u32 %v6349, 16
      %v6453 = vor.u32 %v6450, %v6451
      %v6454 = vsel %vm598, %v6446, %v6453
      %v6456 = vshrl.u32 %v6350, 16
      %v6458 = vrot.slane %v6456, 7
      %v6459 = vrot.slane %v6458, 4
      %v6461 = vshrl.u32 %v6351, 16
      %v6463 = vrot.slane %v6461, 7
      %v6464 = vshll.u32 %v6351, 16
      %v6466 = vor.u32 %v6463, %v6464
      %v6467 = vsel %vm598, %v6459, %v6466
      %v6468 = vrot.slane %v6463, 4
      %v6470 = vshrl.u32 %v6352, 16
      %v6472 = vrot.slane %v6470, 7
      %v6473 = vshll.u32 %v6352, 16
      %v6475 = vor.u32 %v6472, %v6473
      %v6476 = vsel %vm598, %v6468, %v6475
      %v6478 = vshrl.u32 %v6353, 16
      %v6480 = vrot.slane %v6478, 7
      %v6481 = vrot.slane %v6480, 4
      %v6483 = vshrl.u32 %v6354, 16
      %v6485 = vrot.slane %v6483, 7
      %v6486 = vshll.u32 %v6354, 16
      %v6488 = vor.u32 %v6485, %v6486
      %v6489 = vsel %vm598, %v6481, %v6488
      %v6490 = vrot.slane %v6485, 4
      %v6492 = vshrl.u32 %v6355, 16
      %v6494 = vrot.slane %v6492, 7
      %v6495 = vshll.u32 %v6355, 16
      %v6497 = vor.u32 %v6494, %v6495
      %v6498 = vsel %vm598, %v6490, %v6497
      %v6500 = vshrl.u32 %v6356, 16
      %v6502 = vrot.slane %v6500, 7
      %v6503 = vrot.slane %v6502, 4
      %v6505 = vshrl.u32 %v6357, 16
      %v6507 = vrot.slane %v6505, 7
      %v6508 = vshll.u32 %v6357, 16
      %v6510 = vor.u32 %v6507, %v6508
      %v6511 = vsel %vm598, %v6503, %v6510
      %v6512 = vrot.slane %v6507, 4
      %v6514 = vshrl.u32 %v6358, 16
      %v6516 = vrot.slane %v6514, 7
      %v6517 = vshll.u32 %v6358, 16
      %v6519 = vor.u32 %v6516, %v6517
      %v6520 = vsel %vm598, %v6512, %v6519
      %v6522 = vshrl.u32 %v6359, 16
      %v6524 = vrot.slane %v6522, 7
      %v6525 = vrot.slane %v6524, 4
      %v6527 = vshrl.u32 %v6360, 16
      %v6529 = vrot.slane %v6527, 7
      %v6530 = vshll.u32 %v6360, 16
      %v6532 = vor.u32 %v6529, %v6530
      %v6533 = vsel %vm598, %v6525, %v6532
      %v6534 = vrot.slane %v6529, 4
      %v6536 = vshrl.u32 %v6361, 16
      %v6538 = vrot.slane %v6536, 7
      %v6539 = vshll.u32 %v6361, 16
      %v6541 = vor.u32 %v6538, %v6539
      %v6542 = vsel %vm598, %v6534, %v6541
      %v6544 = vshrl.u32 %v6362, 16
      %v6546 = vrot.slane %v6544, 7
      %v6547 = vrot.slane %v6546, 4
      %v6549 = vshrl.u32 %v6363, 16
      %v6551 = vrot.slane %v6549, 7
      %v6552 = vshll.u32 %v6363, 16
      %v6554 = vor.u32 %v6551, %v6552
      %v6555 = vsel %vm598, %v6547, %v6554
      %v6556 = vrot.slane %v6551, 4
      %v6558 = vshrl.u32 %v6364, 16
      %v6560 = vrot.slane %v6558, 7
      %v6561 = vshll.u32 %v6364, 16
      %v6563 = vor.u32 %v6560, %v6561
      %v6564 = vsel %vm598, %v6556, %v6563
      %v6566 = vshrl.u32 %v6365, 16
      %v6568 = vrot.slane %v6566, 7
      %v6569 = vrot.slane %v6568, 4
      %v6571 = vshrl.u32 %v6366, 16
      %v6573 = vrot.slane %v6571, 7
      %v6574 = vshll.u32 %v6366, 16
      %v6576 = vor.u32 %v6573, %v6574
      %v6577 = vsel %vm598, %v6569, %v6576
      %v6578 = vrot.slane %v6573, 4
      %v6580 = vshrl.u32 %v6367, 16
      %v6582 = vrot.slane %v6580, 7
      %v6583 = vshll.u32 %v6367, 16
      %v6585 = vor.u32 %v6582, %v6583
      %v6586 = vsel %vm598, %v6578, %v6585
      %v6588 = vshrl.u32 %v6368, 16
      %v6590 = vrot.slane %v6588, 7
      %v6591 = vrot.slane %v6590, 4
      %v6593 = vshrl.u32 %v6369, 16
      %v6595 = vrot.slane %v6593, 7
      %v6596 = vshll.u32 %v6369, 16
      %v6598 = vor.u32 %v6595, %v6596
      %v6599 = vsel %vm598, %v6591, %v6598
      %v6600 = vrot.slane %v6595, 4
      %v6602 = vshrl.u32 %v6370, 16
      %v6604 = vrot.slane %v6602, 7
      %v6605 = vshll.u32 %v6370, 16
      %v6607 = vor.u32 %v6604, %v6605
      %v6608 = vsel %vm598, %v6600, %v6607
      %v6610 = vshrl.u32 %v6371, 16
      %v6612 = vrot.slane %v6610, 7
      %v6613 = vrot.slane %v6612, 4
      %v6615 = vshrl.u32 %v6372, 16
      %v6617 = vrot.slane %v6615, 7
      %v6618 = vshll.u32 %v6372, 16
      %v6620 = vor.u32 %v6617, %v6618
      %v6621 = vsel %vm598, %v6613, %v6620
      %v6622 = vrot.slane %v6617, 4
      %v6624 = vshrl.u32 %v6373, 16
      %v6626 = vrot.slane %v6624, 7
      %v6627 = vshll.u32 %v6373, 16
      %v6629 = vor.u32 %v6626, %v6627
      %v6630 = vsel %vm598, %v6622, %v6629
      %v6632 = vshrl.u32 %v6374, 16
      %v6634 = vrot.slane %v6632, 7
      %v6635 = vrot.slane %v6634, 4
      %v6637 = vshrl.u32 %v6375, 16
      %v6639 = vrot.slane %v6637, 7
      %v6640 = vshll.u32 %v6375, 16
      %v6642 = vor.u32 %v6639, %v6640
      %v6643 = vsel %vm598, %v6635, %v6642
      %v6644 = vrot.slane %v6639, 4
      %v6646 = vshrl.u32 %v6376, 16
      %v6648 = vrot.slane %v6646, 7
      %v6649 = vshll.u32 %v6376, 16
      %v6651 = vor.u32 %v6648, %v6649
      %v6652 = vsel %vm598, %v6644, %v6651
      %v6654 = vshrl.u32 %v6377, 16
      %v6656 = vrot.slane %v6654, 7
      %v6657 = vrot.slane %v6656, 4
      %v6659 = vshrl.u32 %v6378, 16
      %v6661 = vrot.slane %v6659, 7
      %v6662 = vshll.u32 %v6378, 16
      %v6664 = vor.u32 %v6661, %v6662
      %v6665 = vsel %vm598, %v6657, %v6664
      %v6666 = vrot.slane %v6661, 4
      %v6668 = vshrl.u32 %v6379, 16
      %v6670 = vrot.slane %v6668, 7
      %v6671 = vshll.u32 %v6379, 16
      %v6673 = vor.u32 %v6670, %v6671
      %v6674 = vsel %vm598, %v6666, %v6673
      %v6676 = vshrl.u32 %v6380, 16
      %v6678 = vrot.slane %v6676, 7
      %v6679 = vrot.slane %v6678, 4
      %v6681 = vshrl.u32 %v6381, 16
      %v6683 = vrot.slane %v6681, 7
      %v6684 = vshll.u32 %v6381, 16
      %v6686 = vor.u32 %v6683, %v6684
      %v6687 = vsel %vm598, %v6679, %v6686
      %v6688 = vrot.slane %v6683, 4
      %v6690 = vshrl.u32 %v6382, 16
      %v6692 = vrot.slane %v6690, 7
      %v6693 = vshll.u32 %v6382, 16
      %v6695 = vor.u32 %v6692, %v6693
      %v6696 = vsel %vm598, %v6688, %v6695
      %v6698 = vshrl.u32 %v6383, 16
      %v6700 = vrot.slane %v6698, 7
      %v6701 = vrot.slane %v6700, 4
      %v6703 = vshrl.u32 %v6384, 16
      %v6705 = vrot.slane %v6703, 7
      %v6706 = vshll.u32 %v6384, 16
      %v6708 = vor.u32 %v6705, %v6706
      %v6709 = vsel %vm598, %v6701, %v6708
      %v6710 = vrot.slane %v6705, 4
      %v6712 = vshrl.u32 %v6385, 16
      %v6714 = vrot.slane %v6712, 7
      %v6715 = vshll.u32 %v6385, 16
      %v6717 = vor.u32 %v6714, %v6715
      %v6718 = vsel %vm598, %v6710, %v6717
      %v6720 = vshrl.u32 %v6386, 16
      %v6722 = vrot.slane %v6720, 7
      %v6723 = vrot.slane %v6722, 4
      %v6725 = vshrl.u32 %v6387, 16
      %v6727 = vrot.slane %v6725, 7
      %v6728 = vshll.u32 %v6387, 16
      %v6730 = vor.u32 %v6727, %v6728
      %v6731 = vsel %vm598, %v6723, %v6730
      %v6732 = vrot.slane %v6727, 4
      %v6734 = vshrl.u32 %v6388, 16
      %v6736 = vrot.slane %v6734, 7
      %v6737 = vshll.u32 %v6388, 16
      %v6739 = vor.u32 %v6736, %v6737
      %v6740 = vsel %vm598, %v6732, %v6739
      %v6741 = vld [vmem:[%s3] sm:$0xf]
      %v6742 = vld [vmem:[%s3 + $0x4] sm:$0xf]
      %v6743 = vld [vmem:[%s3 + $0x8] sm:$0xf]
      %v6744 = vld [vmem:[%s3 + $0xc] sm:$0xf]
      %v6745 = vld [vmem:[%s3 + $0x10] sm:$0xf]
      %v6746 = vld [vmem:[%s3 + $0x14] sm:$0xf]
      %v6747 = vld [vmem:[%s3 + $0x18] sm:$0xf]
      %v6748 = vld [vmem:[%s3 + $0x1c] sm:$0xf]
      %v6749 = vld [vmem:[%s3 + $0x20] sm:$0xf]
      %v6750 = vld [vmem:[%s3 + $0x24] sm:$0xf]
      %v6751 = vld [vmem:[%s3 + $0x28] sm:$0xf]
      %v6752 = vld [vmem:[%s3 + $0x2c] sm:$0xf]
      %v6753 = vld [vmem:[%s3 + $0x30] sm:$0xf]
      %v6754 = vld [vmem:[%s3 + $0x34] sm:$0xf]
      %v6755 = vld [vmem:[%s3 + $0x38] sm:$0xf]
      %v6756 = vld [vmem:[%s3 + $0x3c] sm:$0xf]
      %s6757 = scalar_lea.vmem %s3, 64
      %v6758 = vld [vmem:[%s6757] sm:$0xf]
      %v6759 = vld [vmem:[%s6757 + $0x4] sm:$0xf]
      %v6760 = vld [vmem:[%s6757 + $0x8] sm:$0xf]
      %v6761 = vld [vmem:[%s6757 + $0xc] sm:$0xf]
      %v6762 = vld [vmem:[%s6757 + $0x10] sm:$0xf]
      %v6763 = vld [vmem:[%s6757 + $0x14] sm:$0xf]
      %v6764 = vld [vmem:[%s6757 + $0x18] sm:$0xf]
      %v6765 = vld [vmem:[%s6757 + $0x1c] sm:$0xf]
      %v6766 = vld [vmem:[%s6757 + $0x20] sm:$0xf]
      %v6767 = vld [vmem:[%s6757 + $0x24] sm:$0xf]
      %v6768 = vld [vmem:[%s6757 + $0x28] sm:$0xf]
      %v6769 = vld [vmem:[%s6757 + $0x2c] sm:$0xf]
      %v6770 = vld [vmem:[%s6757 + $0x30] sm:$0xf]
      %v6771 = vld [vmem:[%s6757 + $0x34] sm:$0xf]
      %v6772 = vld [vmem:[%s6757 + $0x38] sm:$0xf]
      %v6773 = vld [vmem:[%s6757 + $0x3c] sm:$0xf]
      %v6806 = vunpack.c.l.b16 %v6342
      %v6807 = vunpack.c.l.b16 %v6343
      %v6808 = vunpack.c.l.b16 %v6345
      %v6809 = vunpack.c.l.b16 %v6346
      %v6810 = vunpack.c.l.b16 %v6348
      %v6811 = vunpack.c.l.b16 %v6349
      %v6812 = vunpack.c.l.b16 %v6351
      %v6813 = vunpack.c.l.b16 %v6352
      %v6814 = vunpack.c.l.b16 %v6354
      %v6815 = vunpack.c.l.b16 %v6355
      %v6816 = vunpack.c.l.b16 %v6357
      %v6817 = vunpack.c.l.b16 %v6358
      %v6818 = vunpack.c.l.b16 %v6360
      %v6819 = vunpack.c.l.b16 %v6361
      %v6820 = vunpack.c.l.b16 %v6363
      %v6821 = vunpack.c.l.b16 %v6364
      %v6822 = vunpack.c.l.b16 %v6366
      %v6823 = vunpack.c.l.b16 %v6367
      %v6824 = vunpack.c.l.b16 %v6369
      %v6825 = vunpack.c.l.b16 %v6370
      %v6826 = vunpack.c.l.b16 %v6372
      %v6827 = vunpack.c.l.b16 %v6373
      %v6828 = vunpack.c.l.b16 %v6375
      %v6829 = vunpack.c.l.b16 %v6376
      %v6830 = vunpack.c.l.b16 %v6378
      %v6831 = vunpack.c.l.b16 %v6379
      %v6832 = vunpack.c.l.b16 %v6381
      %v6833 = vunpack.c.l.b16 %v6382
      %v6834 = vunpack.c.l.b16 %v6384
      %v6835 = vunpack.c.l.b16 %v6385
      %v6836 = vunpack.c.l.b16 %v6387
      %v6837 = vunpack.c.l.b16 %v6388
      %v6838 = vpack.c.b16 %v6807, %v6806
      %v6839 = vpack.c.b16 %v6809, %v6808
      %v6840 = vpack.c.b16 %v6811, %v6810
      %v6841 = vpack.c.b16 %v6813, %v6812
      %v6842 = vpack.c.b16 %v6815, %v6814
      %v6843 = vpack.c.b16 %v6817, %v6816
      %v6844 = vpack.c.b16 %v6819, %v6818
      %v6845 = vpack.c.b16 %v6821, %v6820
      %v6846 = vpack.c.b16 %v6823, %v6822
      %v6847 = vpack.c.b16 %v6825, %v6824
      %v6848 = vpack.c.b16 %v6827, %v6826
      %v6849 = vpack.c.b16 %v6829, %v6828
      %v6850 = vpack.c.b16 %v6831, %v6830
      %v6851 = vpack.c.b16 %v6833, %v6832
      %v6852 = vpack.c.b16 %v6835, %v6834
      %v6853 = vpack.c.b16 %v6837, %v6836
      %v6886 = vunpack.c.l.b16 %v6758
      %v6887 = vunpack.c.l.b16 %v6759
      %v6888 = vunpack.c.l.b16 %v6760
      %v6889 = vunpack.c.l.b16 %v6761
      %v6890 = vunpack.c.l.b16 %v6762
      %v6891 = vunpack.c.l.b16 %v6763
      %v6892 = vunpack.c.l.b16 %v6764
      %v6893 = vunpack.c.l.b16 %v6765
      %v6894 = vunpack.c.l.b16 %v6766
      %v6895 = vunpack.c.l.b16 %v6767
      %v6896 = vunpack.c.l.b16 %v6768
      %v6897 = vunpack.c.l.b16 %v6769
      %v6898 = vunpack.c.l.b16 %v6770
      %v6899 = vunpack.c.l.b16 %v6771
      %v6900 = vunpack.c.l.b16 %v6772
      %v6901 = vunpack.c.l.b16 %v6773
      %v6902 = vpack.c.b16 %v6887, %v6886
      %v6903 = vpack.c.b16 %v6889, %v6888
      %v6904 = vpack.c.b16 %v6891, %v6890
      %v6905 = vpack.c.b16 %v6893, %v6892
      %v6906 = vpack.c.b16 %v6895, %v6894
      %v6907 = vpack.c.b16 %v6897, %v6896
      %v6908 = vpack.c.b16 %v6899, %v6898
      %v6909 = vpack.c.b16 %v6901, %v6900
      %6918 = vmatprep.subr.bf16.mxu0 0
      %6919 = vmatpush1.bf16.msra.mxu0 %v6902
      %6920 = vmatprep.subr.bf16.mxu0 0
      %6921 = vmatpush1.bf16.msra.mxu0 %v6903
      %6922 = vmatprep.subr.bf16.mxu0 0
      %6923 = vmatpush1.bf16.msra.mxu0 %v6904
      %6924 = vmatprep.subr.bf16.mxu0 0
      %6925 = vmatpush1.bf16.msra.mxu0 %v6905
      %6926 = vmatprep.subr.bf16.mxu0 0
      %6927 = vmatpush1.bf16.msra.mxu0 %v6906
      %6928 = vmatprep.subr.bf16.mxu0 0
      %6929 = vmatpush1.bf16.msra.mxu0 %v6907
      %6930 = vmatprep.subr.bf16.mxu0 0
      %6931 = vmatpush1.bf16.msra.mxu0 %v6908
      %6932 = vmatprep.subr.bf16.mxu0 0
      %6933 = vmatpush1.bf16.msra.mxu0 %v6909
      %6934 = vmatprep.subr.bf16.mxu0 0
      %6935 = vmatpush1.bf16.msra.mxu0 0
      %6936 = vmatprep.subr.bf16.mxu0 0
      %6937 = vmatpush1.bf16.msra.mxu0 0
      %6938 = vmatprep.subr.bf16.mxu0 0
      %6939 = vmatpush1.bf16.msra.mxu0 0
      %6940 = vmatprep.subr.bf16.mxu0 0
      %6941 = vmatpush1.bf16.msra.mxu0 0
      %6942 = vmatprep.subr.bf16.mxu0 0
      %6943 = vmatpush1.bf16.msra.mxu0 0
      %6944 = vmatprep.subr.bf16.mxu0 0
      %6945 = vmatpush1.bf16.msra.mxu0 0
      %6946 = vmatprep.subr.bf16.mxu0 0
      %6947 = vmatpush1.bf16.msra.mxu0 0
      %6948 = vmatprep.subr.bf16.mxu0 0
      %6949 = vmatpush1.bf16.msra.mxu0 0
      %6950 = vmatprep.mubr.bf16.mxu0 0
      %6951 = vmatmul.mubr.bf16.gmra.mrb[0].mxu0 %v6838
      %v6952 = vpop.f32.mrb[0].mxu0
      %v6953 = vadd.f32 0.0, %v6952
      %v6954 = vpop.f32.mrb[0].mxu0
      %v6955 = vpop.f32.mrb[0].mxu0
      %v6956 = vadd.f32 0.0, %v6955
      %v6957 = vpop.f32.mrb[0].mxu0
      %6958 = vmatprep.mubr.bf16.mxu0 0
      %6959 = vmatmul.mubr.bf16.gmra.mrb[0].mxu0 %v6839
      %v6960 = vpop.f32.mrb[0].mxu0
      %v6961 = vadd.f32 0.0, %v6960
      %v6962 = vpop.f32.mrb[0].mxu0
      %v6963 = vpop.f32.mrb[0].mxu0
      %v6964 = vadd.f32 0.0, %v6963
      %v6965 = vpop.f32.mrb[0].mxu0
      %6966 = vmatprep.mubr.bf16.mxu0 0
      %6967 = vmatmul.mubr.bf16.gmra.mrb[0].mxu0 %v6840
      %v6968 = vpop.f32.mrb[0].mxu0
      %v6969 = vadd.f32 0.0, %v6968
      %v6970 = vpop.f32.mrb[0].mxu0
      %v6971 = vpop.f32.mrb[0].mxu0
      %v6972 = vadd.f32 0.0, %v6971
      %v6973 = vpop.f32.mrb[0].mxu0
      %6974 = vmatprep.mubr.bf16.mxu0 0
      %6975 = vmatmul.mubr.bf16.gmra.mrb[0].mxu0 %v6841
      %v6976 = vpop.f32.mrb[0].mxu0
      %v6977 = vadd.f32 0.0, %v6976
      %v6978 = vpop.f32.mrb[0].mxu0
      %v6979 = vpop.f32.mrb[0].mxu0
      %v6980 = vadd.f32 0.0, %v6979
      %v6981 = vpop.f32.mrb[0].mxu0
      %6982 = vmatprep.mubr.bf16.mxu0 0
      %6983 = vmatmul.mubr.bf16.gmra.mrb[0].mxu0 %v6842
      %v6984 = vpop.f32.mrb[0].mxu0
      %v6985 = vadd.f32 0.0, %v6984
      %v6986 = vpop.f32.mrb[0].mxu0
      %v6987 = vpop.f32.mrb[0].mxu0
      %v6988 = vadd.f32 0.0, %v6987
      %v6989 = vpop.f32.mrb[0].mxu0
      %6990 = vmatprep.mubr.bf16.mxu0 0
      %6991 = vmatmul.mubr.bf16.gmra.mrb[0].mxu0 %v6843
      %v6992 = vpop.f32.mrb[0].mxu0
      %v6993 = vadd.f32 0.0, %v6992
      %v6994 = vpop.f32.mrb[0].mxu0
      %v6995 = vpop.f32.mrb[0].mxu0
      %v6996 = vadd.f32 0.0, %v6995
      %v6997 = vpop.f32.mrb[0].mxu0
      %6998 = vmatprep.mubr.bf16.mxu0 0
      %6999 = vmatmul.mubr.bf16.gmra.mrb[0].mxu0 %v6844
      %v7000 = vpop.f32.mrb[0].mxu0
      %v7001 = vadd.f32 0.0, %v7000
      %v7002 = vpop.f32.mrb[0].mxu0
      %v7003 = vpop.f32.mrb[0].mxu0
      %v7004 = vadd.f32 0.0, %v7003
      %v7005 = vpop.f32.mrb[0].mxu0
      %7006 = vmatprep.mubr.bf16.mxu0 0
      %7007 = vmatmul.mubr.bf16.gmra.mrb[0].mxu0 %v6845
      %v7008 = vpop.f32.mrb[0].mxu0
      %v7009 = vadd.f32 0.0, %v7008
      %v7010 = vpop.f32.mrb[0].mxu0
      %v7011 = vpop.f32.mrb[0].mxu0
      %v7012 = vadd.f32 0.0, %v7011
      %v7013 = vpop.f32.mrb[0].mxu0
      %7014 = vmatprep.mubr.bf16.mxu0 0
      %7015 = vmatmul.mubr.bf16.gmra.mrb[0].mxu0 %v6846
      %v7016 = vpop.f32.mrb[0].mxu0
      %v7017 = vadd.f32 0.0, %v7016
      %v7018 = vpop.f32.mrb[0].mxu0
      %v7019 = vpop.f32.mrb[0].mxu0
      %v7020 = vadd.f32 0.0, %v7019
      %v7021 = vpop.f32.mrb[0].mxu0
      %7022 = vmatprep.mubr.bf16.mxu0 0
      %7023 = vmatmul.mubr.bf16.gmra.mrb[0].mxu0 %v6847
      %v7024 = vpop.f32.mrb[0].mxu0
      %v7025 = vadd.f32 0.0, %v7024
      %v7026 = vpop.f32.mrb[0].mxu0
      %v7027 = vpop.f32.mrb[0].mxu0
      %v7028 = vadd.f32 0.0, %v7027
      %v7029 = vpop.f32.mrb[0].mxu0
      %7030 = vmatprep.mubr.bf16.mxu0 0
      %7031 = vmatmul.mubr.bf16.gmra.mrb[0].mxu0 %v6848
      %v7032 = vpop.f32.mrb[0].mxu0
      %v7033 = vadd.f32 0.0, %v7032
      %v7034 = vpop.f32.mrb[0].mxu0
      %v7035 = vpop.f32.mrb[0].mxu0
      %v7036 = vadd.f32 0.0, %v7035
      %v7037 = vpop.f32.mrb[0].mxu0
      %7038 = vmatprep.mubr.bf16.mxu0 0
      %7039 = vmatmul.mubr.bf16.gmra.mrb[0].mxu0 %v6849
      %v7040 = vpop.f32.mrb[0].mxu0
      %v7041 = vadd.f32 0.0, %v7040
      %v7042 = vpop.f32.mrb[0].mxu0
      %v7043 = vpop.f32.mrb[0].mxu0
      %v7044 = vadd.f32 0.0, %v7043
      %v7045 = vpop.f32.mrb[0].mxu0
      %7046 = vmatprep.mubr.bf16.mxu0 0
      %7047 = vmatmul.mubr.bf16.gmra.mrb[0].mxu0 %v6850
      %v7048 = vpop.f32.mrb[0].mxu0
      %v7049 = vadd.f32 0.0, %v7048
      %v7050 = vpop.f32.mrb[0].mxu0
      %v7051 = vpop.f32.mrb[0].mxu0
      %v7052 = vadd.f32 0.0, %v7051
      %v7053 = vpop.f32.mrb[0].mxu0
      %7054 = vmatprep.mubr.bf16.mxu0 0
      %7055 = vmatmul.mubr.bf16.gmra.mrb[0].mxu0 %v6851
      %v7056 = vpop.f32.mrb[0].mxu0
      %v7057 = vadd.f32 0.0, %v7056
      %v7058 = vpop.f32.mrb[0].mxu0
      %v7059 = vpop.f32.mrb[0].mxu0
      %v7060 = vadd.f32 0.0, %v7059
      %v7061 = vpop.f32.mrb[0].mxu0
      %7062 = vmatprep.mubr.bf16.mxu0 0
      %7063 = vmatmul.mubr.bf16.gmra.mrb[0].mxu0 %v6852
      %v7064 = vpop.f32.mrb[0].mxu0
      %v7065 = vadd.f32 0.0, %v7064
      %v7066 = vpop.f32.mrb[0].mxu0
      %v7067 = vpop.f32.mrb[0].mxu0
      %v7068 = vadd.f32 0.0, %v7067
      %v7069 = vpop.f32.mrb[0].mxu0
      %7070 = vmatprep.mubr.bf16.mxu0 0
      %7071 = vmatmul.mubr.bf16.gmra.mrb[0].mxu0 %v6853
      %v7072 = vpop.f32.mrb[0].mxu0
      %v7073 = vadd.f32 0.0, %v7072
      %v7074 = vpop.f32.mrb[0].mxu0
      %v7075 = vpop.f32.mrb[0].mxu0
      %v7076 = vadd.f32 0.0, %v7075
      %v7077 = vpop.f32.mrb[0].mxu0
      %7078 = vdwg.mxu0
      %v7079 = vunpack.c.l.b16 %v6401
      %v7080 = vunpack.c.l.b16 %v6410
      %v7081 = vunpack.c.l.b16 %v6423
      %v7082 = vunpack.c.l.b16 %v6432
      %v7083 = vunpack.c.l.b16 %v6445
      %v7084 = vunpack.c.l.b16 %v6454
      %v7085 = vunpack.c.l.b16 %v6467
      %v7086 = vunpack.c.l.b16 %v6476
      %v7087 = vunpack.c.l.b16 %v6489
      %v7088 = vunpack.c.l.b16 %v6498
      %v7089 = vunpack.c.l.b16 %v6511
      %v7090 = vunpack.c.l.b16 %v6520
      %v7091 = vunpack.c.l.b16 %v6533
      %v7092 = vunpack.c.l.b16 %v6542
      %v7093 = vunpack.c.l.b16 %v6555
      %v7094 = vunpack.c.l.b16 %v6564
      %v7095 = vunpack.c.l.b16 %v6577
      %v7096 = vunpack.c.l.b16 %v6586
      %v7097 = vunpack.c.l.b16 %v6599
      %v7098 = vunpack.c.l.b16 %v6608
      %v7099 = vunpack.c.l.b16 %v6621
      %v7100 = vunpack.c.l.b16 %v6630
      %v7101 = vunpack.c.l.b16 %v6643
      %v7102 = vunpack.c.l.b16 %v6652
      %v7103 = vunpack.c.l.b16 %v6665
      %v7104 = vunpack.c.l.b16 %v6674
      %v7105 = vunpack.c.l.b16 %v6687
      %v7106 = vunpack.c.l.b16 %v6696
      %v7107 = vunpack.c.l.b16 %v6709
      %v7108 = vunpack.c.l.b16 %v6718
      %v7109 = vunpack.c.l.b16 %v6731
      %v7110 = vunpack.c.l.b16 %v6740
      %v7111 = vpack.c.b16 %v7080, %v7079
      %v7112 = vpack.c.b16 %v7082, %v7081
      %v7113 = vpack.c.b16 %v7084, %v7083
      %v7114 = vpack.c.b16 %v7086, %v7085
      %v7115 = vpack.c.b16 %v7088, %v7087
      %v7116 = vpack.c.b16 %v7090, %v7089
      %v7117 = vpack.c.b16 %v7092, %v7091
      %v7118 = vpack.c.b16 %v7094, %v7093
      %v7119 = vpack.c.b16 %v7096, %v7095
      %v7120 = vpack.c.b16 %v7098, %v7097
      %v7121 = vpack.c.b16 %v7100, %v7099
      %v7122 = vpack.c.b16 %v7102, %v7101
      %v7123 = vpack.c.b16 %v7104, %v7103
      %v7124 = vpack.c.b16 %v7106, %v7105
      %v7125 = vpack.c.b16 %v7108, %v7107
      %v7126 = vpack.c.b16 %v7110, %v7109
      %v7159 = vunpack.c.l.b16 %v6741
      %v7160 = vunpack.c.l.b16 %v6742
      %v7161 = vunpack.c.l.b16 %v6743
      %v7162 = vunpack.c.l.b16 %v6744
      %v7163 = vunpack.c.l.b16 %v6745
      %v7164 = vunpack.c.l.b16 %v6746
      %v7165 = vunpack.c.l.b16 %v6747
      %v7166 = vunpack.c.l.b16 %v6748
      %v7167 = vunpack.c.l.b16 %v6749
      %v7168 = vunpack.c.l.b16 %v6750
      %v7169 = vunpack.c.l.b16 %v6751
      %v7170 = vunpack.c.l.b16 %v6752
      %v7171 = vunpack.c.l.b16 %v6753
      %v7172 = vunpack.c.l.b16 %v6754
      %v7173 = vunpack.c.l.b16 %v6755
      %v7174 = vunpack.c.l.b16 %v6756
      %v7175 = vpack.c.b16 %v7160, %v7159
      %v7176 = vpack.c.b16 %v7162, %v7161
      %v7177 = vpack.c.b16 %v7164, %v7163
      %v7178 = vpack.c.b16 %v7166, %v7165
      %v7179 = vpack.c.b16 %v7168, %v7167
      %v7180 = vpack.c.b16 %v7170, %v7169
      %v7181 = vpack.c.b16 %v7172, %v7171
      %v7182 = vpack.c.b16 %v7174, %v7173
      %7191 = vmatprep.subr.bf16.mxu0 0
      %7192 = vmatpush1.bf16.msra.mxu0 %v7175
      %7193 = vmatprep.subr.bf16.mxu0 0
      %7194 = vmatpush1.bf16.msra.mxu0 %v7176
      %7195 = vmatprep.subr.bf16.mxu0 0
      %7196 = vmatpush1.bf16.msra.mxu0 %v7177
      %7197 = vmatprep.subr.bf16.mxu0 0
      %7198 = vmatpush1.bf16.msra.mxu0 %v7178
      %7199 = vmatprep.subr.bf16.mxu0 0
      %7200 = vmatpush1.bf16.msra.mxu0 %v7179
      %7201 = vmatprep.subr.bf16.mxu0 0
      %7202 = vmatpush1.bf16.msra.mxu0 %v7180
      %7203 = vmatprep.subr.bf16.mxu0 0
      %7204 = vmatpush1.bf16.msra.mxu0 %v7181
      %7205 = vmatprep.subr.bf16.mxu0 0
      %7206 = vmatpush1.bf16.msra.mxu0 %v7182
      %7207 = vmatprep.subr.bf16.mxu0 0
      %7208 = vmatpush1.bf16.msra.mxu0 0
      %7209 = vmatprep.subr.bf16.mxu0 0
      %7210 = vmatpush1.bf16.msra.mxu0 0
      %7211 = vmatprep.subr.bf16.mxu0 0
      %7212 = vmatpush1.bf16.msra.mxu0 0
      %7213 = vmatprep.subr.bf16.mxu0 0
      %7214 = vmatpush1.bf16.msra.mxu0 0
      %7215 = vmatprep.subr.bf16.mxu0 0
      %7216 = vmatpush1.bf16.msra.mxu0 0
      %7217 = vmatprep.subr.bf16.mxu0 0
      %7218 = vmatpush1.bf16.msra.mxu0 0
      %7219 = vmatprep.subr.bf16.mxu0 0
      %7220 = vmatpush1.bf16.msra.mxu0 0
      %7221 = vmatprep.subr.bf16.mxu0 0
      %7222 = vmatpush1.bf16.msra.mxu0 0
      %7223 = vmatprep.mubr.bf16.mxu0 0
      %7224 = vmatmul.mubr.bf16.gmra.mrb[0].mxu0 %v7111
      %v7225 = vpop.f32.mrb[0].mxu0
      %v7226 = vadd.f32 %v6953, %v7225
      %v7227 = vpop.f32.mrb[0].mxu0
      %v7228 = vpop.f32.mrb[0].mxu0
      %v7229 = vadd.f32 %v6956, %v7228
      %v7230 = vpop.f32.mrb[0].mxu0
      %7231 = vmatprep.mubr.bf16.mxu0 0
      %7232 = vmatmul.mubr.bf16.gmra.mrb[0].mxu0 %v7112
      %v7233 = vpop.f32.mrb[0].mxu0
      %v7234 = vadd.f32 %v6961, %v7233
      %v7235 = vpop.f32.mrb[0].mxu0
      %v7236 = vpop.f32.mrb[0].mxu0
      %v7237 = vadd.f32 %v6964, %v7236
      %v7238 = vpop.f32.mrb[0].mxu0
      %7239 = vmatprep.mubr.bf16.mxu0 0
      %7240 = vmatmul.mubr.bf16.gmra.mrb[0].mxu0 %v7113
      %v7241 = vpop.f32.mrb[0].mxu0
      %v7242 = vadd.f32 %v6969, %v7241
      %v7243 = vpop.f32.mrb[0].mxu0
      %v7244 = vpop.f32.mrb[0].mxu0
      %v7245 = vadd.f32 %v6972, %v7244
      %v7246 = vpop.f32.mrb[0].mxu0
      %7247 = vmatprep.mubr.bf16.mxu0 0
      %7248 = vmatmul.mubr.bf16.gmra.mrb[0].mxu0 %v7114
      %v7249 = vpop.f32.mrb[0].mxu0
      %v7250 = vadd.f32 %v6977, %v7249
      %v7251 = vpop.f32.mrb[0].mxu0
      %v7252 = vpop.f32.mrb[0].mxu0
      %v7253 = vadd.f32 %v6980, %v7252
      %v7254 = vpop.f32.mrb[0].mxu0
      %7255 = vmatprep.mubr.bf16.mxu0 0
      %7256 = vmatmul.mubr.bf16.gmra.mrb[0].mxu0 %v7115
      %v7257 = vpop.f32.mrb[0].mxu0
      %v7258 = vadd.f32 %v6985, %v7257
      %v7259 = vpop.f32.mrb[0].mxu0
      %v7260 = vpop.f32.mrb[0].mxu0
      %v7261 = vadd.f32 %v6988, %v7260
      %v7262 = vpop.f32.mrb[0].mxu0
      %7263 = vmatprep.mubr.bf16.mxu0 0
      %7264 = vmatmul.mubr.bf16.gmra.mrb[0].mxu0 %v7116
      %v7265 = vpop.f32.mrb[0].mxu0
      %v7266 = vadd.f32 %v6993, %v7265
      %v7267 = vpop.f32.mrb[0].mxu0
      %v7268 = vpop.f32.mrb[0].mxu0
      %v7269 = vadd.f32 %v6996, %v7268
      %v7270 = vpop.f32.mrb[0].mxu0
      %7271 = vmatprep.mubr.bf16.mxu0 0
      %7272 = vmatmul.mubr.bf16.gmra.mrb[0].mxu0 %v7117
      %v7273 = vpop.f32.mrb[0].mxu0
      %v7274 = vadd.f32 %v7001, %v7273
      %v7275 = vpop.f32.mrb[0].mxu0
      %v7276 = vpop.f32.mrb[0].mxu0
      %v7277 = vadd.f32 %v7004, %v7276
      %v7278 = vpop.f32.mrb[0].mxu0
      %7279 = vmatprep.mubr.bf16.mxu0 0
      %7280 = vmatmul.mubr.bf16.gmra.mrb[0].mxu0 %v7118
      %v7281 = vpop.f32.mrb[0].mxu0
      %v7282 = vadd.f32 %v7009, %v7281
      %v7283 = vpop.f32.mrb[0].mxu0
      %v7284 = vpop.f32.mrb[0].mxu0
      %v7285 = vadd.f32 %v7012, %v7284
      %v7286 = vpop.f32.mrb[0].mxu0
      %7287 = vmatprep.mubr.bf16.mxu0 0
      %7288 = vmatmul.mubr.bf16.gmra.mrb[0].mxu0 %v7119
      %v7289 = vpop.f32.mrb[0].mxu0
      %v7290 = vadd.f32 %v7017, %v7289
      %v7291 = vpop.f32.mrb[0].mxu0
      %v7292 = vpop.f32.mrb[0].mxu0
      %v7293 = vadd.f32 %v7020, %v7292
      %v7294 = vpop.f32.mrb[0].mxu0
      %7295 = vmatprep.mubr.bf16.mxu0 0
      %7296 = vmatmul.mubr.bf16.gmra.mrb[0].mxu0 %v7120
      %v7297 = vpop.f32.mrb[0].mxu0
      %v7298 = vadd.f32 %v7025, %v7297
      %v7299 = vpop.f32.mrb[0].mxu0
      %v7300 = vpop.f32.mrb[0].mxu0
      %v7301 = vadd.f32 %v7028, %v7300
      %v7302 = vpop.f32.mrb[0].mxu0
      %7303 = vmatprep.mubr.bf16.mxu0 0
      %7304 = vmatmul.mubr.bf16.gmra.mrb[0].mxu0 %v7121
      %v7305 = vpop.f32.mrb[0].mxu0
      %v7306 = vadd.f32 %v7033, %v7305
      %v7307 = vpop.f32.mrb[0].mxu0
      %v7308 = vpop.f32.mrb[0].mxu0
      %v7309 = vadd.f32 %v7036, %v7308
      %v7310 = vpop.f32.mrb[0].mxu0
      %7311 = vmatprep.mubr.bf16.mxu0 0
      %7312 = vmatmul.mubr.bf16.gmra.mrb[0].mxu0 %v7122
      %v7313 = vpop.f32.mrb[0].mxu0
      %v7314 = vadd.f32 %v7041, %v7313
      %v7315 = vpop.f32.mrb[0].mxu0
      %v7316 = vpop.f32.mrb[0].mxu0
      %v7317 = vadd.f32 %v7044, %v7316
      %v7318 = vpop.f32.mrb[0].mxu0
      %7319 = vmatprep.mubr.bf16.mxu0 0
      %7320 = vmatmul.mubr.bf16.gmra.mrb[0].mxu0 %v7123
      %v7321 = vpop.f32.mrb[0].mxu0
      %v7322 = vadd.f32 %v7049, %v7321
      %v7323 = vpop.f32.mrb[0].mxu0
      %v7324 = vpop.f32.mrb[0].mxu0
      %v7325 = vadd.f32 %v7052, %v7324
      %v7326 = vpop.f32.mrb[0].mxu0
      %7327 = vmatprep.mubr.bf16.mxu0 0
      %7328 = vmatmul.mubr.bf16.gmra.mrb[0].mxu0 %v7124
      %v7329 = vpop.f32.mrb[0].mxu0
      %v7330 = vadd.f32 %v7057, %v7329
      %v7331 = vpop.f32.mrb[0].mxu0
      %v7332 = vpop.f32.mrb[0].mxu0
      %v7333 = vadd.f32 %v7060, %v7332
      %v7334 = vpop.f32.mrb[0].mxu0
      %7335 = vmatprep.mubr.bf16.mxu0 0
      %7336 = vmatmul.mubr.bf16.gmra.mrb[0].mxu0 %v7125
      %v7337 = vpop.f32.mrb[0].mxu0
      %v7338 = vadd.f32 %v7065, %v7337
      %v7339 = vpop.f32.mrb[0].mxu0
      %v7340 = vpop.f32.mrb[0].mxu0
      %v7341 = vadd.f32 %v7068, %v7340
      %v7342 = vpop.f32.mrb[0].mxu0
      %7343 = vmatprep.mubr.bf16.mxu0 0
      %7344 = vmatmul.mubr.bf16.gmra.mrb[0].mxu0 %v7126
      %v7345 = vpop.f32.mrb[0].mxu0
      %v7346 = vadd.f32 %v7073, %v7345
      %v7347 = vpop.f32.mrb[0].mxu0
      %v7348 = vpop.f32.mrb[0].mxu0
      %v7349 = vadd.f32 %v7076, %v7348
      %v7350 = vpop.f32.mrb[0].mxu0
      %7351 = vdwg.mxu0
      %v7352 = vld [vmem:[#allocation3 + $0x8] sm:$0xf]
      %v7353 = vld [vmem:[#allocation3 + $0xc] sm:$0xf]
      %v7354 = vld [vmem:[#allocation3 + $0x10] sm:$0x1]
      %v7355 = vld [vmem:[#allocation3 + $0x1c] sm:$0xf]
      %v7356 = vld [vmem:[#allocation3 + $0x20] sm:$0xf]
      %v7357 = vld [vmem:[#allocation3 + $0x24] sm:$0x1]
      %v7358 = vld [vmem:[#allocation3 + $0x30] sm:$0xf]
      %v7359 = vld [vmem:[#allocation3 + $0x34] sm:$0xf]
      %v7360 = vld [vmem:[#allocation3 + $0x38] sm:$0x1]
      %v7361 = vld [vmem:[#allocation3 + $0x44] sm:$0xf]
      %v7362 = vld [vmem:[#allocation3 + $0x48] sm:$0xf]
      %v7363 = vld [vmem:[#allocation3 + $0x4c] sm:$0x1]
      %v7364 = vld [vmem:[#allocation3 + $0x58] sm:$0xf]
      %v7365 = vld [vmem:[#allocation3 + $0x5c] sm:$0xf]
      %v7366 = vld [vmem:[#allocation3 + $0x60] sm:$0x1]
      %v7367 = vld [vmem:[#allocation3 + $0x6c] sm:$0xf]
      %v7368 = vld [vmem:[#allocation3 + $0x70] sm:$0xf]
      %v7369 = vld [vmem:[#allocation3 + $0x74] sm:$0x1]
      %v7370 = vld [vmem:[#allocation3 + $0x80] sm:$0xf]
      %v7371 = vld [vmem:[#allocation3 + $0x84] sm:$0xf]
      %v7372 = vld [vmem:[#allocation3 + $0x88] sm:$0x1]
      %v7373 = vld [vmem:[#allocation3 + $0x94] sm:$0xf]
      %v7374 = vld [vmem:[#allocation3 + $0x98] sm:$0xf]
      %v7375 = vld [vmem:[#allocation3 + $0x9c] sm:$0x1]
      %v7376 = vld [vmem:[#allocation3 + $0xa8] sm:$0xf]
      %v7377 = vld [vmem:[#allocation3 + $0xac] sm:$0xf]
      %v7378 = vld [vmem:[#allocation3 + $0xb0] sm:$0x1]
      %v7379 = vld [vmem:[#allocation3 + $0xbc] sm:$0xf]
      %v7380 = vld [vmem:[#allocation3 + $0xc0] sm:$0xf]
      %v7381 = vld [vmem:[#allocation3 + $0xc4] sm:$0x1]
      %v7382 = vld [vmem:[#allocation3 + $0xd0] sm:$0xf]
      %v7383 = vld [vmem:[#allocation3 + $0xd4] sm:$0xf]
      %v7384 = vld [vmem:[#allocation3 + $0xd8] sm:$0x1]
      %v7385 = vld [vmem:[#allocation3 + $0xe4] sm:$0xf]
      %v7386 = vld [vmem:[#allocation3 + $0xe8] sm:$0xf]
      %v7387 = vld [vmem:[#allocation3 + $0xec] sm:$0x1]
      %v7388 = vld [vmem:[#allocation3 + $0xf8] sm:$0xf]
      %v7389 = vld [vmem:[#allocation3 + $0xfc] sm:$0xf]
      %v7390 = vld [vmem:[#allocation3 + $0x100] sm:$0x1]
      %v7391 = vld [vmem:[#allocation3 + $0x10c] sm:$0xf]
      %v7392 = vld [vmem:[#allocation3 + $0x110] sm:$0xf]
      %v7393 = vld [vmem:[#allocation3 + $0x114] sm:$0x1]
      %v7394 = vld [vmem:[#allocation3 + $0x120] sm:$0xf]
      %v7395 = vld [vmem:[#allocation3 + $0x124] sm:$0xf]
      %v7396 = vld [vmem:[#allocation3 + $0x128] sm:$0x1]
      %v7397 = vld [vmem:[#allocation3 + $0x134] sm:$0xf]
      %v7398 = vld [vmem:[#allocation3 + $0x138] sm:$0xf]
      %v7399 = vld [vmem:[#allocation3 + $0x13c] sm:$0x1]
      %v7401 = vshrl.u32 %v7352, 16
      %v7403 = vrot.slane %v7401, 4
      %v7404 = vshll.u32 %v7352, 16
      %v7406 = vrot.slane %v7404, 5
      %v7407 = vor.u32 %v7403, %v7406
      %v7408 = vrot.slane %v7407, 4
      %v7410 = vshll.u32 %v7353, 16
      %v7412 = vrot.slane %v7410, 5
      %v7413 = vsel %vm1613, %v7408, %v7412
      %v7414 = vshrl.u32 %v7353, 16
      %v7416 = vrot.slane %v7414, 4
      %v7417 = vor.u32 %v7416, %v7412
      %v7418 = vrot.slane %v7417, 4
      %v7420 = vshll.u32 %v7354, 16
      %v7422 = vrot.slane %v7420, 5
      %v7423 = vsel %vm1613, %v7418, %v7422
      %v7425 = vshrl.u32 %v7355, 16
      %v7427 = vrot.slane %v7425, 4
      %v7428 = vshll.u32 %v7355, 16
      %v7430 = vrot.slane %v7428, 5
      %v7431 = vor.u32 %v7427, %v7430
      %v7432 = vrot.slane %v7431, 4
      %v7434 = vshll.u32 %v7356, 16
      %v7436 = vrot.slane %v7434, 5
      %v7437 = vsel %vm1613, %v7432, %v7436
      %v7438 = vshrl.u32 %v7356, 16
      %v7440 = vrot.slane %v7438, 4
      %v7441 = vor.u32 %v7440, %v7436
      %v7442 = vrot.slane %v7441, 4
      %v7444 = vshll.u32 %v7357, 16
      %v7446 = vrot.slane %v7444, 5
      %v7447 = vsel %vm1613, %v7442, %v7446
      %v7449 = vshrl.u32 %v7358, 16
      %v7451 = vrot.slane %v7449, 4
      %v7452 = vshll.u32 %v7358, 16
      %v7454 = vrot.slane %v7452, 5
      %v7455 = vor.u32 %v7451, %v7454
      %v7456 = vrot.slane %v7455, 4
      %v7458 = vshll.u32 %v7359, 16
      %v7460 = vrot.slane %v7458, 5
      %v7461 = vsel %vm1613, %v7456, %v7460
      %v7462 = vshrl.u32 %v7359, 16
      %v7464 = vrot.slane %v7462, 4
      %v7465 = vor.u32 %v7464, %v7460
      %v7466 = vrot.slane %v7465, 4
      %v7468 = vshll.u32 %v7360, 16
      %v7470 = vrot.slane %v7468, 5
      %v7471 = vsel %vm1613, %v7466, %v7470
      %v7473 = vshrl.u32 %v7361, 16
      %v7475 = vrot.slane %v7473, 4
      %v7476 = vshll.u32 %v7361, 16
      %v7478 = vrot.slane %v7476, 5
      %v7479 = vor.u32 %v7475, %v7478
      %v7480 = vrot.slane %v7479, 4
      %v7482 = vshll.u32 %v7362, 16
      %v7484 = vrot.slane %v7482, 5
      %v7485 = vsel %vm1613, %v7480, %v7484
      %v7486 = vshrl.u32 %v7362, 16
      %v7488 = vrot.slane %v7486, 4
      %v7489 = vor.u32 %v7488, %v7484
      %v7490 = vrot.slane %v7489, 4
      %v7492 = vshll.u32 %v7363, 16
      %v7494 = vrot.slane %v7492, 5
      %v7495 = vsel %vm1613, %v7490, %v7494
      %v7497 = vshrl.u32 %v7364, 16
      %v7499 = vrot.slane %v7497, 4
      %v7500 = vshll.u32 %v7364, 16
      %v7502 = vrot.slane %v7500, 5
      %v7503 = vor.u32 %v7499, %v7502
      %v7504 = vrot.slane %v7503, 4
      %v7506 = vshll.u32 %v7365, 16
      %v7508 = vrot.slane %v7506, 5
      %v7509 = vsel %vm1613, %v7504, %v7508
      %v7510 = vshrl.u32 %v7365, 16
      %v7512 = vrot.slane %v7510, 4
      %v7513 = vor.u32 %v7512, %v7508
      %v7514 = vrot.slane %v7513, 4
      %v7516 = vshll.u32 %v7366, 16
      %v7518 = vrot.slane %v7516, 5
      %v7519 = vsel %vm1613, %v7514, %v7518
      %v7521 = vshrl.u32 %v7367, 16
      %v7523 = vrot.slane %v7521, 4
      %v7524 = vshll.u32 %v7367, 16
      %v7526 = vrot.slane %v7524, 5
      %v7527 = vor.u32 %v7523, %v7526
      %v7528 = vrot.slane %v7527, 4
      %v7530 = vshll.u32 %v7368, 16
      %v7532 = vrot.slane %v7530, 5
      %v7533 = vsel %vm1613, %v7528, %v7532
      %v7534 = vshrl.u32 %v7368, 16
      %v7536 = vrot.slane %v7534, 4
      %v7537 = vor.u32 %v7536, %v7532
      %v7538 = vrot.slane %v7537, 4
      %v7540 = vshll.u32 %v7369, 16
      %v7542 = vrot.slane %v7540, 5
      %v7543 = vsel %vm1613, %v7538, %v7542
      %v7545 = vshrl.u32 %v7370, 16
      %v7547 = vrot.slane %v7545, 4
      %v7548 = vshll.u32 %v7370, 16
      %v7550 = vrot.slane %v7548, 5
      %v7551 = vor.u32 %v7547, %v7550
      %v7552 = vrot.slane %v7551, 4
      %v7554 = vshll.u32 %v7371, 16
      %v7556 = vrot.slane %v7554, 5
      %v7557 = vsel %vm1613, %v7552, %v7556
      %v7558 = vshrl.u32 %v7371, 16
      %v7560 = vrot.slane %v7558, 4
      %v7561 = vor.u32 %v7560, %v7556
      %v7562 = vrot.slane %v7561, 4
      %v7564 = vshll.u32 %v7372, 16
      %v7566 = vrot.slane %v7564, 5
      %v7567 = vsel %vm1613, %v7562, %v7566
      %v7569 = vshrl.u32 %v7373, 16
      %v7571 = vrot.slane %v7569, 4
      %v7572 = vshll.u32 %v7373, 16
      %v7574 = vrot.slane %v7572, 5
      %v7575 = vor.u32 %v7571, %v7574
      %v7576 = vrot.slane %v7575, 4
      %v7578 = vshll.u32 %v7374, 16
      %v7580 = vrot.slane %v7578, 5
      %v7581 = vsel %vm1613, %v7576, %v7580
      %v7582 = vshrl.u32 %v7374, 16
      %v7584 = vrot.slane %v7582, 4
      %v7585 = vor.u32 %v7584, %v7580
      %v7586 = vrot.slane %v7585, 4
      %v7588 = vshll.u32 %v7375, 16
      %v7590 = vrot.slane %v7588, 5
      %v7591 = vsel %vm1613, %v7586, %v7590
      %v7593 = vshrl.u32 %v7376, 16
      %v7595 = vrot.slane %v7593, 4
      %v7596 = vshll.u32 %v7376, 16
      %v7598 = vrot.slane %v7596, 5
      %v7599 = vor.u32 %v7595, %v7598
      %v7600 = vrot.slane %v7599, 4
      %v7602 = vshll.u32 %v7377, 16
      %v7604 = vrot.slane %v7602, 5
      %v7605 = vsel %vm1613, %v7600, %v7604
      %v7606 = vshrl.u32 %v7377, 16
      %v7608 = vrot.slane %v7606, 4
      %v7609 = vor.u32 %v7608, %v7604
      %v7610 = vrot.slane %v7609, 4
      %v7612 = vshll.u32 %v7378, 16
      %v7614 = vrot.slane %v7612, 5
      %v7615 = vsel %vm1613, %v7610, %v7614
      %v7617 = vshrl.u32 %v7379, 16
      %v7619 = vrot.slane %v7617, 4
      %v7620 = vshll.u32 %v7379, 16
      %v7622 = vrot.slane %v7620, 5
      %v7623 = vor.u32 %v7619, %v7622
      %v7624 = vrot.slane %v7623, 4
      %v7626 = vshll.u32 %v7380, 16
      %v7628 = vrot.slane %v7626, 5
      %v7629 = vsel %vm1613, %v7624, %v7628
      %v7630 = vshrl.u32 %v7380, 16
      %v7632 = vrot.slane %v7630, 4
      %v7633 = vor.u32 %v7632, %v7628
      %v7634 = vrot.slane %v7633, 4
      %v7636 = vshll.u32 %v7381, 16
      %v7638 = vrot.slane %v7636, 5
      %v7639 = vsel %vm1613, %v7634, %v7638
      %v7641 = vshrl.u32 %v7382, 16
      %v7643 = vrot.slane %v7641, 4
      %v7644 = vshll.u32 %v7382, 16
      %v7646 = vrot.slane %v7644, 5
      %v7647 = vor.u32 %v7643, %v7646
      %v7648 = vrot.slane %v7647, 4
      %v7650 = vshll.u32 %v7383, 16
      %v7652 = vrot.slane %v7650, 5
      %v7653 = vsel %vm1613, %v7648, %v7652
      %v7654 = vshrl.u32 %v7383, 16
      %v7656 = vrot.slane %v7654, 4
      %v7657 = vor.u32 %v7656, %v7652
      %v7658 = vrot.slane %v7657, 4
      %v7660 = vshll.u32 %v7384, 16
      %v7662 = vrot.slane %v7660, 5
      %v7663 = vsel %vm1613, %v7658, %v7662
      %v7665 = vshrl.u32 %v7385, 16
      %v7667 = vrot.slane %v7665, 4
      %v7668 = vshll.u32 %v7385, 16
      %v7670 = vrot.slane %v7668, 5
      %v7671 = vor.u32 %v7667, %v7670
      %v7672 = vrot.slane %v7671, 4
      %v7674 = vshll.u32 %v7386, 16
      %v7676 = vrot.slane %v7674, 5
      %v7677 = vsel %vm1613, %v7672, %v7676
      %v7678 = vshrl.u32 %v7386, 16
      %v7680 = vrot.slane %v7678, 4
      %v7681 = vor.u32 %v7680, %v7676
      %v7682 = vrot.slane %v7681, 4
      %v7684 = vshll.u32 %v7387, 16
      %v7686 = vrot.slane %v7684, 5
      %v7687 = vsel %vm1613, %v7682, %v7686
      %v7689 = vshrl.u32 %v7388, 16
      %v7691 = vrot.slane %v7689, 4
      %v7692 = vshll.u32 %v7388, 16
      %v7694 = vrot.slane %v7692, 5
      %v7695 = vor.u32 %v7691, %v7694
      %v7696 = vrot.slane %v7695, 4
      %v7698 = vshll.u32 %v7389, 16
      %v7700 = vrot.slane %v7698, 5
      %v7701 = vsel %vm1613, %v7696, %v7700
      %v7702 = vshrl.u32 %v7389, 16
      %v7704 = vrot.slane %v7702, 4
      %v7705 = vor.u32 %v7704, %v7700
      %v7706 = vrot.slane %v7705, 4
      %v7708 = vshll.u32 %v7390, 16
      %v7710 = vrot.slane %v7708, 5
      %v7711 = vsel %vm1613, %v7706, %v7710
      %v7713 = vshrl.u32 %v7391, 16
      %v7715 = vrot.slane %v7713, 4
      %v7716 = vshll.u32 %v7391, 16
      %v7718 = vrot.slane %v7716, 5
      %v7719 = vor.u32 %v7715, %v7718
      %v7720 = vrot.slane %v7719, 4
      %v7722 = vshll.u32 %v7392, 16
      %v7724 = vrot.slane %v7722, 5
      %v7725 = vsel %vm1613, %v7720, %v7724
      %v7726 = vshrl.u32 %v7392, 16
      %v7728 = vrot.slane %v7726, 4
      %v7729 = vor.u32 %v7728, %v7724
      %v7730 = vrot.slane %v7729, 4
      %v7732 = vshll.u32 %v7393, 16
      %v7734 = vrot.slane %v7732, 5
      %v7735 = vsel %vm1613, %v7730, %v7734
      %v7737 = vshrl.u32 %v7394, 16
      %v7739 = vrot.slane %v7737, 4
      %v7740 = vshll.u32 %v7394, 16
      %v7742 = vrot.slane %v7740, 5
      %v7743 = vor.u32 %v7739, %v7742
      %v7744 = vrot.slane %v7743, 4
      %v7746 = vshll.u32 %v7395, 16
      %v7748 = vrot.slane %v7746, 5
      %v7749 = vsel %vm1613, %v7744, %v7748
      %v7750 = vshrl.u32 %v7395, 16
      %v7752 = vrot.slane %v7750, 4
      %v7753 = vor.u32 %v7752, %v7748
      %v7754 = vrot.slane %v7753, 4
      %v7756 = vshll.u32 %v7396, 16
      %v7758 = vrot.slane %v7756, 5
      %v7759 = vsel %vm1613, %v7754, %v7758
      %v7761 = vshrl.u32 %v7397, 16
      %v7763 = vrot.slane %v7761, 4
      %v7764 = vshll.u32 %v7397, 16
      %v7766 = vrot.slane %v7764, 5
      %v7767 = vor.u32 %v7763, %v7766
      %v7768 = vrot.slane %v7767, 4
      %v7770 = vshll.u32 %v7398, 16
      %v7772 = vrot.slane %v7770, 5
      %v7773 = vsel %vm1613, %v7768, %v7772
      %v7774 = vshrl.u32 %v7398, 16
      %v7776 = vrot.slane %v7774, 4
      %v7777 = vor.u32 %v7776, %v7772
      %v7778 = vrot.slane %v7777, 4
      %v7780 = vshll.u32 %v7399, 16
      %v7782 = vrot.slane %v7780, 5
      %v7783 = vsel %vm1613, %v7778, %v7782
      %s7784 = scalar_lea.vmem %s3, 128
      %v7785 = vld [vmem:[%s7784] sm:$0xf]
      %v7786 = vld [vmem:[%s7784 + $0x4] sm:$0xf]
      %v7787 = vld [vmem:[%s7784 + $0x8] sm:$0xf]
      %v7788 = vld [vmem:[%s7784 + $0xc] sm:$0xf]
      %v7789 = vld [vmem:[%s7784 + $0x10] sm:$0xf]
      %v7790 = vld [vmem:[%s7784 + $0x14] sm:$0xf]
      %v7791 = vld [vmem:[%s7784 + $0x18] sm:$0xf]
      %v7792 = vld [vmem:[%s7784 + $0x1c] sm:$0xf]
      %v7793 = vld [vmem:[%s7784 + $0x20] sm:$0xf]
      %v7794 = vld [vmem:[%s7784 + $0x24] sm:$0xf]
      %v7795 = vld [vmem:[%s7784 + $0x28] sm:$0xf]
      %v7796 = vld [vmem:[%s7784 + $0x2c] sm:$0xf]
      %v7797 = vld [vmem:[%s7784 + $0x30] sm:$0xf]
      %v7798 = vld [vmem:[%s7784 + $0x34] sm:$0xf]
      %v7799 = vld [vmem:[%s7784 + $0x38] sm:$0xf]
      %v7800 = vld [vmem:[%s7784 + $0x3c] sm:$0xf]
      %v7801 = vunpack.c.l.b16 %v7413
      %v7802 = vunpack.c.l.b16 %v7423
      %v7803 = vunpack.c.l.b16 %v7437
      %v7804 = vunpack.c.l.b16 %v7447
      %v7805 = vunpack.c.l.b16 %v7461
      %v7806 = vunpack.c.l.b16 %v7471
      %v7807 = vunpack.c.l.b16 %v7485
      %v7808 = vunpack.c.l.b16 %v7495
      %v7809 = vunpack.c.l.b16 %v7509
      %v7810 = vunpack.c.l.b16 %v7519
      %v7811 = vunpack.c.l.b16 %v7533
      %v7812 = vunpack.c.l.b16 %v7543
      %v7813 = vunpack.c.l.b16 %v7557
      %v7814 = vunpack.c.l.b16 %v7567
      %v7815 = vunpack.c.l.b16 %v7581
      %v7816 = vunpack.c.l.b16 %v7591
      %v7817 = vunpack.c.l.b16 %v7605
      %v7818 = vunpack.c.l.b16 %v7615
      %v7819 = vunpack.c.l.b16 %v7629
      %v7820 = vunpack.c.l.b16 %v7639
      %v7821 = vunpack.c.l.b16 %v7653
      %v7822 = vunpack.c.l.b16 %v7663
      %v7823 = vunpack.c.l.b16 %v7677
      %v7824 = vunpack.c.l.b16 %v7687
      %v7825 = vunpack.c.l.b16 %v7701
      %v7826 = vunpack.c.l.b16 %v7711
      %v7827 = vunpack.c.l.b16 %v7725
      %v7828 = vunpack.c.l.b16 %v7735
      %v7829 = vunpack.c.l.b16 %v7749
      %v7830 = vunpack.c.l.b16 %v7759
      %v7831 = vunpack.c.l.b16 %v7773
      %v7832 = vunpack.c.l.b16 %v7783
      %v7833 = vpack.c.b16 %v7802, %v7801
      %v7834 = vpack.c.b16 %v7804, %v7803
      %v7835 = vpack.c.b16 %v7806, %v7805
      %v7836 = vpack.c.b16 %v7808, %v7807
      %v7837 = vpack.c.b16 %v7810, %v7809
      %v7838 = vpack.c.b16 %v7812, %v7811
      %v7839 = vpack.c.b16 %v7814, %v7813
      %v7840 = vpack.c.b16 %v7816, %v7815
      %v7841 = vpack.c.b16 %v7818, %v7817
      %v7842 = vpack.c.b16 %v7820, %v7819
      %v7843 = vpack.c.b16 %v7822, %v7821
      %v7844 = vpack.c.b16 %v7824, %v7823
      %v7845 = vpack.c.b16 %v7826, %v7825
      %v7846 = vpack.c.b16 %v7828, %v7827
      %v7847 = vpack.c.b16 %v7830, %v7829
      %v7848 = vpack.c.b16 %v7832, %v7831
      %v7881 = vunpack.c.l.b16 %v7785
      %v7882 = vunpack.c.l.b16 %v7786
      %v7883 = vunpack.c.l.b16 %v7787
      %v7884 = vunpack.c.l.b16 %v7788
      %v7885 = vunpack.c.l.b16 %v7789
      %v7886 = vunpack.c.l.b16 %v7790
      %v7887 = vunpack.c.l.b16 %v7791
      %v7888 = vunpack.c.l.b16 %v7792
      %v7889 = vunpack.c.l.b16 %v7793
      %v7890 = vunpack.c.l.b16 %v7794
      %v7891 = vunpack.c.l.b16 %v7795
      %v7892 = vunpack.c.l.b16 %v7796
      %v7893 = vunpack.c.l.b16 %v7797
      %v7894 = vunpack.c.l.b16 %v7798
      %v7895 = vunpack.c.l.b16 %v7799
      %v7896 = vunpack.c.l.b16 %v7800
      %v7897 = vpack.c.b16 %v7882, %v7881
      %v7898 = vpack.c.b16 %v7884, %v7883
      %v7899 = vpack.c.b16 %v7886, %v7885
      %v7900 = vpack.c.b16 %v7888, %v7887
      %v7901 = vpack.c.b16 %v7890, %v7889
      %v7902 = vpack.c.b16 %v7892, %v7891
      %v7903 = vpack.c.b16 %v7894, %v7893
      %v7904 = vpack.c.b16 %v7896, %v7895
      %7913 = vmatprep.subr.bf16.mxu0 0
      %7914 = vmatpush1.bf16.msra.mxu0 %v7897
      %7915 = vmatprep.subr.bf16.mxu0 0
      %7916 = vmatpush1.bf16.msra.mxu0 %v7898
      %7917 = vmatprep.subr.bf16.mxu0 0
      %7918 = vmatpush1.bf16.msra.mxu0 %v7899
      %7919 = vmatprep.subr.bf16.mxu0 0
      %7920 = vmatpush1.bf16.msra.mxu0 %v7900
      %7921 = vmatprep.subr.bf16.mxu0 0
      %7922 = vmatpush1.bf16.msra.mxu0 %v7901
      %7923 = vmatprep.subr.bf16.mxu0 0
      %7924 = vmatpush1.bf16.msra.mxu0 %v7902
      %7925 = vmatprep.subr.bf16.mxu0 0
      %7926 = vmatpush1.bf16.msra.mxu0 %v7903
      %7927 = vmatprep.subr.bf16.mxu0 0
      %7928 = vmatpush1.bf16.msra.mxu0 %v7904
      %7929 = vmatprep.subr.bf16.mxu0 0
      %7930 = vmatpush1.bf16.msra.mxu0 0
      %7931 = vmatprep.subr.bf16.mxu0 0
      %7932 = vmatpush1.bf16.msra.mxu0 0
      %7933 = vmatprep.subr.bf16.mxu0 0
      %7934 = vmatpush1.bf16.msra.mxu0 0
      %7935 = vmatprep.subr.bf16.mxu0 0
      %7936 = vmatpush1.bf16.msra.mxu0 0
      %7937 = vmatprep.subr.bf16.mxu0 0
      %7938 = vmatpush1.bf16.msra.mxu0 0
      %7939 = vmatprep.subr.bf16.mxu0 0
      %7940 = vmatpush1.bf16.msra.mxu0 0
      %7941 = vmatprep.subr.bf16.mxu0 0
      %7942 = vmatpush1.bf16.msra.mxu0 0
      %7943 = vmatprep.subr.bf16.mxu0 0
      %7944 = vmatpush1.bf16.msra.mxu0 0
      %7945 = vmatprep.mubr.bf16.mxu0 0
      %7946 = vmatmul.mubr.bf16.gmra.mrb[0].mxu0 %v7833
      %v7947 = vpop.f32.mrb[0].mxu0
      %v7948 = vadd.f32 0.0, %v7947
      %v7949 = vpop.f32.mrb[0].mxu0
      %v7950 = vpop.f32.mrb[0].mxu0
      %v7951 = vadd.f32 0.0, %v7950
      %v7952 = vpop.f32.mrb[0].mxu0
      %7953 = vmatprep.mubr.bf16.mxu0 0
      %7954 = vmatmul.mubr.bf16.gmra.mrb[0].mxu0 %v7834
      %v7955 = vpop.f32.mrb[0].mxu0
      %v7956 = vadd.f32 0.0, %v7955
      %v7957 = vpop.f32.mrb[0].mxu0
      %v7958 = vpop.f32.mrb[0].mxu0
      %v7959 = vadd.f32 0.0, %v7958
      %v7960 = vpop.f32.mrb[0].mxu0
      %7961 = vmatprep.mubr.bf16.mxu0 0
      %7962 = vmatmul.mubr.bf16.gmra.mrb[0].mxu0 %v7835
      %v7963 = vpop.f32.mrb[0].mxu0
      %v7964 = vadd.f32 0.0, %v7963
      %v7965 = vpop.f32.mrb[0].mxu0
      %v7966 = vpop.f32.mrb[0].mxu0
      %v7967 = vadd.f32 0.0, %v7966
      %v7968 = vpop.f32.mrb[0].mxu0
      %7969 = vmatprep.mubr.bf16.mxu0 0
      %7970 = vmatmul.mubr.bf16.gmra.mrb[0].mxu0 %v7836
      %v7971 = vpop.f32.mrb[0].mxu0
      %v7972 = vadd.f32 0.0, %v7971
      %v7973 = vpop.f32.mrb[0].mxu0
      %v7974 = vpop.f32.mrb[0].mxu0
      %v7975 = vadd.f32 0.0, %v7974
      %v7976 = vpop.f32.mrb[0].mxu0
      %7977 = vmatprep.mubr.bf16.mxu0 0
      %7978 = vmatmul.mubr.bf16.gmra.mrb[0].mxu0 %v7837
      %v7979 = vpop.f32.mrb[0].mxu0
      %v7980 = vadd.f32 0.0, %v7979
      %v7981 = vpop.f32.mrb[0].mxu0
      %v7982 = vpop.f32.mrb[0].mxu0
      %v7983 = vadd.f32 0.0, %v7982
      %v7984 = vpop.f32.mrb[0].mxu0
      %7985 = vmatprep.mubr.bf16.mxu0 0
      %7986 = vmatmul.mubr.bf16.gmra.mrb[0].mxu0 %v7838
      %v7987 = vpop.f32.mrb[0].mxu0
      %v7988 = vadd.f32 0.0, %v7987
      %v7989 = vpop.f32.mrb[0].mxu0
      %v7990 = vpop.f32.mrb[0].mxu0
      %v7991 = vadd.f32 0.0, %v7990
      %v7992 = vpop.f32.mrb[0].mxu0
      %7993 = vmatprep.mubr.bf16.mxu0 0
      %7994 = vmatmul.mubr.bf16.gmra.mrb[0].mxu0 %v7839
      %v7995 = vpop.f32.mrb[0].mxu0
      %v7996 = vadd.f32 0.0, %v7995
      %v7997 = vpop.f32.mrb[0].mxu0
      %v7998 = vpop.f32.mrb[0].mxu0
      %v7999 = vadd.f32 0.0, %v7998
      %v8000 = vpop.f32.mrb[0].mxu0
      %8001 = vmatprep.mubr.bf16.mxu0 0
      %8002 = vmatmul.mubr.bf16.gmra.mrb[0].mxu0 %v7840
      %v8003 = vpop.f32.mrb[0].mxu0
      %v8004 = vadd.f32 0.0, %v8003
      %v8005 = vpop.f32.mrb[0].mxu0
      %v8006 = vpop.f32.mrb[0].mxu0
      %v8007 = vadd.f32 0.0, %v8006
      %v8008 = vpop.f32.mrb[0].mxu0
      %8009 = vmatprep.mubr.bf16.mxu0 0
      %8010 = vmatmul.mubr.bf16.gmra.mrb[0].mxu0 %v7841
      %v8011 = vpop.f32.mrb[0].mxu0
      %v8012 = vadd.f32 0.0, %v8011
      %v8013 = vpop.f32.mrb[0].mxu0
      %v8014 = vpop.f32.mrb[0].mxu0
      %v8015 = vadd.f32 0.0, %v8014
      %v8016 = vpop.f32.mrb[0].mxu0
      %8017 = vmatprep.mubr.bf16.mxu0 0
      %8018 = vmatmul.mubr.bf16.gmra.mrb[0].mxu0 %v7842
      %v8019 = vpop.f32.mrb[0].mxu0
      %v8020 = vadd.f32 0.0, %v8019
      %v8021 = vpop.f32.mrb[0].mxu0
      %v8022 = vpop.f32.mrb[0].mxu0
      %v8023 = vadd.f32 0.0, %v8022
      %v8024 = vpop.f32.mrb[0].mxu0
      %8025 = vmatprep.mubr.bf16.mxu0 0
      %8026 = vmatmul.mubr.bf16.gmra.mrb[0].mxu0 %v7843
      %v8027 = vpop.f32.mrb[0].mxu0
      %v8028 = vadd.f32 0.0, %v8027
      %v8029 = vpop.f32.mrb[0].mxu0
      %v8030 = vpop.f32.mrb[0].mxu0
      %v8031 = vadd.f32 0.0, %v8030
      %v8032 = vpop.f32.mrb[0].mxu0
      %8033 = vmatprep.mubr.bf16.mxu0 0
      %8034 = vmatmul.mubr.bf16.gmra.mrb[0].mxu0 %v7844
      %v8035 = vpop.f32.mrb[0].mxu0
      %v8036 = vadd.f32 0.0, %v8035
      %v8037 = vpop.f32.mrb[0].mxu0
      %v8038 = vpop.f32.mrb[0].mxu0
      %v8039 = vadd.f32 0.0, %v8038
      %v8040 = vpop.f32.mrb[0].mxu0
      %8041 = vmatprep.mubr.bf16.mxu0 0
      %8042 = vmatmul.mubr.bf16.gmra.mrb[0].mxu0 %v7845
      %v8043 = vpop.f32.mrb[0].mxu0
      %v8044 = vadd.f32 0.0, %v8043
      %v8045 = vpop.f32.mrb[0].mxu0
      %v8046 = vpop.f32.mrb[0].mxu0
      %v8047 = vadd.f32 0.0, %v8046
      %v8048 = vpop.f32.mrb[0].mxu0
      %8049 = vmatprep.mubr.bf16.mxu0 0
      %8050 = vmatmul.mubr.bf16.gmra.mrb[0].mxu0 %v7846
      %v8051 = vpop.f32.mrb[0].mxu0
      %v8052 = vadd.f32 0.0, %v8051
      %v8053 = vpop.f32.mrb[0].mxu0
      %v8054 = vpop.f32.mrb[0].mxu0
      %v8055 = vadd.f32 0.0, %v8054
      %v8056 = vpop.f32.mrb[0].mxu0
      %8057 = vmatprep.mubr.bf16.mxu0 0
      %8058 = vmatmul.mubr.bf16.gmra.mrb[0].mxu0 %v7847
      %v8059 = vpop.f32.mrb[0].mxu0
      %v8060 = vadd.f32 0.0, %v8059
      %v8061 = vpop.f32.mrb[0].mxu0
      %v8062 = vpop.f32.mrb[0].mxu0
      %v8063 = vadd.f32 0.0, %v8062
      %v8064 = vpop.f32.mrb[0].mxu0
      %8065 = vmatprep.mubr.bf16.mxu0 0
      %8066 = vmatmul.mubr.bf16.gmra.mrb[0].mxu0 %v7848
      %v8067 = vpop.f32.mrb[0].mxu0
      %v8068 = vadd.f32 0.0, %v8067
      %v8069 = vpop.f32.mrb[0].mxu0
      %v8070 = vpop.f32.mrb[0].mxu0
      %v8071 = vadd.f32 0.0, %v8070
      %v8072 = vpop.f32.mrb[0].mxu0
      %8073 = vdwg.mxu0
      %v8074 = vadd.f32 %v7226, %v7948
      %v8075 = vadd.f32 %v7229, %v7951
      %v8076 = vadd.f32 %v7234, %v7956
      %v8077 = vadd.f32 %v7237, %v7959
      %v8078 = vadd.f32 %v7242, %v7964
      %v8079 = vadd.f32 %v7245, %v7967
      %v8080 = vadd.f32 %v7250, %v7972
      %v8081 = vadd.f32 %v7253, %v7975
      %v8082 = vadd.f32 %v7258, %v7980
      %v8083 = vadd.f32 %v7261, %v7983
      %v8084 = vadd.f32 %v7266, %v7988
      %v8085 = vadd.f32 %v7269, %v7991
      %v8086 = vadd.f32 %v7274, %v7996
      %v8087 = vadd.f32 %v7277, %v7999
      %v8088 = vadd.f32 %v7282, %v8004
      %v8089 = vadd.f32 %v7285, %v8007
      %v8090 = vadd.f32 %v7290, %v8012
      %v8091 = vadd.f32 %v7293, %v8015
      %v8092 = vadd.f32 %v7298, %v8020
      %v8093 = vadd.f32 %v7301, %v8023
      %v8094 = vadd.f32 %v7306, %v8028
      %v8095 = vadd.f32 %v7309, %v8031
      %v8096 = vadd.f32 %v7314, %v8036
      %v8097 = vadd.f32 %v7317, %v8039
      %v8098 = vadd.f32 %v7322, %v8044
      %v8099 = vadd.f32 %v7325, %v8047
      %v8100 = vadd.f32 %v7330, %v8052
      %v8101 = vadd.f32 %v7333, %v8055
      %v8102 = vadd.f32 %v7338, %v8060
      %v8103 = vadd.f32 %v7341, %v8063
      %v8104 = vadd.f32 %v7346, %v8068
      %v8105 = vadd.f32 %v7349, %v8071
      %v8106 = vld [vmem:[%s6308 + $0x4] sm:$0x8]
      %v8107 = vld [vmem:[%s6308 + $0x8] sm:$0xf]
      %v8108 = vld [vmem:[%s6308 + $0xc] sm:$0xf]
      %v8109 = vld [vmem:[%s6308 + $0x18] sm:$0x8]
      %v8110 = vld [vmem:[%s6308 + $0x1c] sm:$0xf]
      %v8111 = vld [vmem:[%s6308 + $0x20] sm:$0xf]
      %v8112 = vld [vmem:[%s6308 + $0x2c] sm:$0x8]
      %v8113 = vld [vmem:[%s6308 + $0x30] sm:$0xf]
      %v8114 = vld [vmem:[%s6308 + $0x34] sm:$0xf]
      %v8115 = vld [vmem:[%s6308 + $0x40] sm:$0x8]
      %v8116 = vld [vmem:[%s6308 + $0x44] sm:$0xf]
      %v8117 = vld [vmem:[%s6308 + $0x48] sm:$0xf]
      %v8118 = vld [vmem:[%s6308 + $0x54] sm:$0x8]
      %v8119 = vld [vmem:[%s6308 + $0x58] sm:$0xf]
      %v8120 = vld [vmem:[%s6308 + $0x5c] sm:$0xf]
      %v8121 = vld [vmem:[%s6308 + $0x68] sm:$0x8]
      %v8122 = vld [vmem:[%s6308 + $0x6c] sm:$0xf]
      %v8123 = vld [vmem:[%s6308 + $0x70] sm:$0xf]
      %v8124 = vld [vmem:[%s6308 + $0x7c] sm:$0x8]
      %v8125 = vld [vmem:[%s6308 + $0x80] sm:$0xf]
      %v8126 = vld [vmem:[%s6308 + $0x84] sm:$0xf]
      %v8127 = vld [vmem:[%s6308 + $0x90] sm:$0x8]
      %v8128 = vld [vmem:[%s6308 + $0x94] sm:$0xf]
      %v8129 = vld [vmem:[%s6308 + $0x98] sm:$0xf]
      %v8130 = vld [vmem:[%s6308 + $0xa4] sm:$0x8]
      %v8131 = vld [vmem:[%s6308 + $0xa8] sm:$0xf]
      %v8132 = vld [vmem:[%s6308 + $0xac] sm:$0xf]
      %v8133 = vld [vmem:[%s6308 + $0xb8] sm:$0x8]
      %v8134 = vld [vmem:[%s6308 + $0xbc] sm:$0xf]
      %v8135 = vld [vmem:[%s6308 + $0xc0] sm:$0xf]
      %v8136 = vld [vmem:[%s6308 + $0xcc] sm:$0x8]
      %v8137 = vld [vmem:[%s6308 + $0xd0] sm:$0xf]
      %v8138 = vld [vmem:[%s6308 + $0xd4] sm:$0xf]
      %v8139 = vld [vmem:[%s6308 + $0xe0] sm:$0x8]
      %v8140 = vld [vmem:[%s6308 + $0xe4] sm:$0xf]
      %v8141 = vld [vmem:[%s6308 + $0xe8] sm:$0xf]
      %v8142 = vld [vmem:[%s6308 + $0xf4] sm:$0x8]
      %v8143 = vld [vmem:[%s6308 + $0xf8] sm:$0xf]
      %v8144 = vld [vmem:[%s6308 + $0xfc] sm:$0xf]
      %v8145 = vld [vmem:[%s6308 + $0x108] sm:$0x8]
      %v8146 = vld [vmem:[%s6308 + $0x10c] sm:$0xf]
      %v8147 = vld [vmem:[%s6308 + $0x110] sm:$0xf]
      %v8148 = vld [vmem:[%s6308 + $0x11c] sm:$0x8]
      %v8149 = vld [vmem:[%s6308 + $0x120] sm:$0xf]
      %v8150 = vld [vmem:[%s6308 + $0x124] sm:$0xf]
      %v8151 = vld [vmem:[%s6308 + $0x130] sm:$0x8]
      %v8152 = vld [vmem:[%s6308 + $0x134] sm:$0xf]
      %v8153 = vld [vmem:[%s6308 + $0x138] sm:$0xf]
      %v8155 = vshrl.u32 %v8106, 16
      %v8157 = vrot.slane %v8155, 7
      %v8158 = vrot.slane %v8157, 4
      %v8160 = vshrl.u32 %v8107, 16
      %v8162 = vrot.slane %v8160, 7
      %v8163 = vshll.u32 %v8107, 16
      %v8165 = vor.u32 %v8162, %v8163
      %v8166 = vsel %vm598, %v8158, %v8165
      %v8167 = vrot.slane %v8162, 4
      %v8169 = vshrl.u32 %v8108, 16
      %v8171 = vrot.slane %v8169, 7
      %v8172 = vshll.u32 %v8108, 16
      %v8174 = vor.u32 %v8171, %v8172
      %v8175 = vsel %vm598, %v8167, %v8174
      %v8177 = vshrl.u32 %v8109, 16
      %v8179 = vrot.slane %v8177, 7
      %v8180 = vrot.slane %v8179, 4
      %v8182 = vshrl.u32 %v8110, 16
      %v8184 = vrot.slane %v8182, 7
      %v8185 = vshll.u32 %v8110, 16
      %v8187 = vor.u32 %v8184, %v8185
      %v8188 = vsel %vm598, %v8180, %v8187
      %v8189 = vrot.slane %v8184, 4
      %v8191 = vshrl.u32 %v8111, 16
      %v8193 = vrot.slane %v8191, 7
      %v8194 = vshll.u32 %v8111, 16
      %v8196 = vor.u32 %v8193, %v8194
      %v8197 = vsel %vm598, %v8189, %v8196
      %v8199 = vshrl.u32 %v8112, 16
      %v8201 = vrot.slane %v8199, 7
      %v8202 = vrot.slane %v8201, 4
      %v8204 = vshrl.u32 %v8113, 16
      %v8206 = vrot.slane %v8204, 7
      %v8207 = vshll.u32 %v8113, 16
      %v8209 = vor.u32 %v8206, %v8207
      %v8210 = vsel %vm598, %v8202, %v8209
      %v8211 = vrot.slane %v8206, 4
      %v8213 = vshrl.u32 %v8114, 16
      %v8215 = vrot.slane %v8213, 7
      %v8216 = vshll.u32 %v8114, 16
      %v8218 = vor.u32 %v8215, %v8216
      %v8219 = vsel %vm598, %v8211, %v8218
      %v8221 = vshrl.u32 %v8115, 16
      %v8223 = vrot.slane %v8221, 7
      %v8224 = vrot.slane %v8223, 4
      %v8226 = vshrl.u32 %v8116, 16
      %v8228 = vrot.slane %v8226, 7
      %v8229 = vshll.u32 %v8116, 16
      %v8231 = vor.u32 %v8228, %v8229
      %v8232 = vsel %vm598, %v8224, %v8231
      %v8233 = vrot.slane %v8228, 4
      %v8235 = vshrl.u32 %v8117, 16
      %v8237 = vrot.slane %v8235, 7
      %v8238 = vshll.u32 %v8117, 16
      %v8240 = vor.u32 %v8237, %v8238
      %v8241 = vsel %vm598, %v8233, %v8240
      %v8243 = vshrl.u32 %v8118, 16
      %v8245 = vrot.slane %v8243, 7
      %v8246 = vrot.slane %v8245, 4
      %v8248 = vshrl.u32 %v8119, 16
      %v8250 = vrot.slane %v8248, 7
      %v8251 = vshll.u32 %v8119, 16
      %v8253 = vor.u32 %v8250, %v8251
      %v8254 = vsel %vm598, %v8246, %v8253
      %v8255 = vrot.slane %v8250, 4
      %v8257 = vshrl.u32 %v8120, 16
      %v8259 = vrot.slane %v8257, 7
      %v8260 = vshll.u32 %v8120, 16
      %v8262 = vor.u32 %v8259, %v8260
      %v8263 = vsel %vm598, %v8255, %v8262
      %v8265 = vshrl.u32 %v8121, 16
      %v8267 = vrot.slane %v8265, 7
      %v8268 = vrot.slane %v8267, 4
      %v8270 = vshrl.u32 %v8122, 16
      %v8272 = vrot.slane %v8270, 7
      %v8273 = vshll.u32 %v8122, 16
      %v8275 = vor.u32 %v8272, %v8273
      %v8276 = vsel %vm598, %v8268, %v8275
      %v8277 = vrot.slane %v8272, 4
      %v8279 = vshrl.u32 %v8123, 16
      %v8281 = vrot.slane %v8279, 7
      %v8282 = vshll.u32 %v8123, 16
      %v8284 = vor.u32 %v8281, %v8282
      %v8285 = vsel %vm598, %v8277, %v8284
      %v8287 = vshrl.u32 %v8124, 16
      %v8289 = vrot.slane %v8287, 7
      %v8290 = vrot.slane %v8289, 4
      %v8292 = vshrl.u32 %v8125, 16
      %v8294 = vrot.slane %v8292, 7
      %v8295 = vshll.u32 %v8125, 16
      %v8297 = vor.u32 %v8294, %v8295
      %v8298 = vsel %vm598, %v8290, %v8297
      %v8299 = vrot.slane %v8294, 4
      %v8301 = vshrl.u32 %v8126, 16
      %v8303 = vrot.slane %v8301, 7
      %v8304 = vshll.u32 %v8126, 16
      %v8306 = vor.u32 %v8303, %v8304
      %v8307 = vsel %vm598, %v8299, %v8306
      %v8309 = vshrl.u32 %v8127, 16
      %v8311 = vrot.slane %v8309, 7
      %v8312 = vrot.slane %v8311, 4
      %v8314 = vshrl.u32 %v8128, 16
      %v8316 = vrot.slane %v8314, 7
      %v8317 = vshll.u32 %v8128, 16
      %v8319 = vor.u32 %v8316, %v8317
      %v8320 = vsel %vm598, %v8312, %v8319
      %v8321 = vrot.slane %v8316, 4
      %v8323 = vshrl.u32 %v8129, 16
      %v8325 = vrot.slane %v8323, 7
      %v8326 = vshll.u32 %v8129, 16
      %v8328 = vor.u32 %v8325, %v8326
      %v8329 = vsel %vm598, %v8321, %v8328
      %v8331 = vshrl.u32 %v8130, 16
      %v8333 = vrot.slane %v8331, 7
      %v8334 = vrot.slane %v8333, 4
      %v8336 = vshrl.u32 %v8131, 16
      %v8338 = vrot.slane %v8336, 7
      %v8339 = vshll.u32 %v8131, 16
      %v8341 = vor.u32 %v8338, %v8339
      %v8342 = vsel %vm598, %v8334, %v8341
      %v8343 = vrot.slane %v8338, 4
      %v8345 = vshrl.u32 %v8132, 16
      %v8347 = vrot.slane %v8345, 7
      %v8348 = vshll.u32 %v8132, 16
      %v8350 = vor.u32 %v8347, %v8348
      %v8351 = vsel %vm598, %v8343, %v8350
      %v8353 = vshrl.u32 %v8133, 16
      %v8355 = vrot.slane %v8353, 7
      %v8356 = vrot.slane %v8355, 4
      %v8358 = vshrl.u32 %v8134, 16
      %v8360 = vrot.slane %v8358, 7
      %v8361 = vshll.u32 %v8134, 16
      %v8363 = vor.u32 %v8360, %v8361
      %v8364 = vsel %vm598, %v8356, %v8363
      %v8365 = vrot.slane %v8360, 4
      %v8367 = vshrl.u32 %v8135, 16
      %v8369 = vrot.slane %v8367, 7
      %v8370 = vshll.u32 %v8135, 16
      %v8372 = vor.u32 %v8369, %v8370
      %v8373 = vsel %vm598, %v8365, %v8372
      %v8375 = vshrl.u32 %v8136, 16
      %v8377 = vrot.slane %v8375, 7
      %v8378 = vrot.slane %v8377, 4
      %v8380 = vshrl.u32 %v8137, 16
      %v8382 = vrot.slane %v8380, 7
      %v8383 = vshll.u32 %v8137, 16
      %v8385 = vor.u32 %v8382, %v8383
      %v8386 = vsel %vm598, %v8378, %v8385
      %v8387 = vrot.slane %v8382, 4
      %v8389 = vshrl.u32 %v8138, 16
      %v8391 = vrot.slane %v8389, 7
      %v8392 = vshll.u32 %v8138, 16
      %v8394 = vor.u32 %v8391, %v8392
      %v8395 = vsel %vm598, %v8387, %v8394
      %v8397 = vshrl.u32 %v8139, 16
      %v8399 = vrot.slane %v8397, 7
      %v8400 = vrot.slane %v8399, 4
      %v8402 = vshrl.u32 %v8140, 16
      %v8404 = vrot.slane %v8402, 7
      %v8405 = vshll.u32 %v8140, 16
      %v8407 = vor.u32 %v8404, %v8405
      %v8408 = vsel %vm598, %v8400, %v8407
      %v8409 = vrot.slane %v8404, 4
      %v8411 = vshrl.u32 %v8141, 16
      %v8413 = vrot.slane %v8411, 7
      %v8414 = vshll.u32 %v8141, 16
      %v8416 = vor.u32 %v8413, %v8414
      %v8417 = vsel %vm598, %v8409, %v8416
      %v8419 = vshrl.u32 %v8142, 16
      %v8421 = vrot.slane %v8419, 7
      %v8422 = vrot.slane %v8421, 4
      %v8424 = vshrl.u32 %v8143, 16
      %v8426 = vrot.slane %v8424, 7
      %v8427 = vshll.u32 %v8143, 16
      %v8429 = vor.u32 %v8426, %v8427
      %v8430 = vsel %vm598, %v8422, %v8429
      %v8431 = vrot.slane %v8426, 4
      %v8433 = vshrl.u32 %v8144, 16
      %v8435 = vrot.slane %v8433, 7
      %v8436 = vshll.u32 %v8144, 16
      %v8438 = vor.u32 %v8435, %v8436
      %v8439 = vsel %vm598, %v8431, %v8438
      %v8441 = vshrl.u32 %v8145, 16
      %v8443 = vrot.slane %v8441, 7
      %v8444 = vrot.slane %v8443, 4
      %v8446 = vshrl.u32 %v8146, 16
      %v8448 = vrot.slane %v8446, 7
      %v8449 = vshll.u32 %v8146, 16
      %v8451 = vor.u32 %v8448, %v8449
      %v8452 = vsel %vm598, %v8444, %v8451
      %v8453 = vrot.slane %v8448, 4
      %v8455 = vshrl.u32 %v8147, 16
      %v8457 = vrot.slane %v8455, 7
      %v8458 = vshll.u32 %v8147, 16
      %v8460 = vor.u32 %v8457, %v8458
      %v8461 = vsel %vm598, %v8453, %v8460
      %v8463 = vshrl.u32 %v8148, 16
      %v8465 = vrot.slane %v8463, 7
      %v8466 = vrot.slane %v8465, 4
      %v8468 = vshrl.u32 %v8149, 16
      %v8470 = vrot.slane %v8468, 7
      %v8471 = vshll.u32 %v8149, 16
      %v8473 = vor.u32 %v8470, %v8471
      %v8474 = vsel %vm598, %v8466, %v8473
      %v8475 = vrot.slane %v8470, 4
      %v8477 = vshrl.u32 %v8150, 16
      %v8479 = vrot.slane %v8477, 7
      %v8480 = vshll.u32 %v8150, 16
      %v8482 = vor.u32 %v8479, %v8480
      %v8483 = vsel %vm598, %v8475, %v8482
      %v8485 = vshrl.u32 %v8151, 16
      %v8487 = vrot.slane %v8485, 7
      %v8488 = vrot.slane %v8487, 4
      %v8490 = vshrl.u32 %v8152, 16
      %v8492 = vrot.slane %v8490, 7
      %v8493 = vshll.u32 %v8152, 16
      %v8495 = vor.u32 %v8492, %v8493
      %v8496 = vsel %vm598, %v8488, %v8495
      %v8497 = vrot.slane %v8492, 4
      %v8499 = vshrl.u32 %v8153, 16
      %v8501 = vrot.slane %v8499, 7
      %v8502 = vshll.u32 %v8153, 16
      %v8504 = vor.u32 %v8501, %v8502
      %v8505 = vsel %vm598, %v8497, %v8504
      %s8506 = scalar_lea.vmem %s3, 192
      %v8507 = vld [vmem:[%s8506] sm:$0xf]
      %v8508 = vld [vmem:[%s8506 + $0x4] sm:$0xf]
      %v8509 = vld [vmem:[%s8506 + $0x8] sm:$0xf]
      %v8510 = vld [vmem:[%s8506 + $0xc] sm:$0xf]
      %v8511 = vld [vmem:[%s8506 + $0x10] sm:$0xf]
      %v8512 = vld [vmem:[%s8506 + $0x14] sm:$0xf]
      %v8513 = vld [vmem:[%s8506 + $0x18] sm:$0xf]
      %v8514 = vld [vmem:[%s8506 + $0x1c] sm:$0xf]
      %v8515 = vld [vmem:[%s8506 + $0x20] sm:$0xf]
      %v8516 = vld [vmem:[%s8506 + $0x24] sm:$0xf]
      %v8517 = vld [vmem:[%s8506 + $0x28] sm:$0xf]
      %v8518 = vld [vmem:[%s8506 + $0x2c] sm:$0xf]
      %v8519 = vld [vmem:[%s8506 + $0x30] sm:$0xf]
      %v8520 = vld [vmem:[%s8506 + $0x34] sm:$0xf]
      %v8521 = vld [vmem:[%s8506 + $0x38] sm:$0xf]
      %v8522 = vld [vmem:[%s8506 + $0x3c] sm:$0xf]
      %v8523 = vunpack.c.l.b16 %v8166
      %v8524 = vunpack.c.l.b16 %v8175
      %v8525 = vunpack.c.l.b16 %v8188
      %v8526 = vunpack.c.l.b16 %v8197
      %v8527 = vunpack.c.l.b16 %v8210
      %v8528 = vunpack.c.l.b16 %v8219
      %v8529 = vunpack.c.l.b16 %v8232
      %v8530 = vunpack.c.l.b16 %v8241
      %v8531 = vunpack.c.l.b16 %v8254
      %v8532 = vunpack.c.l.b16 %v8263
      %v8533 = vunpack.c.l.b16 %v8276
      %v8534 = vunpack.c.l.b16 %v8285
      %v8535 = vunpack.c.l.b16 %v8298
      %v8536 = vunpack.c.l.b16 %v8307
      %v8537 = vunpack.c.l.b16 %v8320
      %v8538 = vunpack.c.l.b16 %v8329
      %v8539 = vunpack.c.l.b16 %v8342
      %v8540 = vunpack.c.l.b16 %v8351
      %v8541 = vunpack.c.l.b16 %v8364
      %v8542 = vunpack.c.l.b16 %v8373
      %v8543 = vunpack.c.l.b16 %v8386
      %v8544 = vunpack.c.l.b16 %v8395
      %v8545 = vunpack.c.l.b16 %v8408
      %v8546 = vunpack.c.l.b16 %v8417
      %v8547 = vunpack.c.l.b16 %v8430
      %v8548 = vunpack.c.l.b16 %v8439
      %v8549 = vunpack.c.l.b16 %v8452
      %v8550 = vunpack.c.l.b16 %v8461
      %v8551 = vunpack.c.l.b16 %v8474
      %v8552 = vunpack.c.l.b16 %v8483
      %v8553 = vunpack.c.l.b16 %v8496
      %v8554 = vunpack.c.l.b16 %v8505
      %v8555 = vpack.c.b16 %v8524, %v8523
      %v8556 = vpack.c.b16 %v8526, %v8525
      %v8557 = vpack.c.b16 %v8528, %v8527
      %v8558 = vpack.c.b16 %v8530, %v8529
      %v8559 = vpack.c.b16 %v8532, %v8531
      %v8560 = vpack.c.b16 %v8534, %v8533
      %v8561 = vpack.c.b16 %v8536, %v8535
      %v8562 = vpack.c.b16 %v8538, %v8537
      %v8563 = vpack.c.b16 %v8540, %v8539
      %v8564 = vpack.c.b16 %v8542, %v8541
      %v8565 = vpack.c.b16 %v8544, %v8543
      %v8566 = vpack.c.b16 %v8546, %v8545
      %v8567 = vpack.c.b16 %v8548, %v8547
      %v8568 = vpack.c.b16 %v8550, %v8549
      %v8569 = vpack.c.b16 %v8552, %v8551
      %v8570 = vpack.c.b16 %v8554, %v8553
      %v8603 = vunpack.c.l.b16 %v8507
      %v8604 = vunpack.c.l.b16 %v8508
      %v8605 = vunpack.c.l.b16 %v8509
      %v8606 = vunpack.c.l.b16 %v8510
      %v8607 = vunpack.c.l.b16 %v8511
      %v8608 = vunpack.c.l.b16 %v8512
      %v8609 = vunpack.c.l.b16 %v8513
      %v8610 = vunpack.c.l.b16 %v8514
      %v8611 = vunpack.c.l.b16 %v8515
      %v8612 = vunpack.c.l.b16 %v8516
      %v8613 = vunpack.c.l.b16 %v8517
      %v8614 = vunpack.c.l.b16 %v8518
      %v8615 = vunpack.c.l.b16 %v8519
      %v8616 = vunpack.c.l.b16 %v8520
      %v8617 = vunpack.c.l.b16 %v8521
      %v8618 = vunpack.c.l.b16 %v8522
      %v8619 = vpack.c.b16 %v8604, %v8603
      %v8620 = vpack.c.b16 %v8606, %v8605
      %v8621 = vpack.c.b16 %v8608, %v8607
      %v8622 = vpack.c.b16 %v8610, %v8609
      %v8623 = vpack.c.b16 %v8612, %v8611
      %v8624 = vpack.c.b16 %v8614, %v8613
      %v8625 = vpack.c.b16 %v8616, %v8615
      %v8626 = vpack.c.b16 %v8618, %v8617
      %8635 = vmatprep.subr.bf16.mxu0 0
      %8636 = vmatpush1.bf16.msra.mxu0 %v8619
      %8637 = vmatprep.subr.bf16.mxu0 0
      %8638 = vmatpush1.bf16.msra.mxu0 %v8620
      %8639 = vmatprep.subr.bf16.mxu0 0
      %8640 = vmatpush1.bf16.msra.mxu0 %v8621
      %8641 = vmatprep.subr.bf16.mxu0 0
      %8642 = vmatpush1.bf16.msra.mxu0 %v8622
      %8643 = vmatprep.subr.bf16.mxu0 0
      %8644 = vmatpush1.bf16.msra.mxu0 %v8623
      %8645 = vmatprep.subr.bf16.mxu0 0
      %8646 = vmatpush1.bf16.msra.mxu0 %v8624
      %8647 = vmatprep.subr.bf16.mxu0 0
      %8648 = vmatpush1.bf16.msra.mxu0 %v8625
      %8649 = vmatprep.subr.bf16.mxu0 0
      %8650 = vmatpush1.bf16.msra.mxu0 %v8626
      %8651 = vmatprep.subr.bf16.mxu0 0
      %8652 = vmatpush1.bf16.msra.mxu0 0
      %8653 = vmatprep.subr.bf16.mxu0 0
      %8654 = vmatpush1.bf16.msra.mxu0 0
      %8655 = vmatprep.subr.bf16.mxu0 0
      %8656 = vmatpush1.bf16.msra.mxu0 0
      %8657 = vmatprep.subr.bf16.mxu0 0
      %8658 = vmatpush1.bf16.msra.mxu0 0
      %8659 = vmatprep.subr.bf16.mxu0 0
      %8660 = vmatpush1.bf16.msra.mxu0 0
      %8661 = vmatprep.subr.bf16.mxu0 0
      %8662 = vmatpush1.bf16.msra.mxu0 0
      %8663 = vmatprep.subr.bf16.mxu0 0
      %8664 = vmatpush1.bf16.msra.mxu0 0
      %8665 = vmatprep.subr.bf16.mxu0 0
      %8666 = vmatpush1.bf16.msra.mxu0 0
      %8667 = vmatprep.mubr.bf16.mxu0 0
      %8668 = vmatmul.mubr.bf16.gmra.mrb[0].mxu0 %v8555
      %v8669 = vpop.f32.mrb[0].mxu0
      %v8670 = vadd.f32 0.0, %v8669
      %v8671 = vpop.f32.mrb[0].mxu0
      %v8672 = vpop.f32.mrb[0].mxu0
      %v8673 = vadd.f32 0.0, %v8672
      %v8674 = vpop.f32.mrb[0].mxu0
      %8675 = vmatprep.mubr.bf16.mxu0 0
      %8676 = vmatmul.mubr.bf16.gmra.mrb[0].mxu0 %v8556
      %v8677 = vpop.f32.mrb[0].mxu0
      %v8678 = vadd.f32 0.0, %v8677
      %v8679 = vpop.f32.mrb[0].mxu0
      %v8680 = vpop.f32.mrb[0].mxu0
      %v8681 = vadd.f32 0.0, %v8680
      %v8682 = vpop.f32.mrb[0].mxu0
      %8683 = vmatprep.mubr.bf16.mxu0 0
      %8684 = vmatmul.mubr.bf16.gmra.mrb[0].mxu0 %v8557
      %v8685 = vpop.f32.mrb[0].mxu0
      %v8686 = vadd.f32 0.0, %v8685
      %v8687 = vpop.f32.mrb[0].mxu0
      %v8688 = vpop.f32.mrb[0].mxu0
      %v8689 = vadd.f32 0.0, %v8688
      %v8690 = vpop.f32.mrb[0].mxu0
      %8691 = vmatprep.mubr.bf16.mxu0 0
      %8692 = vmatmul.mubr.bf16.gmra.mrb[0].mxu0 %v8558
      %v8693 = vpop.f32.mrb[0].mxu0
      %v8694 = vadd.f32 0.0, %v8693
      %v8695 = vpop.f32.mrb[0].mxu0
      %v8696 = vpop.f32.mrb[0].mxu0
      %v8697 = vadd.f32 0.0, %v8696
      %v8698 = vpop.f32.mrb[0].mxu0
      %8699 = vmatprep.mubr.bf16.mxu0 0
      %8700 = vmatmul.mubr.bf16.gmra.mrb[0].mxu0 %v8559
      %v8701 = vpop.f32.mrb[0].mxu0
      %v8702 = vadd.f32 0.0, %v8701
      %v8703 = vpop.f32.mrb[0].mxu0
      %v8704 = vpop.f32.mrb[0].mxu0
      %v8705 = vadd.f32 0.0, %v8704
      %v8706 = vpop.f32.mrb[0].mxu0
      %8707 = vmatprep.mubr.bf16.mxu0 0
      %8708 = vmatmul.mubr.bf16.gmra.mrb[0].mxu0 %v8560
      %v8709 = vpop.f32.mrb[0].mxu0
      %v8710 = vadd.f32 0.0, %v8709
      %v8711 = vpop.f32.mrb[0].mxu0
      %v8712 = vpop.f32.mrb[0].mxu0
      %v8713 = vadd.f32 0.0, %v8712
      %v8714 = vpop.f32.mrb[0].mxu0
      %8715 = vmatprep.mubr.bf16.mxu0 0
      %8716 = vmatmul.mubr.bf16.gmra.mrb[0].mxu0 %v8561
      %v8717 = vpop.f32.mrb[0].mxu0
      %v8718 = vadd.f32 0.0, %v8717
      %v8719 = vpop.f32.mrb[0].mxu0
      %v8720 = vpop.f32.mrb[0].mxu0
      %v8721 = vadd.f32 0.0, %v8720
      %v8722 = vpop.f32.mrb[0].mxu0
      %8723 = vmatprep.mubr.bf16.mxu0 0
      %8724 = vmatmul.mubr.bf16.gmra.mrb[0].mxu0 %v8562
      %v8725 = vpop.f32.mrb[0].mxu0
      %v8726 = vadd.f32 0.0, %v8725
      %v8727 = vpop.f32.mrb[0].mxu0
      %v8728 = vpop.f32.mrb[0].mxu0
      %v8729 = vadd.f32 0.0, %v8728
      %v8730 = vpop.f32.mrb[0].mxu0
      %8731 = vmatprep.mubr.bf16.mxu0 0
      %8732 = vmatmul.mubr.bf16.gmra.mrb[0].mxu0 %v8563
      %v8733 = vpop.f32.mrb[0].mxu0
      %v8734 = vadd.f32 0.0, %v8733
      %v8735 = vpop.f32.mrb[0].mxu0
      %v8736 = vpop.f32.mrb[0].mxu0
      %v8737 = vadd.f32 0.0, %v8736
      %v8738 = vpop.f32.mrb[0].mxu0
      %8739 = vmatprep.mubr.bf16.mxu0 0
      %8740 = vmatmul.mubr.bf16.gmra.mrb[0].mxu0 %v8564
      %v8741 = vpop.f32.mrb[0].mxu0
      %v8742 = vadd.f32 0.0, %v8741
      %v8743 = vpop.f32.mrb[0].mxu0
      %v8744 = vpop.f32.mrb[0].mxu0
      %v8745 = vadd.f32 0.0, %v8744
      %v8746 = vpop.f32.mrb[0].mxu0
      %8747 = vmatprep.mubr.bf16.mxu0 0
      %8748 = vmatmul.mubr.bf16.gmra.mrb[0].mxu0 %v8565
      %v8749 = vpop.f32.mrb[0].mxu0
      %v8750 = vadd.f32 0.0, %v8749
      %v8751 = vpop.f32.mrb[0].mxu0
      %v8752 = vpop.f32.mrb[0].mxu0
      %v8753 = vadd.f32 0.0, %v8752
      %v8754 = vpop.f32.mrb[0].mxu0
      %8755 = vmatprep.mubr.bf16.mxu0 0
      %8756 = vmatmul.mubr.bf16.gmra.mrb[0].mxu0 %v8566
      %v8757 = vpop.f32.mrb[0].mxu0
      %v8758 = vadd.f32 0.0, %v8757
      %v8759 = vpop.f32.mrb[0].mxu0
      %v8760 = vpop.f32.mrb[0].mxu0
      %v8761 = vadd.f32 0.0, %v8760
      %v8762 = vpop.f32.mrb[0].mxu0
      %8763 = vmatprep.mubr.bf16.mxu0 0
      %8764 = vmatmul.mubr.bf16.gmra.mrb[0].mxu0 %v8567
      %v8765 = vpop.f32.mrb[0].mxu0
      %v8766 = vadd.f32 0.0, %v8765
      %v8767 = vpop.f32.mrb[0].mxu0
      %v8768 = vpop.f32.mrb[0].mxu0
      %v8769 = vadd.f32 0.0, %v8768
      %v8770 = vpop.f32.mrb[0].mxu0
      %8771 = vmatprep.mubr.bf16.mxu0 0
      %8772 = vmatmul.mubr.bf16.gmra.mrb[0].mxu0 %v8568
      %v8773 = vpop.f32.mrb[0].mxu0
      %v8774 = vadd.f32 0.0, %v8773
      %v8775 = vpop.f32.mrb[0].mxu0
      %v8776 = vpop.f32.mrb[0].mxu0
      %v8777 = vadd.f32 0.0, %v8776
      %v8778 = vpop.f32.mrb[0].mxu0
      %8779 = vmatprep.mubr.bf16.mxu0 0
      %8780 = vmatmul.mubr.bf16.gmra.mrb[0].mxu0 %v8569
      %v8781 = vpop.f32.mrb[0].mxu0
      %v8782 = vadd.f32 0.0, %v8781
      %v8783 = vpop.f32.mrb[0].mxu0
      %v8784 = vpop.f32.mrb[0].mxu0
      %v8785 = vadd.f32 0.0, %v8784
      %v8786 = vpop.f32.mrb[0].mxu0
      %8787 = vmatprep.mubr.bf16.mxu0 0
      %8788 = vmatmul.mubr.bf16.gmra.mrb[0].mxu0 %v8570
      %v8789 = vpop.f32.mrb[0].mxu0
      %v8790 = vadd.f32 0.0, %v8789
      %v8791 = vpop.f32.mrb[0].mxu0
      %v8792 = vpop.f32.mrb[0].mxu0
      %v8793 = vadd.f32 0.0, %v8792
      %v8794 = vpop.f32.mrb[0].mxu0
      %8795 = vdwg.mxu0
      %v8796 = vadd.f32 %v8074, %v8670
      %v8797 = vadd.f32 %v8075, %v8673
      %v8798 = vadd.f32 %v8076, %v8678
      %v8799 = vadd.f32 %v8077, %v8681
      %v8800 = vadd.f32 %v8078, %v8686
      %v8801 = vadd.f32 %v8079, %v8689
      %v8802 = vadd.f32 %v8080, %v8694
      %v8803 = vadd.f32 %v8081, %v8697
      %v8804 = vadd.f32 %v8082, %v8702
      %v8805 = vadd.f32 %v8083, %v8705
      %v8806 = vadd.f32 %v8084, %v8710
      %v8807 = vadd.f32 %v8085, %v8713
      %v8808 = vadd.f32 %v8086, %v8718
      %v8809 = vadd.f32 %v8087, %v8721
      %v8810 = vadd.f32 %v8088, %v8726
      %v8811 = vadd.f32 %v8089, %v8729
      %v8812 = vadd.f32 %v8090, %v8734
      %v8813 = vadd.f32 %v8091, %v8737
      %v8814 = vadd.f32 %v8092, %v8742
      %v8815 = vadd.f32 %v8093, %v8745
      %v8816 = vadd.f32 %v8094, %v8750
      %v8817 = vadd.f32 %v8095, %v8753
      %v8818 = vadd.f32 %v8096, %v8758
      %v8819 = vadd.f32 %v8097, %v8761
      %v8820 = vadd.f32 %v8098, %v8766
      %v8821 = vadd.f32 %v8099, %v8769
      %v8822 = vadd.f32 %v8100, %v8774
      %v8823 = vadd.f32 %v8101, %v8777
      %v8824 = vadd.f32 %v8102, %v8782
      %v8825 = vadd.f32 %v8103, %v8785
      %v8826 = vadd.f32 %v8104, %v8790
      %v8827 = vadd.f32 %v8105, %v8793
      %s8828 = scalar_lea.vmem %s3, 256
      %v8829 = vld [vmem:[%s8828] sm:$0xf]
      %v8830 = vld [vmem:[%s8828 + $0x4] sm:$0xf]
      %v8831 = vld [vmem:[%s8828 + $0x8] sm:$0xf]
      %v8832 = vld [vmem:[%s8828 + $0xc] sm:$0xf]
      %v8833 = vld [vmem:[%s8828 + $0x10] sm:$0xf]
      %v8834 = vld [vmem:[%s8828 + $0x14] sm:$0xf]
      %v8835 = vld [vmem:[%s8828 + $0x18] sm:$0xf]
      %v8836 = vld [vmem:[%s8828 + $0x1c] sm:$0xf]
      %v8837 = vld [vmem:[%s8828 + $0x20] sm:$0xf]
      %v8838 = vld [vmem:[%s8828 + $0x24] sm:$0xf]
      %v8839 = vld [vmem:[%s8828 + $0x28] sm:$0xf]
      %v8840 = vld [vmem:[%s8828 + $0x2c] sm:$0xf]
      %v8841 = vld [vmem:[%s8828 + $0x30] sm:$0xf]
      %v8842 = vld [vmem:[%s8828 + $0x34] sm:$0xf]
      %v8843 = vld [vmem:[%s8828 + $0x38] sm:$0xf]
      %v8844 = vld [vmem:[%s8828 + $0x3c] sm:$0xf]
      %v8877 = vunpack.c.l.b16 %v8107
      %v8878 = vunpack.c.l.b16 %v8108
      %v8879 = vunpack.c.l.b16 %v8110
      %v8880 = vunpack.c.l.b16 %v8111
      %v8881 = vunpack.c.l.b16 %v8113
      %v8882 = vunpack.c.l.b16 %v8114
      %v8883 = vunpack.c.l.b16 %v8116
      %v8884 = vunpack.c.l.b16 %v8117
      %v8885 = vunpack.c.l.b16 %v8119
      %v8886 = vunpack.c.l.b16 %v8120
      %v8887 = vunpack.c.l.b16 %v8122
      %v8888 = vunpack.c.l.b16 %v8123
      %v8889 = vunpack.c.l.b16 %v8125
      %v8890 = vunpack.c.l.b16 %v8126
      %v8891 = vunpack.c.l.b16 %v8128
      %v8892 = vunpack.c.l.b16 %v8129
      %v8893 = vunpack.c.l.b16 %v8131
      %v8894 = vunpack.c.l.b16 %v8132
      %v8895 = vunpack.c.l.b16 %v8134
      %v8896 = vunpack.c.l.b16 %v8135
      %v8897 = vunpack.c.l.b16 %v8137
      %v8898 = vunpack.c.l.b16 %v8138
      %v8899 = vunpack.c.l.b16 %v8140
      %v8900 = vunpack.c.l.b16 %v8141
      %v8901 = vunpack.c.l.b16 %v8143
      %v8902 = vunpack.c.l.b16 %v8144
      %v8903 = vunpack.c.l.b16 %v8146
      %v8904 = vunpack.c.l.b16 %v8147
      %v8905 = vunpack.c.l.b16 %v8149
      %v8906 = vunpack.c.l.b16 %v8150
      %v8907 = vunpack.c.l.b16 %v8152
      %v8908 = vunpack.c.l.b16 %v8153
      %v8909 = vpack.c.b16 %v8878, %v8877
      %v8910 = vpack.c.b16 %v8880, %v8879
      %v8911 = vpack.c.b16 %v8882, %v8881
      %v8912 = vpack.c.b16 %v8884, %v8883
      %v8913 = vpack.c.b16 %v8886, %v8885
      %v8914 = vpack.c.b16 %v8888, %v8887
      %v8915 = vpack.c.b16 %v8890, %v8889
      %v8916 = vpack.c.b16 %v8892, %v8891
      %v8917 = vpack.c.b16 %v8894, %v8893
      %v8918 = vpack.c.b16 %v8896, %v8895
      %v8919 = vpack.c.b16 %v8898, %v8897
      %v8920 = vpack.c.b16 %v8900, %v8899
      %v8921 = vpack.c.b16 %v8902, %v8901
      %v8922 = vpack.c.b16 %v8904, %v8903
      %v8923 = vpack.c.b16 %v8906, %v8905
      %v8924 = vpack.c.b16 %v8908, %v8907
      %v8957 = vunpack.c.l.b16 %v8829
      %v8958 = vunpack.c.l.b16 %v8830
      %v8959 = vunpack.c.l.b16 %v8831
      %v8960 = vunpack.c.l.b16 %v8832
      %v8961 = vunpack.c.l.b16 %v8833
      %v8962 = vunpack.c.l.b16 %v8834
      %v8963 = vunpack.c.l.b16 %v8835
      %v8964 = vunpack.c.l.b16 %v8836
      %v8965 = vunpack.c.l.b16 %v8837
      %v8966 = vunpack.c.l.b16 %v8838
      %v8967 = vunpack.c.l.b16 %v8839
      %v8968 = vunpack.c.l.b16 %v8840
      %v8969 = vunpack.c.l.b16 %v8841
      %v8970 = vunpack.c.l.b16 %v8842
      %v8971 = vunpack.c.l.b16 %v8843
      %v8972 = vunpack.c.l.b16 %v8844
      %v8973 = vpack.c.b16 %v8958, %v8957
      %v8974 = vpack.c.b16 %v8960, %v8959
      %v8975 = vpack.c.b16 %v8962, %v8961
      %v8976 = vpack.c.b16 %v8964, %v8963
      %v8977 = vpack.c.b16 %v8966, %v8965
      %v8978 = vpack.c.b16 %v8968, %v8967
      %v8979 = vpack.c.b16 %v8970, %v8969
      %v8980 = vpack.c.b16 %v8972, %v8971
      %8989 = vmatprep.subr.bf16.mxu0 0
      %8990 = vmatpush1.bf16.msra.mxu0 %v8973
      %8991 = vmatprep.subr.bf16.mxu0 0
      %8992 = vmatpush1.bf16.msra.mxu0 %v8974
      %8993 = vmatprep.subr.bf16.mxu0 0
      %8994 = vmatpush1.bf16.msra.mxu0 %v8975
      %8995 = vmatprep.subr.bf16.mxu0 0
      %8996 = vmatpush1.bf16.msra.mxu0 %v8976
      %8997 = vmatprep.subr.bf16.mxu0 0
      %8998 = vmatpush1.bf16.msra.mxu0 %v8977
      %8999 = vmatprep.subr.bf16.mxu0 0
      %9000 = vmatpush1.bf16.msra.mxu0 %v8978
      %9001 = vmatprep.subr.bf16.mxu0 0
      %9002 = vmatpush1.bf16.msra.mxu0 %v8979
      %9003 = vmatprep.subr.bf16.mxu0 0
      %9004 = vmatpush1.bf16.msra.mxu0 %v8980
      %9005 = vmatprep.subr.bf16.mxu0 0
      %9006 = vmatpush1.bf16.msra.mxu0 0
      %9007 = vmatprep.subr.bf16.mxu0 0
      %9008 = vmatpush1.bf16.msra.mxu0 0
      %9009 = vmatprep.subr.bf16.mxu0 0
      %9010 = vmatpush1.bf16.msra.mxu0 0
      %9011 = vmatprep.subr.bf16.mxu0 0
      %9012 = vmatpush1.bf16.msra.mxu0 0
      %9013 = vmatprep.subr.bf16.mxu0 0
      %9014 = vmatpush1.bf16.msra.mxu0 0
      %9015 = vmatprep.subr.bf16.mxu0 0
      %9016 = vmatpush1.bf16.msra.mxu0 0
      %9017 = vmatprep.subr.bf16.mxu0 0
      %9018 = vmatpush1.bf16.msra.mxu0 0
      %9019 = vmatprep.subr.bf16.mxu0 0
      %9020 = vmatpush1.bf16.msra.mxu0 0
      %9021 = vmatprep.mubr.bf16.mxu0 0
      %9022 = vmatmul.mubr.bf16.gmra.mrb[0].mxu0 %v8909
      %v9023 = vpop.f32.mrb[0].mxu0
      %v9024 = vadd.f32 0.0, %v9023
      %v9025 = vpop.f32.mrb[0].mxu0
      %v9026 = vpop.f32.mrb[0].mxu0
      %v9027 = vadd.f32 0.0, %v9026
      %v9028 = vpop.f32.mrb[0].mxu0
      %9029 = vmatprep.mubr.bf16.mxu0 0
      %9030 = vmatmul.mubr.bf16.gmra.mrb[0].mxu0 %v8910
      %v9031 = vpop.f32.mrb[0].mxu0
      %v9032 = vadd.f32 0.0, %v9031
      %v9033 = vpop.f32.mrb[0].mxu0
      %v9034 = vpop.f32.mrb[0].mxu0
      %v9035 = vadd.f32 0.0, %v9034
      %v9036 = vpop.f32.mrb[0].mxu0
      %9037 = vmatprep.mubr.bf16.mxu0 0
      %9038 = vmatmul.mubr.bf16.gmra.mrb[0].mxu0 %v8911
      %v9039 = vpop.f32.mrb[0].mxu0
      %v9040 = vadd.f32 0.0, %v9039
      %v9041 = vpop.f32.mrb[0].mxu0
      %v9042 = vpop.f32.mrb[0].mxu0
      %v9043 = vadd.f32 0.0, %v9042
      %v9044 = vpop.f32.mrb[0].mxu0
      %9045 = vmatprep.mubr.bf16.mxu0 0
      %9046 = vmatmul.mubr.bf16.gmra.mrb[0].mxu0 %v8912
      %v9047 = vpop.f32.mrb[0].mxu0
      %v9048 = vadd.f32 0.0, %v9047
      %v9049 = vpop.f32.mrb[0].mxu0
      %v9050 = vpop.f32.mrb[0].mxu0
      %v9051 = vadd.f32 0.0, %v9050
      %v9052 = vpop.f32.mrb[0].mxu0
      %9053 = vmatprep.mubr.bf16.mxu0 0
      %9054 = vmatmul.mubr.bf16.gmra.mrb[0].mxu0 %v8913
      %v9055 = vpop.f32.mrb[0].mxu0
      %v9056 = vadd.f32 0.0, %v9055
      %v9057 = vpop.f32.mrb[0].mxu0
      %v9058 = vpop.f32.mrb[0].mxu0
      %v9059 = vadd.f32 0.0, %v9058
      %v9060 = vpop.f32.mrb[0].mxu0
      %9061 = vmatprep.mubr.bf16.mxu0 0
      %9062 = vmatmul.mubr.bf16.gmra.mrb[0].mxu0 %v8914
      %v9063 = vpop.f32.mrb[0].mxu0
      %v9064 = vadd.f32 0.0, %v9063
      %v9065 = vpop.f32.mrb[0].mxu0
      %v9066 = vpop.f32.mrb[0].mxu0
      %v9067 = vadd.f32 0.0, %v9066
      %v9068 = vpop.f32.mrb[0].mxu0
      %9069 = vmatprep.mubr.bf16.mxu0 0
      %9070 = vmatmul.mubr.bf16.gmra.mrb[0].mxu0 %v8915
      %v9071 = vpop.f32.mrb[0].mxu0
      %v9072 = vadd.f32 0.0, %v9071
      %v9073 = vpop.f32.mrb[0].mxu0
      %v9074 = vpop.f32.mrb[0].mxu0
      %v9075 = vadd.f32 0.0, %v9074
      %v9076 = vpop.f32.mrb[0].mxu0
      %9077 = vmatprep.mubr.bf16.mxu0 0
      %9078 = vmatmul.mubr.bf16.gmra.mrb[0].mxu0 %v8916
      %v9079 = vpop.f32.mrb[0].mxu0
      %v9080 = vadd.f32 0.0, %v9079
      %v9081 = vpop.f32.mrb[0].mxu0
      %v9082 = vpop.f32.mrb[0].mxu0
      %v9083 = vadd.f32 0.0, %v9082
      %v9084 = vpop.f32.mrb[0].mxu0
      %9085 = vmatprep.mubr.bf16.mxu0 0
      %9086 = vmatmul.mubr.bf16.gmra.mrb[0].mxu0 %v8917
      %v9087 = vpop.f32.mrb[0].mxu0
      %v9088 = vadd.f32 0.0, %v9087
      %v9089 = vpop.f32.mrb[0].mxu0
      %v9090 = vpop.f32.mrb[0].mxu0
      %v9091 = vadd.f32 0.0, %v9090
      %v9092 = vpop.f32.mrb[0].mxu0
      %9093 = vmatprep.mubr.bf16.mxu0 0
      %9094 = vmatmul.mubr.bf16.gmra.mrb[0].mxu0 %v8918
      %v9095 = vpop.f32.mrb[0].mxu0
      %v9096 = vadd.f32 0.0, %v9095
      %v9097 = vpop.f32.mrb[0].mxu0
      %v9098 = vpop.f32.mrb[0].mxu0
      %v9099 = vadd.f32 0.0, %v9098
      %v9100 = vpop.f32.mrb[0].mxu0
      %9101 = vmatprep.mubr.bf16.mxu0 0
      %9102 = vmatmul.mubr.bf16.gmra.mrb[0].mxu0 %v8919
      %v9103 = vpop.f32.mrb[0].mxu0
      %v9104 = vadd.f32 0.0, %v9103
      %v9105 = vpop.f32.mrb[0].mxu0
      %v9106 = vpop.f32.mrb[0].mxu0
      %v9107 = vadd.f32 0.0, %v9106
      %v9108 = vpop.f32.mrb[0].mxu0
      %9109 = vmatprep.mubr.bf16.mxu0 0
      %9110 = vmatmul.mubr.bf16.gmra.mrb[0].mxu0 %v8920
      %v9111 = vpop.f32.mrb[0].mxu0
      %v9112 = vadd.f32 0.0, %v9111
      %v9113 = vpop.f32.mrb[0].mxu0
      %v9114 = vpop.f32.mrb[0].mxu0
      %v9115 = vadd.f32 0.0, %v9114
      %v9116 = vpop.f32.mrb[0].mxu0
      %9117 = vmatprep.mubr.bf16.mxu0 0
      %9118 = vmatmul.mubr.bf16.gmra.mrb[0].mxu0 %v8921
      %v9119 = vpop.f32.mrb[0].mxu0
      %v9120 = vadd.f32 0.0, %v9119
      %v9121 = vpop.f32.mrb[0].mxu0
      %v9122 = vpop.f32.mrb[0].mxu0
      %v9123 = vadd.f32 0.0, %v9122
      %v9124 = vpop.f32.mrb[0].mxu0
      %9125 = vmatprep.mubr.bf16.mxu0 0
      %9126 = vmatmul.mubr.bf16.gmra.mrb[0].mxu0 %v8922
      %v9127 = vpop.f32.mrb[0].mxu0
      %v9128 = vadd.f32 0.0, %v9127
      %v9129 = vpop.f32.mrb[0].mxu0
      %v9130 = vpop.f32.mrb[0].mxu0
      %v9131 = vadd.f32 0.0, %v9130
      %v9132 = vpop.f32.mrb[0].mxu0
      %9133 = vmatprep.mubr.bf16.mxu0 0
      %9134 = vmatmul.mubr.bf16.gmra.mrb[0].mxu0 %v8923
      %v9135 = vpop.f32.mrb[0].mxu0
      %v9136 = vadd.f32 0.0, %v9135
      %v9137 = vpop.f32.mrb[0].mxu0
      %v9138 = vpop.f32.mrb[0].mxu0
      %v9139 = vadd.f32 0.0, %v9138
      %v9140 = vpop.f32.mrb[0].mxu0
      %9141 = vmatprep.mubr.bf16.mxu0 0
      %9142 = vmatmul.mubr.bf16.gmra.mrb[0].mxu0 %v8924
      %v9143 = vpop.f32.mrb[0].mxu0
      %v9144 = vadd.f32 0.0, %v9143
      %v9145 = vpop.f32.mrb[0].mxu0
      %v9146 = vpop.f32.mrb[0].mxu0
      %v9147 = vadd.f32 0.0, %v9146
      %v9148 = vpop.f32.mrb[0].mxu0
      %9149 = vdwg.mxu0
      %v9150 = vadd.f32 %v8796, %v9024
      %v9151 = vadd.f32 %v8797, %v9027
      %v9152 = vadd.f32 %v8798, %v9032
      %v9153 = vadd.f32 %v8799, %v9035
      %v9154 = vadd.f32 %v8800, %v9040
      %v9155 = vadd.f32 %v8801, %v9043
      %v9156 = vadd.f32 %v8802, %v9048
      %v9157 = vadd.f32 %v8803, %v9051
      %v9158 = vadd.f32 %v8804, %v9056
      %v9159 = vadd.f32 %v8805, %v9059
      %v9160 = vadd.f32 %v8806, %v9064
      %v9161 = vadd.f32 %v8807, %v9067
      %v9162 = vadd.f32 %v8808, %v9072
      %v9163 = vadd.f32 %v8809, %v9075
      %v9164 = vadd.f32 %v8810, %v9080
      %v9165 = vadd.f32 %v8811, %v9083
      %v9166 = vadd.f32 %v8812, %v9088
      %v9167 = vadd.f32 %v8813, %v9091
      %v9168 = vadd.f32 %v8814, %v9096
      %v9169 = vadd.f32 %v8815, %v9099
      %v9170 = vadd.f32 %v8816, %v9104
      %v9171 = vadd.f32 %v8817, %v9107
      %v9172 = vadd.f32 %v8818, %v9112
      %v9173 = vadd.f32 %v8819, %v9115
      %v9174 = vadd.f32 %v8820, %v9120
      %v9175 = vadd.f32 %v8821, %v9123
      %v9176 = vadd.f32 %v8822, %v9128
      %v9177 = vadd.f32 %v8823, %v9131
      %v9178 = vadd.f32 %v8824, %v9136
      %v9179 = vadd.f32 %v8825, %v9139
      %v9180 = vadd.f32 %v8826, %v9144
      %v9181 = vadd.f32 %v8827, %v9147
      %v9182 = vld [vmem:[%s6308 + $0x8] sm:$0xf]
      %v9183 = vld [vmem:[%s6308 + $0xc] sm:$0xf]
      %v9184 = vld [vmem:[%s6308 + $0x10] sm:$0x1]
      %v9185 = vld [vmem:[%s6308 + $0x1c] sm:$0xf]
      %v9186 = vld [vmem:[%s6308 + $0x20] sm:$0xf]
      %v9187 = vld [vmem:[%s6308 + $0x24] sm:$0x1]
      %v9188 = vld [vmem:[%s6308 + $0x30] sm:$0xf]
      %v9189 = vld [vmem:[%s6308 + $0x34] sm:$0xf]
      %v9190 = vld [vmem:[%s6308 + $0x38] sm:$0x1]
      %v9191 = vld [vmem:[%s6308 + $0x44] sm:$0xf]
      %v9192 = vld [vmem:[%s6308 + $0x48] sm:$0xf]
      %v9193 = vld [vmem:[%s6308 + $0x4c] sm:$0x1]
      %v9194 = vld [vmem:[%s6308 + $0x58] sm:$0xf]
      %v9195 = vld [vmem:[%s6308 + $0x5c] sm:$0xf]
      %v9196 = vld [vmem:[%s6308 + $0x60] sm:$0x1]
      %v9197 = vld [vmem:[%s6308 + $0x6c] sm:$0xf]
      %v9198 = vld [vmem:[%s6308 + $0x70] sm:$0xf]
      %v9199 = vld [vmem:[%s6308 + $0x74] sm:$0x1]
      %v9200 = vld [vmem:[%s6308 + $0x80] sm:$0xf]
      %v9201 = vld [vmem:[%s6308 + $0x84] sm:$0xf]
      %v9202 = vld [vmem:[%s6308 + $0x88] sm:$0x1]
      %v9203 = vld [vmem:[%s6308 + $0x94] sm:$0xf]
      %v9204 = vld [vmem:[%s6308 + $0x98] sm:$0xf]
      %v9205 = vld [vmem:[%s6308 + $0x9c] sm:$0x1]
      %v9206 = vld [vmem:[%s6308 + $0xa8] sm:$0xf]
      %v9207 = vld [vmem:[%s6308 + $0xac] sm:$0xf]
      %v9208 = vld [vmem:[%s6308 + $0xb0] sm:$0x1]
      %v9209 = vld [vmem:[%s6308 + $0xbc] sm:$0xf]
      %v9210 = vld [vmem:[%s6308 + $0xc0] sm:$0xf]
      %v9211 = vld [vmem:[%s6308 + $0xc4] sm:$0x1]
      %v9212 = vld [vmem:[%s6308 + $0xd0] sm:$0xf]
      %v9213 = vld [vmem:[%s6308 + $0xd4] sm:$0xf]
      %v9214 = vld [vmem:[%s6308 + $0xd8] sm:$0x1]
      %v9215 = vld [vmem:[%s6308 + $0xe4] sm:$0xf]
      %v9216 = vld [vmem:[%s6308 + $0xe8] sm:$0xf]
      %v9217 = vld [vmem:[%s6308 + $0xec] sm:$0x1]
      %v9218 = vld [vmem:[%s6308 + $0xf8] sm:$0xf]
      %v9219 = vld [vmem:[%s6308 + $0xfc] sm:$0xf]
      %v9220 = vld [vmem:[%s6308 + $0x100] sm:$0x1]
      %v9221 = vld [vmem:[%s6308 + $0x10c] sm:$0xf]
      %v9222 = vld [vmem:[%s6308 + $0x110] sm:$0xf]
      %v9223 = vld [vmem:[%s6308 + $0x114] sm:$0x1]
      %v9224 = vld [vmem:[%s6308 + $0x120] sm:$0xf]
      %v9225 = vld [vmem:[%s6308 + $0x124] sm:$0xf]
      %v9226 = vld [vmem:[%s6308 + $0x128] sm:$0x1]
      %v9227 = vld [vmem:[%s6308 + $0x134] sm:$0xf]
      %v9228 = vld [vmem:[%s6308 + $0x138] sm:$0xf]
      %v9229 = vld [vmem:[%s6308 + $0x13c] sm:$0x1]
      %v9231 = vshrl.u32 %v9182, 16
      %v9233 = vrot.slane %v9231, 4
      %v9234 = vshll.u32 %v9182, 16
      %v9236 = vrot.slane %v9234, 5
      %v9237 = vor.u32 %v9233, %v9236
      %v9238 = vrot.slane %v9237, 4
      %v9240 = vshll.u32 %v9183, 16
      %v9242 = vrot.slane %v9240, 5
      %v9243 = vsel %vm1613, %v9238, %v9242
      %v9244 = vshrl.u32 %v9183, 16
      %v9246 = vrot.slane %v9244, 4
      %v9247 = vor.u32 %v9246, %v9242
      %v9248 = vrot.slane %v9247, 4
      %v9250 = vshll.u32 %v9184, 16
      %v9252 = vrot.slane %v9250, 5
      %v9253 = vsel %vm1613, %v9248, %v9252
      %v9255 = vshrl.u32 %v9185, 16
      %v9257 = vrot.slane %v9255, 4
      %v9258 = vshll.u32 %v9185, 16
      %v9260 = vrot.slane %v9258, 5
      %v9261 = vor.u32 %v9257, %v9260
      %v9262 = vrot.slane %v9261, 4
      %v9264 = vshll.u32 %v9186, 16
      %v9266 = vrot.slane %v9264, 5
      %v9267 = vsel %vm1613, %v9262, %v9266
      %v9268 = vshrl.u32 %v9186, 16
      %v9270 = vrot.slane %v9268, 4
      %v9271 = vor.u32 %v9270, %v9266
      %v9272 = vrot.slane %v9271, 4
      %v9274 = vshll.u32 %v9187, 16
      %v9276 = vrot.slane %v9274, 5
      %v9277 = vsel %vm1613, %v9272, %v9276
      %v9279 = vshrl.u32 %v9188, 16
      %v9281 = vrot.slane %v9279, 4
      %v9282 = vshll.u32 %v9188, 16
      %v9284 = vrot.slane %v9282, 5
      %v9285 = vor.u32 %v9281, %v9284
      %v9286 = vrot.slane %v9285, 4
      %v9288 = vshll.u32 %v9189, 16
      %v9290 = vrot.slane %v9288, 5
      %v9291 = vsel %vm1613, %v9286, %v9290
      %v9292 = vshrl.u32 %v9189, 16
      %v9294 = vrot.slane %v9292, 4
      %v9295 = vor.u32 %v9294, %v9290
      %v9296 = vrot.slane %v9295, 4
      %v9298 = vshll.u32 %v9190, 16
      %v9300 = vrot.slane %v9298, 5
      %v9301 = vsel %vm1613, %v9296, %v9300
      %v9303 = vshrl.u32 %v9191, 16
      %v9305 = vrot.slane %v9303, 4
      %v9306 = vshll.u32 %v9191, 16
      %v9308 = vrot.slane %v9306, 5
      %v9309 = vor.u32 %v9305, %v9308
      %v9310 = vrot.slane %v9309, 4
      %v9312 = vshll.u32 %v9192, 16
      %v9314 = vrot.slane %v9312, 5
      %v9315 = vsel %vm1613, %v9310, %v9314
      %v9316 = vshrl.u32 %v9192, 16
      %v9318 = vrot.slane %v9316, 4
      %v9319 = vor.u32 %v9318, %v9314
      %v9320 = vrot.slane %v9319, 4
      %v9322 = vshll.u32 %v9193, 16
      %v9324 = vrot.slane %v9322, 5
      %v9325 = vsel %vm1613, %v9320, %v9324
      %v9327 = vshrl.u32 %v9194, 16
      %v9329 = vrot.slane %v9327, 4
      %v9330 = vshll.u32 %v9194, 16
      %v9332 = vrot.slane %v9330, 5
      %v9333 = vor.u32 %v9329, %v9332
      %v9334 = vrot.slane %v9333, 4
      %v9336 = vshll.u32 %v9195, 16
      %v9338 = vrot.slane %v9336, 5
      %v9339 = vsel %vm1613, %v9334, %v9338
      %v9340 = vshrl.u32 %v9195, 16
      %v9342 = vrot.slane %v9340, 4
      %v9343 = vor.u32 %v9342, %v9338
      %v9344 = vrot.slane %v9343, 4
      %v9346 = vshll.u32 %v9196, 16
      %v9348 = vrot.slane %v9346, 5
      %v9349 = vsel %vm1613, %v9344, %v9348
      %v9351 = vshrl.u32 %v9197, 16
      %v9353 = vrot.slane %v9351, 4
      %v9354 = vshll.u32 %v9197, 16
      %v9356 = vrot.slane %v9354, 5
      %v9357 = vor.u32 %v9353, %v9356
      %v9358 = vrot.slane %v9357, 4
      %v9360 = vshll.u32 %v9198, 16
      %v9362 = vrot.slane %v9360, 5
      %v9363 = vsel %vm1613, %v9358, %v9362
      %v9364 = vshrl.u32 %v9198, 16
      %v9366 = vrot.slane %v9364, 4
      %v9367 = vor.u32 %v9366, %v9362
      %v9368 = vrot.slane %v9367, 4
      %v9370 = vshll.u32 %v9199, 16
      %v9372 = vrot.slane %v9370, 5
      %v9373 = vsel %vm1613, %v9368, %v9372
      %v9375 = vshrl.u32 %v9200, 16
      %v9377 = vrot.slane %v9375, 4
      %v9378 = vshll.u32 %v9200, 16
      %v9380 = vrot.slane %v9378, 5
      %v9381 = vor.u32 %v9377, %v9380
      %v9382 = vrot.slane %v9381, 4
      %v9384 = vshll.u32 %v9201, 16
      %v9386 = vrot.slane %v9384, 5
      %v9387 = vsel %vm1613, %v9382, %v9386
      %v9388 = vshrl.u32 %v9201, 16
      %v9390 = vrot.slane %v9388, 4
      %v9391 = vor.u32 %v9390, %v9386
      %v9392 = vrot.slane %v9391, 4
      %v9394 = vshll.u32 %v9202, 16
      %v9396 = vrot.slane %v9394, 5
      %v9397 = vsel %vm1613, %v9392, %v9396
      %v9399 = vshrl.u32 %v9203, 16
      %v9401 = vrot.slane %v9399, 4
      %v9402 = vshll.u32 %v9203, 16
      %v9404 = vrot.slane %v9402, 5
      %v9405 = vor.u32 %v9401, %v9404
      %v9406 = vrot.slane %v9405, 4
      %v9408 = vshll.u32 %v9204, 16
      %v9410 = vrot.slane %v9408, 5
      %v9411 = vsel %vm1613, %v9406, %v9410
      %v9412 = vshrl.u32 %v9204, 16
      %v9414 = vrot.slane %v9412, 4
      %v9415 = vor.u32 %v9414, %v9410
      %v9416 = vrot.slane %v9415, 4
      %v9418 = vshll.u32 %v9205, 16
      %v9420 = vrot.slane %v9418, 5
      %v9421 = vsel %vm1613, %v9416, %v9420
      %v9423 = vshrl.u32 %v9206, 16
      %v9425 = vrot.slane %v9423, 4
      %v9426 = vshll.u32 %v9206, 16
      %v9428 = vrot.slane %v9426, 5
      %v9429 = vor.u32 %v9425, %v9428
      %v9430 = vrot.slane %v9429, 4
      %v9432 = vshll.u32 %v9207, 16
      %v9434 = vrot.slane %v9432, 5
      %v9435 = vsel %vm1613, %v9430, %v9434
      %v9436 = vshrl.u32 %v9207, 16
      %v9438 = vrot.slane %v9436, 4
      %v9439 = vor.u32 %v9438, %v9434
      %v9440 = vrot.slane %v9439, 4
      %v9442 = vshll.u32 %v9208, 16
      %v9444 = vrot.slane %v9442, 5
      %v9445 = vsel %vm1613, %v9440, %v9444
      %v9447 = vshrl.u32 %v9209, 16
      %v9449 = vrot.slane %v9447, 4
      %v9450 = vshll.u32 %v9209, 16
      %v9452 = vrot.slane %v9450, 5
      %v9453 = vor.u32 %v9449, %v9452
      %v9454 = vrot.slane %v9453, 4
      %v9456 = vshll.u32 %v9210, 16
      %v9458 = vrot.slane %v9456, 5
      %v9459 = vsel %vm1613, %v9454, %v9458
      %v9460 = vshrl.u32 %v9210, 16
      %v9462 = vrot.slane %v9460, 4
      %v9463 = vor.u32 %v9462, %v9458
      %v9464 = vrot.slane %v9463, 4
      %v9466 = vshll.u32 %v9211, 16
      %v9468 = vrot.slane %v9466, 5
      %v9469 = vsel %vm1613, %v9464, %v9468
      %v9471 = vshrl.u32 %v9212, 16
      %v9473 = vrot.slane %v9471, 4
      %v9474 = vshll.u32 %v9212, 16
      %v9476 = vrot.slane %v9474, 5
      %v9477 = vor.u32 %v9473, %v9476
      %v9478 = vrot.slane %v9477, 4
      %v9480 = vshll.u32 %v9213, 16
      %v9482 = vrot.slane %v9480, 5
      %v9483 = vsel %vm1613, %v9478, %v9482
      %v9484 = vshrl.u32 %v9213, 16
      %v9486 = vrot.slane %v9484, 4
      %v9487 = vor.u32 %v9486, %v9482
      %v9488 = vrot.slane %v9487, 4
      %v9490 = vshll.u32 %v9214, 16
      %v9492 = vrot.slane %v9490, 5
      %v9493 = vsel %vm1613, %v9488, %v9492
      %v9495 = vshrl.u32 %v9215, 16
      %v9497 = vrot.slane %v9495, 4
      %v9498 = vshll.u32 %v9215, 16
      %v9500 = vrot.slane %v9498, 5
      %v9501 = vor.u32 %v9497, %v9500
      %v9502 = vrot.slane %v9501, 4
      %v9504 = vshll.u32 %v9216, 16
      %v9506 = vrot.slane %v9504, 5
      %v9507 = vsel %vm1613, %v9502, %v9506
      %v9508 = vshrl.u32 %v9216, 16
      %v9510 = vrot.slane %v9508, 4
      %v9511 = vor.u32 %v9510, %v9506
      %v9512 = vrot.slane %v9511, 4
      %v9514 = vshll.u32 %v9217, 16
      %v9516 = vrot.slane %v9514, 5
      %v9517 = vsel %vm1613, %v9512, %v9516
      %v9519 = vshrl.u32 %v9218, 16
      %v9521 = vrot.slane %v9519, 4
      %v9522 = vshll.u32 %v9218, 16
      %v9524 = vrot.slane %v9522, 5
      %v9525 = vor.u32 %v9521, %v9524
      %v9526 = vrot.slane %v9525, 4
      %v9528 = vshll.u32 %v9219, 16
      %v9530 = vrot.slane %v9528, 5
      %v9531 = vsel %vm1613, %v9526, %v9530
      %v9532 = vshrl.u32 %v9219, 16
      %v9534 = vrot.slane %v9532, 4
      %v9535 = vor.u32 %v9534, %v9530
      %v9536 = vrot.slane %v9535, 4
      %v9538 = vshll.u32 %v9220, 16
      %v9540 = vrot.slane %v9538, 5
      %v9541 = vsel %vm1613, %v9536, %v9540
      %v9543 = vshrl.u32 %v9221, 16
      %v9545 = vrot.slane %v9543, 4
      %v9546 = vshll.u32 %v9221, 16
      %v9548 = vrot.slane %v9546, 5
      %v9549 = vor.u32 %v9545, %v9548
      %v9550 = vrot.slane %v9549, 4
      %v9552 = vshll.u32 %v9222, 16
      %v9554 = vrot.slane %v9552, 5
      %v9555 = vsel %vm1613, %v9550, %v9554
      %v9556 = vshrl.u32 %v9222, 16
      %v9558 = vrot.slane %v9556, 4
      %v9559 = vor.u32 %v9558, %v9554
      %v9560 = vrot.slane %v9559, 4
      %v9562 = vshll.u32 %v9223, 16
      %v9564 = vrot.slane %v9562, 5
      %v9565 = vsel %vm1613, %v9560, %v9564
      %v9567 = vshrl.u32 %v9224, 16
      %v9569 = vrot.slane %v9567, 4
      %v9570 = vshll.u32 %v9224, 16
      %v9572 = vrot.slane %v9570, 5
      %v9573 = vor.u32 %v9569, %v9572
      %v9574 = vrot.slane %v9573, 4
      %v9576 = vshll.u32 %v9225, 16
      %v9578 = vrot.slane %v9576, 5
      %v9579 = vsel %vm1613, %v9574, %v9578
      %v9580 = vshrl.u32 %v9225, 16
      %v9582 = vrot.slane %v9580, 4
      %v9583 = vor.u32 %v9582, %v9578
      %v9584 = vrot.slane %v9583, 4
      %v9586 = vshll.u32 %v9226, 16
      %v9588 = vrot.slane %v9586, 5
      %v9589 = vsel %vm1613, %v9584, %v9588
      %v9591 = vshrl.u32 %v9227, 16
      %v9593 = vrot.slane %v9591, 4
      %v9594 = vshll.u32 %v9227, 16
      %v9596 = vrot.slane %v9594, 5
      %v9597 = vor.u32 %v9593, %v9596
      %v9598 = vrot.slane %v9597, 4
      %v9600 = vshll.u32 %v9228, 16
      %v9602 = vrot.slane %v9600, 5
      %v9603 = vsel %vm1613, %v9598, %v9602
      %v9604 = vshrl.u32 %v9228, 16
      %v9606 = vrot.slane %v9604, 4
      %v9607 = vor.u32 %v9606, %v9602
      %v9608 = vrot.slane %v9607, 4
      %v9610 = vshll.u32 %v9229, 16
      %v9612 = vrot.slane %v9610, 5
      %v9613 = vsel %vm1613, %v9608, %v9612
      %s9614 = scalar_lea.vmem %s3, 320
      %v9615 = vld [vmem:[%s9614] sm:$0xf]
      %v9616 = vld [vmem:[%s9614 + $0x4] sm:$0xf]
      %v9617 = vld [vmem:[%s9614 + $0x8] sm:$0xf]
      %v9618 = vld [vmem:[%s9614 + $0xc] sm:$0xf]
      %v9619 = vld [vmem:[%s9614 + $0x10] sm:$0xf]
      %v9620 = vld [vmem:[%s9614 + $0x14] sm:$0xf]
      %v9621 = vld [vmem:[%s9614 + $0x18] sm:$0xf]
      %v9622 = vld [vmem:[%s9614 + $0x1c] sm:$0xf]
      %v9623 = vld [vmem:[%s9614 + $0x20] sm:$0xf]
      %v9624 = vld [vmem:[%s9614 + $0x24] sm:$0xf]
      %v9625 = vld [vmem:[%s9614 + $0x28] sm:$0xf]
      %v9626 = vld [vmem:[%s9614 + $0x2c] sm:$0xf]
      %v9627 = vld [vmem:[%s9614 + $0x30] sm:$0xf]
      %v9628 = vld [vmem:[%s9614 + $0x34] sm:$0xf]
      %v9629 = vld [vmem:[%s9614 + $0x38] sm:$0xf]
      %v9630 = vld [vmem:[%s9614 + $0x3c] sm:$0xf]
      %v9631 = vunpack.c.l.b16 %v9243
      %v9632 = vunpack.c.l.b16 %v9253
      %v9633 = vunpack.c.l.b16 %v9267
      %v9634 = vunpack.c.l.b16 %v9277
      %v9635 = vunpack.c.l.b16 %v9291
      %v9636 = vunpack.c.l.b16 %v9301
      %v9637 = vunpack.c.l.b16 %v9315
      %v9638 = vunpack.c.l.b16 %v9325
      %v9639 = vunpack.c.l.b16 %v9339
      %v9640 = vunpack.c.l.b16 %v9349
      %v9641 = vunpack.c.l.b16 %v9363
      %v9642 = vunpack.c.l.b16 %v9373
      %v9643 = vunpack.c.l.b16 %v9387
      %v9644 = vunpack.c.l.b16 %v9397
      %v9645 = vunpack.c.l.b16 %v9411
      %v9646 = vunpack.c.l.b16 %v9421
      %v9647 = vunpack.c.l.b16 %v9435
      %v9648 = vunpack.c.l.b16 %v9445
      %v9649 = vunpack.c.l.b16 %v9459
      %v9650 = vunpack.c.l.b16 %v9469
      %v9651 = vunpack.c.l.b16 %v9483
      %v9652 = vunpack.c.l.b16 %v9493
      %v9653 = vunpack.c.l.b16 %v9507
      %v9654 = vunpack.c.l.b16 %v9517
      %v9655 = vunpack.c.l.b16 %v9531
      %v9656 = vunpack.c.l.b16 %v9541
      %v9657 = vunpack.c.l.b16 %v9555
      %v9658 = vunpack.c.l.b16 %v9565
      %v9659 = vunpack.c.l.b16 %v9579
      %v9660 = vunpack.c.l.b16 %v9589
      %v9661 = vunpack.c.l.b16 %v9603
      %v9662 = vunpack.c.l.b16 %v9613
      %v9663 = vpack.c.b16 %v9632, %v9631
      %v9664 = vpack.c.b16 %v9634, %v9633
      %v9665 = vpack.c.b16 %v9636, %v9635
      %v9666 = vpack.c.b16 %v9638, %v9637
      %v9667 = vpack.c.b16 %v9640, %v9639
      %v9668 = vpack.c.b16 %v9642, %v9641
      %v9669 = vpack.c.b16 %v9644, %v9643
      %v9670 = vpack.c.b16 %v9646, %v9645
      %v9671 = vpack.c.b16 %v9648, %v9647
      %v9672 = vpack.c.b16 %v9650, %v9649
      %v9673 = vpack.c.b16 %v9652, %v9651
      %v9674 = vpack.c.b16 %v9654, %v9653
      %v9675 = vpack.c.b16 %v9656, %v9655
      %v9676 = vpack.c.b16 %v9658, %v9657
      %v9677 = vpack.c.b16 %v9660, %v9659
      %v9678 = vpack.c.b16 %v9662, %v9661
      %v9711 = vunpack.c.l.b16 %v9615
      %v9712 = vunpack.c.l.b16 %v9616
      %v9713 = vunpack.c.l.b16 %v9617
      %v9714 = vunpack.c.l.b16 %v9618
      %v9715 = vunpack.c.l.b16 %v9619
      %v9716 = vunpack.c.l.b16 %v9620
      %v9717 = vunpack.c.l.b16 %v9621
      %v9718 = vunpack.c.l.b16 %v9622
      %v9719 = vunpack.c.l.b16 %v9623
      %v9720 = vunpack.c.l.b16 %v9624
      %v9721 = vunpack.c.l.b16 %v9625
      %v9722 = vunpack.c.l.b16 %v9626
      %v9723 = vunpack.c.l.b16 %v9627
      %v9724 = vunpack.c.l.b16 %v9628
      %v9725 = vunpack.c.l.b16 %v9629
      %v9726 = vunpack.c.l.b16 %v9630
      %v9727 = vpack.c.b16 %v9712, %v9711
      %v9728 = vpack.c.b16 %v9714, %v9713
      %v9729 = vpack.c.b16 %v9716, %v9715
      %v9730 = vpack.c.b16 %v9718, %v9717
      %v9731 = vpack.c.b16 %v9720, %v9719
      %v9732 = vpack.c.b16 %v9722, %v9721
      %v9733 = vpack.c.b16 %v9724, %v9723
      %v9734 = vpack.c.b16 %v9726, %v9725
      %9743 = vmatprep.subr.bf16.mxu0 0
      %9744 = vmatpush1.bf16.msra.mxu0 %v9727
      %9745 = vmatprep.subr.bf16.mxu0 0
      %9746 = vmatpush1.bf16.msra.mxu0 %v9728
      %9747 = vmatprep.subr.bf16.mxu0 0
      %9748 = vmatpush1.bf16.msra.mxu0 %v9729
      %9749 = vmatprep.subr.bf16.mxu0 0
      %9750 = vmatpush1.bf16.msra.mxu0 %v9730
      %9751 = vmatprep.subr.bf16.mxu0 0
      %9752 = vmatpush1.bf16.msra.mxu0 %v9731
      %9753 = vmatprep.subr.bf16.mxu0 0
      %9754 = vmatpush1.bf16.msra.mxu0 %v9732
      %9755 = vmatprep.subr.bf16.mxu0 0
      %9756 = vmatpush1.bf16.msra.mxu0 %v9733
      %9757 = vmatprep.subr.bf16.mxu0 0
      %9758 = vmatpush1.bf16.msra.mxu0 %v9734
      %9759 = vmatprep.subr.bf16.mxu0 0
      %9760 = vmatpush1.bf16.msra.mxu0 0
      %9761 = vmatprep.subr.bf16.mxu0 0
      %9762 = vmatpush1.bf16.msra.mxu0 0
      %9763 = vmatprep.subr.bf16.mxu0 0
      %9764 = vmatpush1.bf16.msra.mxu0 0
      %9765 = vmatprep.subr.bf16.mxu0 0
      %9766 = vmatpush1.bf16.msra.mxu0 0
      %9767 = vmatprep.subr.bf16.mxu0 0
      %9768 = vmatpush1.bf16.msra.mxu0 0
      %9769 = vmatprep.subr.bf16.mxu0 0
      %9770 = vmatpush1.bf16.msra.mxu0 0
      %9771 = vmatprep.subr.bf16.mxu0 0
      %9772 = vmatpush1.bf16.msra.mxu0 0
      %9773 = vmatprep.subr.bf16.mxu0 0
      %9774 = vmatpush1.bf16.msra.mxu0 0
      %9775 = vmatprep.mubr.bf16.mxu0 0
      %9776 = vmatmul.mubr.bf16.gmra.mrb[0].mxu0 %v9663
      %v9777 = vpop.f32.mrb[0].mxu0
      %v9778 = vadd.f32 0.0, %v9777
      %v9779 = vpop.f32.mrb[0].mxu0
      %v9780 = vpop.f32.mrb[0].mxu0
      %v9781 = vadd.f32 0.0, %v9780
      %v9782 = vpop.f32.mrb[0].mxu0
      %9783 = vmatprep.mubr.bf16.mxu0 0
      %9784 = vmatmul.mubr.bf16.gmra.mrb[0].mxu0 %v9664
      %v9785 = vpop.f32.mrb[0].mxu0
      %v9786 = vadd.f32 0.0, %v9785
      %v9787 = vpop.f32.mrb[0].mxu0
      %v9788 = vpop.f32.mrb[0].mxu0
      %v9789 = vadd.f32 0.0, %v9788
      %v9790 = vpop.f32.mrb[0].mxu0
      %9791 = vmatprep.mubr.bf16.mxu0 0
      %9792 = vmatmul.mubr.bf16.gmra.mrb[0].mxu0 %v9665
      %v9793 = vpop.f32.mrb[0].mxu0
      %v9794 = vadd.f32 0.0, %v9793
      %v9795 = vpop.f32.mrb[0].mxu0
      %v9796 = vpop.f32.mrb[0].mxu0
      %v9797 = vadd.f32 0.0, %v9796
      %v9798 = vpop.f32.mrb[0].mxu0
      %9799 = vmatprep.mubr.bf16.mxu0 0
      %9800 = vmatmul.mubr.bf16.gmra.mrb[0].mxu0 %v9666
      %v9801 = vpop.f32.mrb[0].mxu0
      %v9802 = vadd.f32 0.0, %v9801
      %v9803 = vpop.f32.mrb[0].mxu0
      %v9804 = vpop.f32.mrb[0].mxu0
      %v9805 = vadd.f32 0.0, %v9804
      %v9806 = vpop.f32.mrb[0].mxu0
      %9807 = vmatprep.mubr.bf16.mxu0 0
      %9808 = vmatmul.mubr.bf16.gmra.mrb[0].mxu0 %v9667
      %v9809 = vpop.f32.mrb[0].mxu0
      %v9810 = vadd.f32 0.0, %v9809
      %v9811 = vpop.f32.mrb[0].mxu0
      %v9812 = vpop.f32.mrb[0].mxu0
      %v9813 = vadd.f32 0.0, %v9812
      %v9814 = vpop.f32.mrb[0].mxu0
      %9815 = vmatprep.mubr.bf16.mxu0 0
      %9816 = vmatmul.mubr.bf16.gmra.mrb[0].mxu0 %v9668
      %v9817 = vpop.f32.mrb[0].mxu0
      %v9818 = vadd.f32 0.0, %v9817
      %v9819 = vpop.f32.mrb[0].mxu0
      %v9820 = vpop.f32.mrb[0].mxu0
      %v9821 = vadd.f32 0.0, %v9820
      %v9822 = vpop.f32.mrb[0].mxu0
      %9823 = vmatprep.mubr.bf16.mxu0 0
      %9824 = vmatmul.mubr.bf16.gmra.mrb[0].mxu0 %v9669
      %v9825 = vpop.f32.mrb[0].mxu0
      %v9826 = vadd.f32 0.0, %v9825
      %v9827 = vpop.f32.mrb[0].mxu0
      %v9828 = vpop.f32.mrb[0].mxu0
      %v9829 = vadd.f32 0.0, %v9828
      %v9830 = vpop.f32.mrb[0].mxu0
      %9831 = vmatprep.mubr.bf16.mxu0 0
      %9832 = vmatmul.mubr.bf16.gmra.mrb[0].mxu0 %v9670
      %v9833 = vpop.f32.mrb[0].mxu0
      %v9834 = vadd.f32 0.0, %v9833
      %v9835 = vpop.f32.mrb[0].mxu0
      %v9836 = vpop.f32.mrb[0].mxu0
      %v9837 = vadd.f32 0.0, %v9836
      %v9838 = vpop.f32.mrb[0].mxu0
      %9839 = vmatprep.mubr.bf16.mxu0 0
      %9840 = vmatmul.mubr.bf16.gmra.mrb[0].mxu0 %v9671
      %v9841 = vpop.f32.mrb[0].mxu0
      %v9842 = vadd.f32 0.0, %v9841
      %v9843 = vpop.f32.mrb[0].mxu0
      %v9844 = vpop.f32.mrb[0].mxu0
      %v9845 = vadd.f32 0.0, %v9844
      %v9846 = vpop.f32.mrb[0].mxu0
      %9847 = vmatprep.mubr.bf16.mxu0 0
      %9848 = vmatmul.mubr.bf16.gmra.mrb[0].mxu0 %v9672
      %v9849 = vpop.f32.mrb[0].mxu0
      %v9850 = vadd.f32 0.0, %v9849
      %v9851 = vpop.f32.mrb[0].mxu0
      %v9852 = vpop.f32.mrb[0].mxu0
      %v9853 = vadd.f32 0.0, %v9852
      %v9854 = vpop.f32.mrb[0].mxu0
      %9855 = vmatprep.mubr.bf16.mxu0 0
      %9856 = vmatmul.mubr.bf16.gmra.mrb[0].mxu0 %v9673
      %v9857 = vpop.f32.mrb[0].mxu0
      %v9858 = vadd.f32 0.0, %v9857
      %v9859 = vpop.f32.mrb[0].mxu0
      %v9860 = vpop.f32.mrb[0].mxu0
      %v9861 = vadd.f32 0.0, %v9860
      %v9862 = vpop.f32.mrb[0].mxu0
      %9863 = vmatprep.mubr.bf16.mxu0 0
      %9864 = vmatmul.mubr.bf16.gmra.mrb[0].mxu0 %v9674
      %v9865 = vpop.f32.mrb[0].mxu0
      %v9866 = vadd.f32 0.0, %v9865
      %v9867 = vpop.f32.mrb[0].mxu0
      %v9868 = vpop.f32.mrb[0].mxu0
      %v9869 = vadd.f32 0.0, %v9868
      %v9870 = vpop.f32.mrb[0].mxu0
      %9871 = vmatprep.mubr.bf16.mxu0 0
      %9872 = vmatmul.mubr.bf16.gmra.mrb[0].mxu0 %v9675
      %v9873 = vpop.f32.mrb[0].mxu0
      %v9874 = vadd.f32 0.0, %v9873
      %v9875 = vpop.f32.mrb[0].mxu0
      %v9876 = vpop.f32.mrb[0].mxu0
      %v9877 = vadd.f32 0.0, %v9876
      %v9878 = vpop.f32.mrb[0].mxu0
      %9879 = vmatprep.mubr.bf16.mxu0 0
      %9880 = vmatmul.mubr.bf16.gmra.mrb[0].mxu0 %v9676
      %v9881 = vpop.f32.mrb[0].mxu0
      %v9882 = vadd.f32 0.0, %v9881
      %v9883 = vpop.f32.mrb[0].mxu0
      %v9884 = vpop.f32.mrb[0].mxu0
      %v9885 = vadd.f32 0.0, %v9884
      %v9886 = vpop.f32.mrb[0].mxu0
      %9887 = vmatprep.mubr.bf16.mxu0 0
      %9888 = vmatmul.mubr.bf16.gmra.mrb[0].mxu0 %v9677
      %v9889 = vpop.f32.mrb[0].mxu0
      %v9890 = vadd.f32 0.0, %v9889
      %v9891 = vpop.f32.mrb[0].mxu0
      %v9892 = vpop.f32.mrb[0].mxu0
      %v9893 = vadd.f32 0.0, %v9892
      %v9894 = vpop.f32.mrb[0].mxu0
      %9895 = vmatprep.mubr.bf16.mxu0 0
      %9896 = vmatmul.mubr.bf16.gmra.mrb[0].mxu0 %v9678
      %v9897 = vpop.f32.mrb[0].mxu0
      %v9898 = vadd.f32 0.0, %v9897
      %v9899 = vpop.f32.mrb[0].mxu0
      %v9900 = vpop.f32.mrb[0].mxu0
      %v9901 = vadd.f32 0.0, %v9900
      %v9902 = vpop.f32.mrb[0].mxu0
      %9903 = vdwg.mxu0
      %v9904 = vadd.f32 %v9150, %v9778
      %v9905 = vadd.f32 %v9151, %v9781
      %v9906 = vadd.f32 %v9152, %v9786
      %v9907 = vadd.f32 %v9153, %v9789
      %v9908 = vadd.f32 %v9154, %v9794
      %v9909 = vadd.f32 %v9155, %v9797
      %v9910 = vadd.f32 %v9156, %v9802
      %v9911 = vadd.f32 %v9157, %v9805
      %v9912 = vadd.f32 %v9158, %v9810
      %v9913 = vadd.f32 %v9159, %v9813
      %v9914 = vadd.f32 %v9160, %v9818
      %v9915 = vadd.f32 %v9161, %v9821
      %v9916 = vadd.f32 %v9162, %v9826
      %v9917 = vadd.f32 %v9163, %v9829
      %v9918 = vadd.f32 %v9164, %v9834
      %v9919 = vadd.f32 %v9165, %v9837
      %v9920 = vadd.f32 %v9166, %v9842
      %v9921 = vadd.f32 %v9167, %v9845
      %v9922 = vadd.f32 %v9168, %v9850
      %v9923 = vadd.f32 %v9169, %v9853
      %v9924 = vadd.f32 %v9170, %v9858
      %v9925 = vadd.f32 %v9171, %v9861
      %v9926 = vadd.f32 %v9172, %v9866
      %v9927 = vadd.f32 %v9173, %v9869
      %v9928 = vadd.f32 %v9174, %v9874
      %v9929 = vadd.f32 %v9175, %v9877
      %v9930 = vadd.f32 %v9176, %v9882
      %v9931 = vadd.f32 %v9177, %v9885
      %v9932 = vadd.f32 %v9178, %v9890
      %v9933 = vadd.f32 %v9179, %v9893
      %v9934 = vadd.f32 %v9180, %v9898
      %v9935 = vadd.f32 %v9181, %v9901
      %s9936 = scalar_lea.vmem [#allocation3], 40
      %v9937 = vld [vmem:[%s9936 + $0x4] sm:$0x8]
      %v9938 = vld [vmem:[%s9936 + $0x8] sm:$0xf]
      %v9939 = vld [vmem:[%s9936 + $0xc] sm:$0xf]
      %v9940 = vld [vmem:[%s9936 + $0x18] sm:$0x8]
      %v9941 = vld [vmem:[%s9936 + $0x1c] sm:$0xf]
      %v9942 = vld [vmem:[%s9936 + $0x20] sm:$0xf]
      %v9943 = vld [vmem:[%s9936 + $0x2c] sm:$0x8]
      %v9944 = vld [vmem:[%s9936 + $0x30] sm:$0xf]
      %v9945 = vld [vmem:[%s9936 + $0x34] sm:$0xf]
      %v9946 = vld [vmem:[%s9936 + $0x40] sm:$0x8]
      %v9947 = vld [vmem:[%s9936 + $0x44] sm:$0xf]
      %v9948 = vld [vmem:[%s9936 + $0x48] sm:$0xf]
      %v9949 = vld [vmem:[%s9936 + $0x54] sm:$0x8]
      %v9950 = vld [vmem:[%s9936 + $0x58] sm:$0xf]
      %v9951 = vld [vmem:[%s9936 + $0x5c] sm:$0xf]
      %v9952 = vld [vmem:[%s9936 + $0x68] sm:$0x8]
      %v9953 = vld [vmem:[%s9936 + $0x6c] sm:$0xf]
      %v9954 = vld [vmem:[%s9936 + $0x70] sm:$0xf]
      %v9955 = vld [vmem:[%s9936 + $0x7c] sm:$0x8]
      %v9956 = vld [vmem:[%s9936 + $0x80] sm:$0xf]
      %v9957 = vld [vmem:[%s9936 + $0x84] sm:$0xf]
      %v9958 = vld [vmem:[%s9936 + $0x90] sm:$0x8]
      %v9959 = vld [vmem:[%s9936 + $0x94] sm:$0xf]
      %v9960 = vld [vmem:[%s9936 + $0x98] sm:$0xf]
      %v9961 = vld [vmem:[%s9936 + $0xa4] sm:$0x8]
      %v9962 = vld [vmem:[%s9936 + $0xa8] sm:$0xf]
      %v9963 = vld [vmem:[%s9936 + $0xac] sm:$0xf]
      %v9964 = vld [vmem:[%s9936 + $0xb8] sm:$0x8]
      %v9965 = vld [vmem:[%s9936 + $0xbc] sm:$0xf]
      %v9966 = vld [vmem:[%s9936 + $0xc0] sm:$0xf]
      %v9967 = vld [vmem:[%s9936 + $0xcc] sm:$0x8]
      %v9968 = vld [vmem:[%s9936 + $0xd0] sm:$0xf]
      %v9969 = vld [vmem:[%s9936 + $0xd4] sm:$0xf]
      %v9970 = vld [vmem:[%s9936 + $0xe0] sm:$0x8]
      %v9971 = vld [vmem:[%s9936 + $0xe4] sm:$0xf]
      %v9972 = vld [vmem:[%s9936 + $0xe8] sm:$0xf]
      %v9973 = vld [vmem:[%s9936 + $0xf4] sm:$0x8]
      %v9974 = vld [vmem:[%s9936 + $0xf8] sm:$0xf]
      %v9975 = vld [vmem:[%s9936 + $0xfc] sm:$0xf]
      %v9976 = vld [vmem:[%s9936 + $0x108] sm:$0x8]
      %v9977 = vld [vmem:[%s9936 + $0x10c] sm:$0xf]
      %v9978 = vld [vmem:[%s9936 + $0x110] sm:$0xf]
      %v9979 = vld [vmem:[%s9936 + $0x11c] sm:$0x8]
      %v9980 = vld [vmem:[%s9936 + $0x120] sm:$0xf]
      %v9981 = vld [vmem:[%s9936 + $0x124] sm:$0xf]
      %v9982 = vld [vmem:[%s9936 + $0x130] sm:$0x8]
      %v9983 = vld [vmem:[%s9936 + $0x134] sm:$0xf]
      %v9984 = vld [vmem:[%s9936 + $0x138] sm:$0xf]
      %v9986 = vshrl.u32 %v9937, 16
      %v9988 = vrot.slane %v9986, 7
      %v9989 = vrot.slane %v9988, 4
      %v9991 = vshrl.u32 %v9938, 16
      %v9993 = vrot.slane %v9991, 7
      %v9994 = vshll.u32 %v9938, 16
      %v9996 = vor.u32 %v9993, %v9994
      %v9997 = vsel %vm598, %v9989, %v9996
      %v9998 = vrot.slane %v9993, 4
      %v10000 = vshrl.u32 %v9939, 16
      %v10002 = vrot.slane %v10000, 7
      %v10003 = vshll.u32 %v9939, 16
      %v10005 = vor.u32 %v10002, %v10003
      %v10006 = vsel %vm598, %v9998, %v10005
      %v10008 = vshrl.u32 %v9940, 16
      %v10010 = vrot.slane %v10008, 7
      %v10011 = vrot.slane %v10010, 4
      %v10013 = vshrl.u32 %v9941, 16
      %v10015 = vrot.slane %v10013, 7
      %v10016 = vshll.u32 %v9941, 16
      %v10018 = vor.u32 %v10015, %v10016
      %v10019 = vsel %vm598, %v10011, %v10018
      %v10020 = vrot.slane %v10015, 4
      %v10022 = vshrl.u32 %v9942, 16
      %v10024 = vrot.slane %v10022, 7
      %v10025 = vshll.u32 %v9942, 16
      %v10027 = vor.u32 %v10024, %v10025
      %v10028 = vsel %vm598, %v10020, %v10027
      %v10030 = vshrl.u32 %v9943, 16
      %v10032 = vrot.slane %v10030, 7
      %v10033 = vrot.slane %v10032, 4
      %v10035 = vshrl.u32 %v9944, 16
      %v10037 = vrot.slane %v10035, 7
      %v10038 = vshll.u32 %v9944, 16
      %v10040 = vor.u32 %v10037, %v10038
      %v10041 = vsel %vm598, %v10033, %v10040
      %v10042 = vrot.slane %v10037, 4
      %v10044 = vshrl.u32 %v9945, 16
      %v10046 = vrot.slane %v10044, 7
      %v10047 = vshll.u32 %v9945, 16
      %v10049 = vor.u32 %v10046, %v10047
      %v10050 = vsel %vm598, %v10042, %v10049
      %v10052 = vshrl.u32 %v9946, 16
      %v10054 = vrot.slane %v10052, 7
      %v10055 = vrot.slane %v10054, 4
      %v10057 = vshrl.u32 %v9947, 16
      %v10059 = vrot.slane %v10057, 7
      %v10060 = vshll.u32 %v9947, 16
      %v10062 = vor.u32 %v10059, %v10060
      %v10063 = vsel %vm598, %v10055, %v10062
      %v10064 = vrot.slane %v10059, 4
      %v10066 = vshrl.u32 %v9948, 16
      %v10068 = vrot.slane %v10066, 7
      %v10069 = vshll.u32 %v9948, 16
      %v10071 = vor.u32 %v10068, %v10069
      %v10072 = vsel %vm598, %v10064, %v10071
      %v10074 = vshrl.u32 %v9949, 16
      %v10076 = vrot.slane %v10074, 7
      %v10077 = vrot.slane %v10076, 4
      %v10079 = vshrl.u32 %v9950, 16
      %v10081 = vrot.slane %v10079, 7
      %v10082 = vshll.u32 %v9950, 16
      %v10084 = vor.u32 %v10081, %v10082
      %v10085 = vsel %vm598, %v10077, %v10084
      %v10086 = vrot.slane %v10081, 4
      %v10088 = vshrl.u32 %v9951, 16
      %v10090 = vrot.slane %v10088, 7
      %v10091 = vshll.u32 %v9951, 16
      %v10093 = vor.u32 %v10090, %v10091
      %v10094 = vsel %vm598, %v10086, %v10093
      %v10096 = vshrl.u32 %v9952, 16
      %v10098 = vrot.slane %v10096, 7
      %v10099 = vrot.slane %v10098, 4
      %v10101 = vshrl.u32 %v9953, 16
      %v10103 = vrot.slane %v10101, 7
      %v10104 = vshll.u32 %v9953, 16
      %v10106 = vor.u32 %v10103, %v10104
      %v10107 = vsel %vm598, %v10099, %v10106
      %v10108 = vrot.slane %v10103, 4
      %v10110 = vshrl.u32 %v9954, 16
      %v10112 = vrot.slane %v10110, 7
      %v10113 = vshll.u32 %v9954, 16
      %v10115 = vor.u32 %v10112, %v10113
      %v10116 = vsel %vm598, %v10108, %v10115
      %v10118 = vshrl.u32 %v9955, 16
      %v10120 = vrot.slane %v10118, 7
      %v10121 = vrot.slane %v10120, 4
      %v10123 = vshrl.u32 %v9956, 16
      %v10125 = vrot.slane %v10123, 7
      %v10126 = vshll.u32 %v9956, 16
      %v10128 = vor.u32 %v10125, %v10126
      %v10129 = vsel %vm598, %v10121, %v10128
      %v10130 = vrot.slane %v10125, 4
      %v10132 = vshrl.u32 %v9957, 16
      %v10134 = vrot.slane %v10132, 7
      %v10135 = vshll.u32 %v9957, 16
      %v10137 = vor.u32 %v10134, %v10135
      %v10138 = vsel %vm598, %v10130, %v10137
      %v10140 = vshrl.u32 %v9958, 16
      %v10142 = vrot.slane %v10140, 7
      %v10143 = vrot.slane %v10142, 4
      %v10145 = vshrl.u32 %v9959, 16
      %v10147 = vrot.slane %v10145, 7
      %v10148 = vshll.u32 %v9959, 16
      %v10150 = vor.u32 %v10147, %v10148
      %v10151 = vsel %vm598, %v10143, %v10150
      %v10152 = vrot.slane %v10147, 4
      %v10154 = vshrl.u32 %v9960, 16
      %v10156 = vrot.slane %v10154, 7
      %v10157 = vshll.u32 %v9960, 16
      %v10159 = vor.u32 %v10156, %v10157
      %v10160 = vsel %vm598, %v10152, %v10159
      %v10162 = vshrl.u32 %v9961, 16
      %v10164 = vrot.slane %v10162, 7
      %v10165 = vrot.slane %v10164, 4
      %v10167 = vshrl.u32 %v9962, 16
      %v10169 = vrot.slane %v10167, 7
      %v10170 = vshll.u32 %v9962, 16
      %v10172 = vor.u32 %v10169, %v10170
      %v10173 = vsel %vm598, %v10165, %v10172
      %v10174 = vrot.slane %v10169, 4
      %v10176 = vshrl.u32 %v9963, 16
      %v10178 = vrot.slane %v10176, 7
      %v10179 = vshll.u32 %v9963, 16
      %v10181 = vor.u32 %v10178, %v10179
      %v10182 = vsel %vm598, %v10174, %v10181
      %v10184 = vshrl.u32 %v9964, 16
      %v10186 = vrot.slane %v10184, 7
      %v10187 = vrot.slane %v10186, 4
      %v10189 = vshrl.u32 %v9965, 16
      %v10191 = vrot.slane %v10189, 7
      %v10192 = vshll.u32 %v9965, 16
      %v10194 = vor.u32 %v10191, %v10192
      %v10195 = vsel %vm598, %v10187, %v10194
      %v10196 = vrot.slane %v10191, 4
      %v10198 = vshrl.u32 %v9966, 16
      %v10200 = vrot.slane %v10198, 7
      %v10201 = vshll.u32 %v9966, 16
      %v10203 = vor.u32 %v10200, %v10201
      %v10204 = vsel %vm598, %v10196, %v10203
      %v10206 = vshrl.u32 %v9967, 16
      %v10208 = vrot.slane %v10206, 7
      %v10209 = vrot.slane %v10208, 4
      %v10211 = vshrl.u32 %v9968, 16
      %v10213 = vrot.slane %v10211, 7
      %v10214 = vshll.u32 %v9968, 16
      %v10216 = vor.u32 %v10213, %v10214
      %v10217 = vsel %vm598, %v10209, %v10216
      %v10218 = vrot.slane %v10213, 4
      %v10220 = vshrl.u32 %v9969, 16
      %v10222 = vrot.slane %v10220, 7
      %v10223 = vshll.u32 %v9969, 16
      %v10225 = vor.u32 %v10222, %v10223
      %v10226 = vsel %vm598, %v10218, %v10225
      %v10228 = vshrl.u32 %v9970, 16
      %v10230 = vrot.slane %v10228, 7
      %v10231 = vrot.slane %v10230, 4
      %v10233 = vshrl.u32 %v9971, 16
      %v10235 = vrot.slane %v10233, 7
      %v10236 = vshll.u32 %v9971, 16
      %v10238 = vor.u32 %v10235, %v10236
      %v10239 = vsel %vm598, %v10231, %v10238
      %v10240 = vrot.slane %v10235, 4
      %v10242 = vshrl.u32 %v9972, 16
      %v10244 = vrot.slane %v10242, 7
      %v10245 = vshll.u32 %v9972, 16
      %v10247 = vor.u32 %v10244, %v10245
      %v10248 = vsel %vm598, %v10240, %v10247
      %v10250 = vshrl.u32 %v9973, 16
      %v10252 = vrot.slane %v10250, 7
      %v10253 = vrot.slane %v10252, 4
      %v10255 = vshrl.u32 %v9974, 16
      %v10257 = vrot.slane %v10255, 7
      %v10258 = vshll.u32 %v9974, 16
      %v10260 = vor.u32 %v10257, %v10258
      %v10261 = vsel %vm598, %v10253, %v10260
      %v10262 = vrot.slane %v10257, 4
      %v10264 = vshrl.u32 %v9975, 16
      %v10266 = vrot.slane %v10264, 7
      %v10267 = vshll.u32 %v9975, 16
      %v10269 = vor.u32 %v10266, %v10267
      %v10270 = vsel %vm598, %v10262, %v10269
      %v10272 = vshrl.u32 %v9976, 16
      %v10274 = vrot.slane %v10272, 7
      %v10275 = vrot.slane %v10274, 4
      %v10277 = vshrl.u32 %v9977, 16
      %v10279 = vrot.slane %v10277, 7
      %v10280 = vshll.u32 %v9977, 16
      %v10282 = vor.u32 %v10279, %v10280
      %v10283 = vsel %vm598, %v10275, %v10282
      %v10284 = vrot.slane %v10279, 4
      %v10286 = vshrl.u32 %v9978, 16
      %v10288 = vrot.slane %v10286, 7
      %v10289 = vshll.u32 %v9978, 16
      %v10291 = vor.u32 %v10288, %v10289
      %v10292 = vsel %vm598, %v10284, %v10291
      %v10294 = vshrl.u32 %v9979, 16
      %v10296 = vrot.slane %v10294, 7
      %v10297 = vrot.slane %v10296, 4
      %v10299 = vshrl.u32 %v9980, 16
      %v10301 = vrot.slane %v10299, 7
      %v10302 = vshll.u32 %v9980, 16
      %v10304 = vor.u32 %v10301, %v10302
      %v10305 = vsel %vm598, %v10297, %v10304
      %v10306 = vrot.slane %v10301, 4
      %v10308 = vshrl.u32 %v9981, 16
      %v10310 = vrot.slane %v10308, 7
      %v10311 = vshll.u32 %v9981, 16
      %v10313 = vor.u32 %v10310, %v10311
      %v10314 = vsel %vm598, %v10306, %v10313
      %v10316 = vshrl.u32 %v9982, 16
      %v10318 = vrot.slane %v10316, 7
      %v10319 = vrot.slane %v10318, 4
      %v10321 = vshrl.u32 %v9983, 16
      %v10323 = vrot.slane %v10321, 7
      %v10324 = vshll.u32 %v9983, 16
      %v10326 = vor.u32 %v10323, %v10324
      %v10327 = vsel %vm598, %v10319, %v10326
      %v10328 = vrot.slane %v10323, 4
      %v10330 = vshrl.u32 %v9984, 16
      %v10332 = vrot.slane %v10330, 7
      %v10333 = vshll.u32 %v9984, 16
      %v10335 = vor.u32 %v10332, %v10333
      %v10336 = vsel %vm598, %v10328, %v10335
      %s10337 = scalar_lea.vmem %s3, 384
      %v10338 = vld [vmem:[%s10337] sm:$0xf]
      %v10339 = vld [vmem:[%s10337 + $0x4] sm:$0xf]
      %v10340 = vld [vmem:[%s10337 + $0x8] sm:$0xf]
      %v10341 = vld [vmem:[%s10337 + $0xc] sm:$0xf]
      %v10342 = vld [vmem:[%s10337 + $0x10] sm:$0xf]
      %v10343 = vld [vmem:[%s10337 + $0x14] sm:$0xf]
      %v10344 = vld [vmem:[%s10337 + $0x18] sm:$0xf]
      %v10345 = vld [vmem:[%s10337 + $0x1c] sm:$0xf]
      %v10346 = vld [vmem:[%s10337 + $0x20] sm:$0xf]
      %v10347 = vld [vmem:[%s10337 + $0x24] sm:$0xf]
      %v10348 = vld [vmem:[%s10337 + $0x28] sm:$0xf]
      %v10349 = vld [vmem:[%s10337 + $0x2c] sm:$0xf]
      %v10350 = vld [vmem:[%s10337 + $0x30] sm:$0xf]
      %v10351 = vld [vmem:[%s10337 + $0x34] sm:$0xf]
      %v10352 = vld [vmem:[%s10337 + $0x38] sm:$0xf]
      %v10353 = vld [vmem:[%s10337 + $0x3c] sm:$0xf]
      %v10354 = vunpack.c.l.b16 %v9997
      %v10355 = vunpack.c.l.b16 %v10006
      %v10356 = vunpack.c.l.b16 %v10019
      %v10357 = vunpack.c.l.b16 %v10028
      %v10358 = vunpack.c.l.b16 %v10041
      %v10359 = vunpack.c.l.b16 %v10050
      %v10360 = vunpack.c.l.b16 %v10063
      %v10361 = vunpack.c.l.b16 %v10072
      %v10362 = vunpack.c.l.b16 %v10085
      %v10363 = vunpack.c.l.b16 %v10094
      %v10364 = vunpack.c.l.b16 %v10107
      %v10365 = vunpack.c.l.b16 %v10116
      %v10366 = vunpack.c.l.b16 %v10129
      %v10367 = vunpack.c.l.b16 %v10138
      %v10368 = vunpack.c.l.b16 %v10151
      %v10369 = vunpack.c.l.b16 %v10160
      %v10370 = vunpack.c.l.b16 %v10173
      %v10371 = vunpack.c.l.b16 %v10182
      %v10372 = vunpack.c.l.b16 %v10195
      %v10373 = vunpack.c.l.b16 %v10204
      %v10374 = vunpack.c.l.b16 %v10217
      %v10375 = vunpack.c.l.b16 %v10226
      %v10376 = vunpack.c.l.b16 %v10239
      %v10377 = vunpack.c.l.b16 %v10248
      %v10378 = vunpack.c.l.b16 %v10261
      %v10379 = vunpack.c.l.b16 %v10270
      %v10380 = vunpack.c.l.b16 %v10283
      %v10381 = vunpack.c.l.b16 %v10292
      %v10382 = vunpack.c.l.b16 %v10305
      %v10383 = vunpack.c.l.b16 %v10314
      %v10384 = vunpack.c.l.b16 %v10327
      %v10385 = vunpack.c.l.b16 %v10336
      %v10386 = vpack.c.b16 %v10355, %v10354
      %v10387 = vpack.c.b16 %v10357, %v10356
      %v10388 = vpack.c.b16 %v10359, %v10358
      %v10389 = vpack.c.b16 %v10361, %v10360
      %v10390 = vpack.c.b16 %v10363, %v10362
      %v10391 = vpack.c.b16 %v10365, %v10364
      %v10392 = vpack.c.b16 %v10367, %v10366
      %v10393 = vpack.c.b16 %v10369, %v10368
      %v10394 = vpack.c.b16 %v10371, %v10370
      %v10395 = vpack.c.b16 %v10373, %v10372
      %v10396 = vpack.c.b16 %v10375, %v10374
      %v10397 = vpack.c.b16 %v10377, %v10376
      %v10398 = vpack.c.b16 %v10379, %v10378
      %v10399 = vpack.c.b16 %v10381, %v10380
      %v10400 = vpack.c.b16 %v10383, %v10382
      %v10401 = vpack.c.b16 %v10385, %v10384
      %v10434 = vunpack.c.l.b16 %v10338
      %v10435 = vunpack.c.l.b16 %v10339
      %v10436 = vunpack.c.l.b16 %v10340
      %v10437 = vunpack.c.l.b16 %v10341
      %v10438 = vunpack.c.l.b16 %v10342
      %v10439 = vunpack.c.l.b16 %v10343
      %v10440 = vunpack.c.l.b16 %v10344
      %v10441 = vunpack.c.l.b16 %v10345
      %v10442 = vunpack.c.l.b16 %v10346
      %v10443 = vunpack.c.l.b16 %v10347
      %v10444 = vunpack.c.l.b16 %v10348
      %v10445 = vunpack.c.l.b16 %v10349
      %v10446 = vunpack.c.l.b16 %v10350
      %v10447 = vunpack.c.l.b16 %v10351
      %v10448 = vunpack.c.l.b16 %v10352
      %v10449 = vunpack.c.l.b16 %v10353
      %v10450 = vpack.c.b16 %v10435, %v10434
      %v10451 = vpack.c.b16 %v10437, %v10436
      %v10452 = vpack.c.b16 %v10439, %v10438
      %v10453 = vpack.c.b16 %v10441, %v10440
      %v10454 = vpack.c.b16 %v10443, %v10442
      %v10455 = vpack.c.b16 %v10445, %v10444
      %v10456 = vpack.c.b16 %v10447, %v10446
      %v10457 = vpack.c.b16 %v10449, %v10448
      %10466 = vmatprep.subr.bf16.mxu0 0
      %10467 = vmatpush1.bf16.msra.mxu0 %v10450
      %10468 = vmatprep.subr.bf16.mxu0 0
      %10469 = vmatpush1.bf16.msra.mxu0 %v10451
      %10470 = vmatprep.subr.bf16.mxu0 0
      %10471 = vmatpush1.bf16.msra.mxu0 %v10452
      %10472 = vmatprep.subr.bf16.mxu0 0
      %10473 = vmatpush1.bf16.msra.mxu0 %v10453
      %10474 = vmatprep.subr.bf16.mxu0 0
      %10475 = vmatpush1.bf16.msra.mxu0 %v10454
      %10476 = vmatprep.subr.bf16.mxu0 0
      %10477 = vmatpush1.bf16.msra.mxu0 %v10455
      %10478 = vmatprep.subr.bf16.mxu0 0
      %10479 = vmatpush1.bf16.msra.mxu0 %v10456
      %10480 = vmatprep.subr.bf16.mxu0 0
      %10481 = vmatpush1.bf16.msra.mxu0 %v10457
      %10482 = vmatprep.subr.bf16.mxu0 0
      %10483 = vmatpush1.bf16.msra.mxu0 0
      %10484 = vmatprep.subr.bf16.mxu0 0
      %10485 = vmatpush1.bf16.msra.mxu0 0
      %10486 = vmatprep.subr.bf16.mxu0 0
      %10487 = vmatpush1.bf16.msra.mxu0 0
      %10488 = vmatprep.subr.bf16.mxu0 0
      %10489 = vmatpush1.bf16.msra.mxu0 0
      %10490 = vmatprep.subr.bf16.mxu0 0
      %10491 = vmatpush1.bf16.msra.mxu0 0
      %10492 = vmatprep.subr.bf16.mxu0 0
      %10493 = vmatpush1.bf16.msra.mxu0 0
      %10494 = vmatprep.subr.bf16.mxu0 0
      %10495 = vmatpush1.bf16.msra.mxu0 0
      %10496 = vmatprep.subr.bf16.mxu0 0
      %10497 = vmatpush1.bf16.msra.mxu0 0
      %10498 = vmatprep.mubr.bf16.mxu0 0
      %10499 = vmatmul.mubr.bf16.gmra.mrb[0].mxu0 %v10386
      %v10500 = vpop.f32.mrb[0].mxu0
      %v10501 = vadd.f32 0.0, %v10500
      %v10502 = vpop.f32.mrb[0].mxu0
      %v10503 = vpop.f32.mrb[0].mxu0
      %v10504 = vadd.f32 0.0, %v10503
      %v10505 = vpop.f32.mrb[0].mxu0
      %10506 = vmatprep.mubr.bf16.mxu0 0
      %10507 = vmatmul.mubr.bf16.gmra.mrb[0].mxu0 %v10387
      %v10508 = vpop.f32.mrb[0].mxu0
      %v10509 = vadd.f32 0.0, %v10508
      %v10510 = vpop.f32.mrb[0].mxu0
      %v10511 = vpop.f32.mrb[0].mxu0
      %v10512 = vadd.f32 0.0, %v10511
      %v10513 = vpop.f32.mrb[0].mxu0
      %10514 = vmatprep.mubr.bf16.mxu0 0
      %10515 = vmatmul.mubr.bf16.gmra.mrb[0].mxu0 %v10388
      %v10516 = vpop.f32.mrb[0].mxu0
      %v10517 = vadd.f32 0.0, %v10516
      %v10518 = vpop.f32.mrb[0].mxu0
      %v10519 = vpop.f32.mrb[0].mxu0
      %v10520 = vadd.f32 0.0, %v10519
      %v10521 = vpop.f32.mrb[0].mxu0
      %10522 = vmatprep.mubr.bf16.mxu0 0
      %10523 = vmatmul.mubr.bf16.gmra.mrb[0].mxu0 %v10389
      %v10524 = vpop.f32.mrb[0].mxu0
      %v10525 = vadd.f32 0.0, %v10524
      %v10526 = vpop.f32.mrb[0].mxu0
      %v10527 = vpop.f32.mrb[0].mxu0
      %v10528 = vadd.f32 0.0, %v10527
      %v10529 = vpop.f32.mrb[0].mxu0
      %10530 = vmatprep.mubr.bf16.mxu0 0
      %10531 = vmatmul.mubr.bf16.gmra.mrb[0].mxu0 %v10390
      %v10532 = vpop.f32.mrb[0].mxu0
      %v10533 = vadd.f32 0.0, %v10532
      %v10534 = vpop.f32.mrb[0].mxu0
      %v10535 = vpop.f32.mrb[0].mxu0
      %v10536 = vadd.f32 0.0, %v10535
      %v10537 = vpop.f32.mrb[0].mxu0
      %10538 = vmatprep.mubr.bf16.mxu0 0
      %10539 = vmatmul.mubr.bf16.gmra.mrb[0].mxu0 %v10391
      %v10540 = vpop.f32.mrb[0].mxu0
      %v10541 = vadd.f32 0.0, %v10540
      %v10542 = vpop.f32.mrb[0].mxu0
      %v10543 = vpop.f32.mrb[0].mxu0
      %v10544 = vadd.f32 0.0, %v10543
      %v10545 = vpop.f32.mrb[0].mxu0
      %10546 = vmatprep.mubr.bf16.mxu0 0
      %10547 = vmatmul.mubr.bf16.gmra.mrb[0].mxu0 %v10392
      %v10548 = vpop.f32.mrb[0].mxu0
      %v10549 = vadd.f32 0.0, %v10548
      %v10550 = vpop.f32.mrb[0].mxu0
      %v10551 = vpop.f32.mrb[0].mxu0
      %v10552 = vadd.f32 0.0, %v10551
      %v10553 = vpop.f32.mrb[0].mxu0
      %10554 = vmatprep.mubr.bf16.mxu0 0
      %10555 = vmatmul.mubr.bf16.gmra.mrb[0].mxu0 %v10393
      %v10556 = vpop.f32.mrb[0].mxu0
      %v10557 = vadd.f32 0.0, %v10556
      %v10558 = vpop.f32.mrb[0].mxu0
      %v10559 = vpop.f32.mrb[0].mxu0
      %v10560 = vadd.f32 0.0, %v10559
      %v10561 = vpop.f32.mrb[0].mxu0
      %10562 = vmatprep.mubr.bf16.mxu0 0
      %10563 = vmatmul.mubr.bf16.gmra.mrb[0].mxu0 %v10394
      %v10564 = vpop.f32.mrb[0].mxu0
      %v10565 = vadd.f32 0.0, %v10564
      %v10566 = vpop.f32.mrb[0].mxu0
      %v10567 = vpop.f32.mrb[0].mxu0
      %v10568 = vadd.f32 0.0, %v10567
      %v10569 = vpop.f32.mrb[0].mxu0
      %10570 = vmatprep.mubr.bf16.mxu0 0
      %10571 = vmatmul.mubr.bf16.gmra.mrb[0].mxu0 %v10395
      %v10572 = vpop.f32.mrb[0].mxu0
      %v10573 = vadd.f32 0.0, %v10572
      %v10574 = vpop.f32.mrb[0].mxu0
      %v10575 = vpop.f32.mrb[0].mxu0
      %v10576 = vadd.f32 0.0, %v10575
      %v10577 = vpop.f32.mrb[0].mxu0
      %10578 = vmatprep.mubr.bf16.mxu0 0
      %10579 = vmatmul.mubr.bf16.gmra.mrb[0].mxu0 %v10396
      %v10580 = vpop.f32.mrb[0].mxu0
      %v10581 = vadd.f32 0.0, %v10580
      %v10582 = vpop.f32.mrb[0].mxu0
      %v10583 = vpop.f32.mrb[0].mxu0
      %v10584 = vadd.f32 0.0, %v10583
      %v10585 = vpop.f32.mrb[0].mxu0
      %10586 = vmatprep.mubr.bf16.mxu0 0
      %10587 = vmatmul.mubr.bf16.gmra.mrb[0].mxu0 %v10397
      %v10588 = vpop.f32.mrb[0].mxu0
      %v10589 = vadd.f32 0.0, %v10588
      %v10590 = vpop.f32.mrb[0].mxu0
      %v10591 = vpop.f32.mrb[0].mxu0
      %v10592 = vadd.f32 0.0, %v10591
      %v10593 = vpop.f32.mrb[0].mxu0
      %10594 = vmatprep.mubr.bf16.mxu0 0
      %10595 = vmatmul.mubr.bf16.gmra.mrb[0].mxu0 %v10398
      %v10596 = vpop.f32.mrb[0].mxu0
      %v10597 = vadd.f32 0.0, %v10596
      %v10598 = vpop.f32.mrb[0].mxu0
      %v10599 = vpop.f32.mrb[0].mxu0
      %v10600 = vadd.f32 0.0, %v10599
      %v10601 = vpop.f32.mrb[0].mxu0
      %10602 = vmatprep.mubr.bf16.mxu0 0
      %10603 = vmatmul.mubr.bf16.gmra.mrb[0].mxu0 %v10399
      %v10604 = vpop.f32.mrb[0].mxu0
      %v10605 = vadd.f32 0.0, %v10604
      %v10606 = vpop.f32.mrb[0].mxu0
      %v10607 = vpop.f32.mrb[0].mxu0
      %v10608 = vadd.f32 0.0, %v10607
      %v10609 = vpop.f32.mrb[0].mxu0
      %10610 = vmatprep.mubr.bf16.mxu0 0
      %10611 = vmatmul.mubr.bf16.gmra.mrb[0].mxu0 %v10400
      %v10612 = vpop.f32.mrb[0].mxu0
      %v10613 = vadd.f32 0.0, %v10612
      %v10614 = vpop.f32.mrb[0].mxu0
      %v10615 = vpop.f32.mrb[0].mxu0
      %v10616 = vadd.f32 0.0, %v10615
      %v10617 = vpop.f32.mrb[0].mxu0
      %10618 = vmatprep.mubr.bf16.mxu0 0
      %10619 = vmatmul.mubr.bf16.gmra.mrb[0].mxu0 %v10401
      %v10620 = vpop.f32.mrb[0].mxu0
      %v10621 = vadd.f32 0.0, %v10620
      %v10622 = vpop.f32.mrb[0].mxu0
      %v10623 = vpop.f32.mrb[0].mxu0
      %v10624 = vadd.f32 0.0, %v10623
      %v10625 = vpop.f32.mrb[0].mxu0
      %10626 = vdwg.mxu0
      %v10627 = vadd.f32 %v9904, %v10501
      %v10628 = vadd.f32 %v9905, %v10504
      %v10629 = vadd.f32 %v9906, %v10509
      %v10630 = vadd.f32 %v9907, %v10512
      %v10631 = vadd.f32 %v9908, %v10517
      %v10632 = vadd.f32 %v9909, %v10520
      %v10633 = vadd.f32 %v9910, %v10525
      %v10634 = vadd.f32 %v9911, %v10528
      %v10635 = vadd.f32 %v9912, %v10533
      %v10636 = vadd.f32 %v9913, %v10536
      %v10637 = vadd.f32 %v9914, %v10541
      %v10638 = vadd.f32 %v9915, %v10544
      %v10639 = vadd.f32 %v9916, %v10549
      %v10640 = vadd.f32 %v9917, %v10552
      %v10641 = vadd.f32 %v9918, %v10557
      %v10642 = vadd.f32 %v9919, %v10560
      %v10643 = vadd.f32 %v9920, %v10565
      %v10644 = vadd.f32 %v9921, %v10568
      %v10645 = vadd.f32 %v9922, %v10573
      %v10646 = vadd.f32 %v9923, %v10576
      %v10647 = vadd.f32 %v9924, %v10581
      %v10648 = vadd.f32 %v9925, %v10584
      %v10649 = vadd.f32 %v9926, %v10589
      %v10650 = vadd.f32 %v9927, %v10592
      %v10651 = vadd.f32 %v9928, %v10597
      %v10652 = vadd.f32 %v9929, %v10600
      %v10653 = vadd.f32 %v9930, %v10605
      %v10654 = vadd.f32 %v9931, %v10608
      %v10655 = vadd.f32 %v9932, %v10613
      %v10656 = vadd.f32 %v9933, %v10616
      %v10657 = vadd.f32 %v9934, %v10621
      %v10658 = vadd.f32 %v9935, %v10624
      %s10659 = scalar_lea.vmem %s3, 448
      %v10660 = vld [vmem:[%s10659] sm:$0xf]
      %v10661 = vld [vmem:[%s10659 + $0x4] sm:$0xf]
      %v10662 = vld [vmem:[%s10659 + $0x8] sm:$0xf]
      %v10663 = vld [vmem:[%s10659 + $0xc] sm:$0xf]
      %v10664 = vld [vmem:[%s10659 + $0x10] sm:$0xf]
      %v10665 = vld [vmem:[%s10659 + $0x14] sm:$0xf]
      %v10666 = vld [vmem:[%s10659 + $0x18] sm:$0xf]
      %v10667 = vld [vmem:[%s10659 + $0x1c] sm:$0xf]
      %v10668 = vld [vmem:[%s10659 + $0x20] sm:$0xf]
      %v10669 = vld [vmem:[%s10659 + $0x24] sm:$0xf]
      %v10670 = vld [vmem:[%s10659 + $0x28] sm:$0xf]
      %v10671 = vld [vmem:[%s10659 + $0x2c] sm:$0xf]
      %v10672 = vld [vmem:[%s10659 + $0x30] sm:$0xf]
      %v10673 = vld [vmem:[%s10659 + $0x34] sm:$0xf]
      %v10674 = vld [vmem:[%s10659 + $0x38] sm:$0xf]
      %v10675 = vld [vmem:[%s10659 + $0x3c] sm:$0xf]
      %v10708 = vunpack.c.l.b16 %v9938
      %v10709 = vunpack.c.l.b16 %v9939
      %v10710 = vunpack.c.l.b16 %v9941
      %v10711 = vunpack.c.l.b16 %v9942
      %v10712 = vunpack.c.l.b16 %v9944
      %v10713 = vunpack.c.l.b16 %v9945
      %v10714 = vunpack.c.l.b16 %v9947
      %v10715 = vunpack.c.l.b16 %v9948
      %v10716 = vunpack.c.l.b16 %v9950
      %v10717 = vunpack.c.l.b16 %v9951
      %v10718 = vunpack.c.l.b16 %v9953
      %v10719 = vunpack.c.l.b16 %v9954
      %v10720 = vunpack.c.l.b16 %v9956
      %v10721 = vunpack.c.l.b16 %v9957
      %v10722 = vunpack.c.l.b16 %v9959
      %v10723 = vunpack.c.l.b16 %v9960
      %v10724 = vunpack.c.l.b16 %v9962
      %v10725 = vunpack.c.l.b16 %v9963
      %v10726 = vunpack.c.l.b16 %v9965
      %v10727 = vunpack.c.l.b16 %v9966
      %v10728 = vunpack.c.l.b16 %v9968
      %v10729 = vunpack.c.l.b16 %v9969
      %v10730 = vunpack.c.l.b16 %v9971
      %v10731 = vunpack.c.l.b16 %v9972
      %v10732 = vunpack.c.l.b16 %v9974
      %v10733 = vunpack.c.l.b16 %v9975
      %v10734 = vunpack.c.l.b16 %v9977
      %v10735 = vunpack.c.l.b16 %v9978
      %v10736 = vunpack.c.l.b16 %v9980
      %v10737 = vunpack.c.l.b16 %v9981
      %v10738 = vunpack.c.l.b16 %v9983
      %v10739 = vunpack.c.l.b16 %v9984
      %v10740 = vpack.c.b16 %v10709, %v10708
      %v10741 = vpack.c.b16 %v10711, %v10710
      %v10742 = vpack.c.b16 %v10713, %v10712
      %v10743 = vpack.c.b16 %v10715, %v10714
      %v10744 = vpack.c.b16 %v10717, %v10716
      %v10745 = vpack.c.b16 %v10719, %v10718
      %v10746 = vpack.c.b16 %v10721, %v10720
      %v10747 = vpack.c.b16 %v10723, %v10722
      %v10748 = vpack.c.b16 %v10725, %v10724
      %v10749 = vpack.c.b16 %v10727, %v10726
      %v10750 = vpack.c.b16 %v10729, %v10728
      %v10751 = vpack.c.b16 %v10731, %v10730
      %v10752 = vpack.c.b16 %v10733, %v10732
      %v10753 = vpack.c.b16 %v10735, %v10734
      %v10754 = vpack.c.b16 %v10737, %v10736
      %v10755 = vpack.c.b16 %v10739, %v10738
      %v10788 = vunpack.c.l.b16 %v10660
      %v10789 = vunpack.c.l.b16 %v10661
      %v10790 = vunpack.c.l.b16 %v10662
      %v10791 = vunpack.c.l.b16 %v10663
      %v10792 = vunpack.c.l.b16 %v10664
      %v10793 = vunpack.c.l.b16 %v10665
      %v10794 = vunpack.c.l.b16 %v10666
      %v10795 = vunpack.c.l.b16 %v10667
      %v10796 = vunpack.c.l.b16 %v10668
      %v10797 = vunpack.c.l.b16 %v10669
      %v10798 = vunpack.c.l.b16 %v10670
      %v10799 = vunpack.c.l.b16 %v10671
      %v10800 = vunpack.c.l.b16 %v10672
      %v10801 = vunpack.c.l.b16 %v10673
      %v10802 = vunpack.c.l.b16 %v10674
      %v10803 = vunpack.c.l.b16 %v10675
      %v10804 = vpack.c.b16 %v10789, %v10788
      %v10805 = vpack.c.b16 %v10791, %v10790
      %v10806 = vpack.c.b16 %v10793, %v10792
      %v10807 = vpack.c.b16 %v10795, %v10794
      %v10808 = vpack.c.b16 %v10797, %v10796
      %v10809 = vpack.c.b16 %v10799, %v10798
      %v10810 = vpack.c.b16 %v10801, %v10800
      %v10811 = vpack.c.b16 %v10803, %v10802
      %10820 = vmatprep.subr.bf16.mxu0 0
      %10821 = vmatpush1.bf16.msra.mxu0 %v10804
      %10822 = vmatprep.subr.bf16.mxu0 0
      %10823 = vmatpush1.bf16.msra.mxu0 %v10805
      %10824 = vmatprep.subr.bf16.mxu0 0
      %10825 = vmatpush1.bf16.msra.mxu0 %v10806
      %10826 = vmatprep.subr.bf16.mxu0 0
      %10827 = vmatpush1.bf16.msra.mxu0 %v10807
      %10828 = vmatprep.subr.bf16.mxu0 0
      %10829 = vmatpush1.bf16.msra.mxu0 %v10808
      %10830 = vmatprep.subr.bf16.mxu0 0
      %10831 = vmatpush1.bf16.msra.mxu0 %v10809
      %10832 = vmatprep.subr.bf16.mxu0 0
      %10833 = vmatpush1.bf16.msra.mxu0 %v10810
      %10834 = vmatprep.subr.bf16.mxu0 0
      %10835 = vmatpush1.bf16.msra.mxu0 %v10811
      %10836 = vmatprep.subr.bf16.mxu0 0
      %10837 = vmatpush1.bf16.msra.mxu0 0
      %10838 = vmatprep.subr.bf16.mxu0 0
      %10839 = vmatpush1.bf16.msra.mxu0 0
      %10840 = vmatprep.subr.bf16.mxu0 0
      %10841 = vmatpush1.bf16.msra.mxu0 0
      %10842 = vmatprep.subr.bf16.mxu0 0
      %10843 = vmatpush1.bf16.msra.mxu0 0
      %10844 = vmatprep.subr.bf16.mxu0 0
      %10845 = vmatpush1.bf16.msra.mxu0 0
      %10846 = vmatprep.subr.bf16.mxu0 0
      %10847 = vmatpush1.bf16.msra.mxu0 0
      %10848 = vmatprep.subr.bf16.mxu0 0
      %10849 = vmatpush1.bf16.msra.mxu0 0
      %10850 = vmatprep.subr.bf16.mxu0 0
      %10851 = vmatpush1.bf16.msra.mxu0 0
      %10852 = vmatprep.mubr.bf16.mxu0 0
      %10853 = vmatmul.mubr.bf16.gmra.mrb[0].mxu0 %v10740
      %v10854 = vpop.f32.mrb[0].mxu0
      %v10855 = vadd.f32 0.0, %v10854
      %v10856 = vpop.f32.mrb[0].mxu0
      %v10857 = vpop.f32.mrb[0].mxu0
      %v10858 = vadd.f32 0.0, %v10857
      %v10859 = vpop.f32.mrb[0].mxu0
      %10860 = vmatprep.mubr.bf16.mxu0 0
      %10861 = vmatmul.mubr.bf16.gmra.mrb[0].mxu0 %v10741
      %v10862 = vpop.f32.mrb[0].mxu0
      %v10863 = vadd.f32 0.0, %v10862
      %v10864 = vpop.f32.mrb[0].mxu0
      %v10865 = vpop.f32.mrb[0].mxu0
      %v10866 = vadd.f32 0.0, %v10865
      %v10867 = vpop.f32.mrb[0].mxu0
      %10868 = vmatprep.mubr.bf16.mxu0 0
      %10869 = vmatmul.mubr.bf16.gmra.mrb[0].mxu0 %v10742
      %v10870 = vpop.f32.mrb[0].mxu0
      %v10871 = vadd.f32 0.0, %v10870
      %v10872 = vpop.f32.mrb[0].mxu0
      %v10873 = vpop.f32.mrb[0].mxu0
      %v10874 = vadd.f32 0.0, %v10873
      %v10875 = vpop.f32.mrb[0].mxu0
      %10876 = vmatprep.mubr.bf16.mxu0 0
      %10877 = vmatmul.mubr.bf16.gmra.mrb[0].mxu0 %v10743
      %v10878 = vpop.f32.mrb[0].mxu0
      %v10879 = vadd.f32 0.0, %v10878
      %v10880 = vpop.f32.mrb[0].mxu0
      %v10881 = vpop.f32.mrb[0].mxu0
      %v10882 = vadd.f32 0.0, %v10881
      %v10883 = vpop.f32.mrb[0].mxu0
      %10884 = vmatprep.mubr.bf16.mxu0 0
      %10885 = vmatmul.mubr.bf16.gmra.mrb[0].mxu0 %v10744
      %v10886 = vpop.f32.mrb[0].mxu0
      %v10887 = vadd.f32 0.0, %v10886
      %v10888 = vpop.f32.mrb[0].mxu0
      %v10889 = vpop.f32.mrb[0].mxu0
      %v10890 = vadd.f32 0.0, %v10889
      %v10891 = vpop.f32.mrb[0].mxu0
      %10892 = vmatprep.mubr.bf16.mxu0 0
      %10893 = vmatmul.mubr.bf16.gmra.mrb[0].mxu0 %v10745
      %v10894 = vpop.f32.mrb[0].mxu0
      %v10895 = vadd.f32 0.0, %v10894
      %v10896 = vpop.f32.mrb[0].mxu0
      %v10897 = vpop.f32.mrb[0].mxu0
      %v10898 = vadd.f32 0.0, %v10897
      %v10899 = vpop.f32.mrb[0].mxu0
      %10900 = vmatprep.mubr.bf16.mxu0 0
      %10901 = vmatmul.mubr.bf16.gmra.mrb[0].mxu0 %v10746
      %v10902 = vpop.f32.mrb[0].mxu0
      %v10903 = vadd.f32 0.0, %v10902
      %v10904 = vpop.f32.mrb[0].mxu0
      %v10905 = vpop.f32.mrb[0].mxu0
      %v10906 = vadd.f32 0.0, %v10905
      %v10907 = vpop.f32.mrb[0].mxu0
      %10908 = vmatprep.mubr.bf16.mxu0 0
      %10909 = vmatmul.mubr.bf16.gmra.mrb[0].mxu0 %v10747
      %v10910 = vpop.f32.mrb[0].mxu0
      %v10911 = vadd.f32 0.0, %v10910
      %v10912 = vpop.f32.mrb[0].mxu0
      %v10913 = vpop.f32.mrb[0].mxu0
      %v10914 = vadd.f32 0.0, %v10913
      %v10915 = vpop.f32.mrb[0].mxu0
      %10916 = vmatprep.mubr.bf16.mxu0 0
      %10917 = vmatmul.mubr.bf16.gmra.mrb[0].mxu0 %v10748
      %v10918 = vpop.f32.mrb[0].mxu0
      %v10919 = vadd.f32 0.0, %v10918
      %v10920 = vpop.f32.mrb[0].mxu0
      %v10921 = vpop.f32.mrb[0].mxu0
      %v10922 = vadd.f32 0.0, %v10921
      %v10923 = vpop.f32.mrb[0].mxu0
      %10924 = vmatprep.mubr.bf16.mxu0 0
      %10925 = vmatmul.mubr.bf16.gmra.mrb[0].mxu0 %v10749
      %v10926 = vpop.f32.mrb[0].mxu0
      %v10927 = vadd.f32 0.0, %v10926
      %v10928 = vpop.f32.mrb[0].mxu0
      %v10929 = vpop.f32.mrb[0].mxu0
      %v10930 = vadd.f32 0.0, %v10929
      %v10931 = vpop.f32.mrb[0].mxu0
      %10932 = vmatprep.mubr.bf16.mxu0 0
      %10933 = vmatmul.mubr.bf16.gmra.mrb[0].mxu0 %v10750
      %v10934 = vpop.f32.mrb[0].mxu0
      %v10935 = vadd.f32 0.0, %v10934
      %v10936 = vpop.f32.mrb[0].mxu0
      %v10937 = vpop.f32.mrb[0].mxu0
      %v10938 = vadd.f32 0.0, %v10937
      %v10939 = vpop.f32.mrb[0].mxu0
      %10940 = vmatprep.mubr.bf16.mxu0 0
      %10941 = vmatmul.mubr.bf16.gmra.mrb[0].mxu0 %v10751
      %v10942 = vpop.f32.mrb[0].mxu0
      %v10943 = vadd.f32 0.0, %v10942
      %v10944 = vpop.f32.mrb[0].mxu0
      %v10945 = vpop.f32.mrb[0].mxu0
      %v10946 = vadd.f32 0.0, %v10945
      %v10947 = vpop.f32.mrb[0].mxu0
      %10948 = vmatprep.mubr.bf16.mxu0 0
      %10949 = vmatmul.mubr.bf16.gmra.mrb[0].mxu0 %v10752
      %v10950 = vpop.f32.mrb[0].mxu0
      %v10951 = vadd.f32 0.0, %v10950
      %v10952 = vpop.f32.mrb[0].mxu0
      %v10953 = vpop.f32.mrb[0].mxu0
      %v10954 = vadd.f32 0.0, %v10953
      %v10955 = vpop.f32.mrb[0].mxu0
      %10956 = vmatprep.mubr.bf16.mxu0 0
      %10957 = vmatmul.mubr.bf16.gmra.mrb[0].mxu0 %v10753
      %v10958 = vpop.f32.mrb[0].mxu0
      %v10959 = vadd.f32 0.0, %v10958
      %v10960 = vpop.f32.mrb[0].mxu0
      %v10961 = vpop.f32.mrb[0].mxu0
      %v10962 = vadd.f32 0.0, %v10961
      %v10963 = vpop.f32.mrb[0].mxu0
      %10964 = vmatprep.mubr.bf16.mxu0 0
      %10965 = vmatmul.mubr.bf16.gmra.mrb[0].mxu0 %v10754
      %v10966 = vpop.f32.mrb[0].mxu0
      %v10967 = vadd.f32 0.0, %v10966
      %v10968 = vpop.f32.mrb[0].mxu0
      %v10969 = vpop.f32.mrb[0].mxu0
      %v10970 = vadd.f32 0.0, %v10969
      %v10971 = vpop.f32.mrb[0].mxu0
      %10972 = vmatprep.mubr.bf16.mxu0 0
      %10973 = vmatmul.mubr.bf16.gmra.mrb[0].mxu0 %v10755
      %v10974 = vpop.f32.mrb[0].mxu0
      %v10975 = vadd.f32 0.0, %v10974
      %v10976 = vpop.f32.mrb[0].mxu0
      %v10977 = vpop.f32.mrb[0].mxu0
      %v10978 = vadd.f32 0.0, %v10977
      %v10979 = vpop.f32.mrb[0].mxu0
      %10980 = vdwg.mxu0
      %v10981 = vadd.f32 %v10627, %v10855
      %v10982 = vadd.f32 %v10628, %v10858
      %v10983 = vadd.f32 %v10629, %v10863
      %v10984 = vadd.f32 %v10630, %v10866
      %v10985 = vadd.f32 %v10631, %v10871
      %v10986 = vadd.f32 %v10632, %v10874
      %v10987 = vadd.f32 %v10633, %v10879
      %v10988 = vadd.f32 %v10634, %v10882
      %v10989 = vadd.f32 %v10635, %v10887
      %v10990 = vadd.f32 %v10636, %v10890
      %v10991 = vadd.f32 %v10637, %v10895
      %v10992 = vadd.f32 %v10638, %v10898
      %v10993 = vadd.f32 %v10639, %v10903
      %v10994 = vadd.f32 %v10640, %v10906
      %v10995 = vadd.f32 %v10641, %v10911
      %v10996 = vadd.f32 %v10642, %v10914
      %v10997 = vadd.f32 %v10643, %v10919
      %v10998 = vadd.f32 %v10644, %v10922
      %v10999 = vadd.f32 %v10645, %v10927
      %v11000 = vadd.f32 %v10646, %v10930
      %v11001 = vadd.f32 %v10647, %v10935
      %v11002 = vadd.f32 %v10648, %v10938
      %v11003 = vadd.f32 %v10649, %v10943
      %v11004 = vadd.f32 %v10650, %v10946
      %v11005 = vadd.f32 %v10651, %v10951
      %v11006 = vadd.f32 %v10652, %v10954
      %v11007 = vadd.f32 %v10653, %v10959
      %v11008 = vadd.f32 %v10654, %v10962
      %v11009 = vadd.f32 %v10655, %v10967
      %v11010 = vadd.f32 %v10656, %v10970
      %v11011 = vadd.f32 %v10657, %v10975
      %v11012 = vadd.f32 %v10658, %v10978
      %v11013 = vld [vmem:[%s9936 + $0x8] sm:$0xf]
      %v11014 = vld [vmem:[%s9936 + $0xc] sm:$0xf]
      %v11015 = vld [vmem:[%s9936 + $0x10] sm:$0x1]
      %v11016 = vld [vmem:[%s9936 + $0x1c] sm:$0xf]
      %v11017 = vld [vmem:[%s9936 + $0x20] sm:$0xf]
      %v11018 = vld [vmem:[%s9936 + $0x24] sm:$0x1]
      %v11019 = vld [vmem:[%s9936 + $0x30] sm:$0xf]
      %v11020 = vld [vmem:[%s9936 + $0x34] sm:$0xf]
      %v11021 = vld [vmem:[%s9936 + $0x38] sm:$0x1]
      %v11022 = vld [vmem:[%s9936 + $0x44] sm:$0xf]
      %v11023 = vld [vmem:[%s9936 + $0x48] sm:$0xf]
      %v11024 = vld [vmem:[%s9936 + $0x4c] sm:$0x1]
      %v11025 = vld [vmem:[%s9936 + $0x58] sm:$0xf]
      %v11026 = vld [vmem:[%s9936 + $0x5c] sm:$0xf]
      %v11027 = vld [vmem:[%s9936 + $0x60] sm:$0x1]
      %v11028 = vld [vmem:[%s9936 + $0x6c] sm:$0xf]
      %v11029 = vld [vmem:[%s9936 + $0x70] sm:$0xf]
      %v11030 = vld [vmem:[%s9936 + $0x74] sm:$0x1]
      %v11031 = vld [vmem:[%s9936 + $0x80] sm:$0xf]
      %v11032 = vld [vmem:[%s9936 + $0x84] sm:$0xf]
      %v11033 = vld [vmem:[%s9936 + $0x88] sm:$0x1]
      %v11034 = vld [vmem:[%s9936 + $0x94] sm:$0xf]
      %v11035 = vld [vmem:[%s9936 + $0x98] sm:$0xf]
      %v11036 = vld [vmem:[%s9936 + $0x9c] sm:$0x1]
      %v11037 = vld [vmem:[%s9936 + $0xa8] sm:$0xf]
      %v11038 = vld [vmem:[%s9936 + $0xac] sm:$0xf]
      %v11039 = vld [vmem:[%s9936 + $0xb0] sm:$0x1]
      %v11040 = vld [vmem:[%s9936 + $0xbc] sm:$0xf]
      %v11041 = vld [vmem:[%s9936 + $0xc0] sm:$0xf]
      %v11042 = vld [vmem:[%s9936 + $0xc4] sm:$0x1]
      %v11043 = vld [vmem:[%s9936 + $0xd0] sm:$0xf]
      %v11044 = vld [vmem:[%s9936 + $0xd4] sm:$0xf]
      %v11045 = vld [vmem:[%s9936 + $0xd8] sm:$0x1]
      %v11046 = vld [vmem:[%s9936 + $0xe4] sm:$0xf]
      %v11047 = vld [vmem:[%s9936 + $0xe8] sm:$0xf]
      %v11048 = vld [vmem:[%s9936 + $0xec] sm:$0x1]
      %v11049 = vld [vmem:[%s9936 + $0xf8] sm:$0xf]
      %v11050 = vld [vmem:[%s9936 + $0xfc] sm:$0xf]
      %v11051 = vld [vmem:[%s9936 + $0x100] sm:$0x1]
      %v11052 = vld [vmem:[%s9936 + $0x10c] sm:$0xf]
      %v11053 = vld [vmem:[%s9936 + $0x110] sm:$0xf]
      %v11054 = vld [vmem:[%s9936 + $0x114] sm:$0x1]
      %v11055 = vld [vmem:[%s9936 + $0x120] sm:$0xf]
      %v11056 = vld [vmem:[%s9936 + $0x124] sm:$0xf]
      %v11057 = vld [vmem:[%s9936 + $0x128] sm:$0x1]
      %v11058 = vld [vmem:[%s9936 + $0x134] sm:$0xf]
      %v11059 = vld [vmem:[%s9936 + $0x138] sm:$0xf]
      %v11060 = vld [vmem:[%s9936 + $0x13c] sm:$0x1]
      %v11062 = vshrl.u32 %v11013, 16
      %v11064 = vrot.slane %v11062, 4
      %v11065 = vshll.u32 %v11013, 16
      %v11067 = vrot.slane %v11065, 5
      %v11068 = vor.u32 %v11064, %v11067
      %v11069 = vrot.slane %v11068, 4
      %v11071 = vshll.u32 %v11014, 16
      %v11073 = vrot.slane %v11071, 5
      %v11074 = vsel %vm1613, %v11069, %v11073
      %v11075 = vshrl.u32 %v11014, 16
      %v11077 = vrot.slane %v11075, 4
      %v11078 = vor.u32 %v11077, %v11073
      %v11079 = vrot.slane %v11078, 4
      %v11081 = vshll.u32 %v11015, 16
      %v11083 = vrot.slane %v11081, 5
      %v11084 = vsel %vm1613, %v11079, %v11083
      %v11086 = vshrl.u32 %v11016, 16
      %v11088 = vrot.slane %v11086, 4
      %v11089 = vshll.u32 %v11016, 16
      %v11091 = vrot.slane %v11089, 5
      %v11092 = vor.u32 %v11088, %v11091
      %v11093 = vrot.slane %v11092, 4
      %v11095 = vshll.u32 %v11017, 16
      %v11097 = vrot.slane %v11095, 5
      %v11098 = vsel %vm1613, %v11093, %v11097
      %v11099 = vshrl.u32 %v11017, 16
      %v11101 = vrot.slane %v11099, 4
      %v11102 = vor.u32 %v11101, %v11097
      %v11103 = vrot.slane %v11102, 4
      %v11105 = vshll.u32 %v11018, 16
      %v11107 = vrot.slane %v11105, 5
      %v11108 = vsel %vm1613, %v11103, %v11107
      %v11110 = vshrl.u32 %v11019, 16
      %v11112 = vrot.slane %v11110, 4
      %v11113 = vshll.u32 %v11019, 16
      %v11115 = vrot.slane %v11113, 5
      %v11116 = vor.u32 %v11112, %v11115
      %v11117 = vrot.slane %v11116, 4
      %v11119 = vshll.u32 %v11020, 16
      %v11121 = vrot.slane %v11119, 5
      %v11122 = vsel %vm1613, %v11117, %v11121
      %v11123 = vshrl.u32 %v11020, 16
      %v11125 = vrot.slane %v11123, 4
      %v11126 = vor.u32 %v11125, %v11121
      %v11127 = vrot.slane %v11126, 4
      %v11129 = vshll.u32 %v11021, 16
      %v11131 = vrot.slane %v11129, 5
      %v11132 = vsel %vm1613, %v11127, %v11131
      %v11134 = vshrl.u32 %v11022, 16
      %v11136 = vrot.slane %v11134, 4
      %v11137 = vshll.u32 %v11022, 16
      %v11139 = vrot.slane %v11137, 5
      %v11140 = vor.u32 %v11136, %v11139
      %v11141 = vrot.slane %v11140, 4
      %v11143 = vshll.u32 %v11023, 16
      %v11145 = vrot.slane %v11143, 5
      %v11146 = vsel %vm1613, %v11141, %v11145
      %v11147 = vshrl.u32 %v11023, 16
      %v11149 = vrot.slane %v11147, 4
      %v11150 = vor.u32 %v11149, %v11145
      %v11151 = vrot.slane %v11150, 4
      %v11153 = vshll.u32 %v11024, 16
      %v11155 = vrot.slane %v11153, 5
      %v11156 = vsel %vm1613, %v11151, %v11155
      %v11158 = vshrl.u32 %v11025, 16
      %v11160 = vrot.slane %v11158, 4
      %v11161 = vshll.u32 %v11025, 16
      %v11163 = vrot.slane %v11161, 5
      %v11164 = vor.u32 %v11160, %v11163
      %v11165 = vrot.slane %v11164, 4
      %v11167 = vshll.u32 %v11026, 16
      %v11169 = vrot.slane %v11167, 5
      %v11170 = vsel %vm1613, %v11165, %v11169
      %v11171 = vshrl.u32 %v11026, 16
      %v11173 = vrot.slane %v11171, 4
      %v11174 = vor.u32 %v11173, %v11169
      %v11175 = vrot.slane %v11174, 4
      %v11177 = vshll.u32 %v11027, 16
      %v11179 = vrot.slane %v11177, 5
      %v11180 = vsel %vm1613, %v11175, %v11179
      %v11182 = vshrl.u32 %v11028, 16
      %v11184 = vrot.slane %v11182, 4
      %v11185 = vshll.u32 %v11028, 16
      %v11187 = vrot.slane %v11185, 5
      %v11188 = vor.u32 %v11184, %v11187
      %v11189 = vrot.slane %v11188, 4
      %v11191 = vshll.u32 %v11029, 16
      %v11193 = vrot.slane %v11191, 5
      %v11194 = vsel %vm1613, %v11189, %v11193
      %v11195 = vshrl.u32 %v11029, 16
      %v11197 = vrot.slane %v11195, 4
      %v11198 = vor.u32 %v11197, %v11193
      %v11199 = vrot.slane %v11198, 4
      %v11201 = vshll.u32 %v11030, 16
      %v11203 = vrot.slane %v11201, 5
      %v11204 = vsel %vm1613, %v11199, %v11203
      %v11206 = vshrl.u32 %v11031, 16
      %v11208 = vrot.slane %v11206, 4
      %v11209 = vshll.u32 %v11031, 16
      %v11211 = vrot.slane %v11209, 5
      %v11212 = vor.u32 %v11208, %v11211
      %v11213 = vrot.slane %v11212, 4
      %v11215 = vshll.u32 %v11032, 16
      %v11217 = vrot.slane %v11215, 5
      %v11218 = vsel %vm1613, %v11213, %v11217
      %v11219 = vshrl.u32 %v11032, 16
      %v11221 = vrot.slane %v11219, 4
      %v11222 = vor.u32 %v11221, %v11217
      %v11223 = vrot.slane %v11222, 4
      %v11225 = vshll.u32 %v11033, 16
      %v11227 = vrot.slane %v11225, 5
      %v11228 = vsel %vm1613, %v11223, %v11227
      %v11230 = vshrl.u32 %v11034, 16
      %v11232 = vrot.slane %v11230, 4
      %v11233 = vshll.u32 %v11034, 16
      %v11235 = vrot.slane %v11233, 5
      %v11236 = vor.u32 %v11232, %v11235
      %v11237 = vrot.slane %v11236, 4
      %v11239 = vshll.u32 %v11035, 16
      %v11241 = vrot.slane %v11239, 5
      %v11242 = vsel %vm1613, %v11237, %v11241
      %v11243 = vshrl.u32 %v11035, 16
      %v11245 = vrot.slane %v11243, 4
      %v11246 = vor.u32 %v11245, %v11241
      %v11247 = vrot.slane %v11246, 4
      %v11249 = vshll.u32 %v11036, 16
      %v11251 = vrot.slane %v11249, 5
      %v11252 = vsel %vm1613, %v11247, %v11251
      %v11254 = vshrl.u32 %v11037, 16
      %v11256 = vrot.slane %v11254, 4
      %v11257 = vshll.u32 %v11037, 16
      %v11259 = vrot.slane %v11257, 5
      %v11260 = vor.u32 %v11256, %v11259
      %v11261 = vrot.slane %v11260, 4
      %v11263 = vshll.u32 %v11038, 16
      %v11265 = vrot.slane %v11263, 5
      %v11266 = vsel %vm1613, %v11261, %v11265
      %v11267 = vshrl.u32 %v11038, 16
      %v11269 = vrot.slane %v11267, 4
      %v11270 = vor.u32 %v11269, %v11265
      %v11271 = vrot.slane %v11270, 4
      %v11273 = vshll.u32 %v11039, 16
      %v11275 = vrot.slane %v11273, 5
      %v11276 = vsel %vm1613, %v11271, %v11275
      %v11278 = vshrl.u32 %v11040, 16
      %v11280 = vrot.slane %v11278, 4
      %v11281 = vshll.u32 %v11040, 16
      %v11283 = vrot.slane %v11281, 5
      %v11284 = vor.u32 %v11280, %v11283
      %v11285 = vrot.slane %v11284, 4
      %v11287 = vshll.u32 %v11041, 16
      %v11289 = vrot.slane %v11287, 5
      %v11290 = vsel %vm1613, %v11285, %v11289
      %v11291 = vshrl.u32 %v11041, 16
      %v11293 = vrot.slane %v11291, 4
      %v11294 = vor.u32 %v11293, %v11289
      %v11295 = vrot.slane %v11294, 4
      %v11297 = vshll.u32 %v11042, 16
      %v11299 = vrot.slane %v11297, 5
      %v11300 = vsel %vm1613, %v11295, %v11299
      %v11302 = vshrl.u32 %v11043, 16
      %v11304 = vrot.slane %v11302, 4
      %v11305 = vshll.u32 %v11043, 16
      %v11307 = vrot.slane %v11305, 5
      %v11308 = vor.u32 %v11304, %v11307
      %v11309 = vrot.slane %v11308, 4
      %v11311 = vshll.u32 %v11044, 16
      %v11313 = vrot.slane %v11311, 5
      %v11314 = vsel %vm1613, %v11309, %v11313
      %v11315 = vshrl.u32 %v11044, 16
      %v11317 = vrot.slane %v11315, 4
      %v11318 = vor.u32 %v11317, %v11313
      %v11319 = vrot.slane %v11318, 4
      %v11321 = vshll.u32 %v11045, 16
      %v11323 = vrot.slane %v11321, 5
      %v11324 = vsel %vm1613, %v11319, %v11323
      %v11326 = vshrl.u32 %v11046, 16
      %v11328 = vrot.slane %v11326, 4
      %v11329 = vshll.u32 %v11046, 16
      %v11331 = vrot.slane %v11329, 5
      %v11332 = vor.u32 %v11328, %v11331
      %v11333 = vrot.slane %v11332, 4
      %v11335 = vshll.u32 %v11047, 16
      %v11337 = vrot.slane %v11335, 5
      %v11338 = vsel %vm1613, %v11333, %v11337
      %v11339 = vshrl.u32 %v11047, 16
      %v11341 = vrot.slane %v11339, 4
      %v11342 = vor.u32 %v11341, %v11337
      %v11343 = vrot.slane %v11342, 4
      %v11345 = vshll.u32 %v11048, 16
      %v11347 = vrot.slane %v11345, 5
      %v11348 = vsel %vm1613, %v11343, %v11347
      %v11350 = vshrl.u32 %v11049, 16
      %v11352 = vrot.slane %v11350, 4
      %v11353 = vshll.u32 %v11049, 16
      %v11355 = vrot.slane %v11353, 5
      %v11356 = vor.u32 %v11352, %v11355
      %v11357 = vrot.slane %v11356, 4
      %v11359 = vshll.u32 %v11050, 16
      %v11361 = vrot.slane %v11359, 5
      %v11362 = vsel %vm1613, %v11357, %v11361
      %v11363 = vshrl.u32 %v11050, 16
      %v11365 = vrot.slane %v11363, 4
      %v11366 = vor.u32 %v11365, %v11361
      %v11367 = vrot.slane %v11366, 4
      %v11369 = vshll.u32 %v11051, 16
      %v11371 = vrot.slane %v11369, 5
      %v11372 = vsel %vm1613, %v11367, %v11371
      %v11374 = vshrl.u32 %v11052, 16
      %v11376 = vrot.slane %v11374, 4
      %v11377 = vshll.u32 %v11052, 16
      %v11379 = vrot.slane %v11377, 5
      %v11380 = vor.u32 %v11376, %v11379
      %v11381 = vrot.slane %v11380, 4
      %v11383 = vshll.u32 %v11053, 16
      %v11385 = vrot.slane %v11383, 5
      %v11386 = vsel %vm1613, %v11381, %v11385
      %v11387 = vshrl.u32 %v11053, 16
      %v11389 = vrot.slane %v11387, 4
      %v11390 = vor.u32 %v11389, %v11385
      %v11391 = vrot.slane %v11390, 4
      %v11393 = vshll.u32 %v11054, 16
      %v11395 = vrot.slane %v11393, 5
      %v11396 = vsel %vm1613, %v11391, %v11395
      %v11398 = vshrl.u32 %v11055, 16
      %v11400 = vrot.slane %v11398, 4
      %v11401 = vshll.u32 %v11055, 16
      %v11403 = vrot.slane %v11401, 5
      %v11404 = vor.u32 %v11400, %v11403
      %v11405 = vrot.slane %v11404, 4
      %v11407 = vshll.u32 %v11056, 16
      %v11409 = vrot.slane %v11407, 5
      %v11410 = vsel %vm1613, %v11405, %v11409
      %v11411 = vshrl.u32 %v11056, 16
      %v11413 = vrot.slane %v11411, 4
      %v11414 = vor.u32 %v11413, %v11409
      %v11415 = vrot.slane %v11414, 4
      %v11417 = vshll.u32 %v11057, 16
      %v11419 = vrot.slane %v11417, 5
      %v11420 = vsel %vm1613, %v11415, %v11419
      %v11422 = vshrl.u32 %v11058, 16
      %v11424 = vrot.slane %v11422, 4
      %v11425 = vshll.u32 %v11058, 16
      %v11427 = vrot.slane %v11425, 5
      %v11428 = vor.u32 %v11424, %v11427
      %v11429 = vrot.slane %v11428, 4
      %v11431 = vshll.u32 %v11059, 16
      %v11433 = vrot.slane %v11431, 5
      %v11434 = vsel %vm1613, %v11429, %v11433
      %v11435 = vshrl.u32 %v11059, 16
      %v11437 = vrot.slane %v11435, 4
      %v11438 = vor.u32 %v11437, %v11433
      %v11439 = vrot.slane %v11438, 4
      %v11441 = vshll.u32 %v11060, 16
      %v11443 = vrot.slane %v11441, 5
      %v11444 = vsel %vm1613, %v11439, %v11443
      %s11445 = scalar_lea.vmem %s3, 512
      %v11446 = vld [vmem:[%s11445] sm:$0xf]
      %v11447 = vld [vmem:[%s11445 + $0x4] sm:$0xf]
      %v11448 = vld [vmem:[%s11445 + $0x8] sm:$0xf]
      %v11449 = vld [vmem:[%s11445 + $0xc] sm:$0xf]
      %v11450 = vld [vmem:[%s11445 + $0x10] sm:$0xf]
      %v11451 = vld [vmem:[%s11445 + $0x14] sm:$0xf]
      %v11452 = vld [vmem:[%s11445 + $0x18] sm:$0xf]
      %v11453 = vld [vmem:[%s11445 + $0x1c] sm:$0xf]
      %v11454 = vld [vmem:[%s11445 + $0x20] sm:$0xf]
      %v11455 = vld [vmem:[%s11445 + $0x24] sm:$0xf]
      %v11456 = vld [vmem:[%s11445 + $0x28] sm:$0xf]
      %v11457 = vld [vmem:[%s11445 + $0x2c] sm:$0xf]
      %v11458 = vld [vmem:[%s11445 + $0x30] sm:$0xf]
      %v11459 = vld [vmem:[%s11445 + $0x34] sm:$0xf]
      %v11460 = vld [vmem:[%s11445 + $0x38] sm:$0xf]
      %v11461 = vld [vmem:[%s11445 + $0x3c] sm:$0xf]
      %v11462 = vunpack.c.l.b16 %v11074
      %v11463 = vunpack.c.l.b16 %v11084
      %v11464 = vunpack.c.l.b16 %v11098
      %v11465 = vunpack.c.l.b16 %v11108
      %v11466 = vunpack.c.l.b16 %v11122
      %v11467 = vunpack.c.l.b16 %v11132
      %v11468 = vunpack.c.l.b16 %v11146
      %v11469 = vunpack.c.l.b16 %v11156
      %v11470 = vunpack.c.l.b16 %v11170
      %v11471 = vunpack.c.l.b16 %v11180
      %v11472 = vunpack.c.l.b16 %v11194
      %v11473 = vunpack.c.l.b16 %v11204
      %v11474 = vunpack.c.l.b16 %v11218
      %v11475 = vunpack.c.l.b16 %v11228
      %v11476 = vunpack.c.l.b16 %v11242
      %v11477 = vunpack.c.l.b16 %v11252
      %v11478 = vunpack.c.l.b16 %v11266
      %v11479 = vunpack.c.l.b16 %v11276
      %v11480 = vunpack.c.l.b16 %v11290
      %v11481 = vunpack.c.l.b16 %v11300
      %v11482 = vunpack.c.l.b16 %v11314
      %v11483 = vunpack.c.l.b16 %v11324
      %v11484 = vunpack.c.l.b16 %v11338
      %v11485 = vunpack.c.l.b16 %v11348
      %v11486 = vunpack.c.l.b16 %v11362
      %v11487 = vunpack.c.l.b16 %v11372
      %v11488 = vunpack.c.l.b16 %v11386
      %v11489 = vunpack.c.l.b16 %v11396
      %v11490 = vunpack.c.l.b16 %v11410
      %v11491 = vunpack.c.l.b16 %v11420
      %v11492 = vunpack.c.l.b16 %v11434
      %v11493 = vunpack.c.l.b16 %v11444
      %v11494 = vpack.c.b16 %v11463, %v11462
      %v11495 = vpack.c.b16 %v11465, %v11464
      %v11496 = vpack.c.b16 %v11467, %v11466
      %v11497 = vpack.c.b16 %v11469, %v11468
      %v11498 = vpack.c.b16 %v11471, %v11470
      %v11499 = vpack.c.b16 %v11473, %v11472
      %v11500 = vpack.c.b16 %v11475, %v11474
      %v11501 = vpack.c.b16 %v11477, %v11476
      %v11502 = vpack.c.b16 %v11479, %v11478
      %v11503 = vpack.c.b16 %v11481, %v11480
      %v11504 = vpack.c.b16 %v11483, %v11482
      %v11505 = vpack.c.b16 %v11485, %v11484
      %v11506 = vpack.c.b16 %v11487, %v11486
      %v11507 = vpack.c.b16 %v11489, %v11488
      %v11508 = vpack.c.b16 %v11491, %v11490
      %v11509 = vpack.c.b16 %v11493, %v11492
      %v11542 = vunpack.c.l.b16 %v11446
      %v11543 = vunpack.c.l.b16 %v11447
      %v11544 = vunpack.c.l.b16 %v11448
      %v11545 = vunpack.c.l.b16 %v11449
      %v11546 = vunpack.c.l.b16 %v11450
      %v11547 = vunpack.c.l.b16 %v11451
      %v11548 = vunpack.c.l.b16 %v11452
      %v11549 = vunpack.c.l.b16 %v11453
      %v11550 = vunpack.c.l.b16 %v11454
      %v11551 = vunpack.c.l.b16 %v11455
      %v11552 = vunpack.c.l.b16 %v11456
      %v11553 = vunpack.c.l.b16 %v11457
      %v11554 = vunpack.c.l.b16 %v11458
      %v11555 = vunpack.c.l.b16 %v11459
      %v11556 = vunpack.c.l.b16 %v11460
      %v11557 = vunpack.c.l.b16 %v11461
      %v11558 = vpack.c.b16 %v11543, %v11542
      %v11559 = vpack.c.b16 %v11545, %v11544
      %v11560 = vpack.c.b16 %v11547, %v11546
      %v11561 = vpack.c.b16 %v11549, %v11548
      %v11562 = vpack.c.b16 %v11551, %v11550
      %v11563 = vpack.c.b16 %v11553, %v11552
      %v11564 = vpack.c.b16 %v11555, %v11554
      %v11565 = vpack.c.b16 %v11557, %v11556
      %11574 = vmatprep.subr.bf16.mxu0 0
      %11575 = vmatpush1.bf16.msra.mxu0 %v11558
      %11576 = vmatprep.subr.bf16.mxu0 0
      %11577 = vmatpush1.bf16.msra.mxu0 %v11559
      %11578 = vmatprep.subr.bf16.mxu0 0
      %11579 = vmatpush1.bf16.msra.mxu0 %v11560
      %11580 = vmatprep.subr.bf16.mxu0 0
      %11581 = vmatpush1.bf16.msra.mxu0 %v11561
      %11582 = vmatprep.subr.bf16.mxu0 0
      %11583 = vmatpush1.bf16.msra.mxu0 %v11562
      %11584 = vmatprep.subr.bf16.mxu0 0
      %11585 = vmatpush1.bf16.msra.mxu0 %v11563
      %11586 = vmatprep.subr.bf16.mxu0 0
      %11587 = vmatpush1.bf16.msra.mxu0 %v11564
      %11588 = vmatprep.subr.bf16.mxu0 0
      %11589 = vmatpush1.bf16.msra.mxu0 %v11565
      %11590 = vmatprep.subr.bf16.mxu0 0
      %11591 = vmatpush1.bf16.msra.mxu0 0
      %11592 = vmatprep.subr.bf16.mxu0 0
      %11593 = vmatpush1.bf16.msra.mxu0 0
      %11594 = vmatprep.subr.bf16.mxu0 0
      %11595 = vmatpush1.bf16.msra.mxu0 0
      %11596 = vmatprep.subr.bf16.mxu0 0
      %11597 = vmatpush1.bf16.msra.mxu0 0
      %11598 = vmatprep.subr.bf16.mxu0 0
      %11599 = vmatpush1.bf16.msra.mxu0 0
      %11600 = vmatprep.subr.bf16.mxu0 0
      %11601 = vmatpush1.bf16.msra.mxu0 0
      %11602 = vmatprep.subr.bf16.mxu0 0
      %11603 = vmatpush1.bf16.msra.mxu0 0
      %11604 = vmatprep.subr.bf16.mxu0 0
      %11605 = vmatpush1.bf16.msra.mxu0 0
      %11606 = vmatprep.mubr.bf16.mxu0 0
      %11607 = vmatmul.mubr.bf16.gmra.mrb[0].mxu0 %v11494
      %v11608 = vpop.f32.mrb[0].mxu0
      %v11609 = vadd.f32 0.0, %v11608
      %v11610 = vpop.f32.mrb[0].mxu0
      %v11611 = vpop.f32.mrb[0].mxu0
      %v11612 = vadd.f32 0.0, %v11611
      %v11613 = vpop.f32.mrb[0].mxu0
      %11614 = vmatprep.mubr.bf16.mxu0 0
      %11615 = vmatmul.mubr.bf16.gmra.mrb[0].mxu0 %v11495
      %v11616 = vpop.f32.mrb[0].mxu0
      %v11617 = vadd.f32 0.0, %v11616
      %v11618 = vpop.f32.mrb[0].mxu0
      %v11619 = vpop.f32.mrb[0].mxu0
      %v11620 = vadd.f32 0.0, %v11619
      %v11621 = vpop.f32.mrb[0].mxu0
      %11622 = vmatprep.mubr.bf16.mxu0 0
      %11623 = vmatmul.mubr.bf16.gmra.mrb[0].mxu0 %v11496
      %v11624 = vpop.f32.mrb[0].mxu0
      %v11625 = vadd.f32 0.0, %v11624
      %v11626 = vpop.f32.mrb[0].mxu0
      %v11627 = vpop.f32.mrb[0].mxu0
      %v11628 = vadd.f32 0.0, %v11627
      %v11629 = vpop.f32.mrb[0].mxu0
      %11630 = vmatprep.mubr.bf16.mxu0 0
      %11631 = vmatmul.mubr.bf16.gmra.mrb[0].mxu0 %v11497
      %v11632 = vpop.f32.mrb[0].mxu0
      %v11633 = vadd.f32 0.0, %v11632
      %v11634 = vpop.f32.mrb[0].mxu0
      %v11635 = vpop.f32.mrb[0].mxu0
      %v11636 = vadd.f32 0.0, %v11635
      %v11637 = vpop.f32.mrb[0].mxu0
      %11638 = vmatprep.mubr.bf16.mxu0 0
      %11639 = vmatmul.mubr.bf16.gmra.mrb[0].mxu0 %v11498
      %v11640 = vpop.f32.mrb[0].mxu0
      %v11641 = vadd.f32 0.0, %v11640
      %v11642 = vpop.f32.mrb[0].mxu0
      %v11643 = vpop.f32.mrb[0].mxu0
      %v11644 = vadd.f32 0.0, %v11643
      %v11645 = vpop.f32.mrb[0].mxu0
      %11646 = vmatprep.mubr.bf16.mxu0 0
      %11647 = vmatmul.mubr.bf16.gmra.mrb[0].mxu0 %v11499
      %v11648 = vpop.f32.mrb[0].mxu0
      %v11649 = vadd.f32 0.0, %v11648
      %v11650 = vpop.f32.mrb[0].mxu0
      %v11651 = vpop.f32.mrb[0].mxu0
      %v11652 = vadd.f32 0.0, %v11651
      %v11653 = vpop.f32.mrb[0].mxu0
      %11654 = vmatprep.mubr.bf16.mxu0 0
      %11655 = vmatmul.mubr.bf16.gmra.mrb[0].mxu0 %v11500
      %v11656 = vpop.f32.mrb[0].mxu0
      %v11657 = vadd.f32 0.0, %v11656
      %v11658 = vpop.f32.mrb[0].mxu0
      %v11659 = vpop.f32.mrb[0].mxu0
      %v11660 = vadd.f32 0.0, %v11659
      %v11661 = vpop.f32.mrb[0].mxu0
      %11662 = vmatprep.mubr.bf16.mxu0 0
      %11663 = vmatmul.mubr.bf16.gmra.mrb[0].mxu0 %v11501
      %v11664 = vpop.f32.mrb[0].mxu0
      %v11665 = vadd.f32 0.0, %v11664
      %v11666 = vpop.f32.mrb[0].mxu0
      %v11667 = vpop.f32.mrb[0].mxu0
      %v11668 = vadd.f32 0.0, %v11667
      %v11669 = vpop.f32.mrb[0].mxu0
      %11670 = vmatprep.mubr.bf16.mxu0 0
      %11671 = vmatmul.mubr.bf16.gmra.mrb[0].mxu0 %v11502
      %v11672 = vpop.f32.mrb[0].mxu0
      %v11673 = vadd.f32 0.0, %v11672
      %v11674 = vpop.f32.mrb[0].mxu0
      %v11675 = vpop.f32.mrb[0].mxu0
      %v11676 = vadd.f32 0.0, %v11675
      %v11677 = vpop.f32.mrb[0].mxu0
      %11678 = vmatprep.mubr.bf16.mxu0 0
      %11679 = vmatmul.mubr.bf16.gmra.mrb[0].mxu0 %v11503
      %v11680 = vpop.f32.mrb[0].mxu0
      %v11681 = vadd.f32 0.0, %v11680
      %v11682 = vpop.f32.mrb[0].mxu0
      %v11683 = vpop.f32.mrb[0].mxu0
      %v11684 = vadd.f32 0.0, %v11683
      %v11685 = vpop.f32.mrb[0].mxu0
      %11686 = vmatprep.mubr.bf16.mxu0 0
      %11687 = vmatmul.mubr.bf16.gmra.mrb[0].mxu0 %v11504
      %v11688 = vpop.f32.mrb[0].mxu0
      %v11689 = vadd.f32 0.0, %v11688
      %v11690 = vpop.f32.mrb[0].mxu0
      %v11691 = vpop.f32.mrb[0].mxu0
      %v11692 = vadd.f32 0.0, %v11691
      %v11693 = vpop.f32.mrb[0].mxu0
      %11694 = vmatprep.mubr.bf16.mxu0 0
      %11695 = vmatmul.mubr.bf16.gmra.mrb[0].mxu0 %v11505
      %v11696 = vpop.f32.mrb[0].mxu0
      %v11697 = vadd.f32 0.0, %v11696
      %v11698 = vpop.f32.mrb[0].mxu0
      %v11699 = vpop.f32.mrb[0].mxu0
      %v11700 = vadd.f32 0.0, %v11699
      %v11701 = vpop.f32.mrb[0].mxu0
      %11702 = vmatprep.mubr.bf16.mxu0 0
      %11703 = vmatmul.mubr.bf16.gmra.mrb[0].mxu0 %v11506
      %v11704 = vpop.f32.mrb[0].mxu0
      %v11705 = vadd.f32 0.0, %v11704
      %v11706 = vpop.f32.mrb[0].mxu0
      %v11707 = vpop.f32.mrb[0].mxu0
      %v11708 = vadd.f32 0.0, %v11707
      %v11709 = vpop.f32.mrb[0].mxu0
      %11710 = vmatprep.mubr.bf16.mxu0 0
      %11711 = vmatmul.mubr.bf16.gmra.mrb[0].mxu0 %v11507
      %v11712 = vpop.f32.mrb[0].mxu0
      %v11713 = vadd.f32 0.0, %v11712
      %v11714 = vpop.f32.mrb[0].mxu0
      %v11715 = vpop.f32.mrb[0].mxu0
      %v11716 = vadd.f32 0.0, %v11715
      %v11717 = vpop.f32.mrb[0].mxu0
      %11718 = vmatprep.mubr.bf16.mxu0 0
      %11719 = vmatmul.mubr.bf16.gmra.mrb[0].mxu0 %v11508
      %v11720 = vpop.f32.mrb[0].mxu0
      %v11721 = vadd.f32 0.0, %v11720
      %v11722 = vpop.f32.mrb[0].mxu0
      %v11723 = vpop.f32.mrb[0].mxu0
      %v11724 = vadd.f32 0.0, %v11723
      %v11725 = vpop.f32.mrb[0].mxu0
      %11726 = vmatprep.mubr.bf16.mxu0 0
      %11727 = vmatmul.mubr.bf16.gmra.mrb[0].mxu0 %v11509
      %v11728 = vpop.f32.mrb[0].mxu0
      %v11729 = vadd.f32 0.0, %v11728
      %v11730 = vpop.f32.mrb[0].mxu0
      %v11731 = vpop.f32.mrb[0].mxu0
      %v11732 = vadd.f32 0.0, %v11731
      %v11733 = vpop.f32.mrb[0].mxu0
      %11734 = vdwg.mxu0
      %v11735 = vadd.f32 %v10981, %v11609
      %v11736 = vadd.f32 %v10982, %v11612
      %v11737 = vadd.f32 %v10983, %v11617
      %v11738 = vadd.f32 %v10984, %v11620
      %v11739 = vadd.f32 %v10985, %v11625
      %v11740 = vadd.f32 %v10986, %v11628
      %v11741 = vadd.f32 %v10987, %v11633
      %v11742 = vadd.f32 %v10988, %v11636
      %v11743 = vadd.f32 %v10989, %v11641
      %v11744 = vadd.f32 %v10990, %v11644
      %v11745 = vadd.f32 %v10991, %v11649
      %v11746 = vadd.f32 %v10992, %v11652
      %v11747 = vadd.f32 %v10993, %v11657
      %v11748 = vadd.f32 %v10994, %v11660
      %v11749 = vadd.f32 %v10995, %v11665
      %v11750 = vadd.f32 %v10996, %v11668
      %v11751 = vadd.f32 %v10997, %v11673
      %v11752 = vadd.f32 %v10998, %v11676
      %v11753 = vadd.f32 %v10999, %v11681
      %v11754 = vadd.f32 %v11000, %v11684
      %v11755 = vadd.f32 %v11001, %v11689
      %v11756 = vadd.f32 %v11002, %v11692
      %v11757 = vadd.f32 %v11003, %v11697
      %v11758 = vadd.f32 %v11004, %v11700
      %v11759 = vadd.f32 %v11005, %v11705
      %v11760 = vadd.f32 %v11006, %v11708
      %v11761 = vadd.f32 %v11007, %v11713
      %v11762 = vadd.f32 %v11008, %v11716
      %v11763 = vadd.f32 %v11009, %v11721
      %v11764 = vadd.f32 %v11010, %v11724
      %v11765 = vadd.f32 %v11011, %v11729
      %v11766 = vadd.f32 %v11012, %v11732
      %v11767 = vld [vmem:[%s4] sm:$0x1]
      %v11769 = vlaneseq
      %v11770 = vshrl.u32 %v11769, 7
      %v11771 = vsub.s32 0, %v11770
      %v11772 = vrot.slane %v11767, %v11771
      %v11774 = vadd.f32 %v11735, %v11772
      %v11775 = vadd.f32 %v11736, %v11772
      %v11776 = vadd.f32 %v11737, %v11772
      %v11777 = vadd.f32 %v11738, %v11772
      %v11778 = vadd.f32 %v11739, %v11772
      %v11779 = vadd.f32 %v11740, %v11772
      %v11780 = vadd.f32 %v11741, %v11772
      %v11781 = vadd.f32 %v11742, %v11772
      %v11782 = vadd.f32 %v11743, %v11772
      %v11783 = vadd.f32 %v11744, %v11772
      %v11784 = vadd.f32 %v11745, %v11772
      %v11785 = vadd.f32 %v11746, %v11772
      %v11786 = vadd.f32 %v11747, %v11772
      %v11787 = vadd.f32 %v11748, %v11772
      %v11788 = vadd.f32 %v11749, %v11772
      %v11789 = vadd.f32 %v11750, %v11772
      %v11790 = vadd.f32 %v11751, %v11772
      %v11791 = vadd.f32 %v11752, %v11772
      %v11792 = vadd.f32 %v11753, %v11772
      %v11793 = vadd.f32 %v11754, %v11772
      %v11794 = vadd.f32 %v11755, %v11772
      %v11795 = vadd.f32 %v11756, %v11772
      %v11796 = vadd.f32 %v11757, %v11772
      %v11797 = vadd.f32 %v11758, %v11772
      %v11798 = vadd.f32 %v11759, %v11772
      %v11799 = vadd.f32 %v11760, %v11772
      %v11800 = vadd.f32 %v11761, %v11772
      %v11801 = vadd.f32 %v11762, %v11772
      %v11802 = vadd.f32 %v11763, %v11772
      %v11803 = vadd.f32 %v11764, %v11772
      %v11804 = vadd.f32 %v11765, %v11772
      %v11805 = vadd.f32 %v11766, %v11772
      %v11806 = vmax.f32 %v11774, 0.0
      %v11807 = vmax.f32 %v11775, 0.0
      %v11808 = vmax.f32 %v11776, 0.0
      %v11809 = vmax.f32 %v11777, 0.0
      %v11810 = vmax.f32 %v11778, 0.0
      %v11811 = vmax.f32 %v11779, 0.0
      %v11812 = vmax.f32 %v11780, 0.0
      %v11813 = vmax.f32 %v11781, 0.0
      %v11814 = vmax.f32 %v11782, 0.0
      %v11815 = vmax.f32 %v11783, 0.0
      %v11816 = vmax.f32 %v11784, 0.0
      %v11817 = vmax.f32 %v11785, 0.0
      %v11818 = vmax.f32 %v11786, 0.0
      %v11819 = vmax.f32 %v11787, 0.0
      %v11820 = vmax.f32 %v11788, 0.0
      %v11821 = vmax.f32 %v11789, 0.0
      %v11822 = vmax.f32 %v11790, 0.0
      %v11823 = vmax.f32 %v11791, 0.0
      %v11824 = vmax.f32 %v11792, 0.0
      %v11825 = vmax.f32 %v11793, 0.0
      %v11826 = vmax.f32 %v11794, 0.0
      %v11827 = vmax.f32 %v11795, 0.0
      %v11828 = vmax.f32 %v11796, 0.0
      %v11829 = vmax.f32 %v11797, 0.0
      %v11830 = vmax.f32 %v11798, 0.0
      %v11831 = vmax.f32 %v11799, 0.0
      %v11832 = vmax.f32 %v11800, 0.0
      %v11833 = vmax.f32 %v11801, 0.0
      %v11834 = vmax.f32 %v11802, 0.0
      %v11835 = vmax.f32 %v11803, 0.0
      %v11836 = vmax.f32 %v11804, 0.0
      %v11837 = vmax.f32 %v11805, 0.0
      %11838 = vst [vmem:[%s224] sm:$0xff] %v11806
      %11839 = vst [vmem:[%s224 + $0x8] sm:$0xff] %v11807
      %11840 = vst [vmem:[%s224 + $0x10] sm:$0xff] %v11808
      %11841 = vst [vmem:[%s224 + $0x18] sm:$0xff] %v11809
      %11842 = vst [vmem:[%s224 + $0x20] sm:$0xff] %v11810
      %11843 = vst [vmem:[%s224 + $0x28] sm:$0xff] %v11811
      %11844 = vst [vmem:[%s224 + $0x30] sm:$0xff] %v11812
      %11845 = vst [vmem:[%s224 + $0x38] sm:$0xff] %v11813
      %11846 = vst [vmem:[%s224 + $0x40] sm:$0xff] %v11814
      %11847 = vst [vmem:[%s224 + $0x48] sm:$0xff] %v11815
      %11848 = vst [vmem:[%s224 + $0x50] sm:$0xff] %v11816
      %11849 = vst [vmem:[%s224 + $0x58] sm:$0xff] %v11817
      %11850 = vst [vmem:[%s224 + $0x60] sm:$0xff] %v11818
      %11851 = vst [vmem:[%s224 + $0x68] sm:$0xff] %v11819
      %11852 = vst [vmem:[%s224 + $0x70] sm:$0xff] %v11820
      %11853 = vst [vmem:[%s224 + $0x78] sm:$0xff] %v11821
      %11854 = vst [vmem:[%s224 + $0x80] sm:$0xff] %v11822
      %11855 = vst [vmem:[%s224 + $0x88] sm:$0xff] %v11823
      %11856 = vst [vmem:[%s224 + $0x90] sm:$0xff] %v11824
      %11857 = vst [vmem:[%s224 + $0x98] sm:$0xff] %v11825
      %11858 = vst [vmem:[%s224 + $0xa0] sm:$0xff] %v11826
      %11859 = vst [vmem:[%s224 + $0xa8] sm:$0xff] %v11827
      %11860 = vst [vmem:[%s224 + $0xb0] sm:$0xff] %v11828
      %11861 = vst [vmem:[%s224 + $0xb8] sm:$0xff] %v11829
      %11862 = vst [vmem:[%s224 + $0xc0] sm:$0xff] %v11830
      %11863 = vst [vmem:[%s224 + $0xc8] sm:$0xff] %v11831
      %11864 = vst [vmem:[%s224 + $0xd0] sm:$0xff] %v11832
      %11865 = vst [vmem:[%s224 + $0xd8] sm:$0xff] %v11833
      %11866 = vst [vmem:[%s224 + $0xe0] sm:$0xff] %v11834
      %11867 = vst [vmem:[%s224 + $0xe8] sm:$0xff] %v11835
      %11868 = vst [vmem:[%s224 + $0xf0] sm:$0xff] %v11836
      %11869 = vst [vmem:[%s224 + $0xf8] sm:$0xff] %v11837
      %p11870 = scmp.lt.s32.totalorder %s16, 1
      %s11871 = scalar_select %p11870, %s16, 1
      %s11872 = smul.addr %s11871, 32
      %s11873 = smul.addr %s11872, 8
      %s11874 = scalar_lea.vmem %s5, %s11873
      // Predicated region
      $region41: #{block3d_forward.1} parent=39 // pred_check
        %p11875 = pneg %p144
      $region42: #{block3d_forward.1} parent=39 // pred_check_branch
        %11877 = sbr.rel (%p11875) target = $region44
      $region43: #{block3d_forward.1} parent=39 // pred_region
        _
      $region44: #{block3d_forward.1} parent=39 // pred_fallthru
        _
    $region40: #{block3d_forward.1} parent=5 // pred_fallthru
      _
    %p11878 = scmp.le.s32.totalorder 2, %s11
    // Predicated region
    $region45: #{block3d_forward.1} parent=5 // pred_check
      %p11879 = pneg %p11878
    $region46: #{block3d_forward.1} parent=5 // pred_check_branch
      %11881 = sbr.rel (%p11879) target = $region48
    $region47: #{block3d_forward.1} parent=5 // pred_region
      %s11882 = ssub.s32 %s11, 2
      // Predicated region
      $region49: #{block3d_forward.1} parent=47 // pred_check
        %p11883 = pneg %p150
      $region50: #{block3d_forward.1} parent=47 // pred_check_branch
        %11885 = sbr.rel (%p11883) target = $region52
      $region51: #{block3d_forward.1} parent=47 // pred_region
        %p11886 = scmp.lt.s32.totalorder %s17, 1
        %s11887 = scalar_select %p11886, %s17, 1
        %s11888 = smul.addr %s11887, 32
        %s11889 = smul.addr %s11888, 8
        %s11890 = scalar_lea.vmem %s5, %s11889
      $region52: #{block3d_forward.1} parent=47 // pred_fallthru
        _
    $region48: #{block3d_forward.1} parent=5 // pred_fallthru
      _
  $region6: #{block3d_forward.1} parent=0 // loop_footer
    %s15 = sadd.s32 1, %s11
  $region7: #{block3d_forward.1} parent=0 // loop_footer_branch
    %10 = sbr.rel target = $region3
  $region8: #{block3d_forward.1} parent=0 // loop_exit
    _

</llo_original>
